<compile_context>
chip_gen: v6e
topology: v6e:2x2x1
jax: 0.10.0
libtpu: 0.0.40
codegen_flags: <defaults>
</compile_context>

<pallas_src>
import functools

import numpy as np
import jax
import jax.numpy as jnp
from jax import lax
from jax.experimental import pallas as pl
from jax.experimental.pallas import tpu as pltpu


# ---------------------------------------------------------------------------
# Host-side (cached) construction of the binary shift-sum matrix T.
# ---------------------------------------------------------------------------
@functools.lru_cache(maxsize=None)
def _build_shift_matrix(C, H, W, run_lengths):
    """Binary (C*H*W, n_feat*C*H*W) matrix, columns in module channel order.

    Column block f=0 is the identity (raw board channels); each later block f
    is one run-of-length-l detector (conv2d 'same' zero padding folded in by
    dropping out-of-board taps), expanded per-channel via kron(eye(C), .).
    """
    HW = H * W
    per_hw = [np.eye(HW, dtype=np.float32)]            # feature 0: identity
    for l in run_lengths:
        p = (l - 1) // 2
        tap_sets = (
            [(0, a - p) for a in range(l)],                # horizontal
            [(a - p, 0) for a in range(l)],                # vertical
            [(a - p, a - p) for a in range(l)],            # diagonal
            [(a - p, (l - 1 - a) - p) for a in range(l)],  # anti-diagonal
        )
        for taps in tap_sets:
            T = np.zeros((HW, HW), dtype=np.float32)
            for dy, dx in taps:
                for i in range(H):
                    si = i + dy
                    if not 0 <= si < H:
                        continue
                    for j in range(W):
                        sj = j + dx
                        if 0 <= sj < W:
                            T[si * W + sj, i * W + j] += 1.0
            per_hw.append(T)
    eye_c = np.eye(C, dtype=np.float32)
    # Per-channel filters => block-diagonal expansion over channels; column
    # order inside each feature block is (channel-major, spatial-minor), which
    # is exactly the module's concat order once features are laid out major.
    blocks = [np.kron(eye_c, t) for t in per_hw]
    return np.concatenate(blocks, axis=1)              # (C*HW, n_feat*C*HW)


# ---------------------------------------------------------------------------
# Pallas kernel: one MXU matmul per batch block.
# ---------------------------------------------------------------------------
def _c4_kernel(x_ref, t_ref, o_ref):
    # (rows, C*HW) @ (C*HW, n_feat*C*HW): f32 accumulation, single coalesced
    # store.  HIGHEST precision keeps the binary-matrix matmul (including the
    # identity pass-through block) exact for arbitrary f32 boards.
    o_ref[...] = jnp.dot(
        x_ref[...], t_ref[...],
        precision=lax.Precision.HIGHEST,
        preferred_element_type=jnp.float32,
    ).astype(o_ref.dtype)


def _pick_batch_block(N):
    """Rows (= batch elements) per grid step.

    Small/typical batches run as a single grid step: v5e/v6e have one
    TensorCore (multi-step grid = serial loop + per-step overhead) and on v7x
    a sub-microsecond step is too small to amortize splitting across cores.
    Only very large batches are split, into sublane-aligned, VMEM-safe blocks.
    NOTE: the final fallback (return N) may not be a multiple of 8; it is legal
    only because the block then spans the full first dim of the array
    (full-array BlockSpec exemption from the x8 sublane rule).
    """
    ROWS_CAP = 512   # double-buffered in+out (+T) stays < 16 MiB scoped VMEM
    if N <= ROWS_CAP:
        return N
    divisors = [nb for nb in range(8, ROWS_CAP + 1, 8) if N % nb == 0]
    return max(divisors) if divisors else N


@functools.partial(jax.jit, static_argnums=(1,))
def connect_four_features(x, run_lengths):
    N, C, H, W = x.shape
    for l in run_lengths:
        # Even run lengths shrink spatial dims in the torch module and its
        # torch.concat would fail; only odd lengths are valid.
        assert l % 2 == 1, "run lengths must be odd for 'same'-size features"

    HW = H * W
    K = C * HW                                   # contraction dim
    n_feat = 1 + 4 * len(run_lengths)
    out_w = n_feat * K                           # output columns (module order)

    # Baked device constant under jit; numpy build cached across calls.
    T = jnp.asarray(_build_shift_matrix(C, H, W, tuple(run_lengths)),
                    dtype=x.dtype)

    NB = _pick_batch_block(N)
    grid = (N // NB,) if N % NB == 0 else (pl.cdiv(N, NB),)

    x_flat = x.reshape(N, K)                     # contiguous (free) reshape
    out_flat = pl.pallas_call(
        _c4_kernel,
        out_shape=jax.ShapeDtypeStruct((N, out_w), x.dtype),
        grid_spec=pltpu.PrefetchScalarGridSpec(
            num_scalar_prefetch=0,
            grid=grid,
            in_specs=[
                pl.BlockSpec((NB, K), lambda i: (i, 0)),
                pl.BlockSpec((K, out_w), lambda i: (0, 0)),
            ],
            out_specs=pl.BlockSpec((NB, out_w), lambda i: (i, 0)),
        ),
        compiler_params=pltpu.CompilerParams(
            dimension_semantics=("parallel",)),
    )(x_flat, T)

    # Columns are already (feature-major, channel, spatial) == module channel
    # order, so this reshape is free (no transpose, no slice).
    return out_flat.reshape(N, n_feat * C, H, W)


# ---------------------------------------------------------------------------
# Pure-JAX reference replicating the PyTorch forward (conv2d + concat).
# ---------------------------------------------------------------------------
def get_winning_filters(run_length, channels=3):
    l = run_length
    cid = jnp.eye(channels, dtype=jnp.float32)[:, :, None, None]     # (C,C,1,1)
    horiz = cid * jnp.ones((1, 1, 1, l), jnp.float32)
    vert = cid * jnp.ones((1, 1, l, 1), jnp.float32)
    diag = cid * jnp.eye(l, dtype=jnp.float32)[None, None]
    adiag = cid * jnp.fliplr(jnp.eye(l, dtype=jnp.float32))[None, None]
    return [horiz, vert, diag, adiag]


def reference(x, run_lengths):
    stacks = [x]
    for l in run_lengths:
        for f in get_winning_filters(l, x.shape[1]):
            kh, kw = f.shape[2], f.shape[3]
            pad = [((kh - 1) // 2,) * 2, ((kw - 1) // 2,) * 2]
            w = lax.conv_general_dilated(
                x, f, window_strides=(1, 1), padding=pad,
                dimension_numbers=("NCHW", "OIHW", "NCHW"),
                precision=lax.Precision.HIGHEST)
            stacks.append(w)
    return jnp.concatenate(stacks, axis=1)


if __name__ == "__main__":
    run_lengths = (3, 5)                       # ConnectFourFeatures(3, 5)
    N, C, H, W = 16, 3, 8, 8                   # C=3 is fixed by the module
    x = jax.random.normal(jax.random.PRNGKey(0), (N, C, H, W), jnp.float32)

    out = connect_four_features(x, run_lengths)
    jax.block_until_ready(out)

    ref = reference(x, run_lengths)
    assert out.shape == (N, C + 4 * C * len(run_lengths), H, W)
    np.testing.assert_allclose(np.asarray(out), np.asarray(ref),
                               rtol=1e-5, atol=1e-5)
    print("KERNEL_OK")
</pallas_src>

<mosaic_0001>
module attributes {stable_mosaic.version = 11 : i64} {
  func.func @_c4_kernel(%arg0: i32, %arg1: memref<16x192xf32, #tpu.memory_space<vmem>>, %arg2: memref<192x1728xf32, #tpu.memory_space<vmem>>, %arg3: memref<16x1728xf32, #tpu.memory_space<vmem>>) attributes {dimension_semantics = [#tpu.dimension_semantics<parallel>], iteration_bounds = array<i64: 1>, scalar_prefetch = 0 : i64, scratch_operands = 0 : i64, tpu.core_type = #tpu.core_type<tc>, window_params = [{transform_indices = @transform_0, window_bounds = array<i64: 16, 192>}, {pipeline_mode = #tpu.pipeline_mode<synchronous>, transform_indices = @transform_1, window_bounds = array<i64: 192, 1728>}, {transform_indices = @transform_2, window_bounds = array<i64: 16, 1728>}]} {
    %c0 = arith.constant 0 : index
    %c0_0 = arith.constant 0 : index
    %0 = vector.load %arg1[%c0, %c0_0] : memref<16x192xf32, #tpu.memory_space<vmem>>, vector<16x192xf32>
    %c0_1 = arith.constant 0 : index
    %c0_2 = arith.constant 0 : index
    %1 = vector.load %arg2[%c0_1, %c0_2] : memref<192x1728xf32, #tpu.memory_space<vmem>>, vector<192x1728xf32>
    %cst = arith.constant dense<0.000000e+00> : vector<16x1728xf32>
    %2 = tpu.matmul %0, %1, %cst {dimension_numbers = #tpu.dot_dimension_numbers<[1], [0], [0], [1], [0, 0, 1, 1], [], []>, precision = #tpu.contract_precision<fp32>} : vector<16x192xf32>, vector<192x1728xf32>, vector<16x1728xf32> -> vector<16x1728xf32>
    %c0_3 = arith.constant 0 : index
    %c0_4 = arith.constant 0 : index
    %3 = vector.load %arg3[%c0_3, %c0_4] : memref<16x1728xf32, #tpu.memory_space<vmem>>, vector<16x1728xf32>
    tpu.vector_store %arg3[%c0_3, %c0_4], %2 {strides = array<i32>} : memref<16x1728xf32, #tpu.memory_space<vmem>>, vector<16x1728xf32>,
    return
  }
  func.func @transform_0(%arg0: i32) -> (i32, i32) {
    %c0_i32 = arith.constant 0 : i32
    %c0_i32_0 = arith.constant 0 : i32
    return %arg0, %c0_i32 : i32, i32
  }
  func.func @transform_1(%arg0: i32) -> (i32, i32) {
    %c0_i32 = arith.constant 0 : i32
    %c0_i32_0 = arith.constant 0 : i32
    %c0_i32_1 = arith.constant 0 : i32
    return %c0_i32, %c0_i32_0 : i32, i32
  }
  func.func @transform_2(%arg0: i32) -> (i32, i32) {
    %c0_i32 = arith.constant 0 : i32
    %c0_i32_0 = arith.constant 0 : i32
    return %arg0, %c0_i32 : i32, i32
  }
}

</mosaic_0001>

<llo_original>
// kernel: connect_four_features.1
$region0: #{connect_four_features.1}
  #allocation0 [shape = 'u32[]', space=smem, size = 0x4, offset = 0x4, fixed_abs, tag = 'smem constant byte address 0x4 - core index']
  #allocation1 [shape = 'u32[144,128]{1,0:T(1,128)}', space=vmem, size = 0x12000, scoped, tag = 'internal scratch']
  %s0 = inlined_call_operand.vmem [shape: f32[16,192], index: 0, kind: input, shape index: {}]
  %s1 = inlined_call_operand.hbm [shape: f32[192,1728], index: 1, kind: input, shape index: {}]
  %s2 = inlined_call_operand.vmem [shape: f32[16,1728], index: 2, kind: output, shape index: {}]
  %s3 = sld [smem:[#allocation0]]
  $region22: #{connect_four_features.1} parent=0
    _
  %s5 = ssub.s32 1, %s3
  %s6 = scalar_select 0, %s5, %s3
  $region1: #{connect_four_features.1} parent=0
    #allocation2 [shape = 'u8[1376256]{0}', space=vmem, size = 0x150000, scoped, tag = 'input window, operand 1, single buffered']
    #allocation3 [shape = 's32[1]{0}', space=sflag, size = 0x4, scoped, tag = 'scoped memory for connect_four_features.1']
    %7 = vsyncpa [#allocation3], 0
    // Predicated region
    $region2: #{connect_four_features.1} parent=1 // pred_check
      _
    $region3: #{connect_four_features.1} parent=1 // pred_check_branch
      %9 = sbr.rel (0) target = $region5
    $region4: #{connect_four_features.1} parent=1 // pred_region
      _
    $region5: #{connect_four_features.1} parent=1 // pred_fallthru
      _
    // Predicated region
    $region6: #{connect_four_features.1} parent=1 // pred_check
      _
    $region7: #{connect_four_features.1} parent=1 // pred_check_branch
      %11 = sbr.rel (0) target = $region9
    $region8: #{connect_four_features.1} parent=1 // pred_region
      %s13 = ssub.s32 43008, 43008
      %14 = vsyncadd [#allocation3], %s13
      %s15 = sshll.u32 [#allocation2], 4
      %s16 = int_to_ptr.vmem [resolvable:$true] %s15
      %21 = dma.hbm_to_vmem [thread:$0]  %s1, 43008, %s16, [#allocation3], 1792, 1792, 112
    $region9: #{connect_four_features.1} parent=1 // pred_fallthru
      _
    // Predicated region
    $region10: #{connect_four_features.1} parent=1 // pred_check
      _
    $region11: #{connect_four_features.1} parent=1 // pred_check_branch
      %23 = sbr.rel (0) target = $region13
    $region12: #{connect_four_features.1} parent=1 // pred_region
      %24 = dma.done [#allocation3], 43008
    $region13: #{connect_four_features.1} parent=1 // pred_fallthru
      _
    %v25 = vld [vmem:[%s0] sm:$0xff]
    %v26 = vld [vmem:[%s0 + $0x8] sm:$0xff]
    %v27 = vld [vmem:[%s0 + $0x10] sm:$0xff]
    %v28 = vld [vmem:[%s0 + $0x18] sm:$0xff]
    %v29 = vld [vmem:[#allocation2] sm:$0xff]
    %v30 = vld [vmem:[#allocation2 + $0x8] sm:$0xff]
    %v31 = vld [vmem:[#allocation2 + $0x10] sm:$0xff]
    %v32 = vld [vmem:[#allocation2 + $0x18] sm:$0xff]
    %v33 = vld [vmem:[#allocation2 + $0x20] sm:$0xff]
    %v34 = vld [vmem:[#allocation2 + $0x28] sm:$0xff]
    %v35 = vld [vmem:[#allocation2 + $0x30] sm:$0xff]
    %v36 = vld [vmem:[#allocation2 + $0x38] sm:$0xff]
    %v37 = vld [vmem:[#allocation2 + $0x40] sm:$0xff]
    %v38 = vld [vmem:[#allocation2 + $0x48] sm:$0xff]
    %v39 = vld [vmem:[#allocation2 + $0x50] sm:$0xff]
    %v40 = vld [vmem:[#allocation2 + $0x58] sm:$0xff]
    %v41 = vld [vmem:[#allocation2 + $0x60] sm:$0xff]
    %v42 = vld [vmem:[#allocation2 + $0x68] sm:$0xff]
    %v43 = vld [vmem:[#allocation2 + $0x70] sm:$0xff]
    %v44 = vld [vmem:[#allocation2 + $0x78] sm:$0xff]
    %v45 = vld [vmem:[#allocation2 + $0x80] sm:$0xff]
    %v46 = vld [vmem:[#allocation2 + $0x88] sm:$0xff]
    %v47 = vld [vmem:[#allocation2 + $0x90] sm:$0xff]
    %v48 = vld [vmem:[#allocation2 + $0x98] sm:$0xff]
    %v49 = vld [vmem:[#allocation2 + $0xa0] sm:$0xff]
    %v50 = vld [vmem:[#allocation2 + $0xa8] sm:$0xff]
    %v51 = vld [vmem:[#allocation2 + $0xb0] sm:$0xff]
    %v52 = vld [vmem:[#allocation2 + $0xb8] sm:$0xff]
    %v53 = vld [vmem:[#allocation2 + $0xc0] sm:$0xff]
    %v54 = vld [vmem:[#allocation2 + $0xc8] sm:$0xff]
    %v55 = vld [vmem:[#allocation2 + $0xd0] sm:$0xff]
    %v56 = vld [vmem:[#allocation2 + $0xd8] sm:$0xff]
    %v57 = vld [vmem:[#allocation2 + $0xe0] sm:$0xff]
    %v58 = vld [vmem:[#allocation2 + $0xe8] sm:$0xff]
    %v59 = vld [vmem:[#allocation2 + $0xf0] sm:$0xff]
    %v60 = vld [vmem:[#allocation2 + $0xf8] sm:$0xff]
    %v61 = vld [vmem:[#allocation2 + $0x100] sm:$0xff]
    %v62 = vld [vmem:[#allocation2 + $0x108] sm:$0xff]
    %v63 = vld [vmem:[#allocation2 + $0x110] sm:$0xff]
    %v64 = vld [vmem:[#allocation2 + $0x118] sm:$0xff]
    %v65 = vld [vmem:[#allocation2 + $0x120] sm:$0xff]
    %v66 = vld [vmem:[#allocation2 + $0x128] sm:$0xff]
    %v67 = vld [vmem:[#allocation2 + $0x130] sm:$0xff]
    %v68 = vld [vmem:[#allocation2 + $0x138] sm:$0xff]
    %v69 = vld [vmem:[#allocation2 + $0x140] sm:$0xff]
    %v70 = vld [vmem:[#allocation2 + $0x148] sm:$0xff]
    %v71 = vld [vmem:[#allocation2 + $0x150] sm:$0xff]
    %v72 = vld [vmem:[#allocation2 + $0x158] sm:$0xff]
    %v73 = vld [vmem:[#allocation2 + $0x160] sm:$0xff]
    %v74 = vld [vmem:[#allocation2 + $0x168] sm:$0xff]
    %v75 = vld [vmem:[#allocation2 + $0x170] sm:$0xff]
    %v76 = vld [vmem:[#allocation2 + $0x178] sm:$0xff]
    %v77 = vld [vmem:[#allocation2 + $0x180] sm:$0xff]
    %v78 = vld [vmem:[#allocation2 + $0x188] sm:$0xff]
    %v79 = vld [vmem:[#allocation2 + $0x190] sm:$0xff]
    %v80 = vld [vmem:[#allocation2 + $0x198] sm:$0xff]
    %v81 = vld [vmem:[#allocation2 + $0x1a0] sm:$0xff]
    %v82 = vld [vmem:[#allocation2 + $0x1a8] sm:$0xff]
    %v83 = vld [vmem:[#allocation2 + $0x1b0] sm:$0xff]
    %v84 = vld [vmem:[#allocation2 + $0x1b8] sm:$0xff]
    %v85 = vld [vmem:[#allocation2 + $0x1c0] sm:$0xff]
    %v86 = vld [vmem:[#allocation2 + $0x1c8] sm:$0xff]
    %v87 = vld [vmem:[#allocation2 + $0x1d0] sm:$0xff]
    %v88 = vld [vmem:[#allocation2 + $0x1d8] sm:$0xff]
    %v89 = vld [vmem:[#allocation2 + $0x1e0] sm:$0xff]
    %v90 = vld [vmem:[#allocation2 + $0x1e8] sm:$0xff]
    %v91 = vld [vmem:[#allocation2 + $0x1f0] sm:$0xff]
    %v92 = vld [vmem:[#allocation2 + $0x1f8] sm:$0xff]
    %v93 = vld [vmem:[#allocation2 + $0x200] sm:$0xff]
    %v94 = vld [vmem:[#allocation2 + $0x208] sm:$0xff]
    %v95 = vld [vmem:[#allocation2 + $0x210] sm:$0xff]
    %v96 = vld [vmem:[#allocation2 + $0x218] sm:$0xff]
    %v97 = vld [vmem:[#allocation2 + $0x220] sm:$0xff]
    %v98 = vld [vmem:[#allocation2 + $0x228] sm:$0xff]
    %v99 = vld [vmem:[#allocation2 + $0x230] sm:$0xff]
    %v100 = vld [vmem:[#allocation2 + $0x238] sm:$0xff]
    %v101 = vld [vmem:[#allocation2 + $0x240] sm:$0xff]
    %v102 = vld [vmem:[#allocation2 + $0x248] sm:$0xff]
    %v103 = vld [vmem:[#allocation2 + $0x250] sm:$0xff]
    %v104 = vld [vmem:[#allocation2 + $0x258] sm:$0xff]
    %v105 = vld [vmem:[#allocation2 + $0x260] sm:$0xff]
    %v106 = vld [vmem:[#allocation2 + $0x268] sm:$0xff]
    %v107 = vld [vmem:[#allocation2 + $0x270] sm:$0xff]
    %v108 = vld [vmem:[#allocation2 + $0x278] sm:$0xff]
    %v109 = vld [vmem:[#allocation2 + $0x280] sm:$0xff]
    %v110 = vld [vmem:[#allocation2 + $0x288] sm:$0xff]
    %v111 = vld [vmem:[#allocation2 + $0x290] sm:$0xff]
    %v112 = vld [vmem:[#allocation2 + $0x298] sm:$0xff]
    %v113 = vld [vmem:[#allocation2 + $0x2a0] sm:$0xff]
    %v114 = vld [vmem:[#allocation2 + $0x2a8] sm:$0xff]
    %v115 = vld [vmem:[#allocation2 + $0x2b0] sm:$0xff]
    %v116 = vld [vmem:[#allocation2 + $0x2b8] sm:$0xff]
    %v117 = vld [vmem:[#allocation2 + $0x2c0] sm:$0xff]
    %v118 = vld [vmem:[#allocation2 + $0x2c8] sm:$0xff]
    %v119 = vld [vmem:[#allocation2 + $0x2d0] sm:$0xff]
    %v120 = vld [vmem:[#allocation2 + $0x2d8] sm:$0xff]
    %v121 = vld [vmem:[#allocation2 + $0x2e0] sm:$0xff]
    %v122 = vld [vmem:[#allocation2 + $0x2e8] sm:$0xff]
    %v123 = vld [vmem:[#allocation2 + $0x2f0] sm:$0xff]
    %v124 = vld [vmem:[#allocation2 + $0x2f8] sm:$0xff]
    %v125 = vld [vmem:[#allocation2 + $0x300] sm:$0xff]
    %v126 = vld [vmem:[#allocation2 + $0x308] sm:$0xff]
    %v127 = vld [vmem:[#allocation2 + $0x310] sm:$0xff]
    %v128 = vld [vmem:[#allocation2 + $0x318] sm:$0xff]
    %v129 = vld [vmem:[#allocation2 + $0x320] sm:$0xff]
    %v130 = vld [vmem:[#allocation2 + $0x328] sm:$0xff]
    %v131 = vld [vmem:[#allocation2 + $0x330] sm:$0xff]
    %v132 = vld [vmem:[#allocation2 + $0x338] sm:$0xff]
    %v133 = vld [vmem:[#allocation2 + $0x340] sm:$0xff]
    %v134 = vld [vmem:[#allocation2 + $0x348] sm:$0xff]
    %v135 = vld [vmem:[#allocation2 + $0x350] sm:$0xff]
    %v136 = vld [vmem:[#allocation2 + $0x358] sm:$0xff]
    %v137 = vld [vmem:[#allocation2 + $0x360] sm:$0xff]
    %v138 = vld [vmem:[#allocation2 + $0x368] sm:$0xff]
    %v139 = vld [vmem:[#allocation2 + $0x370] sm:$0xff]
    %v140 = vld [vmem:[#allocation2 + $0x378] sm:$0xff]
    %v141 = vld [vmem:[#allocation2 + $0x380] sm:$0xff]
    %v142 = vld [vmem:[#allocation2 + $0x388] sm:$0xff]
    %v143 = vld [vmem:[#allocation2 + $0x390] sm:$0xff]
    %v144 = vld [vmem:[#allocation2 + $0x398] sm:$0xff]
    %v145 = vld [vmem:[#allocation2 + $0x3a0] sm:$0xff]
    %v146 = vld [vmem:[#allocation2 + $0x3a8] sm:$0xff]
    %v147 = vld [vmem:[#allocation2 + $0x3b0] sm:$0xff]
    %v148 = vld [vmem:[#allocation2 + $0x3b8] sm:$0xff]
    %v149 = vld [vmem:[#allocation2 + $0x3c0] sm:$0xff]
    %v150 = vld [vmem:[#allocation2 + $0x3c8] sm:$0xff]
    %v151 = vld [vmem:[#allocation2 + $0x3d0] sm:$0xff]
    %v152 = vld [vmem:[#allocation2 + $0x3d8] sm:$0xff]
    %v153 = vld [vmem:[#allocation2 + $0x3e0] sm:$0xff]
    %v154 = vld [vmem:[#allocation2 + $0x3e8] sm:$0xff]
    %v155 = vld [vmem:[#allocation2 + $0x3f0] sm:$0xff]
    %v156 = vld [vmem:[#allocation2 + $0x3f8] sm:$0xff]
    %v157 = vld [vmem:[#allocation2 + $0x400] sm:$0xff]
    %v158 = vld [vmem:[#allocation2 + $0x408] sm:$0xff]
    %v159 = vld [vmem:[#allocation2 + $0x410] sm:$0xff]
    %v160 = vld [vmem:[#allocation2 + $0x418] sm:$0xff]
    %v161 = vld [vmem:[#allocation2 + $0x420] sm:$0xff]
    %v162 = vld [vmem:[#allocation2 + $0x428] sm:$0xff]
    %v163 = vld [vmem:[#allocation2 + $0x430] sm:$0xff]
    %v164 = vld [vmem:[#allocation2 + $0x438] sm:$0xff]
    %v165 = vld [vmem:[#allocation2 + $0x440] sm:$0xff]
    %v166 = vld [vmem:[#allocation2 + $0x448] sm:$0xff]
    %v167 = vld [vmem:[#allocation2 + $0x450] sm:$0xff]
    %v168 = vld [vmem:[#allocation2 + $0x458] sm:$0xff]
    %v169 = vld [vmem:[#allocation2 + $0x460] sm:$0xff]
    %v170 = vld [vmem:[#allocation2 + $0x468] sm:$0xff]
    %v171 = vld [vmem:[#allocation2 + $0x470] sm:$0xff]
    %v172 = vld [vmem:[#allocation2 + $0x478] sm:$0xff]
    %v173 = vld [vmem:[#allocation2 + $0x480] sm:$0xff]
    %v174 = vld [vmem:[#allocation2 + $0x488] sm:$0xff]
    %v175 = vld [vmem:[#allocation2 + $0x490] sm:$0xff]
    %v176 = vld [vmem:[#allocation2 + $0x498] sm:$0xff]
    %v177 = vld [vmem:[#allocation2 + $0x4a0] sm:$0xff]
    %v178 = vld [vmem:[#allocation2 + $0x4a8] sm:$0xff]
    %v179 = vld [vmem:[#allocation2 + $0x4b0] sm:$0xff]
    %v180 = vld [vmem:[#allocation2 + $0x4b8] sm:$0xff]
    %v181 = vld [vmem:[#allocation2 + $0x4c0] sm:$0xff]
    %v182 = vld [vmem:[#allocation2 + $0x4c8] sm:$0xff]
    %v183 = vld [vmem:[#allocation2 + $0x4d0] sm:$0xff]
    %v184 = vld [vmem:[#allocation2 + $0x4d8] sm:$0xff]
    %v185 = vld [vmem:[#allocation2 + $0x4e0] sm:$0xff]
    %v186 = vld [vmem:[#allocation2 + $0x4e8] sm:$0xff]
    %v187 = vld [vmem:[#allocation2 + $0x4f0] sm:$0xff]
    %v188 = vld [vmem:[#allocation2 + $0x4f8] sm:$0xff]
    %v189 = vld [vmem:[#allocation2 + $0x500] sm:$0xff]
    %v190 = vld [vmem:[#allocation2 + $0x508] sm:$0xff]
    %v191 = vld [vmem:[#allocation2 + $0x510] sm:$0xff]
    %v192 = vld [vmem:[#allocation2 + $0x518] sm:$0xff]
    %v193 = vld [vmem:[#allocation2 + $0x520] sm:$0xff]
    %v194 = vld [vmem:[#allocation2 + $0x528] sm:$0xff]
    %v195 = vld [vmem:[#allocation2 + $0x530] sm:$0xff]
    %v196 = vld [vmem:[#allocation2 + $0x538] sm:$0xff]
    %v197 = vld [vmem:[#allocation2 + $0x540] sm:$0xff]
    %v198 = vld [vmem:[#allocation2 + $0x548] sm:$0xff]
    %v199 = vld [vmem:[#allocation2 + $0x550] sm:$0xff]
    %v200 = vld [vmem:[#allocation2 + $0x558] sm:$0xff]
    %v201 = vld [vmem:[#allocation2 + $0x560] sm:$0xff]
    %v202 = vld [vmem:[#allocation2 + $0x568] sm:$0xff]
    %v203 = vld [vmem:[#allocation2 + $0x570] sm:$0xff]
    %v204 = vld [vmem:[#allocation2 + $0x578] sm:$0xff]
    %v205 = vld [vmem:[#allocation2 + $0x580] sm:$0xff]
    %v206 = vld [vmem:[#allocation2 + $0x588] sm:$0xff]
    %v207 = vld [vmem:[#allocation2 + $0x590] sm:$0xff]
    %v208 = vld [vmem:[#allocation2 + $0x598] sm:$0xff]
    %v209 = vld [vmem:[#allocation2 + $0x5a0] sm:$0xff]
    %v210 = vld [vmem:[#allocation2 + $0x5a8] sm:$0xff]
    %v211 = vld [vmem:[#allocation2 + $0x5b0] sm:$0xff]
    %v212 = vld [vmem:[#allocation2 + $0x5b8] sm:$0xff]
    %v213 = vld [vmem:[#allocation2 + $0x5c0] sm:$0xff]
    %v214 = vld [vmem:[#allocation2 + $0x5c8] sm:$0xff]
    %v215 = vld [vmem:[#allocation2 + $0x5d0] sm:$0xff]
    %v216 = vld [vmem:[#allocation2 + $0x5d8] sm:$0xff]
    %v217 = vld [vmem:[#allocation2 + $0x5e0] sm:$0xff]
    %v218 = vld [vmem:[#allocation2 + $0x5e8] sm:$0xff]
    %v219 = vld [vmem:[#allocation2 + $0x5f0] sm:$0xff]
    %v220 = vld [vmem:[#allocation2 + $0x5f8] sm:$0xff]
    %v221 = vld [vmem:[#allocation2 + $0x600] sm:$0xff]
    %v222 = vld [vmem:[#allocation2 + $0x608] sm:$0xff]
    %v223 = vld [vmem:[#allocation2 + $0x610] sm:$0xff]
    %v224 = vld [vmem:[#allocation2 + $0x618] sm:$0xff]
    %v225 = vld [vmem:[#allocation2 + $0x620] sm:$0xff]
    %v226 = vld [vmem:[#allocation2 + $0x628] sm:$0xff]
    %v227 = vld [vmem:[#allocation2 + $0x630] sm:$0xff]
    %v228 = vld [vmem:[#allocation2 + $0x638] sm:$0xff]
    %v229 = vld [vmem:[#allocation2 + $0x640] sm:$0xff]
    %v230 = vld [vmem:[#allocation2 + $0x648] sm:$0xff]
    %v231 = vld [vmem:[#allocation2 + $0x650] sm:$0xff]
    %v232 = vld [vmem:[#allocation2 + $0x658] sm:$0xff]
    %v233 = vld [vmem:[#allocation2 + $0x660] sm:$0xff]
    %v234 = vld [vmem:[#allocation2 + $0x668] sm:$0xff]
    %v235 = vld [vmem:[#allocation2 + $0x670] sm:$0xff]
    %v236 = vld [vmem:[#allocation2 + $0x678] sm:$0xff]
    %v237 = vld [vmem:[#allocation2 + $0x680] sm:$0xff]
    %v238 = vld [vmem:[#allocation2 + $0x688] sm:$0xff]
    %v239 = vld [vmem:[#allocation2 + $0x690] sm:$0xff]
    %v240 = vld [vmem:[#allocation2 + $0x698] sm:$0xff]
    %v241 = vld [vmem:[#allocation2 + $0x6a0] sm:$0xff]
    %v242 = vld [vmem:[#allocation2 + $0x6a8] sm:$0xff]
    %v243 = vld [vmem:[#allocation2 + $0x6b0] sm:$0xff]
    %v244 = vld [vmem:[#allocation2 + $0x6b8] sm:$0xff]
    %v245 = vld [vmem:[#allocation2 + $0x6c0] sm:$0xff]
    %v246 = vld [vmem:[#allocation2 + $0x6c8] sm:$0xff]
    %v247 = vld [vmem:[#allocation2 + $0x6d0] sm:$0xff]
    %v248 = vld [vmem:[#allocation2 + $0x6d8] sm:$0xff]
    %v249 = vld [vmem:[#allocation2 + $0x6e0] sm:$0xff]
    %v250 = vld [vmem:[#allocation2 + $0x6e8] sm:$0xff]
    %v251 = vld [vmem:[#allocation2 + $0x6f0] sm:$0xff]
    %v252 = vld [vmem:[#allocation2 + $0x6f8] sm:$0xff]
    %v253 = vld [vmem:[#allocation2 + $0x700] sm:$0xff]
    %v254 = vld [vmem:[#allocation2 + $0x708] sm:$0xff]
    %v255 = vld [vmem:[#allocation2 + $0x710] sm:$0xff]
    %v256 = vld [vmem:[#allocation2 + $0x718] sm:$0xff]
    %v257 = vld [vmem:[#allocation2 + $0x720] sm:$0xff]
    %v258 = vld [vmem:[#allocation2 + $0x728] sm:$0xff]
    %v259 = vld [vmem:[#allocation2 + $0x730] sm:$0xff]
    %v260 = vld [vmem:[#allocation2 + $0x738] sm:$0xff]
    %v261 = vld [vmem:[#allocation2 + $0x740] sm:$0xff]
    %v262 = vld [vmem:[#allocation2 + $0x748] sm:$0xff]
    %v263 = vld [vmem:[#allocation2 + $0x750] sm:$0xff]
    %v264 = vld [vmem:[#allocation2 + $0x758] sm:$0xff]
    %v265 = vld [vmem:[#allocation2 + $0x760] sm:$0xff]
    %v266 = vld [vmem:[#allocation2 + $0x768] sm:$0xff]
    %v267 = vld [vmem:[#allocation2 + $0x770] sm:$0xff]
    %v268 = vld [vmem:[#allocation2 + $0x778] sm:$0xff]
    %v269 = vld [vmem:[#allocation2 + $0x780] sm:$0xff]
    %v270 = vld [vmem:[#allocation2 + $0x788] sm:$0xff]
    %v271 = vld [vmem:[#allocation2 + $0x790] sm:$0xff]
    %v272 = vld [vmem:[#allocation2 + $0x798] sm:$0xff]
    %v273 = vld [vmem:[#allocation2 + $0x7a0] sm:$0xff]
    %v274 = vld [vmem:[#allocation2 + $0x7a8] sm:$0xff]
    %v275 = vld [vmem:[#allocation2 + $0x7b0] sm:$0xff]
    %v276 = vld [vmem:[#allocation2 + $0x7b8] sm:$0xff]
    %v277 = vld [vmem:[#allocation2 + $0x7c0] sm:$0xff]
    %v278 = vld [vmem:[#allocation2 + $0x7c8] sm:$0xff]
    %v279 = vld [vmem:[#allocation2 + $0x7d0] sm:$0xff]
    %v280 = vld [vmem:[#allocation2 + $0x7d8] sm:$0xff]
    %v281 = vld [vmem:[#allocation2 + $0x7e0] sm:$0xff]
    %v282 = vld [vmem:[#allocation2 + $0x7e8] sm:$0xff]
    %v283 = vld [vmem:[#allocation2 + $0x7f0] sm:$0xff]
    %v284 = vld [vmem:[#allocation2 + $0x7f8] sm:$0xff]
    %v285 = vld [vmem:[#allocation2 + $0x800] sm:$0xff]
    %v286 = vld [vmem:[#allocation2 + $0x808] sm:$0xff]
    %v287 = vld [vmem:[#allocation2 + $0x810] sm:$0xff]
    %v288 = vld [vmem:[#allocation2 + $0x818] sm:$0xff]
    %v289 = vld [vmem:[#allocation2 + $0x820] sm:$0xff]
    %v290 = vld [vmem:[#allocation2 + $0x828] sm:$0xff]
    %v291 = vld [vmem:[#allocation2 + $0x830] sm:$0xff]
    %v292 = vld [vmem:[#allocation2 + $0x838] sm:$0xff]
    %v293 = vld [vmem:[#allocation2 + $0x840] sm:$0xff]
    %v294 = vld [vmem:[#allocation2 + $0x848] sm:$0xff]
    %v295 = vld [vmem:[#allocation2 + $0x850] sm:$0xff]
    %v296 = vld [vmem:[#allocation2 + $0x858] sm:$0xff]
    %v297 = vld [vmem:[#allocation2 + $0x860] sm:$0xff]
    %v298 = vld [vmem:[#allocation2 + $0x868] sm:$0xff]
    %v299 = vld [vmem:[#allocation2 + $0x870] sm:$0xff]
    %v300 = vld [vmem:[#allocation2 + $0x878] sm:$0xff]
    %v301 = vld [vmem:[#allocation2 + $0x880] sm:$0xff]
    %v302 = vld [vmem:[#allocation2 + $0x888] sm:$0xff]
    %v303 = vld [vmem:[#allocation2 + $0x890] sm:$0xff]
    %v304 = vld [vmem:[#allocation2 + $0x898] sm:$0xff]
    %v305 = vld [vmem:[#allocation2 + $0x8a0] sm:$0xff]
    %v306 = vld [vmem:[#allocation2 + $0x8a8] sm:$0xff]
    %v307 = vld [vmem:[#allocation2 + $0x8b0] sm:$0xff]
    %v308 = vld [vmem:[#allocation2 + $0x8b8] sm:$0xff]
    %v309 = vld [vmem:[#allocation2 + $0x8c0] sm:$0xff]
    %v310 = vld [vmem:[#allocation2 + $0x8c8] sm:$0xff]
    %v311 = vld [vmem:[#allocation2 + $0x8d0] sm:$0xff]
    %v312 = vld [vmem:[#allocation2 + $0x8d8] sm:$0xff]
    %v313 = vld [vmem:[#allocation2 + $0x8e0] sm:$0xff]
    %v314 = vld [vmem:[#allocation2 + $0x8e8] sm:$0xff]
    %v315 = vld [vmem:[#allocation2 + $0x8f0] sm:$0xff]
    %v316 = vld [vmem:[#allocation2 + $0x8f8] sm:$0xff]
    %v317 = vld [vmem:[#allocation2 + $0x900] sm:$0xff]
    %v318 = vld [vmem:[#allocation2 + $0x908] sm:$0xff]
    %v319 = vld [vmem:[#allocation2 + $0x910] sm:$0xff]
    %v320 = vld [vmem:[#allocation2 + $0x918] sm:$0xff]
    %v321 = vld [vmem:[#allocation2 + $0x920] sm:$0xff]
    %v322 = vld [vmem:[#allocation2 + $0x928] sm:$0xff]
    %v323 = vld [vmem:[#allocation2 + $0x930] sm:$0xff]
    %v324 = vld [vmem:[#allocation2 + $0x938] sm:$0xff]
    %v325 = vld [vmem:[#allocation2 + $0x940] sm:$0xff]
    %v326 = vld [vmem:[#allocation2 + $0x948] sm:$0xff]
    %v327 = vld [vmem:[#allocation2 + $0x950] sm:$0xff]
    %v328 = vld [vmem:[#allocation2 + $0x958] sm:$0xff]
    %v329 = vld [vmem:[#allocation2 + $0x960] sm:$0xff]
    %v330 = vld [vmem:[#allocation2 + $0x968] sm:$0xff]
    %v331 = vld [vmem:[#allocation2 + $0x970] sm:$0xff]
    %v332 = vld [vmem:[#allocation2 + $0x978] sm:$0xff]
    %v333 = vld [vmem:[#allocation2 + $0x980] sm:$0xff]
    %v334 = vld [vmem:[#allocation2 + $0x988] sm:$0xff]
    %v335 = vld [vmem:[#allocation2 + $0x990] sm:$0xff]
    %v336 = vld [vmem:[#allocation2 + $0x998] sm:$0xff]
    %v337 = vld [vmem:[#allocation2 + $0x9a0] sm:$0xff]
    %v338 = vld [vmem:[#allocation2 + $0x9a8] sm:$0xff]
    %v339 = vld [vmem:[#allocation2 + $0x9b0] sm:$0xff]
    %v340 = vld [vmem:[#allocation2 + $0x9b8] sm:$0xff]
    %v341 = vld [vmem:[#allocation2 + $0x9c0] sm:$0xff]
    %v342 = vld [vmem:[#allocation2 + $0x9c8] sm:$0xff]
    %v343 = vld [vmem:[#allocation2 + $0x9d0] sm:$0xff]
    %v344 = vld [vmem:[#allocation2 + $0x9d8] sm:$0xff]
    %v345 = vld [vmem:[#allocation2 + $0x9e0] sm:$0xff]
    %v346 = vld [vmem:[#allocation2 + $0x9e8] sm:$0xff]
    %v347 = vld [vmem:[#allocation2 + $0x9f0] sm:$0xff]
    %v348 = vld [vmem:[#allocation2 + $0x9f8] sm:$0xff]
    %v349 = vld [vmem:[#allocation2 + $0xa00] sm:$0xff]
    %v350 = vld [vmem:[#allocation2 + $0xa08] sm:$0xff]
    %v351 = vld [vmem:[#allocation2 + $0xa10] sm:$0xff]
    %v352 = vld [vmem:[#allocation2 + $0xa18] sm:$0xff]
    %v353 = vld [vmem:[#allocation2 + $0xa20] sm:$0xff]
    %v354 = vld [vmem:[#allocation2 + $0xa28] sm:$0xff]
    %v355 = vld [vmem:[#allocation2 + $0xa30] sm:$0xff]
    %v356 = vld [vmem:[#allocation2 + $0xa38] sm:$0xff]
    %v357 = vld [vmem:[#allocation2 + $0xa40] sm:$0xff]
    %v358 = vld [vmem:[#allocation2 + $0xa48] sm:$0xff]
    %v359 = vld [vmem:[#allocation2 + $0xa50] sm:$0xff]
    %v360 = vld [vmem:[#allocation2 + $0xa58] sm:$0xff]
    %v361 = vld [vmem:[#allocation2 + $0xa60] sm:$0xff]
    %v362 = vld [vmem:[#allocation2 + $0xa68] sm:$0xff]
    %v363 = vld [vmem:[#allocation2 + $0xa70] sm:$0xff]
    %v364 = vld [vmem:[#allocation2 + $0xa78] sm:$0xff]
    %vm365 = vcmask 523264
    %v367 = vsel %vm365, %v26, 0
    %v370 = vsel %vm365, %v28, 0
    %v372 = vand.u32 %v240, 4294901760
    %373 = vmatprep.subr.mxu0 %v372
    %v374 = vand.u32 %v239, 4294901760
    %375 = vmatpush1.msra.mxu0 %v374
    %v376 = vand.u32 %v226, 4294901760
    %377 = vmatprep.subr.mxu0 %v376
    %v378 = vand.u32 %v225, 4294901760
    %379 = vmatpush1.msra.mxu0 %v378
    %v380 = vand.u32 %v212, 4294901760
    %381 = vmatprep.subr.mxu0 %v380
    %v382 = vand.u32 %v211, 4294901760
    %383 = vmatpush1.msra.mxu0 %v382
    %v384 = vand.u32 %v198, 4294901760
    %385 = vmatprep.subr.mxu0 %v384
    %v386 = vand.u32 %v197, 4294901760
    %387 = vmatpush1.msra.mxu0 %v386
    %v388 = vand.u32 %v184, 4294901760
    %389 = vmatprep.subr.mxu0 %v388
    %v390 = vand.u32 %v183, 4294901760
    %391 = vmatpush1.msra.mxu0 %v390
    %v392 = vand.u32 %v170, 4294901760
    %393 = vmatprep.subr.mxu0 %v392
    %v394 = vand.u32 %v169, 4294901760
    %395 = vmatpush1.msra.mxu0 %v394
    %v396 = vand.u32 %v156, 4294901760
    %397 = vmatprep.subr.mxu0 %v396
    %v398 = vand.u32 %v155, 4294901760
    %399 = vmatpush1.msra.mxu0 %v398
    %v400 = vand.u32 %v142, 4294901760
    %401 = vmatprep.subr.mxu0 %v400
    %v402 = vand.u32 %v141, 4294901760
    %403 = vmatpush1.msra.mxu0 %v402
    %v404 = vand.u32 %v128, 4294901760
    %405 = vmatprep.subr.mxu0 %v404
    %v406 = vand.u32 %v127, 4294901760
    %407 = vmatpush1.msra.mxu0 %v406
    %v408 = vand.u32 %v114, 4294901760
    %409 = vmatprep.subr.mxu0 %v408
    %v410 = vand.u32 %v113, 4294901760
    %411 = vmatpush1.msra.mxu0 %v410
    %v412 = vand.u32 %v100, 4294901760
    %413 = vmatprep.subr.mxu0 %v412
    %v414 = vand.u32 %v99, 4294901760
    %415 = vmatpush1.msra.mxu0 %v414
    %v416 = vand.u32 %v86, 4294901760
    %417 = vmatprep.subr.mxu0 %v416
    %v418 = vand.u32 %v85, 4294901760
    %419 = vmatpush1.msra.mxu0 %v418
    %v420 = vand.u32 %v72, 4294901760
    %421 = vmatprep.subr.mxu0 %v420
    %v422 = vand.u32 %v71, 4294901760
    %423 = vmatpush1.msra.mxu0 %v422
    %v424 = vand.u32 %v58, 4294901760
    %425 = vmatprep.subr.mxu0 %v424
    %v426 = vand.u32 %v57, 4294901760
    %427 = vmatpush1.msra.mxu0 %v426
    %v428 = vand.u32 %v44, 4294901760
    %429 = vmatprep.subr.mxu0 %v428
    %v430 = vand.u32 %v43, 4294901760
    %431 = vmatpush1.msra.mxu0 %v430
    %v432 = vand.u32 %v30, 4294901760
    %433 = vmatprep.subr.mxu0 %v432
    %v434 = vand.u32 %v29, 4294901760
    %435 = vmatpush1.msra.mxu0 %v434
    %436 = vmatprep.subr.mxu0 0.0
    %437 = vmatpush2.msra.mxu0 0.0
    %438 = vmatprep.subr.mxu0 0.0
    %439 = vmatpush2.msra.mxu0 0.0
    %440 = vmatprep.subr.mxu0 0.0
    %441 = vmatpush2.msra.mxu0 0.0
    %442 = vmatprep.subr.mxu0 0.0
    %443 = vmatpush2.msra.mxu0 0.0
    %444 = vmatprep.subr.mxu0 0.0
    %445 = vmatpush2.msra.mxu0 0.0
    %446 = vmatprep.subr.mxu0 0.0
    %447 = vmatpush2.msra.mxu0 0.0
    %448 = vmatprep.subr.mxu0 0.0
    %449 = vmatpush2.msra.mxu0 0.0
    %450 = vmatprep.subr.mxu0 0.0
    %451 = vmatpush2.msra.mxu0 0.0
    %v452 = vand.u32 %v352, 4294901760
    %453 = vmatprep.subr.mxu0 %v452
    %v454 = vand.u32 %v351, 4294901760
    %455 = vmatpush2.msra.mxu0 %v454
    %v456 = vand.u32 %v338, 4294901760
    %457 = vmatprep.subr.mxu0 %v456
    %v458 = vand.u32 %v337, 4294901760
    %459 = vmatpush2.msra.mxu0 %v458
    %v460 = vand.u32 %v324, 4294901760
    %461 = vmatprep.subr.mxu0 %v460
    %v462 = vand.u32 %v323, 4294901760
    %463 = vmatpush2.msra.mxu0 %v462
    %v464 = vand.u32 %v310, 4294901760
    %465 = vmatprep.subr.mxu0 %v464
    %v466 = vand.u32 %v309, 4294901760
    %467 = vmatpush2.msra.mxu0 %v466
    %v468 = vand.u32 %v296, 4294901760
    %469 = vmatprep.subr.mxu0 %v468
    %v470 = vand.u32 %v295, 4294901760
    %471 = vmatpush2.msra.mxu0 %v470
    %v472 = vand.u32 %v282, 4294901760
    %473 = vmatprep.subr.mxu0 %v472
    %v474 = vand.u32 %v281, 4294901760
    %475 = vmatpush2.msra.mxu0 %v474
    %v476 = vand.u32 %v268, 4294901760
    %477 = vmatprep.subr.mxu0 %v476
    %v478 = vand.u32 %v267, 4294901760
    %479 = vmatpush2.msra.mxu0 %v478
    %v480 = vand.u32 %v254, 4294901760
    %481 = vmatprep.subr.mxu0 %v480
    %v482 = vand.u32 %v253, 4294901760
    %483 = vmatpush2.msra.mxu0 %v482
    %v484 = vand.u32 %v367, 4294901760
    %v485 = vsub.f32 %v367, %v484
    %v486 = vand.u32 %v485, 4294901760
    %v487 = vsub.f32 %v485, %v486
    %v488 = vand.u32 %v487, 4294901760
    %489 = vmatprep.mubr.f32.mxu0 %v488
    %v490 = vand.u32 %v25, 4294901760
    %v491 = vsub.f32 %v25, %v490
    %v492 = vand.u32 %v491, 4294901760
    %v493 = vsub.f32 %v491, %v492
    %v494 = vand.u32 %v493, 4294901760
    %495 = vmatmul.mubr.f32.gmra.mxu0 %v494
    %v496 = vpop.f32.mrf.mxu0
    %v497 = vadd.f32 0.0, %v496
    %v498 = vpop.f32.mrf.mxu0
    %v499 = vadd.f32 0.0, %v498
    %v500 = vand.u32 %v370, 4294901760
    %v501 = vsub.f32 %v370, %v500
    %v502 = vand.u32 %v501, 4294901760
    %v503 = vsub.f32 %v501, %v502
    %v504 = vand.u32 %v503, 4294901760
    %505 = vmatprep.mubr.f32.mxu0 %v504
    %v506 = vand.u32 %v27, 4294901760
    %v507 = vsub.f32 %v27, %v506
    %v508 = vand.u32 %v507, 4294901760
    %v509 = vsub.f32 %v507, %v508
    %v510 = vand.u32 %v509, 4294901760
    %511 = vmatmul.mubr.f32.gmra.mxu0 %v510
    %v512 = vpop.f32.mrf.mxu0
    %v513 = vadd.f32 0.0, %v512
    %v514 = vpop.f32.mrf.mxu0
    %v515 = vadd.f32 0.0, %v514
    %516 = vdwg.mxu0
    %v517 = vand.u32 %v240, 4294901760
    %v518 = vsub.f32 %v240, %v517
    %v519 = vand.u32 %v518, 4294901760
    %v520 = vsub.f32 %v518, %v519
    %v521 = vand.u32 %v520, 4294901760
    %522 = vmatprep.subr.mxu0 %v521
    %v523 = vand.u32 %v239, 4294901760
    %v524 = vsub.f32 %v239, %v523
    %v525 = vand.u32 %v524, 4294901760
    %v526 = vsub.f32 %v524, %v525
    %v527 = vand.u32 %v526, 4294901760
    %528 = vmatpush1.msra.mxu0 %v527
    %v529 = vand.u32 %v226, 4294901760
    %v530 = vsub.f32 %v226, %v529
    %v531 = vand.u32 %v530, 4294901760
    %v532 = vsub.f32 %v530, %v531
    %v533 = vand.u32 %v532, 4294901760
    %534 = vmatprep.subr.mxu0 %v533
    %v535 = vand.u32 %v225, 4294901760
    %v536 = vsub.f32 %v225, %v535
    %v537 = vand.u32 %v536, 4294901760
    %v538 = vsub.f32 %v536, %v537
    %v539 = vand.u32 %v538, 4294901760
    %540 = vmatpush1.msra.mxu0 %v539
    %v541 = vand.u32 %v212, 4294901760
    %v542 = vsub.f32 %v212, %v541
    %v543 = vand.u32 %v542, 4294901760
    %v544 = vsub.f32 %v542, %v543
    %v545 = vand.u32 %v544, 4294901760
    %546 = vmatprep.subr.mxu0 %v545
    %v547 = vand.u32 %v211, 4294901760
    %v548 = vsub.f32 %v211, %v547
    %v549 = vand.u32 %v548, 4294901760
    %v550 = vsub.f32 %v548, %v549
    %v551 = vand.u32 %v550, 4294901760
    %552 = vmatpush1.msra.mxu0 %v551
    %v553 = vand.u32 %v198, 4294901760
    %v554 = vsub.f32 %v198, %v553
    %v555 = vand.u32 %v554, 4294901760
    %v556 = vsub.f32 %v554, %v555
    %v557 = vand.u32 %v556, 4294901760
    %558 = vmatprep.subr.mxu0 %v557
    %v559 = vand.u32 %v197, 4294901760
    %v560 = vsub.f32 %v197, %v559
    %v561 = vand.u32 %v560, 4294901760
    %v562 = vsub.f32 %v560, %v561
    %v563 = vand.u32 %v562, 4294901760
    %564 = vmatpush1.msra.mxu0 %v563
    %v565 = vand.u32 %v184, 4294901760
    %v566 = vsub.f32 %v184, %v565
    %v567 = vand.u32 %v566, 4294901760
    %v568 = vsub.f32 %v566, %v567
    %v569 = vand.u32 %v568, 4294901760
    %570 = vmatprep.subr.mxu0 %v569
    %v571 = vand.u32 %v183, 4294901760
    %v572 = vsub.f32 %v183, %v571
    %v573 = vand.u32 %v572, 4294901760
    %v574 = vsub.f32 %v572, %v573
    %v575 = vand.u32 %v574, 4294901760
    %576 = vmatpush1.msra.mxu0 %v575
    %v577 = vand.u32 %v170, 4294901760
    %v578 = vsub.f32 %v170, %v577
    %v579 = vand.u32 %v578, 4294901760
    %v580 = vsub.f32 %v578, %v579
    %v581 = vand.u32 %v580, 4294901760
    %582 = vmatprep.subr.mxu0 %v581
    %v583 = vand.u32 %v169, 4294901760
    %v584 = vsub.f32 %v169, %v583
    %v585 = vand.u32 %v584, 4294901760
    %v586 = vsub.f32 %v584, %v585
    %v587 = vand.u32 %v586, 4294901760
    %588 = vmatpush1.msra.mxu0 %v587
    %v589 = vand.u32 %v156, 4294901760
    %v590 = vsub.f32 %v156, %v589
    %v591 = vand.u32 %v590, 4294901760
    %v592 = vsub.f32 %v590, %v591
    %v593 = vand.u32 %v592, 4294901760
    %594 = vmatprep.subr.mxu0 %v593
    %v595 = vand.u32 %v155, 4294901760
    %v596 = vsub.f32 %v155, %v595
    %v597 = vand.u32 %v596, 4294901760
    %v598 = vsub.f32 %v596, %v597
    %v599 = vand.u32 %v598, 4294901760
    %600 = vmatpush1.msra.mxu0 %v599
    %v601 = vand.u32 %v142, 4294901760
    %v602 = vsub.f32 %v142, %v601
    %v603 = vand.u32 %v602, 4294901760
    %v604 = vsub.f32 %v602, %v603
    %v605 = vand.u32 %v604, 4294901760
    %606 = vmatprep.subr.mxu0 %v605
    %v607 = vand.u32 %v141, 4294901760
    %v608 = vsub.f32 %v141, %v607
    %v609 = vand.u32 %v608, 4294901760
    %v610 = vsub.f32 %v608, %v609
    %v611 = vand.u32 %v610, 4294901760
    %612 = vmatpush1.msra.mxu0 %v611
    %v613 = vand.u32 %v128, 4294901760
    %v614 = vsub.f32 %v128, %v613
    %v615 = vand.u32 %v614, 4294901760
    %v616 = vsub.f32 %v614, %v615
    %v617 = vand.u32 %v616, 4294901760
    %618 = vmatprep.subr.mxu0 %v617
    %v619 = vand.u32 %v127, 4294901760
    %v620 = vsub.f32 %v127, %v619
    %v621 = vand.u32 %v620, 4294901760
    %v622 = vsub.f32 %v620, %v621
    %v623 = vand.u32 %v622, 4294901760
    %624 = vmatpush1.msra.mxu0 %v623
    %v625 = vand.u32 %v114, 4294901760
    %v626 = vsub.f32 %v114, %v625
    %v627 = vand.u32 %v626, 4294901760
    %v628 = vsub.f32 %v626, %v627
    %v629 = vand.u32 %v628, 4294901760
    %630 = vmatprep.subr.mxu0 %v629
    %v631 = vand.u32 %v113, 4294901760
    %v632 = vsub.f32 %v113, %v631
    %v633 = vand.u32 %v632, 4294901760
    %v634 = vsub.f32 %v632, %v633
    %v635 = vand.u32 %v634, 4294901760
    %636 = vmatpush1.msra.mxu0 %v635
    %v637 = vand.u32 %v100, 4294901760
    %v638 = vsub.f32 %v100, %v637
    %v639 = vand.u32 %v638, 4294901760
    %v640 = vsub.f32 %v638, %v639
    %v641 = vand.u32 %v640, 4294901760
    %642 = vmatprep.subr.mxu0 %v641
    %v643 = vand.u32 %v99, 4294901760
    %v644 = vsub.f32 %v99, %v643
    %v645 = vand.u32 %v644, 4294901760
    %v646 = vsub.f32 %v644, %v645
    %v647 = vand.u32 %v646, 4294901760
    %648 = vmatpush1.msra.mxu0 %v647
    %v649 = vand.u32 %v86, 4294901760
    %v650 = vsub.f32 %v86, %v649
    %v651 = vand.u32 %v650, 4294901760
    %v652 = vsub.f32 %v650, %v651
    %v653 = vand.u32 %v652, 4294901760
    %654 = vmatprep.subr.mxu0 %v653
    %v655 = vand.u32 %v85, 4294901760
    %v656 = vsub.f32 %v85, %v655
    %v657 = vand.u32 %v656, 4294901760
    %v658 = vsub.f32 %v656, %v657
    %v659 = vand.u32 %v658, 4294901760
    %660 = vmatpush1.msra.mxu0 %v659
    %v661 = vand.u32 %v72, 4294901760
    %v662 = vsub.f32 %v72, %v661
    %v663 = vand.u32 %v662, 4294901760
    %v664 = vsub.f32 %v662, %v663
    %v665 = vand.u32 %v664, 4294901760
    %666 = vmatprep.subr.mxu0 %v665
    %v667 = vand.u32 %v71, 4294901760
    %v668 = vsub.f32 %v71, %v667
    %v669 = vand.u32 %v668, 4294901760
    %v670 = vsub.f32 %v668, %v669
    %v671 = vand.u32 %v670, 4294901760
    %672 = vmatpush1.msra.mxu0 %v671
    %v673 = vand.u32 %v58, 4294901760
    %v674 = vsub.f32 %v58, %v673
    %v675 = vand.u32 %v674, 4294901760
    %v676 = vsub.f32 %v674, %v675
    %v677 = vand.u32 %v676, 4294901760
    %678 = vmatprep.subr.mxu0 %v677
    %v679 = vand.u32 %v57, 4294901760
    %v680 = vsub.f32 %v57, %v679
    %v681 = vand.u32 %v680, 4294901760
    %v682 = vsub.f32 %v680, %v681
    %v683 = vand.u32 %v682, 4294901760
    %684 = vmatpush1.msra.mxu0 %v683
    %v685 = vand.u32 %v44, 4294901760
    %v686 = vsub.f32 %v44, %v685
    %v687 = vand.u32 %v686, 4294901760
    %v688 = vsub.f32 %v686, %v687
    %v689 = vand.u32 %v688, 4294901760
    %690 = vmatprep.subr.mxu0 %v689
    %v691 = vand.u32 %v43, 4294901760
    %v692 = vsub.f32 %v43, %v691
    %v693 = vand.u32 %v692, 4294901760
    %v694 = vsub.f32 %v692, %v693
    %v695 = vand.u32 %v694, 4294901760
    %696 = vmatpush1.msra.mxu0 %v695
    %v697 = vand.u32 %v30, 4294901760
    %v698 = vsub.f32 %v30, %v697
    %v699 = vand.u32 %v698, 4294901760
    %v700 = vsub.f32 %v698, %v699
    %v701 = vand.u32 %v700, 4294901760
    %702 = vmatprep.subr.mxu0 %v701
    %v703 = vand.u32 %v29, 4294901760
    %v704 = vsub.f32 %v29, %v703
    %v705 = vand.u32 %v704, 4294901760
    %v706 = vsub.f32 %v704, %v705
    %v707 = vand.u32 %v706, 4294901760
    %708 = vmatpush1.msra.mxu0 %v707
    %709 = vmatprep.subr.mxu0 0.0
    %710 = vmatpush2.msra.mxu0 0.0
    %711 = vmatprep.subr.mxu0 0.0
    %712 = vmatpush2.msra.mxu0 0.0
    %713 = vmatprep.subr.mxu0 0.0
    %714 = vmatpush2.msra.mxu0 0.0
    %715 = vmatprep.subr.mxu0 0.0
    %716 = vmatpush2.msra.mxu0 0.0
    %717 = vmatprep.subr.mxu0 0.0
    %718 = vmatpush2.msra.mxu0 0.0
    %719 = vmatprep.subr.mxu0 0.0
    %720 = vmatpush2.msra.mxu0 0.0
    %721 = vmatprep.subr.mxu0 0.0
    %722 = vmatpush2.msra.mxu0 0.0
    %723 = vmatprep.subr.mxu0 0.0
    %724 = vmatpush2.msra.mxu0 0.0
    %v725 = vand.u32 %v352, 4294901760
    %v726 = vsub.f32 %v352, %v725
    %v727 = vand.u32 %v726, 4294901760
    %v728 = vsub.f32 %v726, %v727
    %v729 = vand.u32 %v728, 4294901760
    %730 = vmatprep.subr.mxu0 %v729
    %v731 = vand.u32 %v351, 4294901760
    %v732 = vsub.f32 %v351, %v731
    %v733 = vand.u32 %v732, 4294901760
    %v734 = vsub.f32 %v732, %v733
    %v735 = vand.u32 %v734, 4294901760
    %736 = vmatpush2.msra.mxu0 %v735
    %v737 = vand.u32 %v338, 4294901760
    %v738 = vsub.f32 %v338, %v737
    %v739 = vand.u32 %v738, 4294901760
    %v740 = vsub.f32 %v738, %v739
    %v741 = vand.u32 %v740, 4294901760
    %742 = vmatprep.subr.mxu0 %v741
    %v743 = vand.u32 %v337, 4294901760
    %v744 = vsub.f32 %v337, %v743
    %v745 = vand.u32 %v744, 4294901760
    %v746 = vsub.f32 %v744, %v745
    %v747 = vand.u32 %v746, 4294901760
    %748 = vmatpush2.msra.mxu0 %v747
    %v749 = vand.u32 %v324, 4294901760
    %v750 = vsub.f32 %v324, %v749
    %v751 = vand.u32 %v750, 4294901760
    %v752 = vsub.f32 %v750, %v751
    %v753 = vand.u32 %v752, 4294901760
    %754 = vmatprep.subr.mxu0 %v753
    %v755 = vand.u32 %v323, 4294901760
    %v756 = vsub.f32 %v323, %v755
    %v757 = vand.u32 %v756, 4294901760
    %v758 = vsub.f32 %v756, %v757
    %v759 = vand.u32 %v758, 4294901760
    %760 = vmatpush2.msra.mxu0 %v759
    %v761 = vand.u32 %v310, 4294901760
    %v762 = vsub.f32 %v310, %v761
    %v763 = vand.u32 %v762, 4294901760
    %v764 = vsub.f32 %v762, %v763
    %v765 = vand.u32 %v764, 4294901760
    %766 = vmatprep.subr.mxu0 %v765
    %v767 = vand.u32 %v309, 4294901760
    %v768 = vsub.f32 %v309, %v767
    %v769 = vand.u32 %v768, 4294901760
    %v770 = vsub.f32 %v768, %v769
    %v771 = vand.u32 %v770, 4294901760
    %772 = vmatpush2.msra.mxu0 %v771
    %v773 = vand.u32 %v296, 4294901760
    %v774 = vsub.f32 %v296, %v773
    %v775 = vand.u32 %v774, 4294901760
    %v776 = vsub.f32 %v774, %v775
    %v777 = vand.u32 %v776, 4294901760
    %778 = vmatprep.subr.mxu0 %v777
    %v779 = vand.u32 %v295, 4294901760
    %v780 = vsub.f32 %v295, %v779
    %v781 = vand.u32 %v780, 4294901760
    %v782 = vsub.f32 %v780, %v781
    %v783 = vand.u32 %v782, 4294901760
    %784 = vmatpush2.msra.mxu0 %v783
    %v785 = vand.u32 %v282, 4294901760
    %v786 = vsub.f32 %v282, %v785
    %v787 = vand.u32 %v786, 4294901760
    %v788 = vsub.f32 %v786, %v787
    %v789 = vand.u32 %v788, 4294901760
    %790 = vmatprep.subr.mxu0 %v789
    %v791 = vand.u32 %v281, 4294901760
    %v792 = vsub.f32 %v281, %v791
    %v793 = vand.u32 %v792, 4294901760
    %v794 = vsub.f32 %v792, %v793
    %v795 = vand.u32 %v794, 4294901760
    %796 = vmatpush2.msra.mxu0 %v795
    %v797 = vand.u32 %v268, 4294901760
    %v798 = vsub.f32 %v268, %v797
    %v799 = vand.u32 %v798, 4294901760
    %v800 = vsub.f32 %v798, %v799
    %v801 = vand.u32 %v800, 4294901760
    %802 = vmatprep.subr.mxu0 %v801
    %v803 = vand.u32 %v267, 4294901760
    %v804 = vsub.f32 %v267, %v803
    %v805 = vand.u32 %v804, 4294901760
    %v806 = vsub.f32 %v804, %v805
    %v807 = vand.u32 %v806, 4294901760
    %808 = vmatpush2.msra.mxu0 %v807
    %v809 = vand.u32 %v254, 4294901760
    %v810 = vsub.f32 %v254, %v809
    %v811 = vand.u32 %v810, 4294901760
    %v812 = vsub.f32 %v810, %v811
    %v813 = vand.u32 %v812, 4294901760
    %814 = vmatprep.subr.mxu0 %v813
    %v815 = vand.u32 %v253, 4294901760
    %v816 = vsub.f32 %v253, %v815
    %v817 = vand.u32 %v816, 4294901760
    %v818 = vsub.f32 %v816, %v817
    %v819 = vand.u32 %v818, 4294901760
    %820 = vmatpush2.msra.mxu0 %v819
    %v821 = vand.u32 %v367, 4294901760
    %822 = vmatprep.mubr.f32.mxu0 %v821
    %v823 = vand.u32 %v25, 4294901760
    %824 = vmatmul.mubr.f32.gmra.mxu0 %v823
    %v825 = vpop.f32.mrf.mxu0
    %v826 = vadd.f32 %v497, %v825
    %v827 = vpop.f32.mrf.mxu0
    %v828 = vadd.f32 %v499, %v827
    %v829 = vand.u32 %v370, 4294901760
    %830 = vmatprep.mubr.f32.mxu0 %v829
    %v831 = vand.u32 %v27, 4294901760
    %832 = vmatmul.mubr.f32.gmra.mxu0 %v831
    %v833 = vpop.f32.mrf.mxu0
    %v834 = vadd.f32 %v513, %v833
    %v835 = vpop.f32.mrf.mxu0
    %v836 = vadd.f32 %v515, %v835
    %837 = vdwg.mxu0
    %v838 = vand.u32 %v240, 4294901760
    %v839 = vsub.f32 %v240, %v838
    %840 = vmatprep.subr.mxu0 %v839
    %v841 = vand.u32 %v239, 4294901760
    %v842 = vsub.f32 %v239, %v841
    %843 = vmatpush1.msra.mxu0 %v842
    %v844 = vand.u32 %v226, 4294901760
    %v845 = vsub.f32 %v226, %v844
    %846 = vmatprep.subr.mxu0 %v845
    %v847 = vand.u32 %v225, 4294901760
    %v848 = vsub.f32 %v225, %v847
    %849 = vmatpush1.msra.mxu0 %v848
    %v850 = vand.u32 %v212, 4294901760
    %v851 = vsub.f32 %v212, %v850
    %852 = vmatprep.subr.mxu0 %v851
    %v853 = vand.u32 %v211, 4294901760
    %v854 = vsub.f32 %v211, %v853
    %855 = vmatpush1.msra.mxu0 %v854
    %v856 = vand.u32 %v198, 4294901760
    %v857 = vsub.f32 %v198, %v856
    %858 = vmatprep.subr.mxu0 %v857
    %v859 = vand.u32 %v197, 4294901760
    %v860 = vsub.f32 %v197, %v859
    %861 = vmatpush1.msra.mxu0 %v860
    %v862 = vand.u32 %v184, 4294901760
    %v863 = vsub.f32 %v184, %v862
    %864 = vmatprep.subr.mxu0 %v863
    %v865 = vand.u32 %v183, 4294901760
    %v866 = vsub.f32 %v183, %v865
    %867 = vmatpush1.msra.mxu0 %v866
    %v868 = vand.u32 %v170, 4294901760
    %v869 = vsub.f32 %v170, %v868
    %870 = vmatprep.subr.mxu0 %v869
    %v871 = vand.u32 %v169, 4294901760
    %v872 = vsub.f32 %v169, %v871
    %873 = vmatpush1.msra.mxu0 %v872
    %v874 = vand.u32 %v156, 4294901760
    %v875 = vsub.f32 %v156, %v874
    %876 = vmatprep.subr.mxu0 %v875
    %v877 = vand.u32 %v155, 4294901760
    %v878 = vsub.f32 %v155, %v877
    %879 = vmatpush1.msra.mxu0 %v878
    %v880 = vand.u32 %v142, 4294901760
    %v881 = vsub.f32 %v142, %v880
    %882 = vmatprep.subr.mxu0 %v881
    %v883 = vand.u32 %v141, 4294901760
    %v884 = vsub.f32 %v141, %v883
    %885 = vmatpush1.msra.mxu0 %v884
    %v886 = vand.u32 %v128, 4294901760
    %v887 = vsub.f32 %v128, %v886
    %888 = vmatprep.subr.mxu0 %v887
    %v889 = vand.u32 %v127, 4294901760
    %v890 = vsub.f32 %v127, %v889
    %891 = vmatpush1.msra.mxu0 %v890
    %v892 = vand.u32 %v114, 4294901760
    %v893 = vsub.f32 %v114, %v892
    %894 = vmatprep.subr.mxu0 %v893
    %v895 = vand.u32 %v113, 4294901760
    %v896 = vsub.f32 %v113, %v895
    %897 = vmatpush1.msra.mxu0 %v896
    %v898 = vand.u32 %v100, 4294901760
    %v899 = vsub.f32 %v100, %v898
    %900 = vmatprep.subr.mxu0 %v899
    %v901 = vand.u32 %v99, 4294901760
    %v902 = vsub.f32 %v99, %v901
    %903 = vmatpush1.msra.mxu0 %v902
    %v904 = vand.u32 %v86, 4294901760
    %v905 = vsub.f32 %v86, %v904
    %906 = vmatprep.subr.mxu0 %v905
    %v907 = vand.u32 %v85, 4294901760
    %v908 = vsub.f32 %v85, %v907
    %909 = vmatpush1.msra.mxu0 %v908
    %v910 = vand.u32 %v72, 4294901760
    %v911 = vsub.f32 %v72, %v910
    %912 = vmatprep.subr.mxu0 %v911
    %v913 = vand.u32 %v71, 4294901760
    %v914 = vsub.f32 %v71, %v913
    %915 = vmatpush1.msra.mxu0 %v914
    %v916 = vand.u32 %v58, 4294901760
    %v917 = vsub.f32 %v58, %v916
    %918 = vmatprep.subr.mxu0 %v917
    %v919 = vand.u32 %v57, 4294901760
    %v920 = vsub.f32 %v57, %v919
    %921 = vmatpush1.msra.mxu0 %v920
    %v922 = vand.u32 %v44, 4294901760
    %v923 = vsub.f32 %v44, %v922
    %924 = vmatprep.subr.mxu0 %v923
    %v925 = vand.u32 %v43, 4294901760
    %v926 = vsub.f32 %v43, %v925
    %927 = vmatpush1.msra.mxu0 %v926
    %v928 = vand.u32 %v30, 4294901760
    %v929 = vsub.f32 %v30, %v928
    %930 = vmatprep.subr.mxu0 %v929
    %v931 = vand.u32 %v29, 4294901760
    %v932 = vsub.f32 %v29, %v931
    %933 = vmatpush1.msra.mxu0 %v932
    %934 = vmatprep.subr.mxu0 0.0
    %935 = vmatpush2.msra.mxu0 0.0
    %936 = vmatprep.subr.mxu0 0.0
    %937 = vmatpush2.msra.mxu0 0.0
    %938 = vmatprep.subr.mxu0 0.0
    %939 = vmatpush2.msra.mxu0 0.0
    %940 = vmatprep.subr.mxu0 0.0
    %941 = vmatpush2.msra.mxu0 0.0
    %942 = vmatprep.subr.mxu0 0.0
    %943 = vmatpush2.msra.mxu0 0.0
    %944 = vmatprep.subr.mxu0 0.0
    %945 = vmatpush2.msra.mxu0 0.0
    %946 = vmatprep.subr.mxu0 0.0
    %947 = vmatpush2.msra.mxu0 0.0
    %948 = vmatprep.subr.mxu0 0.0
    %949 = vmatpush2.msra.mxu0 0.0
    %v950 = vand.u32 %v352, 4294901760
    %v951 = vsub.f32 %v352, %v950
    %952 = vmatprep.subr.mxu0 %v951
    %v953 = vand.u32 %v351, 4294901760
    %v954 = vsub.f32 %v351, %v953
    %955 = vmatpush2.msra.mxu0 %v954
    %v956 = vand.u32 %v338, 4294901760
    %v957 = vsub.f32 %v338, %v956
    %958 = vmatprep.subr.mxu0 %v957
    %v959 = vand.u32 %v337, 4294901760
    %v960 = vsub.f32 %v337, %v959
    %961 = vmatpush2.msra.mxu0 %v960
    %v962 = vand.u32 %v324, 4294901760
    %v963 = vsub.f32 %v324, %v962
    %964 = vmatprep.subr.mxu0 %v963
    %v965 = vand.u32 %v323, 4294901760
    %v966 = vsub.f32 %v323, %v965
    %967 = vmatpush2.msra.mxu0 %v966
    %v968 = vand.u32 %v310, 4294901760
    %v969 = vsub.f32 %v310, %v968
    %970 = vmatprep.subr.mxu0 %v969
    %v971 = vand.u32 %v309, 4294901760
    %v972 = vsub.f32 %v309, %v971
    %973 = vmatpush2.msra.mxu0 %v972
    %v974 = vand.u32 %v296, 4294901760
    %v975 = vsub.f32 %v296, %v974
    %976 = vmatprep.subr.mxu0 %v975
    %v977 = vand.u32 %v295, 4294901760
    %v978 = vsub.f32 %v295, %v977
    %979 = vmatpush2.msra.mxu0 %v978
    %v980 = vand.u32 %v282, 4294901760
    %v981 = vsub.f32 %v282, %v980
    %982 = vmatprep.subr.mxu0 %v981
    %v983 = vand.u32 %v281, 4294901760
    %v984 = vsub.f32 %v281, %v983
    %985 = vmatpush2.msra.mxu0 %v984
    %v986 = vand.u32 %v268, 4294901760
    %v987 = vsub.f32 %v268, %v986
    %988 = vmatprep.subr.mxu0 %v987
    %v989 = vand.u32 %v267, 4294901760
    %v990 = vsub.f32 %v267, %v989
    %991 = vmatpush2.msra.mxu0 %v990
    %v992 = vand.u32 %v254, 4294901760
    %v993 = vsub.f32 %v254, %v992
    %994 = vmatprep.subr.mxu0 %v993
    %v995 = vand.u32 %v253, 4294901760
    %v996 = vsub.f32 %v253, %v995
    %997 = vmatpush2.msra.mxu0 %v996
    %v998 = vand.u32 %v367, 4294901760
    %v999 = vsub.f32 %v367, %v998
    %1000 = vmatprep.mubr.f32.mxu0 %v999
    %v1001 = vand.u32 %v25, 4294901760
    %v1002 = vsub.f32 %v25, %v1001
    %1003 = vmatmul.mubr.f32.gmra.mxu0 %v1002
    %v1004 = vpop.f32.mrf.mxu0
    %v1005 = vadd.f32 %v826, %v1004
    %v1006 = vpop.f32.mrf.mxu0
    %v1007 = vadd.f32 %v828, %v1006
    %v1008 = vand.u32 %v370, 4294901760
    %v1009 = vsub.f32 %v370, %v1008
    %1010 = vmatprep.mubr.f32.mxu0 %v1009
    %v1011 = vand.u32 %v27, 4294901760
    %v1012 = vsub.f32 %v27, %v1011
    %1013 = vmatmul.mubr.f32.gmra.mxu0 %v1012
    %v1014 = vpop.f32.mrf.mxu0
    %v1015 = vadd.f32 %v834, %v1014
    %v1016 = vpop.f32.mrf.mxu0
    %v1017 = vadd.f32 %v836, %v1016
    %1018 = vdwg.mxu0
    %v1019 = vand.u32 %v240, 4294901760
    %1020 = vmatprep.subr.mxu0 %v1019
    %v1021 = vand.u32 %v239, 4294901760
    %1022 = vmatpush1.msra.mxu0 %v1021
    %v1023 = vand.u32 %v226, 4294901760
    %1024 = vmatprep.subr.mxu0 %v1023
    %v1025 = vand.u32 %v225, 4294901760
    %1026 = vmatpush1.msra.mxu0 %v1025
    %v1027 = vand.u32 %v212, 4294901760
    %1028 = vmatprep.subr.mxu0 %v1027
    %v1029 = vand.u32 %v211, 4294901760
    %1030 = vmatpush1.msra.mxu0 %v1029
    %v1031 = vand.u32 %v198, 4294901760
    %1032 = vmatprep.subr.mxu0 %v1031
    %v1033 = vand.u32 %v197, 4294901760
    %1034 = vmatpush1.msra.mxu0 %v1033
    %v1035 = vand.u32 %v184, 4294901760
    %1036 = vmatprep.subr.mxu0 %v1035
    %v1037 = vand.u32 %v183, 4294901760
    %1038 = vmatpush1.msra.mxu0 %v1037
    %v1039 = vand.u32 %v170, 4294901760
    %1040 = vmatprep.subr.mxu0 %v1039
    %v1041 = vand.u32 %v169, 4294901760
    %1042 = vmatpush1.msra.mxu0 %v1041
    %v1043 = vand.u32 %v156, 4294901760
    %1044 = vmatprep.subr.mxu0 %v1043
    %v1045 = vand.u32 %v155, 4294901760
    %1046 = vmatpush1.msra.mxu0 %v1045
    %v1047 = vand.u32 %v142, 4294901760
    %1048 = vmatprep.subr.mxu0 %v1047
    %v1049 = vand.u32 %v141, 4294901760
    %1050 = vmatpush1.msra.mxu0 %v1049
    %v1051 = vand.u32 %v128, 4294901760
    %1052 = vmatprep.subr.mxu0 %v1051
    %v1053 = vand.u32 %v127, 4294901760
    %1054 = vmatpush1.msra.mxu0 %v1053
    %v1055 = vand.u32 %v114, 4294901760
    %1056 = vmatprep.subr.mxu0 %v1055
    %v1057 = vand.u32 %v113, 4294901760
    %1058 = vmatpush1.msra.mxu0 %v1057
    %v1059 = vand.u32 %v100, 4294901760
    %1060 = vmatprep.subr.mxu0 %v1059
    %v1061 = vand.u32 %v99, 4294901760
    %1062 = vmatpush1.msra.mxu0 %v1061
    %v1063 = vand.u32 %v86, 4294901760
    %1064 = vmatprep.subr.mxu0 %v1063
    %v1065 = vand.u32 %v85, 4294901760
    %1066 = vmatpush1.msra.mxu0 %v1065
    %v1067 = vand.u32 %v72, 4294901760
    %1068 = vmatprep.subr.mxu0 %v1067
    %v1069 = vand.u32 %v71, 4294901760
    %1070 = vmatpush1.msra.mxu0 %v1069
    %v1071 = vand.u32 %v58, 4294901760
    %1072 = vmatprep.subr.mxu0 %v1071
    %v1073 = vand.u32 %v57, 4294901760
    %1074 = vmatpush1.msra.mxu0 %v1073
    %v1075 = vand.u32 %v44, 4294901760
    %1076 = vmatprep.subr.mxu0 %v1075
    %v1077 = vand.u32 %v43, 4294901760
    %1078 = vmatpush1.msra.mxu0 %v1077
    %v1079 = vand.u32 %v30, 4294901760
    %1080 = vmatprep.subr.mxu0 %v1079
    %v1081 = vand.u32 %v29, 4294901760
    %1082 = vmatpush1.msra.mxu0 %v1081
    %1083 = vmatprep.subr.mxu0 0.0
    %1084 = vmatpush2.msra.mxu0 0.0
    %1085 = vmatprep.subr.mxu0 0.0
    %1086 = vmatpush2.msra.mxu0 0.0
    %1087 = vmatprep.subr.mxu0 0.0
    %1088 = vmatpush2.msra.mxu0 0.0
    %1089 = vmatprep.subr.mxu0 0.0
    %1090 = vmatpush2.msra.mxu0 0.0
    %1091 = vmatprep.subr.mxu0 0.0
    %1092 = vmatpush2.msra.mxu0 0.0
    %1093 = vmatprep.subr.mxu0 0.0
    %1094 = vmatpush2.msra.mxu0 0.0
    %1095 = vmatprep.subr.mxu0 0.0
    %1096 = vmatpush2.msra.mxu0 0.0
    %1097 = vmatprep.subr.mxu0 0.0
    %1098 = vmatpush2.msra.mxu0 0.0
    %v1099 = vand.u32 %v352, 4294901760
    %1100 = vmatprep.subr.mxu0 %v1099
    %v1101 = vand.u32 %v351, 4294901760
    %1102 = vmatpush2.msra.mxu0 %v1101
    %v1103 = vand.u32 %v338, 4294901760
    %1104 = vmatprep.subr.mxu0 %v1103
    %v1105 = vand.u32 %v337, 4294901760
    %1106 = vmatpush2.msra.mxu0 %v1105
    %v1107 = vand.u32 %v324, 4294901760
    %1108 = vmatprep.subr.mxu0 %v1107
    %v1109 = vand.u32 %v323, 4294901760
    %1110 = vmatpush2.msra.mxu0 %v1109
    %v1111 = vand.u32 %v310, 4294901760
    %1112 = vmatprep.subr.mxu0 %v1111
    %v1113 = vand.u32 %v309, 4294901760
    %1114 = vmatpush2.msra.mxu0 %v1113
    %v1115 = vand.u32 %v296, 4294901760
    %1116 = vmatprep.subr.mxu0 %v1115
    %v1117 = vand.u32 %v295, 4294901760
    %1118 = vmatpush2.msra.mxu0 %v1117
    %v1119 = vand.u32 %v282, 4294901760
    %1120 = vmatprep.subr.mxu0 %v1119
    %v1121 = vand.u32 %v281, 4294901760
    %1122 = vmatpush2.msra.mxu0 %v1121
    %v1123 = vand.u32 %v268, 4294901760
    %1124 = vmatprep.subr.mxu0 %v1123
    %v1125 = vand.u32 %v267, 4294901760
    %1126 = vmatpush2.msra.mxu0 %v1125
    %v1127 = vand.u32 %v254, 4294901760
    %1128 = vmatprep.subr.mxu0 %v1127
    %v1129 = vand.u32 %v253, 4294901760
    %1130 = vmatpush2.msra.mxu0 %v1129
    %v1131 = vand.u32 %v367, 4294901760
    %v1132 = vsub.f32 %v367, %v1131
    %v1133 = vand.u32 %v1132, 4294901760
    %1134 = vmatprep.mubr.f32.mxu0 %v1133
    %v1135 = vand.u32 %v25, 4294901760
    %v1136 = vsub.f32 %v25, %v1135
    %v1137 = vand.u32 %v1136, 4294901760
    %1138 = vmatmul.mubr.f32.gmra.mxu0 %v1137
    %v1139 = vpop.f32.mrf.mxu0
    %v1140 = vadd.f32 %v1005, %v1139
    %v1141 = vpop.f32.mrf.mxu0
    %v1142 = vadd.f32 %v1007, %v1141
    %v1143 = vand.u32 %v370, 4294901760
    %v1144 = vsub.f32 %v370, %v1143
    %v1145 = vand.u32 %v1144, 4294901760
    %1146 = vmatprep.mubr.f32.mxu0 %v1145
    %v1147 = vand.u32 %v27, 4294901760
    %v1148 = vsub.f32 %v27, %v1147
    %v1149 = vand.u32 %v1148, 4294901760
    %1150 = vmatmul.mubr.f32.gmra.mxu0 %v1149
    %v1151 = vpop.f32.mrf.mxu0
    %v1152 = vadd.f32 %v1015, %v1151
    %v1153 = vpop.f32.mrf.mxu0
    %v1154 = vadd.f32 %v1017, %v1153
    %1155 = vdwg.mxu0
    %v1156 = vand.u32 %v240, 4294901760
    %v1157 = vsub.f32 %v240, %v1156
    %v1158 = vand.u32 %v1157, 4294901760
    %1159 = vmatprep.subr.mxu0 %v1158
    %v1160 = vand.u32 %v239, 4294901760
    %v1161 = vsub.f32 %v239, %v1160
    %v1162 = vand.u32 %v1161, 4294901760
    %1163 = vmatpush1.msra.mxu0 %v1162
    %v1164 = vand.u32 %v226, 4294901760
    %v1165 = vsub.f32 %v226, %v1164
    %v1166 = vand.u32 %v1165, 4294901760
    %1167 = vmatprep.subr.mxu0 %v1166
    %v1168 = vand.u32 %v225, 4294901760
    %v1169 = vsub.f32 %v225, %v1168
    %v1170 = vand.u32 %v1169, 4294901760
    %1171 = vmatpush1.msra.mxu0 %v1170
    %v1172 = vand.u32 %v212, 4294901760
    %v1173 = vsub.f32 %v212, %v1172
    %v1174 = vand.u32 %v1173, 4294901760
    %1175 = vmatprep.subr.mxu0 %v1174
    %v1176 = vand.u32 %v211, 4294901760
    %v1177 = vsub.f32 %v211, %v1176
    %v1178 = vand.u32 %v1177, 4294901760
    %1179 = vmatpush1.msra.mxu0 %v1178
    %v1180 = vand.u32 %v198, 4294901760
    %v1181 = vsub.f32 %v198, %v1180
    %v1182 = vand.u32 %v1181, 4294901760
    %1183 = vmatprep.subr.mxu0 %v1182
    %v1184 = vand.u32 %v197, 4294901760
    %v1185 = vsub.f32 %v197, %v1184
    %v1186 = vand.u32 %v1185, 4294901760
    %1187 = vmatpush1.msra.mxu0 %v1186
    %v1188 = vand.u32 %v184, 4294901760
    %v1189 = vsub.f32 %v184, %v1188
    %v1190 = vand.u32 %v1189, 4294901760
    %1191 = vmatprep.subr.mxu0 %v1190
    %v1192 = vand.u32 %v183, 4294901760
    %v1193 = vsub.f32 %v183, %v1192
    %v1194 = vand.u32 %v1193, 4294901760
    %1195 = vmatpush1.msra.mxu0 %v1194
    %v1196 = vand.u32 %v170, 4294901760
    %v1197 = vsub.f32 %v170, %v1196
    %v1198 = vand.u32 %v1197, 4294901760
    %1199 = vmatprep.subr.mxu0 %v1198
    %v1200 = vand.u32 %v169, 4294901760
    %v1201 = vsub.f32 %v169, %v1200
    %v1202 = vand.u32 %v1201, 4294901760
    %1203 = vmatpush1.msra.mxu0 %v1202
    %v1204 = vand.u32 %v156, 4294901760
    %v1205 = vsub.f32 %v156, %v1204
    %v1206 = vand.u32 %v1205, 4294901760
    %1207 = vmatprep.subr.mxu0 %v1206
    %v1208 = vand.u32 %v155, 4294901760
    %v1209 = vsub.f32 %v155, %v1208
    %v1210 = vand.u32 %v1209, 4294901760
    %1211 = vmatpush1.msra.mxu0 %v1210
    %v1212 = vand.u32 %v142, 4294901760
    %v1213 = vsub.f32 %v142, %v1212
    %v1214 = vand.u32 %v1213, 4294901760
    %1215 = vmatprep.subr.mxu0 %v1214
    %v1216 = vand.u32 %v141, 4294901760
    %v1217 = vsub.f32 %v141, %v1216
    %v1218 = vand.u32 %v1217, 4294901760
    %1219 = vmatpush1.msra.mxu0 %v1218
    %v1220 = vand.u32 %v128, 4294901760
    %v1221 = vsub.f32 %v128, %v1220
    %v1222 = vand.u32 %v1221, 4294901760
    %1223 = vmatprep.subr.mxu0 %v1222
    %v1224 = vand.u32 %v127, 4294901760
    %v1225 = vsub.f32 %v127, %v1224
    %v1226 = vand.u32 %v1225, 4294901760
    %1227 = vmatpush1.msra.mxu0 %v1226
    %v1228 = vand.u32 %v114, 4294901760
    %v1229 = vsub.f32 %v114, %v1228
    %v1230 = vand.u32 %v1229, 4294901760
    %1231 = vmatprep.subr.mxu0 %v1230
    %v1232 = vand.u32 %v113, 4294901760
    %v1233 = vsub.f32 %v113, %v1232
    %v1234 = vand.u32 %v1233, 4294901760
    %1235 = vmatpush1.msra.mxu0 %v1234
    %v1236 = vand.u32 %v100, 4294901760
    %v1237 = vsub.f32 %v100, %v1236
    %v1238 = vand.u32 %v1237, 4294901760
    %1239 = vmatprep.subr.mxu0 %v1238
    %v1240 = vand.u32 %v99, 4294901760
    %v1241 = vsub.f32 %v99, %v1240
    %v1242 = vand.u32 %v1241, 4294901760
    %1243 = vmatpush1.msra.mxu0 %v1242
    %v1244 = vand.u32 %v86, 4294901760
    %v1245 = vsub.f32 %v86, %v1244
    %v1246 = vand.u32 %v1245, 4294901760
    %1247 = vmatprep.subr.mxu0 %v1246
    %v1248 = vand.u32 %v85, 4294901760
    %v1249 = vsub.f32 %v85, %v1248
    %v1250 = vand.u32 %v1249, 4294901760
    %1251 = vmatpush1.msra.mxu0 %v1250
    %v1252 = vand.u32 %v72, 4294901760
    %v1253 = vsub.f32 %v72, %v1252
    %v1254 = vand.u32 %v1253, 4294901760
    %1255 = vmatprep.subr.mxu0 %v1254
    %v1256 = vand.u32 %v71, 4294901760
    %v1257 = vsub.f32 %v71, %v1256
    %v1258 = vand.u32 %v1257, 4294901760
    %1259 = vmatpush1.msra.mxu0 %v1258
    %v1260 = vand.u32 %v58, 4294901760
    %v1261 = vsub.f32 %v58, %v1260
    %v1262 = vand.u32 %v1261, 4294901760
    %1263 = vmatprep.subr.mxu0 %v1262
    %v1264 = vand.u32 %v57, 4294901760
    %v1265 = vsub.f32 %v57, %v1264
    %v1266 = vand.u32 %v1265, 4294901760
    %1267 = vmatpush1.msra.mxu0 %v1266
    %v1268 = vand.u32 %v44, 4294901760
    %v1269 = vsub.f32 %v44, %v1268
    %v1270 = vand.u32 %v1269, 4294901760
    %1271 = vmatprep.subr.mxu0 %v1270
    %v1272 = vand.u32 %v43, 4294901760
    %v1273 = vsub.f32 %v43, %v1272
    %v1274 = vand.u32 %v1273, 4294901760
    %1275 = vmatpush1.msra.mxu0 %v1274
    %v1276 = vand.u32 %v30, 4294901760
    %v1277 = vsub.f32 %v30, %v1276
    %v1278 = vand.u32 %v1277, 4294901760
    %1279 = vmatprep.subr.mxu0 %v1278
    %v1280 = vand.u32 %v29, 4294901760
    %v1281 = vsub.f32 %v29, %v1280
    %v1282 = vand.u32 %v1281, 4294901760
    %1283 = vmatpush1.msra.mxu0 %v1282
    %1284 = vmatprep.subr.mxu0 0.0
    %1285 = vmatpush2.msra.mxu0 0.0
    %1286 = vmatprep.subr.mxu0 0.0
    %1287 = vmatpush2.msra.mxu0 0.0
    %1288 = vmatprep.subr.mxu0 0.0
    %1289 = vmatpush2.msra.mxu0 0.0
    %1290 = vmatprep.subr.mxu0 0.0
    %1291 = vmatpush2.msra.mxu0 0.0
    %1292 = vmatprep.subr.mxu0 0.0
    %1293 = vmatpush2.msra.mxu0 0.0
    %1294 = vmatprep.subr.mxu0 0.0
    %1295 = vmatpush2.msra.mxu0 0.0
    %1296 = vmatprep.subr.mxu0 0.0
    %1297 = vmatpush2.msra.mxu0 0.0
    %1298 = vmatprep.subr.mxu0 0.0
    %1299 = vmatpush2.msra.mxu0 0.0
    %v1300 = vand.u32 %v352, 4294901760
    %v1301 = vsub.f32 %v352, %v1300
    %v1302 = vand.u32 %v1301, 4294901760
    %1303 = vmatprep.subr.mxu0 %v1302
    %v1304 = vand.u32 %v351, 4294901760
    %v1305 = vsub.f32 %v351, %v1304
    %v1306 = vand.u32 %v1305, 4294901760
    %1307 = vmatpush2.msra.mxu0 %v1306
    %v1308 = vand.u32 %v338, 4294901760
    %v1309 = vsub.f32 %v338, %v1308
    %v1310 = vand.u32 %v1309, 4294901760
    %1311 = vmatprep.subr.mxu0 %v1310
    %v1312 = vand.u32 %v337, 4294901760
    %v1313 = vsub.f32 %v337, %v1312
    %v1314 = vand.u32 %v1313, 4294901760
    %1315 = vmatpush2.msra.mxu0 %v1314
    %v1316 = vand.u32 %v324, 4294901760
    %v1317 = vsub.f32 %v324, %v1316
    %v1318 = vand.u32 %v1317, 4294901760
    %1319 = vmatprep.subr.mxu0 %v1318
    %v1320 = vand.u32 %v323, 4294901760
    %v1321 = vsub.f32 %v323, %v1320
    %v1322 = vand.u32 %v1321, 4294901760
    %1323 = vmatpush2.msra.mxu0 %v1322
    %v1324 = vand.u32 %v310, 4294901760
    %v1325 = vsub.f32 %v310, %v1324
    %v1326 = vand.u32 %v1325, 4294901760
    %1327 = vmatprep.subr.mxu0 %v1326
    %v1328 = vand.u32 %v309, 4294901760
    %v1329 = vsub.f32 %v309, %v1328
    %v1330 = vand.u32 %v1329, 4294901760
    %1331 = vmatpush2.msra.mxu0 %v1330
    %v1332 = vand.u32 %v296, 4294901760
    %v1333 = vsub.f32 %v296, %v1332
    %v1334 = vand.u32 %v1333, 4294901760
    %1335 = vmatprep.subr.mxu0 %v1334
    %v1336 = vand.u32 %v295, 4294901760
    %v1337 = vsub.f32 %v295, %v1336
    %v1338 = vand.u32 %v1337, 4294901760
    %1339 = vmatpush2.msra.mxu0 %v1338
    %v1340 = vand.u32 %v282, 4294901760
    %v1341 = vsub.f32 %v282, %v1340
    %v1342 = vand.u32 %v1341, 4294901760
    %1343 = vmatprep.subr.mxu0 %v1342
    %v1344 = vand.u32 %v281, 4294901760
    %v1345 = vsub.f32 %v281, %v1344
    %v1346 = vand.u32 %v1345, 4294901760
    %1347 = vmatpush2.msra.mxu0 %v1346
    %v1348 = vand.u32 %v268, 4294901760
    %v1349 = vsub.f32 %v268, %v1348
    %v1350 = vand.u32 %v1349, 4294901760
    %1351 = vmatprep.subr.mxu0 %v1350
    %v1352 = vand.u32 %v267, 4294901760
    %v1353 = vsub.f32 %v267, %v1352
    %v1354 = vand.u32 %v1353, 4294901760
    %1355 = vmatpush2.msra.mxu0 %v1354
    %v1356 = vand.u32 %v254, 4294901760
    %v1357 = vsub.f32 %v254, %v1356
    %v1358 = vand.u32 %v1357, 4294901760
    %1359 = vmatprep.subr.mxu0 %v1358
    %v1360 = vand.u32 %v253, 4294901760
    %v1361 = vsub.f32 %v253, %v1360
    %v1362 = vand.u32 %v1361, 4294901760
    %1363 = vmatpush2.msra.mxu0 %v1362
    %v1364 = vand.u32 %v367, 4294901760
    %1365 = vmatprep.mubr.f32.mxu0 %v1364
    %v1366 = vand.u32 %v25, 4294901760
    %1367 = vmatmul.mubr.f32.gmra.mxu0 %v1366
    %v1368 = vpop.f32.mrf.mxu0
    %v1369 = vadd.f32 %v1140, %v1368
    %v1370 = vpop.f32.mrf.mxu0
    %v1371 = vadd.f32 %v1142, %v1370
    %v1372 = vand.u32 %v370, 4294901760
    %1373 = vmatprep.mubr.f32.mxu0 %v1372
    %v1374 = vand.u32 %v27, 4294901760
    %1375 = vmatmul.mubr.f32.gmra.mxu0 %v1374
    %v1376 = vpop.f32.mrf.mxu0
    %v1377 = vadd.f32 %v1152, %v1376
    %v1378 = vpop.f32.mrf.mxu0
    %v1379 = vadd.f32 %v1154, %v1378
    %1380 = vdwg.mxu0
    %v1381 = vand.u32 %v240, 4294901760
    %1382 = vmatprep.subr.mxu0 %v1381
    %v1383 = vand.u32 %v239, 4294901760
    %1384 = vmatpush1.msra.mxu0 %v1383
    %v1385 = vand.u32 %v226, 4294901760
    %1386 = vmatprep.subr.mxu0 %v1385
    %v1387 = vand.u32 %v225, 4294901760
    %1388 = vmatpush1.msra.mxu0 %v1387
    %v1389 = vand.u32 %v212, 4294901760
    %1390 = vmatprep.subr.mxu0 %v1389
    %v1391 = vand.u32 %v211, 4294901760
    %1392 = vmatpush1.msra.mxu0 %v1391
    %v1393 = vand.u32 %v198, 4294901760
    %1394 = vmatprep.subr.mxu0 %v1393
    %v1395 = vand.u32 %v197, 4294901760
    %1396 = vmatpush1.msra.mxu0 %v1395
    %v1397 = vand.u32 %v184, 4294901760
    %1398 = vmatprep.subr.mxu0 %v1397
    %v1399 = vand.u32 %v183, 4294901760
    %1400 = vmatpush1.msra.mxu0 %v1399
    %v1401 = vand.u32 %v170, 4294901760
    %1402 = vmatprep.subr.mxu0 %v1401
    %v1403 = vand.u32 %v169, 4294901760
    %1404 = vmatpush1.msra.mxu0 %v1403
    %v1405 = vand.u32 %v156, 4294901760
    %1406 = vmatprep.subr.mxu0 %v1405
    %v1407 = vand.u32 %v155, 4294901760
    %1408 = vmatpush1.msra.mxu0 %v1407
    %v1409 = vand.u32 %v142, 4294901760
    %1410 = vmatprep.subr.mxu0 %v1409
    %v1411 = vand.u32 %v141, 4294901760
    %1412 = vmatpush1.msra.mxu0 %v1411
    %v1413 = vand.u32 %v128, 4294901760
    %1414 = vmatprep.subr.mxu0 %v1413
    %v1415 = vand.u32 %v127, 4294901760
    %1416 = vmatpush1.msra.mxu0 %v1415
    %v1417 = vand.u32 %v114, 4294901760
    %1418 = vmatprep.subr.mxu0 %v1417
    %v1419 = vand.u32 %v113, 4294901760
    %1420 = vmatpush1.msra.mxu0 %v1419
    %v1421 = vand.u32 %v100, 4294901760
    %1422 = vmatprep.subr.mxu0 %v1421
    %v1423 = vand.u32 %v99, 4294901760
    %1424 = vmatpush1.msra.mxu0 %v1423
    %v1425 = vand.u32 %v86, 4294901760
    %1426 = vmatprep.subr.mxu0 %v1425
    %v1427 = vand.u32 %v85, 4294901760
    %1428 = vmatpush1.msra.mxu0 %v1427
    %v1429 = vand.u32 %v72, 4294901760
    %1430 = vmatprep.subr.mxu0 %v1429
    %v1431 = vand.u32 %v71, 4294901760
    %1432 = vmatpush1.msra.mxu0 %v1431
    %v1433 = vand.u32 %v58, 4294901760
    %1434 = vmatprep.subr.mxu0 %v1433
    %v1435 = vand.u32 %v57, 4294901760
    %1436 = vmatpush1.msra.mxu0 %v1435
    %v1437 = vand.u32 %v44, 4294901760
    %1438 = vmatprep.subr.mxu0 %v1437
    %v1439 = vand.u32 %v43, 4294901760
    %1440 = vmatpush1.msra.mxu0 %v1439
    %v1441 = vand.u32 %v30, 4294901760
    %1442 = vmatprep.subr.mxu0 %v1441
    %v1443 = vand.u32 %v29, 4294901760
    %1444 = vmatpush1.msra.mxu0 %v1443
    %1445 = vmatprep.subr.mxu0 0.0
    %1446 = vmatpush2.msra.mxu0 0.0
    %1447 = vmatprep.subr.mxu0 0.0
    %1448 = vmatpush2.msra.mxu0 0.0
    %1449 = vmatprep.subr.mxu0 0.0
    %1450 = vmatpush2.msra.mxu0 0.0
    %1451 = vmatprep.subr.mxu0 0.0
    %1452 = vmatpush2.msra.mxu0 0.0
    %1453 = vmatprep.subr.mxu0 0.0
    %1454 = vmatpush2.msra.mxu0 0.0
    %1455 = vmatprep.subr.mxu0 0.0
    %1456 = vmatpush2.msra.mxu0 0.0
    %1457 = vmatprep.subr.mxu0 0.0
    %1458 = vmatpush2.msra.mxu0 0.0
    %1459 = vmatprep.subr.mxu0 0.0
    %1460 = vmatpush2.msra.mxu0 0.0
    %v1461 = vand.u32 %v352, 4294901760
    %1462 = vmatprep.subr.mxu0 %v1461
    %v1463 = vand.u32 %v351, 4294901760
    %1464 = vmatpush2.msra.mxu0 %v1463
    %v1465 = vand.u32 %v338, 4294901760
    %1466 = vmatprep.subr.mxu0 %v1465
    %v1467 = vand.u32 %v337, 4294901760
    %1468 = vmatpush2.msra.mxu0 %v1467
    %v1469 = vand.u32 %v324, 4294901760
    %1470 = vmatprep.subr.mxu0 %v1469
    %v1471 = vand.u32 %v323, 4294901760
    %1472 = vmatpush2.msra.mxu0 %v1471
    %v1473 = vand.u32 %v310, 4294901760
    %1474 = vmatprep.subr.mxu0 %v1473
    %v1475 = vand.u32 %v309, 4294901760
    %1476 = vmatpush2.msra.mxu0 %v1475
    %v1477 = vand.u32 %v296, 4294901760
    %1478 = vmatprep.subr.mxu0 %v1477
    %v1479 = vand.u32 %v295, 4294901760
    %1480 = vmatpush2.msra.mxu0 %v1479
    %v1481 = vand.u32 %v282, 4294901760
    %1482 = vmatprep.subr.mxu0 %v1481
    %v1483 = vand.u32 %v281, 4294901760
    %1484 = vmatpush2.msra.mxu0 %v1483
    %v1485 = vand.u32 %v268, 4294901760
    %1486 = vmatprep.subr.mxu0 %v1485
    %v1487 = vand.u32 %v267, 4294901760
    %1488 = vmatpush2.msra.mxu0 %v1487
    %v1489 = vand.u32 %v254, 4294901760
    %1490 = vmatprep.subr.mxu0 %v1489
    %v1491 = vand.u32 %v253, 4294901760
    %1492 = vmatpush2.msra.mxu0 %v1491
    %v1493 = vand.u32 %v367, 4294901760
    %1494 = vmatprep.mubr.f32.mxu0 %v1493
    %v1495 = vand.u32 %v25, 4294901760
    %1496 = vmatmul.mubr.f32.gmra.mxu0 %v1495
    %v1497 = vpop.f32.mrf.mxu0
    %v1498 = vadd.f32 %v1369, %v1497
    %v1499 = vpop.f32.mrf.mxu0
    %v1500 = vadd.f32 %v1371, %v1499
    %v1501 = vand.u32 %v370, 4294901760
    %1502 = vmatprep.mubr.f32.mxu0 %v1501
    %v1503 = vand.u32 %v27, 4294901760
    %1504 = vmatmul.mubr.f32.gmra.mxu0 %v1503
    %v1505 = vpop.f32.mrf.mxu0
    %v1506 = vadd.f32 %v1377, %v1505
    %v1507 = vpop.f32.mrf.mxu0
    %v1508 = vadd.f32 %v1379, %v1507
    %1509 = vdwg.mxu0
    %v1510 = vand.u32 %v242, 4294901760
    %1511 = vmatprep.subr.mxu0 %v1510
    %v1512 = vand.u32 %v241, 4294901760
    %1513 = vmatpush1.msra.mxu0 %v1512
    %v1514 = vand.u32 %v228, 4294901760
    %1515 = vmatprep.subr.mxu0 %v1514
    %v1516 = vand.u32 %v227, 4294901760
    %1517 = vmatpush1.msra.mxu0 %v1516
    %v1518 = vand.u32 %v214, 4294901760
    %1519 = vmatprep.subr.mxu0 %v1518
    %v1520 = vand.u32 %v213, 4294901760
    %1521 = vmatpush1.msra.mxu0 %v1520
    %v1522 = vand.u32 %v200, 4294901760
    %1523 = vmatprep.subr.mxu0 %v1522
    %v1524 = vand.u32 %v199, 4294901760
    %1525 = vmatpush1.msra.mxu0 %v1524
    %v1526 = vand.u32 %v186, 4294901760
    %1527 = vmatprep.subr.mxu0 %v1526
    %v1528 = vand.u32 %v185, 4294901760
    %1529 = vmatpush1.msra.mxu0 %v1528
    %v1530 = vand.u32 %v172, 4294901760
    %1531 = vmatprep.subr.mxu0 %v1530
    %v1532 = vand.u32 %v171, 4294901760
    %1533 = vmatpush1.msra.mxu0 %v1532
    %v1534 = vand.u32 %v158, 4294901760
    %1535 = vmatprep.subr.mxu0 %v1534
    %v1536 = vand.u32 %v157, 4294901760
    %1537 = vmatpush1.msra.mxu0 %v1536
    %v1538 = vand.u32 %v144, 4294901760
    %1539 = vmatprep.subr.mxu0 %v1538
    %v1540 = vand.u32 %v143, 4294901760
    %1541 = vmatpush1.msra.mxu0 %v1540
    %v1542 = vand.u32 %v130, 4294901760
    %1543 = vmatprep.subr.mxu0 %v1542
    %v1544 = vand.u32 %v129, 4294901760
    %1545 = vmatpush1.msra.mxu0 %v1544
    %v1546 = vand.u32 %v116, 4294901760
    %1547 = vmatprep.subr.mxu0 %v1546
    %v1548 = vand.u32 %v115, 4294901760
    %1549 = vmatpush1.msra.mxu0 %v1548
    %v1550 = vand.u32 %v102, 4294901760
    %1551 = vmatprep.subr.mxu0 %v1550
    %v1552 = vand.u32 %v101, 4294901760
    %1553 = vmatpush1.msra.mxu0 %v1552
    %v1554 = vand.u32 %v88, 4294901760
    %1555 = vmatprep.subr.mxu0 %v1554
    %v1556 = vand.u32 %v87, 4294901760
    %1557 = vmatpush1.msra.mxu0 %v1556
    %v1558 = vand.u32 %v74, 4294901760
    %1559 = vmatprep.subr.mxu0 %v1558
    %v1560 = vand.u32 %v73, 4294901760
    %1561 = vmatpush1.msra.mxu0 %v1560
    %v1562 = vand.u32 %v60, 4294901760
    %1563 = vmatprep.subr.mxu0 %v1562
    %v1564 = vand.u32 %v59, 4294901760
    %1565 = vmatpush1.msra.mxu0 %v1564
    %v1566 = vand.u32 %v46, 4294901760
    %1567 = vmatprep.subr.mxu0 %v1566
    %v1568 = vand.u32 %v45, 4294901760
    %1569 = vmatpush1.msra.mxu0 %v1568
    %v1570 = vand.u32 %v32, 4294901760
    %1571 = vmatprep.subr.mxu0 %v1570
    %v1572 = vand.u32 %v31, 4294901760
    %1573 = vmatpush1.msra.mxu0 %v1572
    %1574 = vmatprep.subr.mxu0 0.0
    %1575 = vmatpush2.msra.mxu0 0.0
    %1576 = vmatprep.subr.mxu0 0.0
    %1577 = vmatpush2.msra.mxu0 0.0
    %1578 = vmatprep.subr.mxu0 0.0
    %1579 = vmatpush2.msra.mxu0 0.0
    %1580 = vmatprep.subr.mxu0 0.0
    %1581 = vmatpush2.msra.mxu0 0.0
    %1582 = vmatprep.subr.mxu0 0.0
    %1583 = vmatpush2.msra.mxu0 0.0
    %1584 = vmatprep.subr.mxu0 0.0
    %1585 = vmatpush2.msra.mxu0 0.0
    %1586 = vmatprep.subr.mxu0 0.0
    %1587 = vmatpush2.msra.mxu0 0.0
    %1588 = vmatprep.subr.mxu0 0.0
    %1589 = vmatpush2.msra.mxu0 0.0
    %v1590 = vand.u32 %v354, 4294901760
    %1591 = vmatprep.subr.mxu0 %v1590
    %v1592 = vand.u32 %v353, 4294901760
    %1593 = vmatpush2.msra.mxu0 %v1592
    %v1594 = vand.u32 %v340, 4294901760
    %1595 = vmatprep.subr.mxu0 %v1594
    %v1596 = vand.u32 %v339, 4294901760
    %1597 = vmatpush2.msra.mxu0 %v1596
    %v1598 = vand.u32 %v326, 4294901760
    %1599 = vmatprep.subr.mxu0 %v1598
    %v1600 = vand.u32 %v325, 4294901760
    %1601 = vmatpush2.msra.mxu0 %v1600
    %v1602 = vand.u32 %v312, 4294901760
    %1603 = vmatprep.subr.mxu0 %v1602
    %v1604 = vand.u32 %v311, 4294901760
    %1605 = vmatpush2.msra.mxu0 %v1604
    %v1606 = vand.u32 %v298, 4294901760
    %1607 = vmatprep.subr.mxu0 %v1606
    %v1608 = vand.u32 %v297, 4294901760
    %1609 = vmatpush2.msra.mxu0 %v1608
    %v1610 = vand.u32 %v284, 4294901760
    %1611 = vmatprep.subr.mxu0 %v1610
    %v1612 = vand.u32 %v283, 4294901760
    %1613 = vmatpush2.msra.mxu0 %v1612
    %v1614 = vand.u32 %v270, 4294901760
    %1615 = vmatprep.subr.mxu0 %v1614
    %v1616 = vand.u32 %v269, 4294901760
    %1617 = vmatpush2.msra.mxu0 %v1616
    %v1618 = vand.u32 %v256, 4294901760
    %1619 = vmatprep.subr.mxu0 %v1618
    %v1620 = vand.u32 %v255, 4294901760
    %1621 = vmatpush2.msra.mxu0 %v1620
    %v1622 = vand.u32 %v367, 4294901760
    %v1623 = vsub.f32 %v367, %v1622
    %v1624 = vand.u32 %v1623, 4294901760
    %v1625 = vsub.f32 %v1623, %v1624
    %v1626 = vand.u32 %v1625, 4294901760
    %1627 = vmatprep.mubr.f32.mxu0 %v1626
    %v1628 = vand.u32 %v25, 4294901760
    %v1629 = vsub.f32 %v25, %v1628
    %v1630 = vand.u32 %v1629, 4294901760
    %v1631 = vsub.f32 %v1629, %v1630
    %v1632 = vand.u32 %v1631, 4294901760
    %1633 = vmatmul.mubr.f32.gmra.mxu0 %v1632
    %v1634 = vpop.f32.mrf.mxu0
    %v1635 = vadd.f32 0.0, %v1634
    %v1636 = vpop.f32.mrf.mxu0
    %v1637 = vadd.f32 0.0, %v1636
    %v1638 = vand.u32 %v370, 4294901760
    %v1639 = vsub.f32 %v370, %v1638
    %v1640 = vand.u32 %v1639, 4294901760
    %v1641 = vsub.f32 %v1639, %v1640
    %v1642 = vand.u32 %v1641, 4294901760
    %1643 = vmatprep.mubr.f32.mxu0 %v1642
    %v1644 = vand.u32 %v27, 4294901760
    %v1645 = vsub.f32 %v27, %v1644
    %v1646 = vand.u32 %v1645, 4294901760
    %v1647 = vsub.f32 %v1645, %v1646
    %v1648 = vand.u32 %v1647, 4294901760
    %1649 = vmatmul.mubr.f32.gmra.mxu0 %v1648
    %v1650 = vpop.f32.mrf.mxu0
    %v1651 = vadd.f32 0.0, %v1650
    %v1652 = vpop.f32.mrf.mxu0
    %v1653 = vadd.f32 0.0, %v1652
    %1654 = vdwg.mxu0
    %v1655 = vand.u32 %v242, 4294901760
    %v1656 = vsub.f32 %v242, %v1655
    %v1657 = vand.u32 %v1656, 4294901760
    %v1658 = vsub.f32 %v1656, %v1657
    %v1659 = vand.u32 %v1658, 4294901760
    %1660 = vmatprep.subr.mxu0 %v1659
    %v1661 = vand.u32 %v241, 4294901760
    %v1662 = vsub.f32 %v241, %v1661
    %v1663 = vand.u32 %v1662, 4294901760
    %v1664 = vsub.f32 %v1662, %v1663
    %v1665 = vand.u32 %v1664, 4294901760
    %1666 = vmatpush1.msra.mxu0 %v1665
    %v1667 = vand.u32 %v228, 4294901760
    %v1668 = vsub.f32 %v228, %v1667
    %v1669 = vand.u32 %v1668, 4294901760
    %v1670 = vsub.f32 %v1668, %v1669
    %v1671 = vand.u32 %v1670, 4294901760
    %1672 = vmatprep.subr.mxu0 %v1671
    %v1673 = vand.u32 %v227, 4294901760
    %v1674 = vsub.f32 %v227, %v1673
    %v1675 = vand.u32 %v1674, 4294901760
    %v1676 = vsub.f32 %v1674, %v1675
    %v1677 = vand.u32 %v1676, 4294901760
    %1678 = vmatpush1.msra.mxu0 %v1677
    %v1679 = vand.u32 %v214, 4294901760
    %v1680 = vsub.f32 %v214, %v1679
    %v1681 = vand.u32 %v1680, 4294901760
    %v1682 = vsub.f32 %v1680, %v1681
    %v1683 = vand.u32 %v1682, 4294901760
    %1684 = vmatprep.subr.mxu0 %v1683
    %v1685 = vand.u32 %v213, 4294901760
    %v1686 = vsub.f32 %v213, %v1685
    %v1687 = vand.u32 %v1686, 4294901760
    %v1688 = vsub.f32 %v1686, %v1687
    %v1689 = vand.u32 %v1688, 4294901760
    %1690 = vmatpush1.msra.mxu0 %v1689
    %v1691 = vand.u32 %v200, 4294901760
    %v1692 = vsub.f32 %v200, %v1691
    %v1693 = vand.u32 %v1692, 4294901760
    %v1694 = vsub.f32 %v1692, %v1693
    %v1695 = vand.u32 %v1694, 4294901760
    %1696 = vmatprep.subr.mxu0 %v1695
    %v1697 = vand.u32 %v199, 4294901760
    %v1698 = vsub.f32 %v199, %v1697
    %v1699 = vand.u32 %v1698, 4294901760
    %v1700 = vsub.f32 %v1698, %v1699
    %v1701 = vand.u32 %v1700, 4294901760
    %1702 = vmatpush1.msra.mxu0 %v1701
    %v1703 = vand.u32 %v186, 4294901760
    %v1704 = vsub.f32 %v186, %v1703
    %v1705 = vand.u32 %v1704, 4294901760
    %v1706 = vsub.f32 %v1704, %v1705
    %v1707 = vand.u32 %v1706, 4294901760
    %1708 = vmatprep.subr.mxu0 %v1707
    %v1709 = vand.u32 %v185, 4294901760
    %v1710 = vsub.f32 %v185, %v1709
    %v1711 = vand.u32 %v1710, 4294901760
    %v1712 = vsub.f32 %v1710, %v1711
    %v1713 = vand.u32 %v1712, 4294901760
    %1714 = vmatpush1.msra.mxu0 %v1713
    %v1715 = vand.u32 %v172, 4294901760
    %v1716 = vsub.f32 %v172, %v1715
    %v1717 = vand.u32 %v1716, 4294901760
    %v1718 = vsub.f32 %v1716, %v1717
    %v1719 = vand.u32 %v1718, 4294901760
    %1720 = vmatprep.subr.mxu0 %v1719
    %v1721 = vand.u32 %v171, 4294901760
    %v1722 = vsub.f32 %v171, %v1721
    %v1723 = vand.u32 %v1722, 4294901760
    %v1724 = vsub.f32 %v1722, %v1723
    %v1725 = vand.u32 %v1724, 4294901760
    %1726 = vmatpush1.msra.mxu0 %v1725
    %v1727 = vand.u32 %v158, 4294901760
    %v1728 = vsub.f32 %v158, %v1727
    %v1729 = vand.u32 %v1728, 4294901760
    %v1730 = vsub.f32 %v1728, %v1729
    %v1731 = vand.u32 %v1730, 4294901760
    %1732 = vmatprep.subr.mxu0 %v1731
    %v1733 = vand.u32 %v157, 4294901760
    %v1734 = vsub.f32 %v157, %v1733
    %v1735 = vand.u32 %v1734, 4294901760
    %v1736 = vsub.f32 %v1734, %v1735
    %v1737 = vand.u32 %v1736, 4294901760
    %1738 = vmatpush1.msra.mxu0 %v1737
    %v1739 = vand.u32 %v144, 4294901760
    %v1740 = vsub.f32 %v144, %v1739
    %v1741 = vand.u32 %v1740, 4294901760
    %v1742 = vsub.f32 %v1740, %v1741
    %v1743 = vand.u32 %v1742, 4294901760
    %1744 = vmatprep.subr.mxu0 %v1743
    %v1745 = vand.u32 %v143, 4294901760
    %v1746 = vsub.f32 %v143, %v1745
    %v1747 = vand.u32 %v1746, 4294901760
    %v1748 = vsub.f32 %v1746, %v1747
    %v1749 = vand.u32 %v1748, 4294901760
    %1750 = vmatpush1.msra.mxu0 %v1749
    %v1751 = vand.u32 %v130, 4294901760
    %v1752 = vsub.f32 %v130, %v1751
    %v1753 = vand.u32 %v1752, 4294901760
    %v1754 = vsub.f32 %v1752, %v1753
    %v1755 = vand.u32 %v1754, 4294901760
    %1756 = vmatprep.subr.mxu0 %v1755
    %v1757 = vand.u32 %v129, 4294901760
    %v1758 = vsub.f32 %v129, %v1757
    %v1759 = vand.u32 %v1758, 4294901760
    %v1760 = vsub.f32 %v1758, %v1759
    %v1761 = vand.u32 %v1760, 4294901760
    %1762 = vmatpush1.msra.mxu0 %v1761
    %v1763 = vand.u32 %v116, 4294901760
    %v1764 = vsub.f32 %v116, %v1763
    %v1765 = vand.u32 %v1764, 4294901760
    %v1766 = vsub.f32 %v1764, %v1765
    %v1767 = vand.u32 %v1766, 4294901760
    %1768 = vmatprep.subr.mxu0 %v1767
    %v1769 = vand.u32 %v115, 4294901760
    %v1770 = vsub.f32 %v115, %v1769
    %v1771 = vand.u32 %v1770, 4294901760
    %v1772 = vsub.f32 %v1770, %v1771
    %v1773 = vand.u32 %v1772, 4294901760
    %1774 = vmatpush1.msra.mxu0 %v1773
    %v1775 = vand.u32 %v102, 4294901760
    %v1776 = vsub.f32 %v102, %v1775
    %v1777 = vand.u32 %v1776, 4294901760
    %v1778 = vsub.f32 %v1776, %v1777
    %v1779 = vand.u32 %v1778, 4294901760
    %1780 = vmatprep.subr.mxu0 %v1779
    %v1781 = vand.u32 %v101, 4294901760
    %v1782 = vsub.f32 %v101, %v1781
    %v1783 = vand.u32 %v1782, 4294901760
    %v1784 = vsub.f32 %v1782, %v1783
    %v1785 = vand.u32 %v1784, 4294901760
    %1786 = vmatpush1.msra.mxu0 %v1785
    %v1787 = vand.u32 %v88, 4294901760
    %v1788 = vsub.f32 %v88, %v1787
    %v1789 = vand.u32 %v1788, 4294901760
    %v1790 = vsub.f32 %v1788, %v1789
    %v1791 = vand.u32 %v1790, 4294901760
    %1792 = vmatprep.subr.mxu0 %v1791
    %v1793 = vand.u32 %v87, 4294901760
    %v1794 = vsub.f32 %v87, %v1793
    %v1795 = vand.u32 %v1794, 4294901760
    %v1796 = vsub.f32 %v1794, %v1795
    %v1797 = vand.u32 %v1796, 4294901760
    %1798 = vmatpush1.msra.mxu0 %v1797
    %v1799 = vand.u32 %v74, 4294901760
    %v1800 = vsub.f32 %v74, %v1799
    %v1801 = vand.u32 %v1800, 4294901760
    %v1802 = vsub.f32 %v1800, %v1801
    %v1803 = vand.u32 %v1802, 4294901760
    %1804 = vmatprep.subr.mxu0 %v1803
    %v1805 = vand.u32 %v73, 4294901760
    %v1806 = vsub.f32 %v73, %v1805
    %v1807 = vand.u32 %v1806, 4294901760
    %v1808 = vsub.f32 %v1806, %v1807
    %v1809 = vand.u32 %v1808, 4294901760
    %1810 = vmatpush1.msra.mxu0 %v1809
    %v1811 = vand.u32 %v60, 4294901760
    %v1812 = vsub.f32 %v60, %v1811
    %v1813 = vand.u32 %v1812, 4294901760
    %v1814 = vsub.f32 %v1812, %v1813
    %v1815 = vand.u32 %v1814, 4294901760
    %1816 = vmatprep.subr.mxu0 %v1815
    %v1817 = vand.u32 %v59, 4294901760
    %v1818 = vsub.f32 %v59, %v1817
    %v1819 = vand.u32 %v1818, 4294901760
    %v1820 = vsub.f32 %v1818, %v1819
    %v1821 = vand.u32 %v1820, 4294901760
    %1822 = vmatpush1.msra.mxu0 %v1821
    %v1823 = vand.u32 %v46, 4294901760
    %v1824 = vsub.f32 %v46, %v1823
    %v1825 = vand.u32 %v1824, 4294901760
    %v1826 = vsub.f32 %v1824, %v1825
    %v1827 = vand.u32 %v1826, 4294901760
    %1828 = vmatprep.subr.mxu0 %v1827
    %v1829 = vand.u32 %v45, 4294901760
    %v1830 = vsub.f32 %v45, %v1829
    %v1831 = vand.u32 %v1830, 4294901760
    %v1832 = vsub.f32 %v1830, %v1831
    %v1833 = vand.u32 %v1832, 4294901760
    %1834 = vmatpush1.msra.mxu0 %v1833
    %v1835 = vand.u32 %v32, 4294901760
    %v1836 = vsub.f32 %v32, %v1835
    %v1837 = vand.u32 %v1836, 4294901760
    %v1838 = vsub.f32 %v1836, %v1837
    %v1839 = vand.u32 %v1838, 4294901760
    %1840 = vmatprep.subr.mxu0 %v1839
    %v1841 = vand.u32 %v31, 4294901760
    %v1842 = vsub.f32 %v31, %v1841
    %v1843 = vand.u32 %v1842, 4294901760
    %v1844 = vsub.f32 %v1842, %v1843
    %v1845 = vand.u32 %v1844, 4294901760
    %1846 = vmatpush1.msra.mxu0 %v1845
    %1847 = vmatprep.subr.mxu0 0.0
    %1848 = vmatpush2.msra.mxu0 0.0
    %1849 = vmatprep.subr.mxu0 0.0
    %1850 = vmatpush2.msra.mxu0 0.0
    %1851 = vmatprep.subr.mxu0 0.0
    %1852 = vmatpush2.msra.mxu0 0.0
    %1853 = vmatprep.subr.mxu0 0.0
    %1854 = vmatpush2.msra.mxu0 0.0
    %1855 = vmatprep.subr.mxu0 0.0
    %1856 = vmatpush2.msra.mxu0 0.0
    %1857 = vmatprep.subr.mxu0 0.0
    %1858 = vmatpush2.msra.mxu0 0.0
    %1859 = vmatprep.subr.mxu0 0.0
    %1860 = vmatpush2.msra.mxu0 0.0
    %1861 = vmatprep.subr.mxu0 0.0
    %1862 = vmatpush2.msra.mxu0 0.0
    %v1863 = vand.u32 %v354, 4294901760
    %v1864 = vsub.f32 %v354, %v1863
    %v1865 = vand.u32 %v1864, 4294901760
    %v1866 = vsub.f32 %v1864, %v1865
    %v1867 = vand.u32 %v1866, 4294901760
    %1868 = vmatprep.subr.mxu0 %v1867
    %v1869 = vand.u32 %v353, 4294901760
    %v1870 = vsub.f32 %v353, %v1869
    %v1871 = vand.u32 %v1870, 4294901760
    %v1872 = vsub.f32 %v1870, %v1871
    %v1873 = vand.u32 %v1872, 4294901760
    %1874 = vmatpush2.msra.mxu0 %v1873
    %v1875 = vand.u32 %v340, 4294901760
    %v1876 = vsub.f32 %v340, %v1875
    %v1877 = vand.u32 %v1876, 4294901760
    %v1878 = vsub.f32 %v1876, %v1877
    %v1879 = vand.u32 %v1878, 4294901760
    %1880 = vmatprep.subr.mxu0 %v1879
    %v1881 = vand.u32 %v339, 4294901760
    %v1882 = vsub.f32 %v339, %v1881
    %v1883 = vand.u32 %v1882, 4294901760
    %v1884 = vsub.f32 %v1882, %v1883
    %v1885 = vand.u32 %v1884, 4294901760
    %1886 = vmatpush2.msra.mxu0 %v1885
    %v1887 = vand.u32 %v326, 4294901760
    %v1888 = vsub.f32 %v326, %v1887
    %v1889 = vand.u32 %v1888, 4294901760
    %v1890 = vsub.f32 %v1888, %v1889
    %v1891 = vand.u32 %v1890, 4294901760
    %1892 = vmatprep.subr.mxu0 %v1891
    %v1893 = vand.u32 %v325, 4294901760
    %v1894 = vsub.f32 %v325, %v1893
    %v1895 = vand.u32 %v1894, 4294901760
    %v1896 = vsub.f32 %v1894, %v1895
    %v1897 = vand.u32 %v1896, 4294901760
    %1898 = vmatpush2.msra.mxu0 %v1897
    %v1899 = vand.u32 %v312, 4294901760
    %v1900 = vsub.f32 %v312, %v1899
    %v1901 = vand.u32 %v1900, 4294901760
    %v1902 = vsub.f32 %v1900, %v1901
    %v1903 = vand.u32 %v1902, 4294901760
    %1904 = vmatprep.subr.mxu0 %v1903
    %v1905 = vand.u32 %v311, 4294901760
    %v1906 = vsub.f32 %v311, %v1905
    %v1907 = vand.u32 %v1906, 4294901760
    %v1908 = vsub.f32 %v1906, %v1907
    %v1909 = vand.u32 %v1908, 4294901760
    %1910 = vmatpush2.msra.mxu0 %v1909
    %v1911 = vand.u32 %v298, 4294901760
    %v1912 = vsub.f32 %v298, %v1911
    %v1913 = vand.u32 %v1912, 4294901760
    %v1914 = vsub.f32 %v1912, %v1913
    %v1915 = vand.u32 %v1914, 4294901760
    %1916 = vmatprep.subr.mxu0 %v1915
    %v1917 = vand.u32 %v297, 4294901760
    %v1918 = vsub.f32 %v297, %v1917
    %v1919 = vand.u32 %v1918, 4294901760
    %v1920 = vsub.f32 %v1918, %v1919
    %v1921 = vand.u32 %v1920, 4294901760
    %1922 = vmatpush2.msra.mxu0 %v1921
    %v1923 = vand.u32 %v284, 4294901760
    %v1924 = vsub.f32 %v284, %v1923
    %v1925 = vand.u32 %v1924, 4294901760
    %v1926 = vsub.f32 %v1924, %v1925
    %v1927 = vand.u32 %v1926, 4294901760
    %1928 = vmatprep.subr.mxu0 %v1927
    %v1929 = vand.u32 %v283, 4294901760
    %v1930 = vsub.f32 %v283, %v1929
    %v1931 = vand.u32 %v1930, 4294901760
    %v1932 = vsub.f32 %v1930, %v1931
    %v1933 = vand.u32 %v1932, 4294901760
    %1934 = vmatpush2.msra.mxu0 %v1933
    %v1935 = vand.u32 %v270, 4294901760
    %v1936 = vsub.f32 %v270, %v1935
    %v1937 = vand.u32 %v1936, 4294901760
    %v1938 = vsub.f32 %v1936, %v1937
    %v1939 = vand.u32 %v1938, 4294901760
    %1940 = vmatprep.subr.mxu0 %v1939
    %v1941 = vand.u32 %v269, 4294901760
    %v1942 = vsub.f32 %v269, %v1941
    %v1943 = vand.u32 %v1942, 4294901760
    %v1944 = vsub.f32 %v1942, %v1943
    %v1945 = vand.u32 %v1944, 4294901760
    %1946 = vmatpush2.msra.mxu0 %v1945
    %v1947 = vand.u32 %v256, 4294901760
    %v1948 = vsub.f32 %v256, %v1947
    %v1949 = vand.u32 %v1948, 4294901760
    %v1950 = vsub.f32 %v1948, %v1949
    %v1951 = vand.u32 %v1950, 4294901760
    %1952 = vmatprep.subr.mxu0 %v1951
    %v1953 = vand.u32 %v255, 4294901760
    %v1954 = vsub.f32 %v255, %v1953
    %v1955 = vand.u32 %v1954, 4294901760
    %v1956 = vsub.f32 %v1954, %v1955
    %v1957 = vand.u32 %v1956, 4294901760
    %1958 = vmatpush2.msra.mxu0 %v1957
    %v1959 = vand.u32 %v367, 4294901760
    %1960 = vmatprep.mubr.f32.mxu0 %v1959
    %v1961 = vand.u32 %v25, 4294901760
    %1962 = vmatmul.mubr.f32.gmra.mxu0 %v1961
    %v1963 = vpop.f32.mrf.mxu0
    %v1964 = vadd.f32 %v1635, %v1963
    %v1965 = vpop.f32.mrf.mxu0
    %v1966 = vadd.f32 %v1637, %v1965
    %v1967 = vand.u32 %v370, 4294901760
    %1968 = vmatprep.mubr.f32.mxu0 %v1967
    %v1969 = vand.u32 %v27, 4294901760
    %1970 = vmatmul.mubr.f32.gmra.mxu0 %v1969
    %v1971 = vpop.f32.mrf.mxu0
    %v1972 = vadd.f32 %v1651, %v1971
    %v1973 = vpop.f32.mrf.mxu0
    %v1974 = vadd.f32 %v1653, %v1973
    %1975 = vdwg.mxu0
    %v1976 = vand.u32 %v242, 4294901760
    %v1977 = vsub.f32 %v242, %v1976
    %1978 = vmatprep.subr.mxu0 %v1977
    %v1979 = vand.u32 %v241, 4294901760
    %v1980 = vsub.f32 %v241, %v1979
    %1981 = vmatpush1.msra.mxu0 %v1980
    %v1982 = vand.u32 %v228, 4294901760
    %v1983 = vsub.f32 %v228, %v1982
    %1984 = vmatprep.subr.mxu0 %v1983
    %v1985 = vand.u32 %v227, 4294901760
    %v1986 = vsub.f32 %v227, %v1985
    %1987 = vmatpush1.msra.mxu0 %v1986
    %v1988 = vand.u32 %v214, 4294901760
    %v1989 = vsub.f32 %v214, %v1988
    %1990 = vmatprep.subr.mxu0 %v1989
    %v1991 = vand.u32 %v213, 4294901760
    %v1992 = vsub.f32 %v213, %v1991
    %1993 = vmatpush1.msra.mxu0 %v1992
    %v1994 = vand.u32 %v200, 4294901760
    %v1995 = vsub.f32 %v200, %v1994
    %1996 = vmatprep.subr.mxu0 %v1995
    %v1997 = vand.u32 %v199, 4294901760
    %v1998 = vsub.f32 %v199, %v1997
    %1999 = vmatpush1.msra.mxu0 %v1998
    %v2000 = vand.u32 %v186, 4294901760
    %v2001 = vsub.f32 %v186, %v2000
    %2002 = vmatprep.subr.mxu0 %v2001
    %v2003 = vand.u32 %v185, 4294901760
    %v2004 = vsub.f32 %v185, %v2003
    %2005 = vmatpush1.msra.mxu0 %v2004
    %v2006 = vand.u32 %v172, 4294901760
    %v2007 = vsub.f32 %v172, %v2006
    %2008 = vmatprep.subr.mxu0 %v2007
    %v2009 = vand.u32 %v171, 4294901760
    %v2010 = vsub.f32 %v171, %v2009
    %2011 = vmatpush1.msra.mxu0 %v2010
    %v2012 = vand.u32 %v158, 4294901760
    %v2013 = vsub.f32 %v158, %v2012
    %2014 = vmatprep.subr.mxu0 %v2013
    %v2015 = vand.u32 %v157, 4294901760
    %v2016 = vsub.f32 %v157, %v2015
    %2017 = vmatpush1.msra.mxu0 %v2016
    %v2018 = vand.u32 %v144, 4294901760
    %v2019 = vsub.f32 %v144, %v2018
    %2020 = vmatprep.subr.mxu0 %v2019
    %v2021 = vand.u32 %v143, 4294901760
    %v2022 = vsub.f32 %v143, %v2021
    %2023 = vmatpush1.msra.mxu0 %v2022
    %v2024 = vand.u32 %v130, 4294901760
    %v2025 = vsub.f32 %v130, %v2024
    %2026 = vmatprep.subr.mxu0 %v2025
    %v2027 = vand.u32 %v129, 4294901760
    %v2028 = vsub.f32 %v129, %v2027
    %2029 = vmatpush1.msra.mxu0 %v2028
    %v2030 = vand.u32 %v116, 4294901760
    %v2031 = vsub.f32 %v116, %v2030
    %2032 = vmatprep.subr.mxu0 %v2031
    %v2033 = vand.u32 %v115, 4294901760
    %v2034 = vsub.f32 %v115, %v2033
    %2035 = vmatpush1.msra.mxu0 %v2034
    %v2036 = vand.u32 %v102, 4294901760
    %v2037 = vsub.f32 %v102, %v2036
    %2038 = vmatprep.subr.mxu0 %v2037
    %v2039 = vand.u32 %v101, 4294901760
    %v2040 = vsub.f32 %v101, %v2039
    %2041 = vmatpush1.msra.mxu0 %v2040
    %v2042 = vand.u32 %v88, 4294901760
    %v2043 = vsub.f32 %v88, %v2042
    %2044 = vmatprep.subr.mxu0 %v2043
    %v2045 = vand.u32 %v87, 4294901760
    %v2046 = vsub.f32 %v87, %v2045
    %2047 = vmatpush1.msra.mxu0 %v2046
    %v2048 = vand.u32 %v74, 4294901760
    %v2049 = vsub.f32 %v74, %v2048
    %2050 = vmatprep.subr.mxu0 %v2049
    %v2051 = vand.u32 %v73, 4294901760
    %v2052 = vsub.f32 %v73, %v2051
    %2053 = vmatpush1.msra.mxu0 %v2052
    %v2054 = vand.u32 %v60, 4294901760
    %v2055 = vsub.f32 %v60, %v2054
    %2056 = vmatprep.subr.mxu0 %v2055
    %v2057 = vand.u32 %v59, 4294901760
    %v2058 = vsub.f32 %v59, %v2057
    %2059 = vmatpush1.msra.mxu0 %v2058
    %v2060 = vand.u32 %v46, 4294901760
    %v2061 = vsub.f32 %v46, %v2060
    %2062 = vmatprep.subr.mxu0 %v2061
    %v2063 = vand.u32 %v45, 4294901760
    %v2064 = vsub.f32 %v45, %v2063
    %2065 = vmatpush1.msra.mxu0 %v2064
    %v2066 = vand.u32 %v32, 4294901760
    %v2067 = vsub.f32 %v32, %v2066
    %2068 = vmatprep.subr.mxu0 %v2067
    %v2069 = vand.u32 %v31, 4294901760
    %v2070 = vsub.f32 %v31, %v2069
    %2071 = vmatpush1.msra.mxu0 %v2070
    %2072 = vmatprep.subr.mxu0 0.0
    %2073 = vmatpush2.msra.mxu0 0.0
    %2074 = vmatprep.subr.mxu0 0.0
    %2075 = vmatpush2.msra.mxu0 0.0
    %2076 = vmatprep.subr.mxu0 0.0
    %2077 = vmatpush2.msra.mxu0 0.0
    %2078 = vmatprep.subr.mxu0 0.0
    %2079 = vmatpush2.msra.mxu0 0.0
    %2080 = vmatprep.subr.mxu0 0.0
    %2081 = vmatpush2.msra.mxu0 0.0
    %2082 = vmatprep.subr.mxu0 0.0
    %2083 = vmatpush2.msra.mxu0 0.0
    %2084 = vmatprep.subr.mxu0 0.0
    %2085 = vmatpush2.msra.mxu0 0.0
    %2086 = vmatprep.subr.mxu0 0.0
    %2087 = vmatpush2.msra.mxu0 0.0
    %v2088 = vand.u32 %v354, 4294901760
    %v2089 = vsub.f32 %v354, %v2088
    %2090 = vmatprep.subr.mxu0 %v2089
    %v2091 = vand.u32 %v353, 4294901760
    %v2092 = vsub.f32 %v353, %v2091
    %2093 = vmatpush2.msra.mxu0 %v2092
    %v2094 = vand.u32 %v340, 4294901760
    %v2095 = vsub.f32 %v340, %v2094
    %2096 = vmatprep.subr.mxu0 %v2095
    %v2097 = vand.u32 %v339, 4294901760
    %v2098 = vsub.f32 %v339, %v2097
    %2099 = vmatpush2.msra.mxu0 %v2098
    %v2100 = vand.u32 %v326, 4294901760
    %v2101 = vsub.f32 %v326, %v2100
    %2102 = vmatprep.subr.mxu0 %v2101
    %v2103 = vand.u32 %v325, 4294901760
    %v2104 = vsub.f32 %v325, %v2103
    %2105 = vmatpush2.msra.mxu0 %v2104
    %v2106 = vand.u32 %v312, 4294901760
    %v2107 = vsub.f32 %v312, %v2106
    %2108 = vmatprep.subr.mxu0 %v2107
    %v2109 = vand.u32 %v311, 4294901760
    %v2110 = vsub.f32 %v311, %v2109
    %2111 = vmatpush2.msra.mxu0 %v2110
    %v2112 = vand.u32 %v298, 4294901760
    %v2113 = vsub.f32 %v298, %v2112
    %2114 = vmatprep.subr.mxu0 %v2113
    %v2115 = vand.u32 %v297, 4294901760
    %v2116 = vsub.f32 %v297, %v2115
    %2117 = vmatpush2.msra.mxu0 %v2116
    %v2118 = vand.u32 %v284, 4294901760
    %v2119 = vsub.f32 %v284, %v2118
    %2120 = vmatprep.subr.mxu0 %v2119
    %v2121 = vand.u32 %v283, 4294901760
    %v2122 = vsub.f32 %v283, %v2121
    %2123 = vmatpush2.msra.mxu0 %v2122
    %v2124 = vand.u32 %v270, 4294901760
    %v2125 = vsub.f32 %v270, %v2124
    %2126 = vmatprep.subr.mxu0 %v2125
    %v2127 = vand.u32 %v269, 4294901760
    %v2128 = vsub.f32 %v269, %v2127
    %2129 = vmatpush2.msra.mxu0 %v2128
    %v2130 = vand.u32 %v256, 4294901760
    %v2131 = vsub.f32 %v256, %v2130
    %2132 = vmatprep.subr.mxu0 %v2131
    %v2133 = vand.u32 %v255, 4294901760
    %v2134 = vsub.f32 %v255, %v2133
    %2135 = vmatpush2.msra.mxu0 %v2134
    %v2136 = vand.u32 %v367, 4294901760
    %v2137 = vsub.f32 %v367, %v2136
    %2138 = vmatprep.mubr.f32.mxu0 %v2137
    %v2139 = vand.u32 %v25, 4294901760
    %v2140 = vsub.f32 %v25, %v2139
    %2141 = vmatmul.mubr.f32.gmra.mxu0 %v2140
    %v2142 = vpop.f32.mrf.mxu0
    %v2143 = vadd.f32 %v1964, %v2142
    %v2144 = vpop.f32.mrf.mxu0
    %v2145 = vadd.f32 %v1966, %v2144
    %v2146 = vand.u32 %v370, 4294901760
    %v2147 = vsub.f32 %v370, %v2146
    %2148 = vmatprep.mubr.f32.mxu0 %v2147
    %v2149 = vand.u32 %v27, 4294901760
    %v2150 = vsub.f32 %v27, %v2149
    %2151 = vmatmul.mubr.f32.gmra.mxu0 %v2150
    %v2152 = vpop.f32.mrf.mxu0
    %v2153 = vadd.f32 %v1972, %v2152
    %v2154 = vpop.f32.mrf.mxu0
    %v2155 = vadd.f32 %v1974, %v2154
    %2156 = vdwg.mxu0
    %v2157 = vand.u32 %v242, 4294901760
    %2158 = vmatprep.subr.mxu0 %v2157
    %v2159 = vand.u32 %v241, 4294901760
    %2160 = vmatpush1.msra.mxu0 %v2159
    %v2161 = vand.u32 %v228, 4294901760
    %2162 = vmatprep.subr.mxu0 %v2161
    %v2163 = vand.u32 %v227, 4294901760
    %2164 = vmatpush1.msra.mxu0 %v2163
    %v2165 = vand.u32 %v214, 4294901760
    %2166 = vmatprep.subr.mxu0 %v2165
    %v2167 = vand.u32 %v213, 4294901760
    %2168 = vmatpush1.msra.mxu0 %v2167
    %v2169 = vand.u32 %v200, 4294901760
    %2170 = vmatprep.subr.mxu0 %v2169
    %v2171 = vand.u32 %v199, 4294901760
    %2172 = vmatpush1.msra.mxu0 %v2171
    %v2173 = vand.u32 %v186, 4294901760
    %2174 = vmatprep.subr.mxu0 %v2173
    %v2175 = vand.u32 %v185, 4294901760
    %2176 = vmatpush1.msra.mxu0 %v2175
    %v2177 = vand.u32 %v172, 4294901760
    %2178 = vmatprep.subr.mxu0 %v2177
    %v2179 = vand.u32 %v171, 4294901760
    %2180 = vmatpush1.msra.mxu0 %v2179
    %v2181 = vand.u32 %v158, 4294901760
    %2182 = vmatprep.subr.mxu0 %v2181
    %v2183 = vand.u32 %v157, 4294901760
    %2184 = vmatpush1.msra.mxu0 %v2183
    %v2185 = vand.u32 %v144, 4294901760
    %2186 = vmatprep.subr.mxu0 %v2185
    %v2187 = vand.u32 %v143, 4294901760
    %2188 = vmatpush1.msra.mxu0 %v2187
    %v2189 = vand.u32 %v130, 4294901760
    %2190 = vmatprep.subr.mxu0 %v2189
    %v2191 = vand.u32 %v129, 4294901760
    %2192 = vmatpush1.msra.mxu0 %v2191
    %v2193 = vand.u32 %v116, 4294901760
    %2194 = vmatprep.subr.mxu0 %v2193
    %v2195 = vand.u32 %v115, 4294901760
    %2196 = vmatpush1.msra.mxu0 %v2195
    %v2197 = vand.u32 %v102, 4294901760
    %2198 = vmatprep.subr.mxu0 %v2197
    %v2199 = vand.u32 %v101, 4294901760
    %2200 = vmatpush1.msra.mxu0 %v2199
    %v2201 = vand.u32 %v88, 4294901760
    %2202 = vmatprep.subr.mxu0 %v2201
    %v2203 = vand.u32 %v87, 4294901760
    %2204 = vmatpush1.msra.mxu0 %v2203
    %v2205 = vand.u32 %v74, 4294901760
    %2206 = vmatprep.subr.mxu0 %v2205
    %v2207 = vand.u32 %v73, 4294901760
    %2208 = vmatpush1.msra.mxu0 %v2207
    %v2209 = vand.u32 %v60, 4294901760
    %2210 = vmatprep.subr.mxu0 %v2209
    %v2211 = vand.u32 %v59, 4294901760
    %2212 = vmatpush1.msra.mxu0 %v2211
    %v2213 = vand.u32 %v46, 4294901760
    %2214 = vmatprep.subr.mxu0 %v2213
    %v2215 = vand.u32 %v45, 4294901760
    %2216 = vmatpush1.msra.mxu0 %v2215
    %v2217 = vand.u32 %v32, 4294901760
    %2218 = vmatprep.subr.mxu0 %v2217
    %v2219 = vand.u32 %v31, 4294901760
    %2220 = vmatpush1.msra.mxu0 %v2219
    %2221 = vmatprep.subr.mxu0 0.0
    %2222 = vmatpush2.msra.mxu0 0.0
    %2223 = vmatprep.subr.mxu0 0.0
    %2224 = vmatpush2.msra.mxu0 0.0
    %2225 = vmatprep.subr.mxu0 0.0
    %2226 = vmatpush2.msra.mxu0 0.0
    %2227 = vmatprep.subr.mxu0 0.0
    %2228 = vmatpush2.msra.mxu0 0.0
    %2229 = vmatprep.subr.mxu0 0.0
    %2230 = vmatpush2.msra.mxu0 0.0
    %2231 = vmatprep.subr.mxu0 0.0
    %2232 = vmatpush2.msra.mxu0 0.0
    %2233 = vmatprep.subr.mxu0 0.0
    %2234 = vmatpush2.msra.mxu0 0.0
    %2235 = vmatprep.subr.mxu0 0.0
    %2236 = vmatpush2.msra.mxu0 0.0
    %v2237 = vand.u32 %v354, 4294901760
    %2238 = vmatprep.subr.mxu0 %v2237
    %v2239 = vand.u32 %v353, 4294901760
    %2240 = vmatpush2.msra.mxu0 %v2239
    %v2241 = vand.u32 %v340, 4294901760
    %2242 = vmatprep.subr.mxu0 %v2241
    %v2243 = vand.u32 %v339, 4294901760
    %2244 = vmatpush2.msra.mxu0 %v2243
    %v2245 = vand.u32 %v326, 4294901760
    %2246 = vmatprep.subr.mxu0 %v2245
    %v2247 = vand.u32 %v325, 4294901760
    %2248 = vmatpush2.msra.mxu0 %v2247
    %v2249 = vand.u32 %v312, 4294901760
    %2250 = vmatprep.subr.mxu0 %v2249
    %v2251 = vand.u32 %v311, 4294901760
    %2252 = vmatpush2.msra.mxu0 %v2251
    %v2253 = vand.u32 %v298, 4294901760
    %2254 = vmatprep.subr.mxu0 %v2253
    %v2255 = vand.u32 %v297, 4294901760
    %2256 = vmatpush2.msra.mxu0 %v2255
    %v2257 = vand.u32 %v284, 4294901760
    %2258 = vmatprep.subr.mxu0 %v2257
    %v2259 = vand.u32 %v283, 4294901760
    %2260 = vmatpush2.msra.mxu0 %v2259
    %v2261 = vand.u32 %v270, 4294901760
    %2262 = vmatprep.subr.mxu0 %v2261
    %v2263 = vand.u32 %v269, 4294901760
    %2264 = vmatpush2.msra.mxu0 %v2263
    %v2265 = vand.u32 %v256, 4294901760
    %2266 = vmatprep.subr.mxu0 %v2265
    %v2267 = vand.u32 %v255, 4294901760
    %2268 = vmatpush2.msra.mxu0 %v2267
    %v2269 = vand.u32 %v367, 4294901760
    %v2270 = vsub.f32 %v367, %v2269
    %v2271 = vand.u32 %v2270, 4294901760
    %2272 = vmatprep.mubr.f32.mxu0 %v2271
    %v2273 = vand.u32 %v25, 4294901760
    %v2274 = vsub.f32 %v25, %v2273
    %v2275 = vand.u32 %v2274, 4294901760
    %2276 = vmatmul.mubr.f32.gmra.mxu0 %v2275
    %v2277 = vpop.f32.mrf.mxu0
    %v2278 = vadd.f32 %v2143, %v2277
    %v2279 = vpop.f32.mrf.mxu0
    %v2280 = vadd.f32 %v2145, %v2279
    %v2281 = vand.u32 %v370, 4294901760
    %v2282 = vsub.f32 %v370, %v2281
    %v2283 = vand.u32 %v2282, 4294901760
    %2284 = vmatprep.mubr.f32.mxu0 %v2283
    %v2285 = vand.u32 %v27, 4294901760
    %v2286 = vsub.f32 %v27, %v2285
    %v2287 = vand.u32 %v2286, 4294901760
    %2288 = vmatmul.mubr.f32.gmra.mxu0 %v2287
    %v2289 = vpop.f32.mrf.mxu0
    %v2290 = vadd.f32 %v2153, %v2289
    %v2291 = vpop.f32.mrf.mxu0
    %v2292 = vadd.f32 %v2155, %v2291
    %2293 = vdwg.mxu0
    %v2294 = vand.u32 %v242, 4294901760
    %v2295 = vsub.f32 %v242, %v2294
    %v2296 = vand.u32 %v2295, 4294901760
    %2297 = vmatprep.subr.mxu0 %v2296
    %v2298 = vand.u32 %v241, 4294901760
    %v2299 = vsub.f32 %v241, %v2298
    %v2300 = vand.u32 %v2299, 4294901760
    %2301 = vmatpush1.msra.mxu0 %v2300
    %v2302 = vand.u32 %v228, 4294901760
    %v2303 = vsub.f32 %v228, %v2302
    %v2304 = vand.u32 %v2303, 4294901760
    %2305 = vmatprep.subr.mxu0 %v2304
    %v2306 = vand.u32 %v227, 4294901760
    %v2307 = vsub.f32 %v227, %v2306
    %v2308 = vand.u32 %v2307, 4294901760
    %2309 = vmatpush1.msra.mxu0 %v2308
    %v2310 = vand.u32 %v214, 4294901760
    %v2311 = vsub.f32 %v214, %v2310
    %v2312 = vand.u32 %v2311, 4294901760
    %2313 = vmatprep.subr.mxu0 %v2312
    %v2314 = vand.u32 %v213, 4294901760
    %v2315 = vsub.f32 %v213, %v2314
    %v2316 = vand.u32 %v2315, 4294901760
    %2317 = vmatpush1.msra.mxu0 %v2316
    %v2318 = vand.u32 %v200, 4294901760
    %v2319 = vsub.f32 %v200, %v2318
    %v2320 = vand.u32 %v2319, 4294901760
    %2321 = vmatprep.subr.mxu0 %v2320
    %v2322 = vand.u32 %v199, 4294901760
    %v2323 = vsub.f32 %v199, %v2322
    %v2324 = vand.u32 %v2323, 4294901760
    %2325 = vmatpush1.msra.mxu0 %v2324
    %v2326 = vand.u32 %v186, 4294901760
    %v2327 = vsub.f32 %v186, %v2326
    %v2328 = vand.u32 %v2327, 4294901760
    %2329 = vmatprep.subr.mxu0 %v2328
    %v2330 = vand.u32 %v185, 4294901760
    %v2331 = vsub.f32 %v185, %v2330
    %v2332 = vand.u32 %v2331, 4294901760
    %2333 = vmatpush1.msra.mxu0 %v2332
    %v2334 = vand.u32 %v172, 4294901760
    %v2335 = vsub.f32 %v172, %v2334
    %v2336 = vand.u32 %v2335, 4294901760
    %2337 = vmatprep.subr.mxu0 %v2336
    %v2338 = vand.u32 %v171, 4294901760
    %v2339 = vsub.f32 %v171, %v2338
    %v2340 = vand.u32 %v2339, 4294901760
    %2341 = vmatpush1.msra.mxu0 %v2340
    %v2342 = vand.u32 %v158, 4294901760
    %v2343 = vsub.f32 %v158, %v2342
    %v2344 = vand.u32 %v2343, 4294901760
    %2345 = vmatprep.subr.mxu0 %v2344
    %v2346 = vand.u32 %v157, 4294901760
    %v2347 = vsub.f32 %v157, %v2346
    %v2348 = vand.u32 %v2347, 4294901760
    %2349 = vmatpush1.msra.mxu0 %v2348
    %v2350 = vand.u32 %v144, 4294901760
    %v2351 = vsub.f32 %v144, %v2350
    %v2352 = vand.u32 %v2351, 4294901760
    %2353 = vmatprep.subr.mxu0 %v2352
    %v2354 = vand.u32 %v143, 4294901760
    %v2355 = vsub.f32 %v143, %v2354
    %v2356 = vand.u32 %v2355, 4294901760
    %2357 = vmatpush1.msra.mxu0 %v2356
    %v2358 = vand.u32 %v130, 4294901760
    %v2359 = vsub.f32 %v130, %v2358
    %v2360 = vand.u32 %v2359, 4294901760
    %2361 = vmatprep.subr.mxu0 %v2360
    %v2362 = vand.u32 %v129, 4294901760
    %v2363 = vsub.f32 %v129, %v2362
    %v2364 = vand.u32 %v2363, 4294901760
    %2365 = vmatpush1.msra.mxu0 %v2364
    %v2366 = vand.u32 %v116, 4294901760
    %v2367 = vsub.f32 %v116, %v2366
    %v2368 = vand.u32 %v2367, 4294901760
    %2369 = vmatprep.subr.mxu0 %v2368
    %v2370 = vand.u32 %v115, 4294901760
    %v2371 = vsub.f32 %v115, %v2370
    %v2372 = vand.u32 %v2371, 4294901760
    %2373 = vmatpush1.msra.mxu0 %v2372
    %v2374 = vand.u32 %v102, 4294901760
    %v2375 = vsub.f32 %v102, %v2374
    %v2376 = vand.u32 %v2375, 4294901760
    %2377 = vmatprep.subr.mxu0 %v2376
    %v2378 = vand.u32 %v101, 4294901760
    %v2379 = vsub.f32 %v101, %v2378
    %v2380 = vand.u32 %v2379, 4294901760
    %2381 = vmatpush1.msra.mxu0 %v2380
    %v2382 = vand.u32 %v88, 4294901760
    %v2383 = vsub.f32 %v88, %v2382
    %v2384 = vand.u32 %v2383, 4294901760
    %2385 = vmatprep.subr.mxu0 %v2384
    %v2386 = vand.u32 %v87, 4294901760
    %v2387 = vsub.f32 %v87, %v2386
    %v2388 = vand.u32 %v2387, 4294901760
    %2389 = vmatpush1.msra.mxu0 %v2388
    %v2390 = vand.u32 %v74, 4294901760
    %v2391 = vsub.f32 %v74, %v2390
    %v2392 = vand.u32 %v2391, 4294901760
    %2393 = vmatprep.subr.mxu0 %v2392
    %v2394 = vand.u32 %v73, 4294901760
    %v2395 = vsub.f32 %v73, %v2394
    %v2396 = vand.u32 %v2395, 4294901760
    %2397 = vmatpush1.msra.mxu0 %v2396
    %v2398 = vand.u32 %v60, 4294901760
    %v2399 = vsub.f32 %v60, %v2398
    %v2400 = vand.u32 %v2399, 4294901760
    %2401 = vmatprep.subr.mxu0 %v2400
    %v2402 = vand.u32 %v59, 4294901760
    %v2403 = vsub.f32 %v59, %v2402
    %v2404 = vand.u32 %v2403, 4294901760
    %2405 = vmatpush1.msra.mxu0 %v2404
    %v2406 = vand.u32 %v46, 4294901760
    %v2407 = vsub.f32 %v46, %v2406
    %v2408 = vand.u32 %v2407, 4294901760
    %2409 = vmatprep.subr.mxu0 %v2408
    %v2410 = vand.u32 %v45, 4294901760
    %v2411 = vsub.f32 %v45, %v2410
    %v2412 = vand.u32 %v2411, 4294901760
    %2413 = vmatpush1.msra.mxu0 %v2412
    %v2414 = vand.u32 %v32, 4294901760
    %v2415 = vsub.f32 %v32, %v2414
    %v2416 = vand.u32 %v2415, 4294901760
    %2417 = vmatprep.subr.mxu0 %v2416
    %v2418 = vand.u32 %v31, 4294901760
    %v2419 = vsub.f32 %v31, %v2418
    %v2420 = vand.u32 %v2419, 4294901760
    %2421 = vmatpush1.msra.mxu0 %v2420
    %2422 = vmatprep.subr.mxu0 0.0
    %2423 = vmatpush2.msra.mxu0 0.0
    %2424 = vmatprep.subr.mxu0 0.0
    %2425 = vmatpush2.msra.mxu0 0.0
    %2426 = vmatprep.subr.mxu0 0.0
    %2427 = vmatpush2.msra.mxu0 0.0
    %2428 = vmatprep.subr.mxu0 0.0
    %2429 = vmatpush2.msra.mxu0 0.0
    %2430 = vmatprep.subr.mxu0 0.0
    %2431 = vmatpush2.msra.mxu0 0.0
    %2432 = vmatprep.subr.mxu0 0.0
    %2433 = vmatpush2.msra.mxu0 0.0
    %2434 = vmatprep.subr.mxu0 0.0
    %2435 = vmatpush2.msra.mxu0 0.0
    %2436 = vmatprep.subr.mxu0 0.0
    %2437 = vmatpush2.msra.mxu0 0.0
    %v2438 = vand.u32 %v354, 4294901760
    %v2439 = vsub.f32 %v354, %v2438
    %v2440 = vand.u32 %v2439, 4294901760
    %2441 = vmatprep.subr.mxu0 %v2440
    %v2442 = vand.u32 %v353, 4294901760
    %v2443 = vsub.f32 %v353, %v2442
    %v2444 = vand.u32 %v2443, 4294901760
    %2445 = vmatpush2.msra.mxu0 %v2444
    %v2446 = vand.u32 %v340, 4294901760
    %v2447 = vsub.f32 %v340, %v2446
    %v2448 = vand.u32 %v2447, 4294901760
    %2449 = vmatprep.subr.mxu0 %v2448
    %v2450 = vand.u32 %v339, 4294901760
    %v2451 = vsub.f32 %v339, %v2450
    %v2452 = vand.u32 %v2451, 4294901760
    %2453 = vmatpush2.msra.mxu0 %v2452
    %v2454 = vand.u32 %v326, 4294901760
    %v2455 = vsub.f32 %v326, %v2454
    %v2456 = vand.u32 %v2455, 4294901760
    %2457 = vmatprep.subr.mxu0 %v2456
    %v2458 = vand.u32 %v325, 4294901760
    %v2459 = vsub.f32 %v325, %v2458
    %v2460 = vand.u32 %v2459, 4294901760
    %2461 = vmatpush2.msra.mxu0 %v2460
    %v2462 = vand.u32 %v312, 4294901760
    %v2463 = vsub.f32 %v312, %v2462
    %v2464 = vand.u32 %v2463, 4294901760
    %2465 = vmatprep.subr.mxu0 %v2464
    %v2466 = vand.u32 %v311, 4294901760
    %v2467 = vsub.f32 %v311, %v2466
    %v2468 = vand.u32 %v2467, 4294901760
    %2469 = vmatpush2.msra.mxu0 %v2468
    %v2470 = vand.u32 %v298, 4294901760
    %v2471 = vsub.f32 %v298, %v2470
    %v2472 = vand.u32 %v2471, 4294901760
    %2473 = vmatprep.subr.mxu0 %v2472
    %v2474 = vand.u32 %v297, 4294901760
    %v2475 = vsub.f32 %v297, %v2474
    %v2476 = vand.u32 %v2475, 4294901760
    %2477 = vmatpush2.msra.mxu0 %v2476
    %v2478 = vand.u32 %v284, 4294901760
    %v2479 = vsub.f32 %v284, %v2478
    %v2480 = vand.u32 %v2479, 4294901760
    %2481 = vmatprep.subr.mxu0 %v2480
    %v2482 = vand.u32 %v283, 4294901760
    %v2483 = vsub.f32 %v283, %v2482
    %v2484 = vand.u32 %v2483, 4294901760
    %2485 = vmatpush2.msra.mxu0 %v2484
    %v2486 = vand.u32 %v270, 4294901760
    %v2487 = vsub.f32 %v270, %v2486
    %v2488 = vand.u32 %v2487, 4294901760
    %2489 = vmatprep.subr.mxu0 %v2488
    %v2490 = vand.u32 %v269, 4294901760
    %v2491 = vsub.f32 %v269, %v2490
    %v2492 = vand.u32 %v2491, 4294901760
    %2493 = vmatpush2.msra.mxu0 %v2492
    %v2494 = vand.u32 %v256, 4294901760
    %v2495 = vsub.f32 %v256, %v2494
    %v2496 = vand.u32 %v2495, 4294901760
    %2497 = vmatprep.subr.mxu0 %v2496
    %v2498 = vand.u32 %v255, 4294901760
    %v2499 = vsub.f32 %v255, %v2498
    %v2500 = vand.u32 %v2499, 4294901760
    %2501 = vmatpush2.msra.mxu0 %v2500
    %v2502 = vand.u32 %v367, 4294901760
    %2503 = vmatprep.mubr.f32.mxu0 %v2502
    %v2504 = vand.u32 %v25, 4294901760
    %2505 = vmatmul.mubr.f32.gmra.mxu0 %v2504
    %v2506 = vpop.f32.mrf.mxu0
    %v2507 = vadd.f32 %v2278, %v2506
    %v2508 = vpop.f32.mrf.mxu0
    %v2509 = vadd.f32 %v2280, %v2508
    %v2510 = vand.u32 %v370, 4294901760
    %2511 = vmatprep.mubr.f32.mxu0 %v2510
    %v2512 = vand.u32 %v27, 4294901760
    %2513 = vmatmul.mubr.f32.gmra.mxu0 %v2512
    %v2514 = vpop.f32.mrf.mxu0
    %v2515 = vadd.f32 %v2290, %v2514
    %v2516 = vpop.f32.mrf.mxu0
    %v2517 = vadd.f32 %v2292, %v2516
    %2518 = vdwg.mxu0
    %v2519 = vand.u32 %v242, 4294901760
    %2520 = vmatprep.subr.mxu0 %v2519
    %v2521 = vand.u32 %v241, 4294901760
    %2522 = vmatpush1.msra.mxu0 %v2521
    %v2523 = vand.u32 %v228, 4294901760
    %2524 = vmatprep.subr.mxu0 %v2523
    %v2525 = vand.u32 %v227, 4294901760
    %2526 = vmatpush1.msra.mxu0 %v2525
    %v2527 = vand.u32 %v214, 4294901760
    %2528 = vmatprep.subr.mxu0 %v2527
    %v2529 = vand.u32 %v213, 4294901760
    %2530 = vmatpush1.msra.mxu0 %v2529
    %v2531 = vand.u32 %v200, 4294901760
    %2532 = vmatprep.subr.mxu0 %v2531
    %v2533 = vand.u32 %v199, 4294901760
    %2534 = vmatpush1.msra.mxu0 %v2533
    %v2535 = vand.u32 %v186, 4294901760
    %2536 = vmatprep.subr.mxu0 %v2535
    %v2537 = vand.u32 %v185, 4294901760
    %2538 = vmatpush1.msra.mxu0 %v2537
    %v2539 = vand.u32 %v172, 4294901760
    %2540 = vmatprep.subr.mxu0 %v2539
    %v2541 = vand.u32 %v171, 4294901760
    %2542 = vmatpush1.msra.mxu0 %v2541
    %v2543 = vand.u32 %v158, 4294901760
    %2544 = vmatprep.subr.mxu0 %v2543
    %v2545 = vand.u32 %v157, 4294901760
    %2546 = vmatpush1.msra.mxu0 %v2545
    %v2547 = vand.u32 %v144, 4294901760
    %2548 = vmatprep.subr.mxu0 %v2547
    %v2549 = vand.u32 %v143, 4294901760
    %2550 = vmatpush1.msra.mxu0 %v2549
    %v2551 = vand.u32 %v130, 4294901760
    %2552 = vmatprep.subr.mxu0 %v2551
    %v2553 = vand.u32 %v129, 4294901760
    %2554 = vmatpush1.msra.mxu0 %v2553
    %v2555 = vand.u32 %v116, 4294901760
    %2556 = vmatprep.subr.mxu0 %v2555
    %v2557 = vand.u32 %v115, 4294901760
    %2558 = vmatpush1.msra.mxu0 %v2557
    %v2559 = vand.u32 %v102, 4294901760
    %2560 = vmatprep.subr.mxu0 %v2559
    %v2561 = vand.u32 %v101, 4294901760
    %2562 = vmatpush1.msra.mxu0 %v2561
    %v2563 = vand.u32 %v88, 4294901760
    %2564 = vmatprep.subr.mxu0 %v2563
    %v2565 = vand.u32 %v87, 4294901760
    %2566 = vmatpush1.msra.mxu0 %v2565
    %v2567 = vand.u32 %v74, 4294901760
    %2568 = vmatprep.subr.mxu0 %v2567
    %v2569 = vand.u32 %v73, 4294901760
    %2570 = vmatpush1.msra.mxu0 %v2569
    %v2571 = vand.u32 %v60, 4294901760
    %2572 = vmatprep.subr.mxu0 %v2571
    %v2573 = vand.u32 %v59, 4294901760
    %2574 = vmatpush1.msra.mxu0 %v2573
    %v2575 = vand.u32 %v46, 4294901760
    %2576 = vmatprep.subr.mxu0 %v2575
    %v2577 = vand.u32 %v45, 4294901760
    %2578 = vmatpush1.msra.mxu0 %v2577
    %v2579 = vand.u32 %v32, 4294901760
    %2580 = vmatprep.subr.mxu0 %v2579
    %v2581 = vand.u32 %v31, 4294901760
    %2582 = vmatpush1.msra.mxu0 %v2581
    %2583 = vmatprep.subr.mxu0 0.0
    %2584 = vmatpush2.msra.mxu0 0.0
    %2585 = vmatprep.subr.mxu0 0.0
    %2586 = vmatpush2.msra.mxu0 0.0
    %2587 = vmatprep.subr.mxu0 0.0
    %2588 = vmatpush2.msra.mxu0 0.0
    %2589 = vmatprep.subr.mxu0 0.0
    %2590 = vmatpush2.msra.mxu0 0.0
    %2591 = vmatprep.subr.mxu0 0.0
    %2592 = vmatpush2.msra.mxu0 0.0
    %2593 = vmatprep.subr.mxu0 0.0
    %2594 = vmatpush2.msra.mxu0 0.0
    %2595 = vmatprep.subr.mxu0 0.0
    %2596 = vmatpush2.msra.mxu0 0.0
    %2597 = vmatprep.subr.mxu0 0.0
    %2598 = vmatpush2.msra.mxu0 0.0
    %v2599 = vand.u32 %v354, 4294901760
    %2600 = vmatprep.subr.mxu0 %v2599
    %v2601 = vand.u32 %v353, 4294901760
    %2602 = vmatpush2.msra.mxu0 %v2601
    %v2603 = vand.u32 %v340, 4294901760
    %2604 = vmatprep.subr.mxu0 %v2603
    %v2605 = vand.u32 %v339, 4294901760
    %2606 = vmatpush2.msra.mxu0 %v2605
    %v2607 = vand.u32 %v326, 4294901760
    %2608 = vmatprep.subr.mxu0 %v2607
    %v2609 = vand.u32 %v325, 4294901760
    %2610 = vmatpush2.msra.mxu0 %v2609
    %v2611 = vand.u32 %v312, 4294901760
    %2612 = vmatprep.subr.mxu0 %v2611
    %v2613 = vand.u32 %v311, 4294901760
    %2614 = vmatpush2.msra.mxu0 %v2613
    %v2615 = vand.u32 %v298, 4294901760
    %2616 = vmatprep.subr.mxu0 %v2615
    %v2617 = vand.u32 %v297, 4294901760
    %2618 = vmatpush2.msra.mxu0 %v2617
    %v2619 = vand.u32 %v284, 4294901760
    %2620 = vmatprep.subr.mxu0 %v2619
    %v2621 = vand.u32 %v283, 4294901760
    %2622 = vmatpush2.msra.mxu0 %v2621
    %v2623 = vand.u32 %v270, 4294901760
    %2624 = vmatprep.subr.mxu0 %v2623
    %v2625 = vand.u32 %v269, 4294901760
    %2626 = vmatpush2.msra.mxu0 %v2625
    %v2627 = vand.u32 %v256, 4294901760
    %2628 = vmatprep.subr.mxu0 %v2627
    %v2629 = vand.u32 %v255, 4294901760
    %2630 = vmatpush2.msra.mxu0 %v2629
    %v2631 = vand.u32 %v367, 4294901760
    %2632 = vmatprep.mubr.f32.mxu0 %v2631
    %v2633 = vand.u32 %v25, 4294901760
    %2634 = vmatmul.mubr.f32.gmra.mxu0 %v2633
    %v2635 = vpop.f32.mrf.mxu0
    %v2636 = vadd.f32 %v2507, %v2635
    %v2637 = vpop.f32.mrf.mxu0
    %v2638 = vadd.f32 %v2509, %v2637
    %v2639 = vand.u32 %v370, 4294901760
    %2640 = vmatprep.mubr.f32.mxu0 %v2639
    %v2641 = vand.u32 %v27, 4294901760
    %2642 = vmatmul.mubr.f32.gmra.mxu0 %v2641
    %v2643 = vpop.f32.mrf.mxu0
    %v2644 = vadd.f32 %v2515, %v2643
    %v2645 = vpop.f32.mrf.mxu0
    %v2646 = vadd.f32 %v2517, %v2645
    %2647 = vdwg.mxu0
    %v2648 = vand.u32 %v244, 4294901760
    %2649 = vmatprep.subr.mxu0 %v2648
    %v2650 = vand.u32 %v243, 4294901760
    %2651 = vmatpush1.msra.mxu0 %v2650
    %v2652 = vand.u32 %v230, 4294901760
    %2653 = vmatprep.subr.mxu0 %v2652
    %v2654 = vand.u32 %v229, 4294901760
    %2655 = vmatpush1.msra.mxu0 %v2654
    %v2656 = vand.u32 %v216, 4294901760
    %2657 = vmatprep.subr.mxu0 %v2656
    %v2658 = vand.u32 %v215, 4294901760
    %2659 = vmatpush1.msra.mxu0 %v2658
    %v2660 = vand.u32 %v202, 4294901760
    %2661 = vmatprep.subr.mxu0 %v2660
    %v2662 = vand.u32 %v201, 4294901760
    %2663 = vmatpush1.msra.mxu0 %v2662
    %v2664 = vand.u32 %v188, 4294901760
    %2665 = vmatprep.subr.mxu0 %v2664
    %v2666 = vand.u32 %v187, 4294901760
    %2667 = vmatpush1.msra.mxu0 %v2666
    %v2668 = vand.u32 %v174, 4294901760
    %2669 = vmatprep.subr.mxu0 %v2668
    %v2670 = vand.u32 %v173, 4294901760
    %2671 = vmatpush1.msra.mxu0 %v2670
    %v2672 = vand.u32 %v160, 4294901760
    %2673 = vmatprep.subr.mxu0 %v2672
    %v2674 = vand.u32 %v159, 4294901760
    %2675 = vmatpush1.msra.mxu0 %v2674
    %v2676 = vand.u32 %v146, 4294901760
    %2677 = vmatprep.subr.mxu0 %v2676
    %v2678 = vand.u32 %v145, 4294901760
    %2679 = vmatpush1.msra.mxu0 %v2678
    %v2680 = vand.u32 %v132, 4294901760
    %2681 = vmatprep.subr.mxu0 %v2680
    %v2682 = vand.u32 %v131, 4294901760
    %2683 = vmatpush1.msra.mxu0 %v2682
    %v2684 = vand.u32 %v118, 4294901760
    %2685 = vmatprep.subr.mxu0 %v2684
    %v2686 = vand.u32 %v117, 4294901760
    %2687 = vmatpush1.msra.mxu0 %v2686
    %v2688 = vand.u32 %v104, 4294901760
    %2689 = vmatprep.subr.mxu0 %v2688
    %v2690 = vand.u32 %v103, 4294901760
    %2691 = vmatpush1.msra.mxu0 %v2690
    %v2692 = vand.u32 %v90, 4294901760
    %2693 = vmatprep.subr.mxu0 %v2692
    %v2694 = vand.u32 %v89, 4294901760
    %2695 = vmatpush1.msra.mxu0 %v2694
    %v2696 = vand.u32 %v76, 4294901760
    %2697 = vmatprep.subr.mxu0 %v2696
    %v2698 = vand.u32 %v75, 4294901760
    %2699 = vmatpush1.msra.mxu0 %v2698
    %v2700 = vand.u32 %v62, 4294901760
    %2701 = vmatprep.subr.mxu0 %v2700
    %v2702 = vand.u32 %v61, 4294901760
    %2703 = vmatpush1.msra.mxu0 %v2702
    %v2704 = vand.u32 %v48, 4294901760
    %2705 = vmatprep.subr.mxu0 %v2704
    %v2706 = vand.u32 %v47, 4294901760
    %2707 = vmatpush1.msra.mxu0 %v2706
    %v2708 = vand.u32 %v34, 4294901760
    %2709 = vmatprep.subr.mxu0 %v2708
    %v2710 = vand.u32 %v33, 4294901760
    %2711 = vmatpush1.msra.mxu0 %v2710
    %2712 = vmatprep.subr.mxu0 0.0
    %2713 = vmatpush2.msra.mxu0 0.0
    %2714 = vmatprep.subr.mxu0 0.0
    %2715 = vmatpush2.msra.mxu0 0.0
    %2716 = vmatprep.subr.mxu0 0.0
    %2717 = vmatpush2.msra.mxu0 0.0
    %2718 = vmatprep.subr.mxu0 0.0
    %2719 = vmatpush2.msra.mxu0 0.0
    %2720 = vmatprep.subr.mxu0 0.0
    %2721 = vmatpush2.msra.mxu0 0.0
    %2722 = vmatprep.subr.mxu0 0.0
    %2723 = vmatpush2.msra.mxu0 0.0
    %2724 = vmatprep.subr.mxu0 0.0
    %2725 = vmatpush2.msra.mxu0 0.0
    %2726 = vmatprep.subr.mxu0 0.0
    %2727 = vmatpush2.msra.mxu0 0.0
    %v2728 = vand.u32 %v356, 4294901760
    %2729 = vmatprep.subr.mxu0 %v2728
    %v2730 = vand.u32 %v355, 4294901760
    %2731 = vmatpush2.msra.mxu0 %v2730
    %v2732 = vand.u32 %v342, 4294901760
    %2733 = vmatprep.subr.mxu0 %v2732
    %v2734 = vand.u32 %v341, 4294901760
    %2735 = vmatpush2.msra.mxu0 %v2734
    %v2736 = vand.u32 %v328, 4294901760
    %2737 = vmatprep.subr.mxu0 %v2736
    %v2738 = vand.u32 %v327, 4294901760
    %2739 = vmatpush2.msra.mxu0 %v2738
    %v2740 = vand.u32 %v314, 4294901760
    %2741 = vmatprep.subr.mxu0 %v2740
    %v2742 = vand.u32 %v313, 4294901760
    %2743 = vmatpush2.msra.mxu0 %v2742
    %v2744 = vand.u32 %v300, 4294901760
    %2745 = vmatprep.subr.mxu0 %v2744
    %v2746 = vand.u32 %v299, 4294901760
    %2747 = vmatpush2.msra.mxu0 %v2746
    %v2748 = vand.u32 %v286, 4294901760
    %2749 = vmatprep.subr.mxu0 %v2748
    %v2750 = vand.u32 %v285, 4294901760
    %2751 = vmatpush2.msra.mxu0 %v2750
    %v2752 = vand.u32 %v272, 4294901760
    %2753 = vmatprep.subr.mxu0 %v2752
    %v2754 = vand.u32 %v271, 4294901760
    %2755 = vmatpush2.msra.mxu0 %v2754
    %v2756 = vand.u32 %v258, 4294901760
    %2757 = vmatprep.subr.mxu0 %v2756
    %v2758 = vand.u32 %v257, 4294901760
    %2759 = vmatpush2.msra.mxu0 %v2758
    %v2760 = vand.u32 %v367, 4294901760
    %v2761 = vsub.f32 %v367, %v2760
    %v2762 = vand.u32 %v2761, 4294901760
    %v2763 = vsub.f32 %v2761, %v2762
    %v2764 = vand.u32 %v2763, 4294901760
    %2765 = vmatprep.mubr.f32.mxu0 %v2764
    %v2766 = vand.u32 %v25, 4294901760
    %v2767 = vsub.f32 %v25, %v2766
    %v2768 = vand.u32 %v2767, 4294901760
    %v2769 = vsub.f32 %v2767, %v2768
    %v2770 = vand.u32 %v2769, 4294901760
    %2771 = vmatmul.mubr.f32.gmra.mxu0 %v2770
    %v2772 = vpop.f32.mrf.mxu0
    %v2773 = vadd.f32 0.0, %v2772
    %v2774 = vpop.f32.mrf.mxu0
    %v2775 = vadd.f32 0.0, %v2774
    %v2776 = vand.u32 %v370, 4294901760
    %v2777 = vsub.f32 %v370, %v2776
    %v2778 = vand.u32 %v2777, 4294901760
    %v2779 = vsub.f32 %v2777, %v2778
    %v2780 = vand.u32 %v2779, 4294901760
    %2781 = vmatprep.mubr.f32.mxu0 %v2780
    %v2782 = vand.u32 %v27, 4294901760
    %v2783 = vsub.f32 %v27, %v2782
    %v2784 = vand.u32 %v2783, 4294901760
    %v2785 = vsub.f32 %v2783, %v2784
    %v2786 = vand.u32 %v2785, 4294901760
    %2787 = vmatmul.mubr.f32.gmra.mxu0 %v2786
    %v2788 = vpop.f32.mrf.mxu0
    %v2789 = vadd.f32 0.0, %v2788
    %v2790 = vpop.f32.mrf.mxu0
    %v2791 = vadd.f32 0.0, %v2790
    %2792 = vdwg.mxu0
    %v2793 = vand.u32 %v244, 4294901760
    %v2794 = vsub.f32 %v244, %v2793
    %v2795 = vand.u32 %v2794, 4294901760
    %v2796 = vsub.f32 %v2794, %v2795
    %v2797 = vand.u32 %v2796, 4294901760
    %2798 = vmatprep.subr.mxu0 %v2797
    %v2799 = vand.u32 %v243, 4294901760
    %v2800 = vsub.f32 %v243, %v2799
    %v2801 = vand.u32 %v2800, 4294901760
    %v2802 = vsub.f32 %v2800, %v2801
    %v2803 = vand.u32 %v2802, 4294901760
    %2804 = vmatpush1.msra.mxu0 %v2803
    %v2805 = vand.u32 %v230, 4294901760
    %v2806 = vsub.f32 %v230, %v2805
    %v2807 = vand.u32 %v2806, 4294901760
    %v2808 = vsub.f32 %v2806, %v2807
    %v2809 = vand.u32 %v2808, 4294901760
    %2810 = vmatprep.subr.mxu0 %v2809
    %v2811 = vand.u32 %v229, 4294901760
    %v2812 = vsub.f32 %v229, %v2811
    %v2813 = vand.u32 %v2812, 4294901760
    %v2814 = vsub.f32 %v2812, %v2813
    %v2815 = vand.u32 %v2814, 4294901760
    %2816 = vmatpush1.msra.mxu0 %v2815
    %v2817 = vand.u32 %v216, 4294901760
    %v2818 = vsub.f32 %v216, %v2817
    %v2819 = vand.u32 %v2818, 4294901760
    %v2820 = vsub.f32 %v2818, %v2819
    %v2821 = vand.u32 %v2820, 4294901760
    %2822 = vmatprep.subr.mxu0 %v2821
    %v2823 = vand.u32 %v215, 4294901760
    %v2824 = vsub.f32 %v215, %v2823
    %v2825 = vand.u32 %v2824, 4294901760
    %v2826 = vsub.f32 %v2824, %v2825
    %v2827 = vand.u32 %v2826, 4294901760
    %2828 = vmatpush1.msra.mxu0 %v2827
    %v2829 = vand.u32 %v202, 4294901760
    %v2830 = vsub.f32 %v202, %v2829
    %v2831 = vand.u32 %v2830, 4294901760
    %v2832 = vsub.f32 %v2830, %v2831
    %v2833 = vand.u32 %v2832, 4294901760
    %2834 = vmatprep.subr.mxu0 %v2833
    %v2835 = vand.u32 %v201, 4294901760
    %v2836 = vsub.f32 %v201, %v2835
    %v2837 = vand.u32 %v2836, 4294901760
    %v2838 = vsub.f32 %v2836, %v2837
    %v2839 = vand.u32 %v2838, 4294901760
    %2840 = vmatpush1.msra.mxu0 %v2839
    %v2841 = vand.u32 %v188, 4294901760
    %v2842 = vsub.f32 %v188, %v2841
    %v2843 = vand.u32 %v2842, 4294901760
    %v2844 = vsub.f32 %v2842, %v2843
    %v2845 = vand.u32 %v2844, 4294901760
    %2846 = vmatprep.subr.mxu0 %v2845
    %v2847 = vand.u32 %v187, 4294901760
    %v2848 = vsub.f32 %v187, %v2847
    %v2849 = vand.u32 %v2848, 4294901760
    %v2850 = vsub.f32 %v2848, %v2849
    %v2851 = vand.u32 %v2850, 4294901760
    %2852 = vmatpush1.msra.mxu0 %v2851
    %v2853 = vand.u32 %v174, 4294901760
    %v2854 = vsub.f32 %v174, %v2853
    %v2855 = vand.u32 %v2854, 4294901760
    %v2856 = vsub.f32 %v2854, %v2855
    %v2857 = vand.u32 %v2856, 4294901760
    %2858 = vmatprep.subr.mxu0 %v2857
    %v2859 = vand.u32 %v173, 4294901760
    %v2860 = vsub.f32 %v173, %v2859
    %v2861 = vand.u32 %v2860, 4294901760
    %v2862 = vsub.f32 %v2860, %v2861
    %v2863 = vand.u32 %v2862, 4294901760
    %2864 = vmatpush1.msra.mxu0 %v2863
    %v2865 = vand.u32 %v160, 4294901760
    %v2866 = vsub.f32 %v160, %v2865
    %v2867 = vand.u32 %v2866, 4294901760
    %v2868 = vsub.f32 %v2866, %v2867
    %v2869 = vand.u32 %v2868, 4294901760
    %2870 = vmatprep.subr.mxu0 %v2869
    %v2871 = vand.u32 %v159, 4294901760
    %v2872 = vsub.f32 %v159, %v2871
    %v2873 = vand.u32 %v2872, 4294901760
    %v2874 = vsub.f32 %v2872, %v2873
    %v2875 = vand.u32 %v2874, 4294901760
    %2876 = vmatpush1.msra.mxu0 %v2875
    %v2877 = vand.u32 %v146, 4294901760
    %v2878 = vsub.f32 %v146, %v2877
    %v2879 = vand.u32 %v2878, 4294901760
    %v2880 = vsub.f32 %v2878, %v2879
    %v2881 = vand.u32 %v2880, 4294901760
    %2882 = vmatprep.subr.mxu0 %v2881
    %v2883 = vand.u32 %v145, 4294901760
    %v2884 = vsub.f32 %v145, %v2883
    %v2885 = vand.u32 %v2884, 4294901760
    %v2886 = vsub.f32 %v2884, %v2885
    %v2887 = vand.u32 %v2886, 4294901760
    %2888 = vmatpush1.msra.mxu0 %v2887
    %v2889 = vand.u32 %v132, 4294901760
    %v2890 = vsub.f32 %v132, %v2889
    %v2891 = vand.u32 %v2890, 4294901760
    %v2892 = vsub.f32 %v2890, %v2891
    %v2893 = vand.u32 %v2892, 4294901760
    %2894 = vmatprep.subr.mxu0 %v2893
    %v2895 = vand.u32 %v131, 4294901760
    %v2896 = vsub.f32 %v131, %v2895
    %v2897 = vand.u32 %v2896, 4294901760
    %v2898 = vsub.f32 %v2896, %v2897
    %v2899 = vand.u32 %v2898, 4294901760
    %2900 = vmatpush1.msra.mxu0 %v2899
    %v2901 = vand.u32 %v118, 4294901760
    %v2902 = vsub.f32 %v118, %v2901
    %v2903 = vand.u32 %v2902, 4294901760
    %v2904 = vsub.f32 %v2902, %v2903
    %v2905 = vand.u32 %v2904, 4294901760
    %2906 = vmatprep.subr.mxu0 %v2905
    %v2907 = vand.u32 %v117, 4294901760
    %v2908 = vsub.f32 %v117, %v2907
    %v2909 = vand.u32 %v2908, 4294901760
    %v2910 = vsub.f32 %v2908, %v2909
    %v2911 = vand.u32 %v2910, 4294901760
    %2912 = vmatpush1.msra.mxu0 %v2911
    %v2913 = vand.u32 %v104, 4294901760
    %v2914 = vsub.f32 %v104, %v2913
    %v2915 = vand.u32 %v2914, 4294901760
    %v2916 = vsub.f32 %v2914, %v2915
    %v2917 = vand.u32 %v2916, 4294901760
    %2918 = vmatprep.subr.mxu0 %v2917
    %v2919 = vand.u32 %v103, 4294901760
    %v2920 = vsub.f32 %v103, %v2919
    %v2921 = vand.u32 %v2920, 4294901760
    %v2922 = vsub.f32 %v2920, %v2921
    %v2923 = vand.u32 %v2922, 4294901760
    %2924 = vmatpush1.msra.mxu0 %v2923
    %v2925 = vand.u32 %v90, 4294901760
    %v2926 = vsub.f32 %v90, %v2925
    %v2927 = vand.u32 %v2926, 4294901760
    %v2928 = vsub.f32 %v2926, %v2927
    %v2929 = vand.u32 %v2928, 4294901760
    %2930 = vmatprep.subr.mxu0 %v2929
    %v2931 = vand.u32 %v89, 4294901760
    %v2932 = vsub.f32 %v89, %v2931
    %v2933 = vand.u32 %v2932, 4294901760
    %v2934 = vsub.f32 %v2932, %v2933
    %v2935 = vand.u32 %v2934, 4294901760
    %2936 = vmatpush1.msra.mxu0 %v2935
    %v2937 = vand.u32 %v76, 4294901760
    %v2938 = vsub.f32 %v76, %v2937
    %v2939 = vand.u32 %v2938, 4294901760
    %v2940 = vsub.f32 %v2938, %v2939
    %v2941 = vand.u32 %v2940, 4294901760
    %2942 = vmatprep.subr.mxu0 %v2941
    %v2943 = vand.u32 %v75, 4294901760
    %v2944 = vsub.f32 %v75, %v2943
    %v2945 = vand.u32 %v2944, 4294901760
    %v2946 = vsub.f32 %v2944, %v2945
    %v2947 = vand.u32 %v2946, 4294901760
    %2948 = vmatpush1.msra.mxu0 %v2947
    %v2949 = vand.u32 %v62, 4294901760
    %v2950 = vsub.f32 %v62, %v2949
    %v2951 = vand.u32 %v2950, 4294901760
    %v2952 = vsub.f32 %v2950, %v2951
    %v2953 = vand.u32 %v2952, 4294901760
    %2954 = vmatprep.subr.mxu0 %v2953
    %v2955 = vand.u32 %v61, 4294901760
    %v2956 = vsub.f32 %v61, %v2955
    %v2957 = vand.u32 %v2956, 4294901760
    %v2958 = vsub.f32 %v2956, %v2957
    %v2959 = vand.u32 %v2958, 4294901760
    %2960 = vmatpush1.msra.mxu0 %v2959
    %v2961 = vand.u32 %v48, 4294901760
    %v2962 = vsub.f32 %v48, %v2961
    %v2963 = vand.u32 %v2962, 4294901760
    %v2964 = vsub.f32 %v2962, %v2963
    %v2965 = vand.u32 %v2964, 4294901760
    %2966 = vmatprep.subr.mxu0 %v2965
    %v2967 = vand.u32 %v47, 4294901760
    %v2968 = vsub.f32 %v47, %v2967
    %v2969 = vand.u32 %v2968, 4294901760
    %v2970 = vsub.f32 %v2968, %v2969
    %v2971 = vand.u32 %v2970, 4294901760
    %2972 = vmatpush1.msra.mxu0 %v2971
    %v2973 = vand.u32 %v34, 4294901760
    %v2974 = vsub.f32 %v34, %v2973
    %v2975 = vand.u32 %v2974, 4294901760
    %v2976 = vsub.f32 %v2974, %v2975
    %v2977 = vand.u32 %v2976, 4294901760
    %2978 = vmatprep.subr.mxu0 %v2977
    %v2979 = vand.u32 %v33, 4294901760
    %v2980 = vsub.f32 %v33, %v2979
    %v2981 = vand.u32 %v2980, 4294901760
    %v2982 = vsub.f32 %v2980, %v2981
    %v2983 = vand.u32 %v2982, 4294901760
    %2984 = vmatpush1.msra.mxu0 %v2983
    %2985 = vmatprep.subr.mxu0 0.0
    %2986 = vmatpush2.msra.mxu0 0.0
    %2987 = vmatprep.subr.mxu0 0.0
    %2988 = vmatpush2.msra.mxu0 0.0
    %2989 = vmatprep.subr.mxu0 0.0
    %2990 = vmatpush2.msra.mxu0 0.0
    %2991 = vmatprep.subr.mxu0 0.0
    %2992 = vmatpush2.msra.mxu0 0.0
    %2993 = vmatprep.subr.mxu0 0.0
    %2994 = vmatpush2.msra.mxu0 0.0
    %2995 = vmatprep.subr.mxu0 0.0
    %2996 = vmatpush2.msra.mxu0 0.0
    %2997 = vmatprep.subr.mxu0 0.0
    %2998 = vmatpush2.msra.mxu0 0.0
    %2999 = vmatprep.subr.mxu0 0.0
    %3000 = vmatpush2.msra.mxu0 0.0
    %v3001 = vand.u32 %v356, 4294901760
    %v3002 = vsub.f32 %v356, %v3001
    %v3003 = vand.u32 %v3002, 4294901760
    %v3004 = vsub.f32 %v3002, %v3003
    %v3005 = vand.u32 %v3004, 4294901760
    %3006 = vmatprep.subr.mxu0 %v3005
    %v3007 = vand.u32 %v355, 4294901760
    %v3008 = vsub.f32 %v355, %v3007
    %v3009 = vand.u32 %v3008, 4294901760
    %v3010 = vsub.f32 %v3008, %v3009
    %v3011 = vand.u32 %v3010, 4294901760
    %3012 = vmatpush2.msra.mxu0 %v3011
    %v3013 = vand.u32 %v342, 4294901760
    %v3014 = vsub.f32 %v342, %v3013
    %v3015 = vand.u32 %v3014, 4294901760
    %v3016 = vsub.f32 %v3014, %v3015
    %v3017 = vand.u32 %v3016, 4294901760
    %3018 = vmatprep.subr.mxu0 %v3017
    %v3019 = vand.u32 %v341, 4294901760
    %v3020 = vsub.f32 %v341, %v3019
    %v3021 = vand.u32 %v3020, 4294901760
    %v3022 = vsub.f32 %v3020, %v3021
    %v3023 = vand.u32 %v3022, 4294901760
    %3024 = vmatpush2.msra.mxu0 %v3023
    %v3025 = vand.u32 %v328, 4294901760
    %v3026 = vsub.f32 %v328, %v3025
    %v3027 = vand.u32 %v3026, 4294901760
    %v3028 = vsub.f32 %v3026, %v3027
    %v3029 = vand.u32 %v3028, 4294901760
    %3030 = vmatprep.subr.mxu0 %v3029
    %v3031 = vand.u32 %v327, 4294901760
    %v3032 = vsub.f32 %v327, %v3031
    %v3033 = vand.u32 %v3032, 4294901760
    %v3034 = vsub.f32 %v3032, %v3033
    %v3035 = vand.u32 %v3034, 4294901760
    %3036 = vmatpush2.msra.mxu0 %v3035
    %v3037 = vand.u32 %v314, 4294901760
    %v3038 = vsub.f32 %v314, %v3037
    %v3039 = vand.u32 %v3038, 4294901760
    %v3040 = vsub.f32 %v3038, %v3039
    %v3041 = vand.u32 %v3040, 4294901760
    %3042 = vmatprep.subr.mxu0 %v3041
    %v3043 = vand.u32 %v313, 4294901760
    %v3044 = vsub.f32 %v313, %v3043
    %v3045 = vand.u32 %v3044, 4294901760
    %v3046 = vsub.f32 %v3044, %v3045
    %v3047 = vand.u32 %v3046, 4294901760
    %3048 = vmatpush2.msra.mxu0 %v3047
    %v3049 = vand.u32 %v300, 4294901760
    %v3050 = vsub.f32 %v300, %v3049
    %v3051 = vand.u32 %v3050, 4294901760
    %v3052 = vsub.f32 %v3050, %v3051
    %v3053 = vand.u32 %v3052, 4294901760
    %3054 = vmatprep.subr.mxu0 %v3053
    %v3055 = vand.u32 %v299, 4294901760
    %v3056 = vsub.f32 %v299, %v3055
    %v3057 = vand.u32 %v3056, 4294901760
    %v3058 = vsub.f32 %v3056, %v3057
    %v3059 = vand.u32 %v3058, 4294901760
    %3060 = vmatpush2.msra.mxu0 %v3059
    %v3061 = vand.u32 %v286, 4294901760
    %v3062 = vsub.f32 %v286, %v3061
    %v3063 = vand.u32 %v3062, 4294901760
    %v3064 = vsub.f32 %v3062, %v3063
    %v3065 = vand.u32 %v3064, 4294901760
    %3066 = vmatprep.subr.mxu0 %v3065
    %v3067 = vand.u32 %v285, 4294901760
    %v3068 = vsub.f32 %v285, %v3067
    %v3069 = vand.u32 %v3068, 4294901760
    %v3070 = vsub.f32 %v3068, %v3069
    %v3071 = vand.u32 %v3070, 4294901760
    %3072 = vmatpush2.msra.mxu0 %v3071
    %v3073 = vand.u32 %v272, 4294901760
    %v3074 = vsub.f32 %v272, %v3073
    %v3075 = vand.u32 %v3074, 4294901760
    %v3076 = vsub.f32 %v3074, %v3075
    %v3077 = vand.u32 %v3076, 4294901760
    %3078 = vmatprep.subr.mxu0 %v3077
    %v3079 = vand.u32 %v271, 4294901760
    %v3080 = vsub.f32 %v271, %v3079
    %v3081 = vand.u32 %v3080, 4294901760
    %v3082 = vsub.f32 %v3080, %v3081
    %v3083 = vand.u32 %v3082, 4294901760
    %3084 = vmatpush2.msra.mxu0 %v3083
    %v3085 = vand.u32 %v258, 4294901760
    %v3086 = vsub.f32 %v258, %v3085
    %v3087 = vand.u32 %v3086, 4294901760
    %v3088 = vsub.f32 %v3086, %v3087
    %v3089 = vand.u32 %v3088, 4294901760
    %3090 = vmatprep.subr.mxu0 %v3089
    %v3091 = vand.u32 %v257, 4294901760
    %v3092 = vsub.f32 %v257, %v3091
    %v3093 = vand.u32 %v3092, 4294901760
    %v3094 = vsub.f32 %v3092, %v3093
    %v3095 = vand.u32 %v3094, 4294901760
    %3096 = vmatpush2.msra.mxu0 %v3095
    %v3097 = vand.u32 %v367, 4294901760
    %3098 = vmatprep.mubr.f32.mxu0 %v3097
    %v3099 = vand.u32 %v25, 4294901760
    %3100 = vmatmul.mubr.f32.gmra.mxu0 %v3099
    %v3101 = vpop.f32.mrf.mxu0
    %v3102 = vadd.f32 %v2773, %v3101
    %v3103 = vpop.f32.mrf.mxu0
    %v3104 = vadd.f32 %v2775, %v3103
    %v3105 = vand.u32 %v370, 4294901760
    %3106 = vmatprep.mubr.f32.mxu0 %v3105
    %v3107 = vand.u32 %v27, 4294901760
    %3108 = vmatmul.mubr.f32.gmra.mxu0 %v3107
    %v3109 = vpop.f32.mrf.mxu0
    %v3110 = vadd.f32 %v2789, %v3109
    %v3111 = vpop.f32.mrf.mxu0
    %v3112 = vadd.f32 %v2791, %v3111
    %3113 = vdwg.mxu0
    %v3114 = vand.u32 %v244, 4294901760
    %v3115 = vsub.f32 %v244, %v3114
    %3116 = vmatprep.subr.mxu0 %v3115
    %v3117 = vand.u32 %v243, 4294901760
    %v3118 = vsub.f32 %v243, %v3117
    %3119 = vmatpush1.msra.mxu0 %v3118
    %v3120 = vand.u32 %v230, 4294901760
    %v3121 = vsub.f32 %v230, %v3120
    %3122 = vmatprep.subr.mxu0 %v3121
    %v3123 = vand.u32 %v229, 4294901760
    %v3124 = vsub.f32 %v229, %v3123
    %3125 = vmatpush1.msra.mxu0 %v3124
    %v3126 = vand.u32 %v216, 4294901760
    %v3127 = vsub.f32 %v216, %v3126
    %3128 = vmatprep.subr.mxu0 %v3127
    %v3129 = vand.u32 %v215, 4294901760
    %v3130 = vsub.f32 %v215, %v3129
    %3131 = vmatpush1.msra.mxu0 %v3130
    %v3132 = vand.u32 %v202, 4294901760
    %v3133 = vsub.f32 %v202, %v3132
    %3134 = vmatprep.subr.mxu0 %v3133
    %v3135 = vand.u32 %v201, 4294901760
    %v3136 = vsub.f32 %v201, %v3135
    %3137 = vmatpush1.msra.mxu0 %v3136
    %v3138 = vand.u32 %v188, 4294901760
    %v3139 = vsub.f32 %v188, %v3138
    %3140 = vmatprep.subr.mxu0 %v3139
    %v3141 = vand.u32 %v187, 4294901760
    %v3142 = vsub.f32 %v187, %v3141
    %3143 = vmatpush1.msra.mxu0 %v3142
    %v3144 = vand.u32 %v174, 4294901760
    %v3145 = vsub.f32 %v174, %v3144
    %3146 = vmatprep.subr.mxu0 %v3145
    %v3147 = vand.u32 %v173, 4294901760
    %v3148 = vsub.f32 %v173, %v3147
    %3149 = vmatpush1.msra.mxu0 %v3148
    %v3150 = vand.u32 %v160, 4294901760
    %v3151 = vsub.f32 %v160, %v3150
    %3152 = vmatprep.subr.mxu0 %v3151
    %v3153 = vand.u32 %v159, 4294901760
    %v3154 = vsub.f32 %v159, %v3153
    %3155 = vmatpush1.msra.mxu0 %v3154
    %v3156 = vand.u32 %v146, 4294901760
    %v3157 = vsub.f32 %v146, %v3156
    %3158 = vmatprep.subr.mxu0 %v3157
    %v3159 = vand.u32 %v145, 4294901760
    %v3160 = vsub.f32 %v145, %v3159
    %3161 = vmatpush1.msra.mxu0 %v3160
    %v3162 = vand.u32 %v132, 4294901760
    %v3163 = vsub.f32 %v132, %v3162
    %3164 = vmatprep.subr.mxu0 %v3163
    %v3165 = vand.u32 %v131, 4294901760
    %v3166 = vsub.f32 %v131, %v3165
    %3167 = vmatpush1.msra.mxu0 %v3166
    %v3168 = vand.u32 %v118, 4294901760
    %v3169 = vsub.f32 %v118, %v3168
    %3170 = vmatprep.subr.mxu0 %v3169
    %v3171 = vand.u32 %v117, 4294901760
    %v3172 = vsub.f32 %v117, %v3171
    %3173 = vmatpush1.msra.mxu0 %v3172
    %v3174 = vand.u32 %v104, 4294901760
    %v3175 = vsub.f32 %v104, %v3174
    %3176 = vmatprep.subr.mxu0 %v3175
    %v3177 = vand.u32 %v103, 4294901760
    %v3178 = vsub.f32 %v103, %v3177
    %3179 = vmatpush1.msra.mxu0 %v3178
    %v3180 = vand.u32 %v90, 4294901760
    %v3181 = vsub.f32 %v90, %v3180
    %3182 = vmatprep.subr.mxu0 %v3181
    %v3183 = vand.u32 %v89, 4294901760
    %v3184 = vsub.f32 %v89, %v3183
    %3185 = vmatpush1.msra.mxu0 %v3184
    %v3186 = vand.u32 %v76, 4294901760
    %v3187 = vsub.f32 %v76, %v3186
    %3188 = vmatprep.subr.mxu0 %v3187
    %v3189 = vand.u32 %v75, 4294901760
    %v3190 = vsub.f32 %v75, %v3189
    %3191 = vmatpush1.msra.mxu0 %v3190
    %v3192 = vand.u32 %v62, 4294901760
    %v3193 = vsub.f32 %v62, %v3192
    %3194 = vmatprep.subr.mxu0 %v3193
    %v3195 = vand.u32 %v61, 4294901760
    %v3196 = vsub.f32 %v61, %v3195
    %3197 = vmatpush1.msra.mxu0 %v3196
    %v3198 = vand.u32 %v48, 4294901760
    %v3199 = vsub.f32 %v48, %v3198
    %3200 = vmatprep.subr.mxu0 %v3199
    %v3201 = vand.u32 %v47, 4294901760
    %v3202 = vsub.f32 %v47, %v3201
    %3203 = vmatpush1.msra.mxu0 %v3202
    %v3204 = vand.u32 %v34, 4294901760
    %v3205 = vsub.f32 %v34, %v3204
    %3206 = vmatprep.subr.mxu0 %v3205
    %v3207 = vand.u32 %v33, 4294901760
    %v3208 = vsub.f32 %v33, %v3207
    %3209 = vmatpush1.msra.mxu0 %v3208
    %3210 = vmatprep.subr.mxu0 0.0
    %3211 = vmatpush2.msra.mxu0 0.0
    %3212 = vmatprep.subr.mxu0 0.0
    %3213 = vmatpush2.msra.mxu0 0.0
    %3214 = vmatprep.subr.mxu0 0.0
    %3215 = vmatpush2.msra.mxu0 0.0
    %3216 = vmatprep.subr.mxu0 0.0
    %3217 = vmatpush2.msra.mxu0 0.0
    %3218 = vmatprep.subr.mxu0 0.0
    %3219 = vmatpush2.msra.mxu0 0.0
    %3220 = vmatprep.subr.mxu0 0.0
    %3221 = vmatpush2.msra.mxu0 0.0
    %3222 = vmatprep.subr.mxu0 0.0
    %3223 = vmatpush2.msra.mxu0 0.0
    %3224 = vmatprep.subr.mxu0 0.0
    %3225 = vmatpush2.msra.mxu0 0.0
    %v3226 = vand.u32 %v356, 4294901760
    %v3227 = vsub.f32 %v356, %v3226
    %3228 = vmatprep.subr.mxu0 %v3227
    %v3229 = vand.u32 %v355, 4294901760
    %v3230 = vsub.f32 %v355, %v3229
    %3231 = vmatpush2.msra.mxu0 %v3230
    %v3232 = vand.u32 %v342, 4294901760
    %v3233 = vsub.f32 %v342, %v3232
    %3234 = vmatprep.subr.mxu0 %v3233
    %v3235 = vand.u32 %v341, 4294901760
    %v3236 = vsub.f32 %v341, %v3235
    %3237 = vmatpush2.msra.mxu0 %v3236
    %v3238 = vand.u32 %v328, 4294901760
    %v3239 = vsub.f32 %v328, %v3238
    %3240 = vmatprep.subr.mxu0 %v3239
    %v3241 = vand.u32 %v327, 4294901760
    %v3242 = vsub.f32 %v327, %v3241
    %3243 = vmatpush2.msra.mxu0 %v3242
    %v3244 = vand.u32 %v314, 4294901760
    %v3245 = vsub.f32 %v314, %v3244
    %3246 = vmatprep.subr.mxu0 %v3245
    %v3247 = vand.u32 %v313, 4294901760
    %v3248 = vsub.f32 %v313, %v3247
    %3249 = vmatpush2.msra.mxu0 %v3248
    %v3250 = vand.u32 %v300, 4294901760
    %v3251 = vsub.f32 %v300, %v3250
    %3252 = vmatprep.subr.mxu0 %v3251
    %v3253 = vand.u32 %v299, 4294901760
    %v3254 = vsub.f32 %v299, %v3253
    %3255 = vmatpush2.msra.mxu0 %v3254
    %v3256 = vand.u32 %v286, 4294901760
    %v3257 = vsub.f32 %v286, %v3256
    %3258 = vmatprep.subr.mxu0 %v3257
    %v3259 = vand.u32 %v285, 4294901760
    %v3260 = vsub.f32 %v285, %v3259
    %3261 = vmatpush2.msra.mxu0 %v3260
    %v3262 = vand.u32 %v272, 4294901760
    %v3263 = vsub.f32 %v272, %v3262
    %3264 = vmatprep.subr.mxu0 %v3263
    %v3265 = vand.u32 %v271, 4294901760
    %v3266 = vsub.f32 %v271, %v3265
    %3267 = vmatpush2.msra.mxu0 %v3266
    %v3268 = vand.u32 %v258, 4294901760
    %v3269 = vsub.f32 %v258, %v3268
    %3270 = vmatprep.subr.mxu0 %v3269
    %v3271 = vand.u32 %v257, 4294901760
    %v3272 = vsub.f32 %v257, %v3271
    %3273 = vmatpush2.msra.mxu0 %v3272
    %v3274 = vand.u32 %v367, 4294901760
    %v3275 = vsub.f32 %v367, %v3274
    %3276 = vmatprep.mubr.f32.mxu0 %v3275
    %v3277 = vand.u32 %v25, 4294901760
    %v3278 = vsub.f32 %v25, %v3277
    %3279 = vmatmul.mubr.f32.gmra.mxu0 %v3278
    %v3280 = vpop.f32.mrf.mxu0
    %v3281 = vadd.f32 %v3102, %v3280
    %v3282 = vpop.f32.mrf.mxu0
    %v3283 = vadd.f32 %v3104, %v3282
    %v3284 = vand.u32 %v370, 4294901760
    %v3285 = vsub.f32 %v370, %v3284
    %3286 = vmatprep.mubr.f32.mxu0 %v3285
    %v3287 = vand.u32 %v27, 4294901760
    %v3288 = vsub.f32 %v27, %v3287
    %3289 = vmatmul.mubr.f32.gmra.mxu0 %v3288
    %v3290 = vpop.f32.mrf.mxu0
    %v3291 = vadd.f32 %v3110, %v3290
    %v3292 = vpop.f32.mrf.mxu0
    %v3293 = vadd.f32 %v3112, %v3292
    %3294 = vdwg.mxu0
    %v3295 = vand.u32 %v244, 4294901760
    %3296 = vmatprep.subr.mxu0 %v3295
    %v3297 = vand.u32 %v243, 4294901760
    %3298 = vmatpush1.msra.mxu0 %v3297
    %v3299 = vand.u32 %v230, 4294901760
    %3300 = vmatprep.subr.mxu0 %v3299
    %v3301 = vand.u32 %v229, 4294901760
    %3302 = vmatpush1.msra.mxu0 %v3301
    %v3303 = vand.u32 %v216, 4294901760
    %3304 = vmatprep.subr.mxu0 %v3303
    %v3305 = vand.u32 %v215, 4294901760
    %3306 = vmatpush1.msra.mxu0 %v3305
    %v3307 = vand.u32 %v202, 4294901760
    %3308 = vmatprep.subr.mxu0 %v3307
    %v3309 = vand.u32 %v201, 4294901760
    %3310 = vmatpush1.msra.mxu0 %v3309
    %v3311 = vand.u32 %v188, 4294901760
    %3312 = vmatprep.subr.mxu0 %v3311
    %v3313 = vand.u32 %v187, 4294901760
    %3314 = vmatpush1.msra.mxu0 %v3313
    %v3315 = vand.u32 %v174, 4294901760
    %3316 = vmatprep.subr.mxu0 %v3315
    %v3317 = vand.u32 %v173, 4294901760
    %3318 = vmatpush1.msra.mxu0 %v3317
    %v3319 = vand.u32 %v160, 4294901760
    %3320 = vmatprep.subr.mxu0 %v3319
    %v3321 = vand.u32 %v159, 4294901760
    %3322 = vmatpush1.msra.mxu0 %v3321
    %v3323 = vand.u32 %v146, 4294901760
    %3324 = vmatprep.subr.mxu0 %v3323
    %v3325 = vand.u32 %v145, 4294901760
    %3326 = vmatpush1.msra.mxu0 %v3325
    %v3327 = vand.u32 %v132, 4294901760
    %3328 = vmatprep.subr.mxu0 %v3327
    %v3329 = vand.u32 %v131, 4294901760
    %3330 = vmatpush1.msra.mxu0 %v3329
    %v3331 = vand.u32 %v118, 4294901760
    %3332 = vmatprep.subr.mxu0 %v3331
    %v3333 = vand.u32 %v117, 4294901760
    %3334 = vmatpush1.msra.mxu0 %v3333
    %v3335 = vand.u32 %v104, 4294901760
    %3336 = vmatprep.subr.mxu0 %v3335
    %v3337 = vand.u32 %v103, 4294901760
    %3338 = vmatpush1.msra.mxu0 %v3337
    %v3339 = vand.u32 %v90, 4294901760
    %3340 = vmatprep.subr.mxu0 %v3339
    %v3341 = vand.u32 %v89, 4294901760
    %3342 = vmatpush1.msra.mxu0 %v3341
    %v3343 = vand.u32 %v76, 4294901760
    %3344 = vmatprep.subr.mxu0 %v3343
    %v3345 = vand.u32 %v75, 4294901760
    %3346 = vmatpush1.msra.mxu0 %v3345
    %v3347 = vand.u32 %v62, 4294901760
    %3348 = vmatprep.subr.mxu0 %v3347
    %v3349 = vand.u32 %v61, 4294901760
    %3350 = vmatpush1.msra.mxu0 %v3349
    %v3351 = vand.u32 %v48, 4294901760
    %3352 = vmatprep.subr.mxu0 %v3351
    %v3353 = vand.u32 %v47, 4294901760
    %3354 = vmatpush1.msra.mxu0 %v3353
    %v3355 = vand.u32 %v34, 4294901760
    %3356 = vmatprep.subr.mxu0 %v3355
    %v3357 = vand.u32 %v33, 4294901760
    %3358 = vmatpush1.msra.mxu0 %v3357
    %3359 = vmatprep.subr.mxu0 0.0
    %3360 = vmatpush2.msra.mxu0 0.0
    %3361 = vmatprep.subr.mxu0 0.0
    %3362 = vmatpush2.msra.mxu0 0.0
    %3363 = vmatprep.subr.mxu0 0.0
    %3364 = vmatpush2.msra.mxu0 0.0
    %3365 = vmatprep.subr.mxu0 0.0
    %3366 = vmatpush2.msra.mxu0 0.0
    %3367 = vmatprep.subr.mxu0 0.0
    %3368 = vmatpush2.msra.mxu0 0.0
    %3369 = vmatprep.subr.mxu0 0.0
    %3370 = vmatpush2.msra.mxu0 0.0
    %3371 = vmatprep.subr.mxu0 0.0
    %3372 = vmatpush2.msra.mxu0 0.0
    %3373 = vmatprep.subr.mxu0 0.0
    %3374 = vmatpush2.msra.mxu0 0.0
    %v3375 = vand.u32 %v356, 4294901760
    %3376 = vmatprep.subr.mxu0 %v3375
    %v3377 = vand.u32 %v355, 4294901760
    %3378 = vmatpush2.msra.mxu0 %v3377
    %v3379 = vand.u32 %v342, 4294901760
    %3380 = vmatprep.subr.mxu0 %v3379
    %v3381 = vand.u32 %v341, 4294901760
    %3382 = vmatpush2.msra.mxu0 %v3381
    %v3383 = vand.u32 %v328, 4294901760
    %3384 = vmatprep.subr.mxu0 %v3383
    %v3385 = vand.u32 %v327, 4294901760
    %3386 = vmatpush2.msra.mxu0 %v3385
    %v3387 = vand.u32 %v314, 4294901760
    %3388 = vmatprep.subr.mxu0 %v3387
    %v3389 = vand.u32 %v313, 4294901760
    %3390 = vmatpush2.msra.mxu0 %v3389
    %v3391 = vand.u32 %v300, 4294901760
    %3392 = vmatprep.subr.mxu0 %v3391
    %v3393 = vand.u32 %v299, 4294901760
    %3394 = vmatpush2.msra.mxu0 %v3393
    %v3395 = vand.u32 %v286, 4294901760
    %3396 = vmatprep.subr.mxu0 %v3395
    %v3397 = vand.u32 %v285, 4294901760
    %3398 = vmatpush2.msra.mxu0 %v3397
    %v3399 = vand.u32 %v272, 4294901760
    %3400 = vmatprep.subr.mxu0 %v3399
    %v3401 = vand.u32 %v271, 4294901760
    %3402 = vmatpush2.msra.mxu0 %v3401
    %v3403 = vand.u32 %v258, 4294901760
    %3404 = vmatprep.subr.mxu0 %v3403
    %v3405 = vand.u32 %v257, 4294901760
    %3406 = vmatpush2.msra.mxu0 %v3405
    %v3407 = vand.u32 %v367, 4294901760
    %v3408 = vsub.f32 %v367, %v3407
    %v3409 = vand.u32 %v3408, 4294901760
    %3410 = vmatprep.mubr.f32.mxu0 %v3409
    %v3411 = vand.u32 %v25, 4294901760
    %v3412 = vsub.f32 %v25, %v3411
    %v3413 = vand.u32 %v3412, 4294901760
    %3414 = vmatmul.mubr.f32.gmra.mxu0 %v3413
    %v3415 = vpop.f32.mrf.mxu0
    %v3416 = vadd.f32 %v3281, %v3415
    %v3417 = vpop.f32.mrf.mxu0
    %v3418 = vadd.f32 %v3283, %v3417
    %v3419 = vand.u32 %v370, 4294901760
    %v3420 = vsub.f32 %v370, %v3419
    %v3421 = vand.u32 %v3420, 4294901760
    %3422 = vmatprep.mubr.f32.mxu0 %v3421
    %v3423 = vand.u32 %v27, 4294901760
    %v3424 = vsub.f32 %v27, %v3423
    %v3425 = vand.u32 %v3424, 4294901760
    %3426 = vmatmul.mubr.f32.gmra.mxu0 %v3425
    %v3427 = vpop.f32.mrf.mxu0
    %v3428 = vadd.f32 %v3291, %v3427
    %v3429 = vpop.f32.mrf.mxu0
    %v3430 = vadd.f32 %v3293, %v3429
    %3431 = vdwg.mxu0
    %v3432 = vand.u32 %v244, 4294901760
    %v3433 = vsub.f32 %v244, %v3432
    %v3434 = vand.u32 %v3433, 4294901760
    %3435 = vmatprep.subr.mxu0 %v3434
    %v3436 = vand.u32 %v243, 4294901760
    %v3437 = vsub.f32 %v243, %v3436
    %v3438 = vand.u32 %v3437, 4294901760
    %3439 = vmatpush1.msra.mxu0 %v3438
    %v3440 = vand.u32 %v230, 4294901760
    %v3441 = vsub.f32 %v230, %v3440
    %v3442 = vand.u32 %v3441, 4294901760
    %3443 = vmatprep.subr.mxu0 %v3442
    %v3444 = vand.u32 %v229, 4294901760
    %v3445 = vsub.f32 %v229, %v3444
    %v3446 = vand.u32 %v3445, 4294901760
    %3447 = vmatpush1.msra.mxu0 %v3446
    %v3448 = vand.u32 %v216, 4294901760
    %v3449 = vsub.f32 %v216, %v3448
    %v3450 = vand.u32 %v3449, 4294901760
    %3451 = vmatprep.subr.mxu0 %v3450
    %v3452 = vand.u32 %v215, 4294901760
    %v3453 = vsub.f32 %v215, %v3452
    %v3454 = vand.u32 %v3453, 4294901760
    %3455 = vmatpush1.msra.mxu0 %v3454
    %v3456 = vand.u32 %v202, 4294901760
    %v3457 = vsub.f32 %v202, %v3456
    %v3458 = vand.u32 %v3457, 4294901760
    %3459 = vmatprep.subr.mxu0 %v3458
    %v3460 = vand.u32 %v201, 4294901760
    %v3461 = vsub.f32 %v201, %v3460
    %v3462 = vand.u32 %v3461, 4294901760
    %3463 = vmatpush1.msra.mxu0 %v3462
    %v3464 = vand.u32 %v188, 4294901760
    %v3465 = vsub.f32 %v188, %v3464
    %v3466 = vand.u32 %v3465, 4294901760
    %3467 = vmatprep.subr.mxu0 %v3466
    %v3468 = vand.u32 %v187, 4294901760
    %v3469 = vsub.f32 %v187, %v3468
    %v3470 = vand.u32 %v3469, 4294901760
    %3471 = vmatpush1.msra.mxu0 %v3470
    %v3472 = vand.u32 %v174, 4294901760
    %v3473 = vsub.f32 %v174, %v3472
    %v3474 = vand.u32 %v3473, 4294901760
    %3475 = vmatprep.subr.mxu0 %v3474
    %v3476 = vand.u32 %v173, 4294901760
    %v3477 = vsub.f32 %v173, %v3476
    %v3478 = vand.u32 %v3477, 4294901760
    %3479 = vmatpush1.msra.mxu0 %v3478
    %v3480 = vand.u32 %v160, 4294901760
    %v3481 = vsub.f32 %v160, %v3480
    %v3482 = vand.u32 %v3481, 4294901760
    %3483 = vmatprep.subr.mxu0 %v3482
    %v3484 = vand.u32 %v159, 4294901760
    %v3485 = vsub.f32 %v159, %v3484
    %v3486 = vand.u32 %v3485, 4294901760
    %3487 = vmatpush1.msra.mxu0 %v3486
    %v3488 = vand.u32 %v146, 4294901760
    %v3489 = vsub.f32 %v146, %v3488
    %v3490 = vand.u32 %v3489, 4294901760
    %3491 = vmatprep.subr.mxu0 %v3490
    %v3492 = vand.u32 %v145, 4294901760
    %v3493 = vsub.f32 %v145, %v3492
    %v3494 = vand.u32 %v3493, 4294901760
    %3495 = vmatpush1.msra.mxu0 %v3494
    %v3496 = vand.u32 %v132, 4294901760
    %v3497 = vsub.f32 %v132, %v3496
    %v3498 = vand.u32 %v3497, 4294901760
    %3499 = vmatprep.subr.mxu0 %v3498
    %v3500 = vand.u32 %v131, 4294901760
    %v3501 = vsub.f32 %v131, %v3500
    %v3502 = vand.u32 %v3501, 4294901760
    %3503 = vmatpush1.msra.mxu0 %v3502
    %v3504 = vand.u32 %v118, 4294901760
    %v3505 = vsub.f32 %v118, %v3504
    %v3506 = vand.u32 %v3505, 4294901760
    %3507 = vmatprep.subr.mxu0 %v3506
    %v3508 = vand.u32 %v117, 4294901760
    %v3509 = vsub.f32 %v117, %v3508
    %v3510 = vand.u32 %v3509, 4294901760
    %3511 = vmatpush1.msra.mxu0 %v3510
    %v3512 = vand.u32 %v104, 4294901760
    %v3513 = vsub.f32 %v104, %v3512
    %v3514 = vand.u32 %v3513, 4294901760
    %3515 = vmatprep.subr.mxu0 %v3514
    %v3516 = vand.u32 %v103, 4294901760
    %v3517 = vsub.f32 %v103, %v3516
    %v3518 = vand.u32 %v3517, 4294901760
    %3519 = vmatpush1.msra.mxu0 %v3518
    %v3520 = vand.u32 %v90, 4294901760
    %v3521 = vsub.f32 %v90, %v3520
    %v3522 = vand.u32 %v3521, 4294901760
    %3523 = vmatprep.subr.mxu0 %v3522
    %v3524 = vand.u32 %v89, 4294901760
    %v3525 = vsub.f32 %v89, %v3524
    %v3526 = vand.u32 %v3525, 4294901760
    %3527 = vmatpush1.msra.mxu0 %v3526
    %v3528 = vand.u32 %v76, 4294901760
    %v3529 = vsub.f32 %v76, %v3528
    %v3530 = vand.u32 %v3529, 4294901760
    %3531 = vmatprep.subr.mxu0 %v3530
    %v3532 = vand.u32 %v75, 4294901760
    %v3533 = vsub.f32 %v75, %v3532
    %v3534 = vand.u32 %v3533, 4294901760
    %3535 = vmatpush1.msra.mxu0 %v3534
    %v3536 = vand.u32 %v62, 4294901760
    %v3537 = vsub.f32 %v62, %v3536
    %v3538 = vand.u32 %v3537, 4294901760
    %3539 = vmatprep.subr.mxu0 %v3538
    %v3540 = vand.u32 %v61, 4294901760
    %v3541 = vsub.f32 %v61, %v3540
    %v3542 = vand.u32 %v3541, 4294901760
    %3543 = vmatpush1.msra.mxu0 %v3542
    %v3544 = vand.u32 %v48, 4294901760
    %v3545 = vsub.f32 %v48, %v3544
    %v3546 = vand.u32 %v3545, 4294901760
    %3547 = vmatprep.subr.mxu0 %v3546
    %v3548 = vand.u32 %v47, 4294901760
    %v3549 = vsub.f32 %v47, %v3548
    %v3550 = vand.u32 %v3549, 4294901760
    %3551 = vmatpush1.msra.mxu0 %v3550
    %v3552 = vand.u32 %v34, 4294901760
    %v3553 = vsub.f32 %v34, %v3552
    %v3554 = vand.u32 %v3553, 4294901760
    %3555 = vmatprep.subr.mxu0 %v3554
    %v3556 = vand.u32 %v33, 4294901760
    %v3557 = vsub.f32 %v33, %v3556
    %v3558 = vand.u32 %v3557, 4294901760
    %3559 = vmatpush1.msra.mxu0 %v3558
    %3560 = vmatprep.subr.mxu0 0.0
    %3561 = vmatpush2.msra.mxu0 0.0
    %3562 = vmatprep.subr.mxu0 0.0
    %3563 = vmatpush2.msra.mxu0 0.0
    %3564 = vmatprep.subr.mxu0 0.0
    %3565 = vmatpush2.msra.mxu0 0.0
    %3566 = vmatprep.subr.mxu0 0.0
    %3567 = vmatpush2.msra.mxu0 0.0
    %3568 = vmatprep.subr.mxu0 0.0
    %3569 = vmatpush2.msra.mxu0 0.0
    %3570 = vmatprep.subr.mxu0 0.0
    %3571 = vmatpush2.msra.mxu0 0.0
    %3572 = vmatprep.subr.mxu0 0.0
    %3573 = vmatpush2.msra.mxu0 0.0
    %3574 = vmatprep.subr.mxu0 0.0
    %3575 = vmatpush2.msra.mxu0 0.0
    %v3576 = vand.u32 %v356, 4294901760
    %v3577 = vsub.f32 %v356, %v3576
    %v3578 = vand.u32 %v3577, 4294901760
    %3579 = vmatprep.subr.mxu0 %v3578
    %v3580 = vand.u32 %v355, 4294901760
    %v3581 = vsub.f32 %v355, %v3580
    %v3582 = vand.u32 %v3581, 4294901760
    %3583 = vmatpush2.msra.mxu0 %v3582
    %v3584 = vand.u32 %v342, 4294901760
    %v3585 = vsub.f32 %v342, %v3584
    %v3586 = vand.u32 %v3585, 4294901760
    %3587 = vmatprep.subr.mxu0 %v3586
    %v3588 = vand.u32 %v341, 4294901760
    %v3589 = vsub.f32 %v341, %v3588
    %v3590 = vand.u32 %v3589, 4294901760
    %3591 = vmatpush2.msra.mxu0 %v3590
    %v3592 = vand.u32 %v328, 4294901760
    %v3593 = vsub.f32 %v328, %v3592
    %v3594 = vand.u32 %v3593, 4294901760
    %3595 = vmatprep.subr.mxu0 %v3594
    %v3596 = vand.u32 %v327, 4294901760
    %v3597 = vsub.f32 %v327, %v3596
    %v3598 = vand.u32 %v3597, 4294901760
    %3599 = vmatpush2.msra.mxu0 %v3598
    %v3600 = vand.u32 %v314, 4294901760
    %v3601 = vsub.f32 %v314, %v3600
    %v3602 = vand.u32 %v3601, 4294901760
    %3603 = vmatprep.subr.mxu0 %v3602
    %v3604 = vand.u32 %v313, 4294901760
    %v3605 = vsub.f32 %v313, %v3604
    %v3606 = vand.u32 %v3605, 4294901760
    %3607 = vmatpush2.msra.mxu0 %v3606
    %v3608 = vand.u32 %v300, 4294901760
    %v3609 = vsub.f32 %v300, %v3608
    %v3610 = vand.u32 %v3609, 4294901760
    %3611 = vmatprep.subr.mxu0 %v3610
    %v3612 = vand.u32 %v299, 4294901760
    %v3613 = vsub.f32 %v299, %v3612
    %v3614 = vand.u32 %v3613, 4294901760
    %3615 = vmatpush2.msra.mxu0 %v3614
    %v3616 = vand.u32 %v286, 4294901760
    %v3617 = vsub.f32 %v286, %v3616
    %v3618 = vand.u32 %v3617, 4294901760
    %3619 = vmatprep.subr.mxu0 %v3618
    %v3620 = vand.u32 %v285, 4294901760
    %v3621 = vsub.f32 %v285, %v3620
    %v3622 = vand.u32 %v3621, 4294901760
    %3623 = vmatpush2.msra.mxu0 %v3622
    %v3624 = vand.u32 %v272, 4294901760
    %v3625 = vsub.f32 %v272, %v3624
    %v3626 = vand.u32 %v3625, 4294901760
    %3627 = vmatprep.subr.mxu0 %v3626
    %v3628 = vand.u32 %v271, 4294901760
    %v3629 = vsub.f32 %v271, %v3628
    %v3630 = vand.u32 %v3629, 4294901760
    %3631 = vmatpush2.msra.mxu0 %v3630
    %v3632 = vand.u32 %v258, 4294901760
    %v3633 = vsub.f32 %v258, %v3632
    %v3634 = vand.u32 %v3633, 4294901760
    %3635 = vmatprep.subr.mxu0 %v3634
    %v3636 = vand.u32 %v257, 4294901760
    %v3637 = vsub.f32 %v257, %v3636
    %v3638 = vand.u32 %v3637, 4294901760
    %3639 = vmatpush2.msra.mxu0 %v3638
    %v3640 = vand.u32 %v367, 4294901760
    %3641 = vmatprep.mubr.f32.mxu0 %v3640
    %v3642 = vand.u32 %v25, 4294901760
    %3643 = vmatmul.mubr.f32.gmra.mxu0 %v3642
    %v3644 = vpop.f32.mrf.mxu0
    %v3645 = vadd.f32 %v3416, %v3644
    %v3646 = vpop.f32.mrf.mxu0
    %v3647 = vadd.f32 %v3418, %v3646
    %v3648 = vand.u32 %v370, 4294901760
    %3649 = vmatprep.mubr.f32.mxu0 %v3648
    %v3650 = vand.u32 %v27, 4294901760
    %3651 = vmatmul.mubr.f32.gmra.mxu0 %v3650
    %v3652 = vpop.f32.mrf.mxu0
    %v3653 = vadd.f32 %v3428, %v3652
    %v3654 = vpop.f32.mrf.mxu0
    %v3655 = vadd.f32 %v3430, %v3654
    %3656 = vdwg.mxu0
    %v3657 = vand.u32 %v244, 4294901760
    %3658 = vmatprep.subr.mxu0 %v3657
    %v3659 = vand.u32 %v243, 4294901760
    %3660 = vmatpush1.msra.mxu0 %v3659
    %v3661 = vand.u32 %v230, 4294901760
    %3662 = vmatprep.subr.mxu0 %v3661
    %v3663 = vand.u32 %v229, 4294901760
    %3664 = vmatpush1.msra.mxu0 %v3663
    %v3665 = vand.u32 %v216, 4294901760
    %3666 = vmatprep.subr.mxu0 %v3665
    %v3667 = vand.u32 %v215, 4294901760
    %3668 = vmatpush1.msra.mxu0 %v3667
    %v3669 = vand.u32 %v202, 4294901760
    %3670 = vmatprep.subr.mxu0 %v3669
    %v3671 = vand.u32 %v201, 4294901760
    %3672 = vmatpush1.msra.mxu0 %v3671
    %v3673 = vand.u32 %v188, 4294901760
    %3674 = vmatprep.subr.mxu0 %v3673
    %v3675 = vand.u32 %v187, 4294901760
    %3676 = vmatpush1.msra.mxu0 %v3675
    %v3677 = vand.u32 %v174, 4294901760
    %3678 = vmatprep.subr.mxu0 %v3677
    %v3679 = vand.u32 %v173, 4294901760
    %3680 = vmatpush1.msra.mxu0 %v3679
    %v3681 = vand.u32 %v160, 4294901760
    %3682 = vmatprep.subr.mxu0 %v3681
    %v3683 = vand.u32 %v159, 4294901760
    %3684 = vmatpush1.msra.mxu0 %v3683
    %v3685 = vand.u32 %v146, 4294901760
    %3686 = vmatprep.subr.mxu0 %v3685
    %v3687 = vand.u32 %v145, 4294901760
    %3688 = vmatpush1.msra.mxu0 %v3687
    %v3689 = vand.u32 %v132, 4294901760
    %3690 = vmatprep.subr.mxu0 %v3689
    %v3691 = vand.u32 %v131, 4294901760
    %3692 = vmatpush1.msra.mxu0 %v3691
    %v3693 = vand.u32 %v118, 4294901760
    %3694 = vmatprep.subr.mxu0 %v3693
    %v3695 = vand.u32 %v117, 4294901760
    %3696 = vmatpush1.msra.mxu0 %v3695
    %v3697 = vand.u32 %v104, 4294901760
    %3698 = vmatprep.subr.mxu0 %v3697
    %v3699 = vand.u32 %v103, 4294901760
    %3700 = vmatpush1.msra.mxu0 %v3699
    %v3701 = vand.u32 %v90, 4294901760
    %3702 = vmatprep.subr.mxu0 %v3701
    %v3703 = vand.u32 %v89, 4294901760
    %3704 = vmatpush1.msra.mxu0 %v3703
    %v3705 = vand.u32 %v76, 4294901760
    %3706 = vmatprep.subr.mxu0 %v3705
    %v3707 = vand.u32 %v75, 4294901760
    %3708 = vmatpush1.msra.mxu0 %v3707
    %v3709 = vand.u32 %v62, 4294901760
    %3710 = vmatprep.subr.mxu0 %v3709
    %v3711 = vand.u32 %v61, 4294901760
    %3712 = vmatpush1.msra.mxu0 %v3711
    %v3713 = vand.u32 %v48, 4294901760
    %3714 = vmatprep.subr.mxu0 %v3713
    %v3715 = vand.u32 %v47, 4294901760
    %3716 = vmatpush1.msra.mxu0 %v3715
    %v3717 = vand.u32 %v34, 4294901760
    %3718 = vmatprep.subr.mxu0 %v3717
    %v3719 = vand.u32 %v33, 4294901760
    %3720 = vmatpush1.msra.mxu0 %v3719
    %3721 = vmatprep.subr.mxu0 0.0
    %3722 = vmatpush2.msra.mxu0 0.0
    %3723 = vmatprep.subr.mxu0 0.0
    %3724 = vmatpush2.msra.mxu0 0.0
    %3725 = vmatprep.subr.mxu0 0.0
    %3726 = vmatpush2.msra.mxu0 0.0
    %3727 = vmatprep.subr.mxu0 0.0
    %3728 = vmatpush2.msra.mxu0 0.0
    %3729 = vmatprep.subr.mxu0 0.0
    %3730 = vmatpush2.msra.mxu0 0.0
    %3731 = vmatprep.subr.mxu0 0.0
    %3732 = vmatpush2.msra.mxu0 0.0
    %3733 = vmatprep.subr.mxu0 0.0
    %3734 = vmatpush2.msra.mxu0 0.0
    %3735 = vmatprep.subr.mxu0 0.0
    %3736 = vmatpush2.msra.mxu0 0.0
    %v3737 = vand.u32 %v356, 4294901760
    %3738 = vmatprep.subr.mxu0 %v3737
    %v3739 = vand.u32 %v355, 4294901760
    %3740 = vmatpush2.msra.mxu0 %v3739
    %v3741 = vand.u32 %v342, 4294901760
    %3742 = vmatprep.subr.mxu0 %v3741
    %v3743 = vand.u32 %v341, 4294901760
    %3744 = vmatpush2.msra.mxu0 %v3743
    %v3745 = vand.u32 %v328, 4294901760
    %3746 = vmatprep.subr.mxu0 %v3745
    %v3747 = vand.u32 %v327, 4294901760
    %3748 = vmatpush2.msra.mxu0 %v3747
    %v3749 = vand.u32 %v314, 4294901760
    %3750 = vmatprep.subr.mxu0 %v3749
    %v3751 = vand.u32 %v313, 4294901760
    %3752 = vmatpush2.msra.mxu0 %v3751
    %v3753 = vand.u32 %v300, 4294901760
    %3754 = vmatprep.subr.mxu0 %v3753
    %v3755 = vand.u32 %v299, 4294901760
    %3756 = vmatpush2.msra.mxu0 %v3755
    %v3757 = vand.u32 %v286, 4294901760
    %3758 = vmatprep.subr.mxu0 %v3757
    %v3759 = vand.u32 %v285, 4294901760
    %3760 = vmatpush2.msra.mxu0 %v3759
    %v3761 = vand.u32 %v272, 4294901760
    %3762 = vmatprep.subr.mxu0 %v3761
    %v3763 = vand.u32 %v271, 4294901760
    %3764 = vmatpush2.msra.mxu0 %v3763
    %v3765 = vand.u32 %v258, 4294901760
    %3766 = vmatprep.subr.mxu0 %v3765
    %v3767 = vand.u32 %v257, 4294901760
    %3768 = vmatpush2.msra.mxu0 %v3767
    %v3769 = vand.u32 %v367, 4294901760
    %3770 = vmatprep.mubr.f32.mxu0 %v3769
    %v3771 = vand.u32 %v25, 4294901760
    %3772 = vmatmul.mubr.f32.gmra.mxu0 %v3771
    %v3773 = vpop.f32.mrf.mxu0
    %v3774 = vadd.f32 %v3645, %v3773
    %v3775 = vpop.f32.mrf.mxu0
    %v3776 = vadd.f32 %v3647, %v3775
    %v3777 = vand.u32 %v370, 4294901760
    %3778 = vmatprep.mubr.f32.mxu0 %v3777
    %v3779 = vand.u32 %v27, 4294901760
    %3780 = vmatmul.mubr.f32.gmra.mxu0 %v3779
    %v3781 = vpop.f32.mrf.mxu0
    %v3782 = vadd.f32 %v3653, %v3781
    %v3783 = vpop.f32.mrf.mxu0
    %v3784 = vadd.f32 %v3655, %v3783
    %3785 = vdwg.mxu0
    %v3786 = vand.u32 %v246, 4294901760
    %3787 = vmatprep.subr.mxu0 %v3786
    %v3788 = vand.u32 %v245, 4294901760
    %3789 = vmatpush1.msra.mxu0 %v3788
    %v3790 = vand.u32 %v232, 4294901760
    %3791 = vmatprep.subr.mxu0 %v3790
    %v3792 = vand.u32 %v231, 4294901760
    %3793 = vmatpush1.msra.mxu0 %v3792
    %v3794 = vand.u32 %v218, 4294901760
    %3795 = vmatprep.subr.mxu0 %v3794
    %v3796 = vand.u32 %v217, 4294901760
    %3797 = vmatpush1.msra.mxu0 %v3796
    %v3798 = vand.u32 %v204, 4294901760
    %3799 = vmatprep.subr.mxu0 %v3798
    %v3800 = vand.u32 %v203, 4294901760
    %3801 = vmatpush1.msra.mxu0 %v3800
    %v3802 = vand.u32 %v190, 4294901760
    %3803 = vmatprep.subr.mxu0 %v3802
    %v3804 = vand.u32 %v189, 4294901760
    %3805 = vmatpush1.msra.mxu0 %v3804
    %v3806 = vand.u32 %v176, 4294901760
    %3807 = vmatprep.subr.mxu0 %v3806
    %v3808 = vand.u32 %v175, 4294901760
    %3809 = vmatpush1.msra.mxu0 %v3808
    %v3810 = vand.u32 %v162, 4294901760
    %3811 = vmatprep.subr.mxu0 %v3810
    %v3812 = vand.u32 %v161, 4294901760
    %3813 = vmatpush1.msra.mxu0 %v3812
    %v3814 = vand.u32 %v148, 4294901760
    %3815 = vmatprep.subr.mxu0 %v3814
    %v3816 = vand.u32 %v147, 4294901760
    %3817 = vmatpush1.msra.mxu0 %v3816
    %v3818 = vand.u32 %v134, 4294901760
    %3819 = vmatprep.subr.mxu0 %v3818
    %v3820 = vand.u32 %v133, 4294901760
    %3821 = vmatpush1.msra.mxu0 %v3820
    %v3822 = vand.u32 %v120, 4294901760
    %3823 = vmatprep.subr.mxu0 %v3822
    %v3824 = vand.u32 %v119, 4294901760
    %3825 = vmatpush1.msra.mxu0 %v3824
    %v3826 = vand.u32 %v106, 4294901760
    %3827 = vmatprep.subr.mxu0 %v3826
    %v3828 = vand.u32 %v105, 4294901760
    %3829 = vmatpush1.msra.mxu0 %v3828
    %v3830 = vand.u32 %v92, 4294901760
    %3831 = vmatprep.subr.mxu0 %v3830
    %v3832 = vand.u32 %v91, 4294901760
    %3833 = vmatpush1.msra.mxu0 %v3832
    %v3834 = vand.u32 %v78, 4294901760
    %3835 = vmatprep.subr.mxu0 %v3834
    %v3836 = vand.u32 %v77, 4294901760
    %3837 = vmatpush1.msra.mxu0 %v3836
    %v3838 = vand.u32 %v64, 4294901760
    %3839 = vmatprep.subr.mxu0 %v3838
    %v3840 = vand.u32 %v63, 4294901760
    %3841 = vmatpush1.msra.mxu0 %v3840
    %v3842 = vand.u32 %v50, 4294901760
    %3843 = vmatprep.subr.mxu0 %v3842
    %v3844 = vand.u32 %v49, 4294901760
    %3845 = vmatpush1.msra.mxu0 %v3844
    %v3846 = vand.u32 %v36, 4294901760
    %3847 = vmatprep.subr.mxu0 %v3846
    %v3848 = vand.u32 %v35, 4294901760
    %3849 = vmatpush1.msra.mxu0 %v3848
    %3850 = vmatprep.subr.mxu0 0.0
    %3851 = vmatpush2.msra.mxu0 0.0
    %3852 = vmatprep.subr.mxu0 0.0
    %3853 = vmatpush2.msra.mxu0 0.0
    %3854 = vmatprep.subr.mxu0 0.0
    %3855 = vmatpush2.msra.mxu0 0.0
    %3856 = vmatprep.subr.mxu0 0.0
    %3857 = vmatpush2.msra.mxu0 0.0
    %3858 = vmatprep.subr.mxu0 0.0
    %3859 = vmatpush2.msra.mxu0 0.0
    %3860 = vmatprep.subr.mxu0 0.0
    %3861 = vmatpush2.msra.mxu0 0.0
    %3862 = vmatprep.subr.mxu0 0.0
    %3863 = vmatpush2.msra.mxu0 0.0
    %3864 = vmatprep.subr.mxu0 0.0
    %3865 = vmatpush2.msra.mxu0 0.0
    %v3866 = vand.u32 %v358, 4294901760
    %3867 = vmatprep.subr.mxu0 %v3866
    %v3868 = vand.u32 %v357, 4294901760
    %3869 = vmatpush2.msra.mxu0 %v3868
    %v3870 = vand.u32 %v344, 4294901760
    %3871 = vmatprep.subr.mxu0 %v3870
    %v3872 = vand.u32 %v343, 4294901760
    %3873 = vmatpush2.msra.mxu0 %v3872
    %v3874 = vand.u32 %v330, 4294901760
    %3875 = vmatprep.subr.mxu0 %v3874
    %v3876 = vand.u32 %v329, 4294901760
    %3877 = vmatpush2.msra.mxu0 %v3876
    %v3878 = vand.u32 %v316, 4294901760
    %3879 = vmatprep.subr.mxu0 %v3878
    %v3880 = vand.u32 %v315, 4294901760
    %3881 = vmatpush2.msra.mxu0 %v3880
    %v3882 = vand.u32 %v302, 4294901760
    %3883 = vmatprep.subr.mxu0 %v3882
    %v3884 = vand.u32 %v301, 4294901760
    %3885 = vmatpush2.msra.mxu0 %v3884
    %v3886 = vand.u32 %v288, 4294901760
    %3887 = vmatprep.subr.mxu0 %v3886
    %v3888 = vand.u32 %v287, 4294901760
    %3889 = vmatpush2.msra.mxu0 %v3888
    %v3890 = vand.u32 %v274, 4294901760
    %3891 = vmatprep.subr.mxu0 %v3890
    %v3892 = vand.u32 %v273, 4294901760
    %3893 = vmatpush2.msra.mxu0 %v3892
    %v3894 = vand.u32 %v260, 4294901760
    %3895 = vmatprep.subr.mxu0 %v3894
    %v3896 = vand.u32 %v259, 4294901760
    %3897 = vmatpush2.msra.mxu0 %v3896
    %v3898 = vand.u32 %v367, 4294901760
    %v3899 = vsub.f32 %v367, %v3898
    %v3900 = vand.u32 %v3899, 4294901760
    %v3901 = vsub.f32 %v3899, %v3900
    %v3902 = vand.u32 %v3901, 4294901760
    %3903 = vmatprep.mubr.f32.mxu0 %v3902
    %v3904 = vand.u32 %v25, 4294901760
    %v3905 = vsub.f32 %v25, %v3904
    %v3906 = vand.u32 %v3905, 4294901760
    %v3907 = vsub.f32 %v3905, %v3906
    %v3908 = vand.u32 %v3907, 4294901760
    %3909 = vmatmul.mubr.f32.gmra.mxu0 %v3908
    %v3910 = vpop.f32.mrf.mxu0
    %v3911 = vadd.f32 0.0, %v3910
    %v3912 = vpop.f32.mrf.mxu0
    %v3913 = vadd.f32 0.0, %v3912
    %v3914 = vand.u32 %v370, 4294901760
    %v3915 = vsub.f32 %v370, %v3914
    %v3916 = vand.u32 %v3915, 4294901760
    %v3917 = vsub.f32 %v3915, %v3916
    %v3918 = vand.u32 %v3917, 4294901760
    %3919 = vmatprep.mubr.f32.mxu0 %v3918
    %v3920 = vand.u32 %v27, 4294901760
    %v3921 = vsub.f32 %v27, %v3920
    %v3922 = vand.u32 %v3921, 4294901760
    %v3923 = vsub.f32 %v3921, %v3922
    %v3924 = vand.u32 %v3923, 4294901760
    %3925 = vmatmul.mubr.f32.gmra.mxu0 %v3924
    %v3926 = vpop.f32.mrf.mxu0
    %v3927 = vadd.f32 0.0, %v3926
    %v3928 = vpop.f32.mrf.mxu0
    %v3929 = vadd.f32 0.0, %v3928
    %3930 = vdwg.mxu0
    %v3931 = vand.u32 %v246, 4294901760
    %v3932 = vsub.f32 %v246, %v3931
    %v3933 = vand.u32 %v3932, 4294901760
    %v3934 = vsub.f32 %v3932, %v3933
    %v3935 = vand.u32 %v3934, 4294901760
    %3936 = vmatprep.subr.mxu0 %v3935
    %v3937 = vand.u32 %v245, 4294901760
    %v3938 = vsub.f32 %v245, %v3937
    %v3939 = vand.u32 %v3938, 4294901760
    %v3940 = vsub.f32 %v3938, %v3939
    %v3941 = vand.u32 %v3940, 4294901760
    %3942 = vmatpush1.msra.mxu0 %v3941
    %v3943 = vand.u32 %v232, 4294901760
    %v3944 = vsub.f32 %v232, %v3943
    %v3945 = vand.u32 %v3944, 4294901760
    %v3946 = vsub.f32 %v3944, %v3945
    %v3947 = vand.u32 %v3946, 4294901760
    %3948 = vmatprep.subr.mxu0 %v3947
    %v3949 = vand.u32 %v231, 4294901760
    %v3950 = vsub.f32 %v231, %v3949
    %v3951 = vand.u32 %v3950, 4294901760
    %v3952 = vsub.f32 %v3950, %v3951
    %v3953 = vand.u32 %v3952, 4294901760
    %3954 = vmatpush1.msra.mxu0 %v3953
    %v3955 = vand.u32 %v218, 4294901760
    %v3956 = vsub.f32 %v218, %v3955
    %v3957 = vand.u32 %v3956, 4294901760
    %v3958 = vsub.f32 %v3956, %v3957
    %v3959 = vand.u32 %v3958, 4294901760
    %3960 = vmatprep.subr.mxu0 %v3959
    %v3961 = vand.u32 %v217, 4294901760
    %v3962 = vsub.f32 %v217, %v3961
    %v3963 = vand.u32 %v3962, 4294901760
    %v3964 = vsub.f32 %v3962, %v3963
    %v3965 = vand.u32 %v3964, 4294901760
    %3966 = vmatpush1.msra.mxu0 %v3965
    %v3967 = vand.u32 %v204, 4294901760
    %v3968 = vsub.f32 %v204, %v3967
    %v3969 = vand.u32 %v3968, 4294901760
    %v3970 = vsub.f32 %v3968, %v3969
    %v3971 = vand.u32 %v3970, 4294901760
    %3972 = vmatprep.subr.mxu0 %v3971
    %v3973 = vand.u32 %v203, 4294901760
    %v3974 = vsub.f32 %v203, %v3973
    %v3975 = vand.u32 %v3974, 4294901760
    %v3976 = vsub.f32 %v3974, %v3975
    %v3977 = vand.u32 %v3976, 4294901760
    %3978 = vmatpush1.msra.mxu0 %v3977
    %v3979 = vand.u32 %v190, 4294901760
    %v3980 = vsub.f32 %v190, %v3979
    %v3981 = vand.u32 %v3980, 4294901760
    %v3982 = vsub.f32 %v3980, %v3981
    %v3983 = vand.u32 %v3982, 4294901760
    %3984 = vmatprep.subr.mxu0 %v3983
    %v3985 = vand.u32 %v189, 4294901760
    %v3986 = vsub.f32 %v189, %v3985
    %v3987 = vand.u32 %v3986, 4294901760
    %v3988 = vsub.f32 %v3986, %v3987
    %v3989 = vand.u32 %v3988, 4294901760
    %3990 = vmatpush1.msra.mxu0 %v3989
    %v3991 = vand.u32 %v176, 4294901760
    %v3992 = vsub.f32 %v176, %v3991
    %v3993 = vand.u32 %v3992, 4294901760
    %v3994 = vsub.f32 %v3992, %v3993
    %v3995 = vand.u32 %v3994, 4294901760
    %3996 = vmatprep.subr.mxu0 %v3995
    %v3997 = vand.u32 %v175, 4294901760
    %v3998 = vsub.f32 %v175, %v3997
    %v3999 = vand.u32 %v3998, 4294901760
    %v4000 = vsub.f32 %v3998, %v3999
    %v4001 = vand.u32 %v4000, 4294901760
    %4002 = vmatpush1.msra.mxu0 %v4001
    %v4003 = vand.u32 %v162, 4294901760
    %v4004 = vsub.f32 %v162, %v4003
    %v4005 = vand.u32 %v4004, 4294901760
    %v4006 = vsub.f32 %v4004, %v4005
    %v4007 = vand.u32 %v4006, 4294901760
    %4008 = vmatprep.subr.mxu0 %v4007
    %v4009 = vand.u32 %v161, 4294901760
    %v4010 = vsub.f32 %v161, %v4009
    %v4011 = vand.u32 %v4010, 4294901760
    %v4012 = vsub.f32 %v4010, %v4011
    %v4013 = vand.u32 %v4012, 4294901760
    %4014 = vmatpush1.msra.mxu0 %v4013
    %v4015 = vand.u32 %v148, 4294901760
    %v4016 = vsub.f32 %v148, %v4015
    %v4017 = vand.u32 %v4016, 4294901760
    %v4018 = vsub.f32 %v4016, %v4017
    %v4019 = vand.u32 %v4018, 4294901760
    %4020 = vmatprep.subr.mxu0 %v4019
    %v4021 = vand.u32 %v147, 4294901760
    %v4022 = vsub.f32 %v147, %v4021
    %v4023 = vand.u32 %v4022, 4294901760
    %v4024 = vsub.f32 %v4022, %v4023
    %v4025 = vand.u32 %v4024, 4294901760
    %4026 = vmatpush1.msra.mxu0 %v4025
    %v4027 = vand.u32 %v134, 4294901760
    %v4028 = vsub.f32 %v134, %v4027
    %v4029 = vand.u32 %v4028, 4294901760
    %v4030 = vsub.f32 %v4028, %v4029
    %v4031 = vand.u32 %v4030, 4294901760
    %4032 = vmatprep.subr.mxu0 %v4031
    %v4033 = vand.u32 %v133, 4294901760
    %v4034 = vsub.f32 %v133, %v4033
    %v4035 = vand.u32 %v4034, 4294901760
    %v4036 = vsub.f32 %v4034, %v4035
    %v4037 = vand.u32 %v4036, 4294901760
    %4038 = vmatpush1.msra.mxu0 %v4037
    %v4039 = vand.u32 %v120, 4294901760
    %v4040 = vsub.f32 %v120, %v4039
    %v4041 = vand.u32 %v4040, 4294901760
    %v4042 = vsub.f32 %v4040, %v4041
    %v4043 = vand.u32 %v4042, 4294901760
    %4044 = vmatprep.subr.mxu0 %v4043
    %v4045 = vand.u32 %v119, 4294901760
    %v4046 = vsub.f32 %v119, %v4045
    %v4047 = vand.u32 %v4046, 4294901760
    %v4048 = vsub.f32 %v4046, %v4047
    %v4049 = vand.u32 %v4048, 4294901760
    %4050 = vmatpush1.msra.mxu0 %v4049
    %v4051 = vand.u32 %v106, 4294901760
    %v4052 = vsub.f32 %v106, %v4051
    %v4053 = vand.u32 %v4052, 4294901760
    %v4054 = vsub.f32 %v4052, %v4053
    %v4055 = vand.u32 %v4054, 4294901760
    %4056 = vmatprep.subr.mxu0 %v4055
    %v4057 = vand.u32 %v105, 4294901760
    %v4058 = vsub.f32 %v105, %v4057
    %v4059 = vand.u32 %v4058, 4294901760
    %v4060 = vsub.f32 %v4058, %v4059
    %v4061 = vand.u32 %v4060, 4294901760
    %4062 = vmatpush1.msra.mxu0 %v4061
    %v4063 = vand.u32 %v92, 4294901760
    %v4064 = vsub.f32 %v92, %v4063
    %v4065 = vand.u32 %v4064, 4294901760
    %v4066 = vsub.f32 %v4064, %v4065
    %v4067 = vand.u32 %v4066, 4294901760
    %4068 = vmatprep.subr.mxu0 %v4067
    %v4069 = vand.u32 %v91, 4294901760
    %v4070 = vsub.f32 %v91, %v4069
    %v4071 = vand.u32 %v4070, 4294901760
    %v4072 = vsub.f32 %v4070, %v4071
    %v4073 = vand.u32 %v4072, 4294901760
    %4074 = vmatpush1.msra.mxu0 %v4073
    %v4075 = vand.u32 %v78, 4294901760
    %v4076 = vsub.f32 %v78, %v4075
    %v4077 = vand.u32 %v4076, 4294901760
    %v4078 = vsub.f32 %v4076, %v4077
    %v4079 = vand.u32 %v4078, 4294901760
    %4080 = vmatprep.subr.mxu0 %v4079
    %v4081 = vand.u32 %v77, 4294901760
    %v4082 = vsub.f32 %v77, %v4081
    %v4083 = vand.u32 %v4082, 4294901760
    %v4084 = vsub.f32 %v4082, %v4083
    %v4085 = vand.u32 %v4084, 4294901760
    %4086 = vmatpush1.msra.mxu0 %v4085
    %v4087 = vand.u32 %v64, 4294901760
    %v4088 = vsub.f32 %v64, %v4087
    %v4089 = vand.u32 %v4088, 4294901760
    %v4090 = vsub.f32 %v4088, %v4089
    %v4091 = vand.u32 %v4090, 4294901760
    %4092 = vmatprep.subr.mxu0 %v4091
    %v4093 = vand.u32 %v63, 4294901760
    %v4094 = vsub.f32 %v63, %v4093
    %v4095 = vand.u32 %v4094, 4294901760
    %v4096 = vsub.f32 %v4094, %v4095
    %v4097 = vand.u32 %v4096, 4294901760
    %4098 = vmatpush1.msra.mxu0 %v4097
    %v4099 = vand.u32 %v50, 4294901760
    %v4100 = vsub.f32 %v50, %v4099
    %v4101 = vand.u32 %v4100, 4294901760
    %v4102 = vsub.f32 %v4100, %v4101
    %v4103 = vand.u32 %v4102, 4294901760
    %4104 = vmatprep.subr.mxu0 %v4103
    %v4105 = vand.u32 %v49, 4294901760
    %v4106 = vsub.f32 %v49, %v4105
    %v4107 = vand.u32 %v4106, 4294901760
    %v4108 = vsub.f32 %v4106, %v4107
    %v4109 = vand.u32 %v4108, 4294901760
    %4110 = vmatpush1.msra.mxu0 %v4109
    %v4111 = vand.u32 %v36, 4294901760
    %v4112 = vsub.f32 %v36, %v4111
    %v4113 = vand.u32 %v4112, 4294901760
    %v4114 = vsub.f32 %v4112, %v4113
    %v4115 = vand.u32 %v4114, 4294901760
    %4116 = vmatprep.subr.mxu0 %v4115
    %v4117 = vand.u32 %v35, 4294901760
    %v4118 = vsub.f32 %v35, %v4117
    %v4119 = vand.u32 %v4118, 4294901760
    %v4120 = vsub.f32 %v4118, %v4119
    %v4121 = vand.u32 %v4120, 4294901760
    %4122 = vmatpush1.msra.mxu0 %v4121
    %4123 = vmatprep.subr.mxu0 0.0
    %4124 = vmatpush2.msra.mxu0 0.0
    %4125 = vmatprep.subr.mxu0 0.0
    %4126 = vmatpush2.msra.mxu0 0.0
    %4127 = vmatprep.subr.mxu0 0.0
    %4128 = vmatpush2.msra.mxu0 0.0
    %4129 = vmatprep.subr.mxu0 0.0
    %4130 = vmatpush2.msra.mxu0 0.0
    %4131 = vmatprep.subr.mxu0 0.0
    %4132 = vmatpush2.msra.mxu0 0.0
    %4133 = vmatprep.subr.mxu0 0.0
    %4134 = vmatpush2.msra.mxu0 0.0
    %4135 = vmatprep.subr.mxu0 0.0
    %4136 = vmatpush2.msra.mxu0 0.0
    %4137 = vmatprep.subr.mxu0 0.0
    %4138 = vmatpush2.msra.mxu0 0.0
    %v4139 = vand.u32 %v358, 4294901760
    %v4140 = vsub.f32 %v358, %v4139
    %v4141 = vand.u32 %v4140, 4294901760
    %v4142 = vsub.f32 %v4140, %v4141
    %v4143 = vand.u32 %v4142, 4294901760
    %4144 = vmatprep.subr.mxu0 %v4143
    %v4145 = vand.u32 %v357, 4294901760
    %v4146 = vsub.f32 %v357, %v4145
    %v4147 = vand.u32 %v4146, 4294901760
    %v4148 = vsub.f32 %v4146, %v4147
    %v4149 = vand.u32 %v4148, 4294901760
    %4150 = vmatpush2.msra.mxu0 %v4149
    %v4151 = vand.u32 %v344, 4294901760
    %v4152 = vsub.f32 %v344, %v4151
    %v4153 = vand.u32 %v4152, 4294901760
    %v4154 = vsub.f32 %v4152, %v4153
    %v4155 = vand.u32 %v4154, 4294901760
    %4156 = vmatprep.subr.mxu0 %v4155
    %v4157 = vand.u32 %v343, 4294901760
    %v4158 = vsub.f32 %v343, %v4157
    %v4159 = vand.u32 %v4158, 4294901760
    %v4160 = vsub.f32 %v4158, %v4159
    %v4161 = vand.u32 %v4160, 4294901760
    %4162 = vmatpush2.msra.mxu0 %v4161
    %v4163 = vand.u32 %v330, 4294901760
    %v4164 = vsub.f32 %v330, %v4163
    %v4165 = vand.u32 %v4164, 4294901760
    %v4166 = vsub.f32 %v4164, %v4165
    %v4167 = vand.u32 %v4166, 4294901760
    %4168 = vmatprep.subr.mxu0 %v4167
    %v4169 = vand.u32 %v329, 4294901760
    %v4170 = vsub.f32 %v329, %v4169
    %v4171 = vand.u32 %v4170, 4294901760
    %v4172 = vsub.f32 %v4170, %v4171
    %v4173 = vand.u32 %v4172, 4294901760
    %4174 = vmatpush2.msra.mxu0 %v4173
    %v4175 = vand.u32 %v316, 4294901760
    %v4176 = vsub.f32 %v316, %v4175
    %v4177 = vand.u32 %v4176, 4294901760
    %v4178 = vsub.f32 %v4176, %v4177
    %v4179 = vand.u32 %v4178, 4294901760
    %4180 = vmatprep.subr.mxu0 %v4179
    %v4181 = vand.u32 %v315, 4294901760
    %v4182 = vsub.f32 %v315, %v4181
    %v4183 = vand.u32 %v4182, 4294901760
    %v4184 = vsub.f32 %v4182, %v4183
    %v4185 = vand.u32 %v4184, 4294901760
    %4186 = vmatpush2.msra.mxu0 %v4185
    %v4187 = vand.u32 %v302, 4294901760
    %v4188 = vsub.f32 %v302, %v4187
    %v4189 = vand.u32 %v4188, 4294901760
    %v4190 = vsub.f32 %v4188, %v4189
    %v4191 = vand.u32 %v4190, 4294901760
    %4192 = vmatprep.subr.mxu0 %v4191
    %v4193 = vand.u32 %v301, 4294901760
    %v4194 = vsub.f32 %v301, %v4193
    %v4195 = vand.u32 %v4194, 4294901760
    %v4196 = vsub.f32 %v4194, %v4195
    %v4197 = vand.u32 %v4196, 4294901760
    %4198 = vmatpush2.msra.mxu0 %v4197
    %v4199 = vand.u32 %v288, 4294901760
    %v4200 = vsub.f32 %v288, %v4199
    %v4201 = vand.u32 %v4200, 4294901760
    %v4202 = vsub.f32 %v4200, %v4201
    %v4203 = vand.u32 %v4202, 4294901760
    %4204 = vmatprep.subr.mxu0 %v4203
    %v4205 = vand.u32 %v287, 4294901760
    %v4206 = vsub.f32 %v287, %v4205
    %v4207 = vand.u32 %v4206, 4294901760
    %v4208 = vsub.f32 %v4206, %v4207
    %v4209 = vand.u32 %v4208, 4294901760
    %4210 = vmatpush2.msra.mxu0 %v4209
    %v4211 = vand.u32 %v274, 4294901760
    %v4212 = vsub.f32 %v274, %v4211
    %v4213 = vand.u32 %v4212, 4294901760
    %v4214 = vsub.f32 %v4212, %v4213
    %v4215 = vand.u32 %v4214, 4294901760
    %4216 = vmatprep.subr.mxu0 %v4215
    %v4217 = vand.u32 %v273, 4294901760
    %v4218 = vsub.f32 %v273, %v4217
    %v4219 = vand.u32 %v4218, 4294901760
    %v4220 = vsub.f32 %v4218, %v4219
    %v4221 = vand.u32 %v4220, 4294901760
    %4222 = vmatpush2.msra.mxu0 %v4221
    %v4223 = vand.u32 %v260, 4294901760
    %v4224 = vsub.f32 %v260, %v4223
    %v4225 = vand.u32 %v4224, 4294901760
    %v4226 = vsub.f32 %v4224, %v4225
    %v4227 = vand.u32 %v4226, 4294901760
    %4228 = vmatprep.subr.mxu0 %v4227
    %v4229 = vand.u32 %v259, 4294901760
    %v4230 = vsub.f32 %v259, %v4229
    %v4231 = vand.u32 %v4230, 4294901760
    %v4232 = vsub.f32 %v4230, %v4231
    %v4233 = vand.u32 %v4232, 4294901760
    %4234 = vmatpush2.msra.mxu0 %v4233
    %v4235 = vand.u32 %v367, 4294901760
    %4236 = vmatprep.mubr.f32.mxu0 %v4235
    %v4237 = vand.u32 %v25, 4294901760
    %4238 = vmatmul.mubr.f32.gmra.mxu0 %v4237
    %v4239 = vpop.f32.mrf.mxu0
    %v4240 = vadd.f32 %v3911, %v4239
    %v4241 = vpop.f32.mrf.mxu0
    %v4242 = vadd.f32 %v3913, %v4241
    %v4243 = vand.u32 %v370, 4294901760
    %4244 = vmatprep.mubr.f32.mxu0 %v4243
    %v4245 = vand.u32 %v27, 4294901760
    %4246 = vmatmul.mubr.f32.gmra.mxu0 %v4245
    %v4247 = vpop.f32.mrf.mxu0
    %v4248 = vadd.f32 %v3927, %v4247
    %v4249 = vpop.f32.mrf.mxu0
    %v4250 = vadd.f32 %v3929, %v4249
    %4251 = vdwg.mxu0
    %v4252 = vand.u32 %v246, 4294901760
    %v4253 = vsub.f32 %v246, %v4252
    %4254 = vmatprep.subr.mxu0 %v4253
    %v4255 = vand.u32 %v245, 4294901760
    %v4256 = vsub.f32 %v245, %v4255
    %4257 = vmatpush1.msra.mxu0 %v4256
    %v4258 = vand.u32 %v232, 4294901760
    %v4259 = vsub.f32 %v232, %v4258
    %4260 = vmatprep.subr.mxu0 %v4259
    %v4261 = vand.u32 %v231, 4294901760
    %v4262 = vsub.f32 %v231, %v4261
    %4263 = vmatpush1.msra.mxu0 %v4262
    %v4264 = vand.u32 %v218, 4294901760
    %v4265 = vsub.f32 %v218, %v4264
    %4266 = vmatprep.subr.mxu0 %v4265
    %v4267 = vand.u32 %v217, 4294901760
    %v4268 = vsub.f32 %v217, %v4267
    %4269 = vmatpush1.msra.mxu0 %v4268
    %v4270 = vand.u32 %v204, 4294901760
    %v4271 = vsub.f32 %v204, %v4270
    %4272 = vmatprep.subr.mxu0 %v4271
    %v4273 = vand.u32 %v203, 4294901760
    %v4274 = vsub.f32 %v203, %v4273
    %4275 = vmatpush1.msra.mxu0 %v4274
    %v4276 = vand.u32 %v190, 4294901760
    %v4277 = vsub.f32 %v190, %v4276
    %4278 = vmatprep.subr.mxu0 %v4277
    %v4279 = vand.u32 %v189, 4294901760
    %v4280 = vsub.f32 %v189, %v4279
    %4281 = vmatpush1.msra.mxu0 %v4280
    %v4282 = vand.u32 %v176, 4294901760
    %v4283 = vsub.f32 %v176, %v4282
    %4284 = vmatprep.subr.mxu0 %v4283
    %v4285 = vand.u32 %v175, 4294901760
    %v4286 = vsub.f32 %v175, %v4285
    %4287 = vmatpush1.msra.mxu0 %v4286
    %v4288 = vand.u32 %v162, 4294901760
    %v4289 = vsub.f32 %v162, %v4288
    %4290 = vmatprep.subr.mxu0 %v4289
    %v4291 = vand.u32 %v161, 4294901760
    %v4292 = vsub.f32 %v161, %v4291
    %4293 = vmatpush1.msra.mxu0 %v4292
    %v4294 = vand.u32 %v148, 4294901760
    %v4295 = vsub.f32 %v148, %v4294
    %4296 = vmatprep.subr.mxu0 %v4295
    %v4297 = vand.u32 %v147, 4294901760
    %v4298 = vsub.f32 %v147, %v4297
    %4299 = vmatpush1.msra.mxu0 %v4298
    %v4300 = vand.u32 %v134, 4294901760
    %v4301 = vsub.f32 %v134, %v4300
    %4302 = vmatprep.subr.mxu0 %v4301
    %v4303 = vand.u32 %v133, 4294901760
    %v4304 = vsub.f32 %v133, %v4303
    %4305 = vmatpush1.msra.mxu0 %v4304
    %v4306 = vand.u32 %v120, 4294901760
    %v4307 = vsub.f32 %v120, %v4306
    %4308 = vmatprep.subr.mxu0 %v4307
    %v4309 = vand.u32 %v119, 4294901760
    %v4310 = vsub.f32 %v119, %v4309
    %4311 = vmatpush1.msra.mxu0 %v4310
    %v4312 = vand.u32 %v106, 4294901760
    %v4313 = vsub.f32 %v106, %v4312
    %4314 = vmatprep.subr.mxu0 %v4313
    %v4315 = vand.u32 %v105, 4294901760
    %v4316 = vsub.f32 %v105, %v4315
    %4317 = vmatpush1.msra.mxu0 %v4316
    %v4318 = vand.u32 %v92, 4294901760
    %v4319 = vsub.f32 %v92, %v4318
    %4320 = vmatprep.subr.mxu0 %v4319
    %v4321 = vand.u32 %v91, 4294901760
    %v4322 = vsub.f32 %v91, %v4321
    %4323 = vmatpush1.msra.mxu0 %v4322
    %v4324 = vand.u32 %v78, 4294901760
    %v4325 = vsub.f32 %v78, %v4324
    %4326 = vmatprep.subr.mxu0 %v4325
    %v4327 = vand.u32 %v77, 4294901760
    %v4328 = vsub.f32 %v77, %v4327
    %4329 = vmatpush1.msra.mxu0 %v4328
    %v4330 = vand.u32 %v64, 4294901760
    %v4331 = vsub.f32 %v64, %v4330
    %4332 = vmatprep.subr.mxu0 %v4331
    %v4333 = vand.u32 %v63, 4294901760
    %v4334 = vsub.f32 %v63, %v4333
    %4335 = vmatpush1.msra.mxu0 %v4334
    %v4336 = vand.u32 %v50, 4294901760
    %v4337 = vsub.f32 %v50, %v4336
    %4338 = vmatprep.subr.mxu0 %v4337
    %v4339 = vand.u32 %v49, 4294901760
    %v4340 = vsub.f32 %v49, %v4339
    %4341 = vmatpush1.msra.mxu0 %v4340
    %v4342 = vand.u32 %v36, 4294901760
    %v4343 = vsub.f32 %v36, %v4342
    %4344 = vmatprep.subr.mxu0 %v4343
    %v4345 = vand.u32 %v35, 4294901760
    %v4346 = vsub.f32 %v35, %v4345
    %4347 = vmatpush1.msra.mxu0 %v4346
    %4348 = vmatprep.subr.mxu0 0.0
    %4349 = vmatpush2.msra.mxu0 0.0
    %4350 = vmatprep.subr.mxu0 0.0
    %4351 = vmatpush2.msra.mxu0 0.0
    %4352 = vmatprep.subr.mxu0 0.0
    %4353 = vmatpush2.msra.mxu0 0.0
    %4354 = vmatprep.subr.mxu0 0.0
    %4355 = vmatpush2.msra.mxu0 0.0
    %4356 = vmatprep.subr.mxu0 0.0
    %4357 = vmatpush2.msra.mxu0 0.0
    %4358 = vmatprep.subr.mxu0 0.0
    %4359 = vmatpush2.msra.mxu0 0.0
    %4360 = vmatprep.subr.mxu0 0.0
    %4361 = vmatpush2.msra.mxu0 0.0
    %4362 = vmatprep.subr.mxu0 0.0
    %4363 = vmatpush2.msra.mxu0 0.0
    %v4364 = vand.u32 %v358, 4294901760
    %v4365 = vsub.f32 %v358, %v4364
    %4366 = vmatprep.subr.mxu0 %v4365
    %v4367 = vand.u32 %v357, 4294901760
    %v4368 = vsub.f32 %v357, %v4367
    %4369 = vmatpush2.msra.mxu0 %v4368
    %v4370 = vand.u32 %v344, 4294901760
    %v4371 = vsub.f32 %v344, %v4370
    %4372 = vmatprep.subr.mxu0 %v4371
    %v4373 = vand.u32 %v343, 4294901760
    %v4374 = vsub.f32 %v343, %v4373
    %4375 = vmatpush2.msra.mxu0 %v4374
    %v4376 = vand.u32 %v330, 4294901760
    %v4377 = vsub.f32 %v330, %v4376
    %4378 = vmatprep.subr.mxu0 %v4377
    %v4379 = vand.u32 %v329, 4294901760
    %v4380 = vsub.f32 %v329, %v4379
    %4381 = vmatpush2.msra.mxu0 %v4380
    %v4382 = vand.u32 %v316, 4294901760
    %v4383 = vsub.f32 %v316, %v4382
    %4384 = vmatprep.subr.mxu0 %v4383
    %v4385 = vand.u32 %v315, 4294901760
    %v4386 = vsub.f32 %v315, %v4385
    %4387 = vmatpush2.msra.mxu0 %v4386
    %v4388 = vand.u32 %v302, 4294901760
    %v4389 = vsub.f32 %v302, %v4388
    %4390 = vmatprep.subr.mxu0 %v4389
    %v4391 = vand.u32 %v301, 4294901760
    %v4392 = vsub.f32 %v301, %v4391
    %4393 = vmatpush2.msra.mxu0 %v4392
    %v4394 = vand.u32 %v288, 4294901760
    %v4395 = vsub.f32 %v288, %v4394
    %4396 = vmatprep.subr.mxu0 %v4395
    %v4397 = vand.u32 %v287, 4294901760
    %v4398 = vsub.f32 %v287, %v4397
    %4399 = vmatpush2.msra.mxu0 %v4398
    %v4400 = vand.u32 %v274, 4294901760
    %v4401 = vsub.f32 %v274, %v4400
    %4402 = vmatprep.subr.mxu0 %v4401
    %v4403 = vand.u32 %v273, 4294901760
    %v4404 = vsub.f32 %v273, %v4403
    %4405 = vmatpush2.msra.mxu0 %v4404
    %v4406 = vand.u32 %v260, 4294901760
    %v4407 = vsub.f32 %v260, %v4406
    %4408 = vmatprep.subr.mxu0 %v4407
    %v4409 = vand.u32 %v259, 4294901760
    %v4410 = vsub.f32 %v259, %v4409
    %4411 = vmatpush2.msra.mxu0 %v4410
    %v4412 = vand.u32 %v367, 4294901760
    %v4413 = vsub.f32 %v367, %v4412
    %4414 = vmatprep.mubr.f32.mxu0 %v4413
    %v4415 = vand.u32 %v25, 4294901760
    %v4416 = vsub.f32 %v25, %v4415
    %4417 = vmatmul.mubr.f32.gmra.mxu0 %v4416
    %v4418 = vpop.f32.mrf.mxu0
    %v4419 = vadd.f32 %v4240, %v4418
    %v4420 = vpop.f32.mrf.mxu0
    %v4421 = vadd.f32 %v4242, %v4420
    %v4422 = vand.u32 %v370, 4294901760
    %v4423 = vsub.f32 %v370, %v4422
    %4424 = vmatprep.mubr.f32.mxu0 %v4423
    %v4425 = vand.u32 %v27, 4294901760
    %v4426 = vsub.f32 %v27, %v4425
    %4427 = vmatmul.mubr.f32.gmra.mxu0 %v4426
    %v4428 = vpop.f32.mrf.mxu0
    %v4429 = vadd.f32 %v4248, %v4428
    %v4430 = vpop.f32.mrf.mxu0
    %v4431 = vadd.f32 %v4250, %v4430
    %4432 = vdwg.mxu0
    %v4433 = vand.u32 %v246, 4294901760
    %4434 = vmatprep.subr.mxu0 %v4433
    %v4435 = vand.u32 %v245, 4294901760
    %4436 = vmatpush1.msra.mxu0 %v4435
    %v4437 = vand.u32 %v232, 4294901760
    %4438 = vmatprep.subr.mxu0 %v4437
    %v4439 = vand.u32 %v231, 4294901760
    %4440 = vmatpush1.msra.mxu0 %v4439
    %v4441 = vand.u32 %v218, 4294901760
    %4442 = vmatprep.subr.mxu0 %v4441
    %v4443 = vand.u32 %v217, 4294901760
    %4444 = vmatpush1.msra.mxu0 %v4443
    %v4445 = vand.u32 %v204, 4294901760
    %4446 = vmatprep.subr.mxu0 %v4445
    %v4447 = vand.u32 %v203, 4294901760
    %4448 = vmatpush1.msra.mxu0 %v4447
    %v4449 = vand.u32 %v190, 4294901760
    %4450 = vmatprep.subr.mxu0 %v4449
    %v4451 = vand.u32 %v189, 4294901760
    %4452 = vmatpush1.msra.mxu0 %v4451
    %v4453 = vand.u32 %v176, 4294901760
    %4454 = vmatprep.subr.mxu0 %v4453
    %v4455 = vand.u32 %v175, 4294901760
    %4456 = vmatpush1.msra.mxu0 %v4455
    %v4457 = vand.u32 %v162, 4294901760
    %4458 = vmatprep.subr.mxu0 %v4457
    %v4459 = vand.u32 %v161, 4294901760
    %4460 = vmatpush1.msra.mxu0 %v4459
    %v4461 = vand.u32 %v148, 4294901760
    %4462 = vmatprep.subr.mxu0 %v4461
    %v4463 = vand.u32 %v147, 4294901760
    %4464 = vmatpush1.msra.mxu0 %v4463
    %v4465 = vand.u32 %v134, 4294901760
    %4466 = vmatprep.subr.mxu0 %v4465
    %v4467 = vand.u32 %v133, 4294901760
    %4468 = vmatpush1.msra.mxu0 %v4467
    %v4469 = vand.u32 %v120, 4294901760
    %4470 = vmatprep.subr.mxu0 %v4469
    %v4471 = vand.u32 %v119, 4294901760
    %4472 = vmatpush1.msra.mxu0 %v4471
    %v4473 = vand.u32 %v106, 4294901760
    %4474 = vmatprep.subr.mxu0 %v4473
    %v4475 = vand.u32 %v105, 4294901760
    %4476 = vmatpush1.msra.mxu0 %v4475
    %v4477 = vand.u32 %v92, 4294901760
    %4478 = vmatprep.subr.mxu0 %v4477
    %v4479 = vand.u32 %v91, 4294901760
    %4480 = vmatpush1.msra.mxu0 %v4479
    %v4481 = vand.u32 %v78, 4294901760
    %4482 = vmatprep.subr.mxu0 %v4481
    %v4483 = vand.u32 %v77, 4294901760
    %4484 = vmatpush1.msra.mxu0 %v4483
    %v4485 = vand.u32 %v64, 4294901760
    %4486 = vmatprep.subr.mxu0 %v4485
    %v4487 = vand.u32 %v63, 4294901760
    %4488 = vmatpush1.msra.mxu0 %v4487
    %v4489 = vand.u32 %v50, 4294901760
    %4490 = vmatprep.subr.mxu0 %v4489
    %v4491 = vand.u32 %v49, 4294901760
    %4492 = vmatpush1.msra.mxu0 %v4491
    %v4493 = vand.u32 %v36, 4294901760
    %4494 = vmatprep.subr.mxu0 %v4493
    %v4495 = vand.u32 %v35, 4294901760
    %4496 = vmatpush1.msra.mxu0 %v4495
    %4497 = vmatprep.subr.mxu0 0.0
    %4498 = vmatpush2.msra.mxu0 0.0
    %4499 = vmatprep.subr.mxu0 0.0
    %4500 = vmatpush2.msra.mxu0 0.0
    %4501 = vmatprep.subr.mxu0 0.0
    %4502 = vmatpush2.msra.mxu0 0.0
    %4503 = vmatprep.subr.mxu0 0.0
    %4504 = vmatpush2.msra.mxu0 0.0
    %4505 = vmatprep.subr.mxu0 0.0
    %4506 = vmatpush2.msra.mxu0 0.0
    %4507 = vmatprep.subr.mxu0 0.0
    %4508 = vmatpush2.msra.mxu0 0.0
    %4509 = vmatprep.subr.mxu0 0.0
    %4510 = vmatpush2.msra.mxu0 0.0
    %4511 = vmatprep.subr.mxu0 0.0
    %4512 = vmatpush2.msra.mxu0 0.0
    %v4513 = vand.u32 %v358, 4294901760
    %4514 = vmatprep.subr.mxu0 %v4513
    %v4515 = vand.u32 %v357, 4294901760
    %4516 = vmatpush2.msra.mxu0 %v4515
    %v4517 = vand.u32 %v344, 4294901760
    %4518 = vmatprep.subr.mxu0 %v4517
    %v4519 = vand.u32 %v343, 4294901760
    %4520 = vmatpush2.msra.mxu0 %v4519
    %v4521 = vand.u32 %v330, 4294901760
    %4522 = vmatprep.subr.mxu0 %v4521
    %v4523 = vand.u32 %v329, 4294901760
    %4524 = vmatpush2.msra.mxu0 %v4523
    %v4525 = vand.u32 %v316, 4294901760
    %4526 = vmatprep.subr.mxu0 %v4525
    %v4527 = vand.u32 %v315, 4294901760
    %4528 = vmatpush2.msra.mxu0 %v4527
    %v4529 = vand.u32 %v302, 4294901760
    %4530 = vmatprep.subr.mxu0 %v4529
    %v4531 = vand.u32 %v301, 4294901760
    %4532 = vmatpush2.msra.mxu0 %v4531
    %v4533 = vand.u32 %v288, 4294901760
    %4534 = vmatprep.subr.mxu0 %v4533
    %v4535 = vand.u32 %v287, 4294901760
    %4536 = vmatpush2.msra.mxu0 %v4535
    %v4537 = vand.u32 %v274, 4294901760
    %4538 = vmatprep.subr.mxu0 %v4537
    %v4539 = vand.u32 %v273, 4294901760
    %4540 = vmatpush2.msra.mxu0 %v4539
    %v4541 = vand.u32 %v260, 4294901760
    %4542 = vmatprep.subr.mxu0 %v4541
    %v4543 = vand.u32 %v259, 4294901760
    %4544 = vmatpush2.msra.mxu0 %v4543
    %v4545 = vand.u32 %v367, 4294901760
    %v4546 = vsub.f32 %v367, %v4545
    %v4547 = vand.u32 %v4546, 4294901760
    %4548 = vmatprep.mubr.f32.mxu0 %v4547
    %v4549 = vand.u32 %v25, 4294901760
    %v4550 = vsub.f32 %v25, %v4549
    %v4551 = vand.u32 %v4550, 4294901760
    %4552 = vmatmul.mubr.f32.gmra.mxu0 %v4551
    %v4553 = vpop.f32.mrf.mxu0
    %v4554 = vadd.f32 %v4419, %v4553
    %v4555 = vpop.f32.mrf.mxu0
    %v4556 = vadd.f32 %v4421, %v4555
    %v4557 = vand.u32 %v370, 4294901760
    %v4558 = vsub.f32 %v370, %v4557
    %v4559 = vand.u32 %v4558, 4294901760
    %4560 = vmatprep.mubr.f32.mxu0 %v4559
    %v4561 = vand.u32 %v27, 4294901760
    %v4562 = vsub.f32 %v27, %v4561
    %v4563 = vand.u32 %v4562, 4294901760
    %4564 = vmatmul.mubr.f32.gmra.mxu0 %v4563
    %v4565 = vpop.f32.mrf.mxu0
    %v4566 = vadd.f32 %v4429, %v4565
    %v4567 = vpop.f32.mrf.mxu0
    %v4568 = vadd.f32 %v4431, %v4567
    %4569 = vdwg.mxu0
    %v4570 = vand.u32 %v246, 4294901760
    %v4571 = vsub.f32 %v246, %v4570
    %v4572 = vand.u32 %v4571, 4294901760
    %4573 = vmatprep.subr.mxu0 %v4572
    %v4574 = vand.u32 %v245, 4294901760
    %v4575 = vsub.f32 %v245, %v4574
    %v4576 = vand.u32 %v4575, 4294901760
    %4577 = vmatpush1.msra.mxu0 %v4576
    %v4578 = vand.u32 %v232, 4294901760
    %v4579 = vsub.f32 %v232, %v4578
    %v4580 = vand.u32 %v4579, 4294901760
    %4581 = vmatprep.subr.mxu0 %v4580
    %v4582 = vand.u32 %v231, 4294901760
    %v4583 = vsub.f32 %v231, %v4582
    %v4584 = vand.u32 %v4583, 4294901760
    %4585 = vmatpush1.msra.mxu0 %v4584
    %v4586 = vand.u32 %v218, 4294901760
    %v4587 = vsub.f32 %v218, %v4586
    %v4588 = vand.u32 %v4587, 4294901760
    %4589 = vmatprep.subr.mxu0 %v4588
    %v4590 = vand.u32 %v217, 4294901760
    %v4591 = vsub.f32 %v217, %v4590
    %v4592 = vand.u32 %v4591, 4294901760
    %4593 = vmatpush1.msra.mxu0 %v4592
    %v4594 = vand.u32 %v204, 4294901760
    %v4595 = vsub.f32 %v204, %v4594
    %v4596 = vand.u32 %v4595, 4294901760
    %4597 = vmatprep.subr.mxu0 %v4596
    %v4598 = vand.u32 %v203, 4294901760
    %v4599 = vsub.f32 %v203, %v4598
    %v4600 = vand.u32 %v4599, 4294901760
    %4601 = vmatpush1.msra.mxu0 %v4600
    %v4602 = vand.u32 %v190, 4294901760
    %v4603 = vsub.f32 %v190, %v4602
    %v4604 = vand.u32 %v4603, 4294901760
    %4605 = vmatprep.subr.mxu0 %v4604
    %v4606 = vand.u32 %v189, 4294901760
    %v4607 = vsub.f32 %v189, %v4606
    %v4608 = vand.u32 %v4607, 4294901760
    %4609 = vmatpush1.msra.mxu0 %v4608
    %v4610 = vand.u32 %v176, 4294901760
    %v4611 = vsub.f32 %v176, %v4610
    %v4612 = vand.u32 %v4611, 4294901760
    %4613 = vmatprep.subr.mxu0 %v4612
    %v4614 = vand.u32 %v175, 4294901760
    %v4615 = vsub.f32 %v175, %v4614
    %v4616 = vand.u32 %v4615, 4294901760
    %4617 = vmatpush1.msra.mxu0 %v4616
    %v4618 = vand.u32 %v162, 4294901760
    %v4619 = vsub.f32 %v162, %v4618
    %v4620 = vand.u32 %v4619, 4294901760
    %4621 = vmatprep.subr.mxu0 %v4620
    %v4622 = vand.u32 %v161, 4294901760
    %v4623 = vsub.f32 %v161, %v4622
    %v4624 = vand.u32 %v4623, 4294901760
    %4625 = vmatpush1.msra.mxu0 %v4624
    %v4626 = vand.u32 %v148, 4294901760
    %v4627 = vsub.f32 %v148, %v4626
    %v4628 = vand.u32 %v4627, 4294901760
    %4629 = vmatprep.subr.mxu0 %v4628
    %v4630 = vand.u32 %v147, 4294901760
    %v4631 = vsub.f32 %v147, %v4630
    %v4632 = vand.u32 %v4631, 4294901760
    %4633 = vmatpush1.msra.mxu0 %v4632
    %v4634 = vand.u32 %v134, 4294901760
    %v4635 = vsub.f32 %v134, %v4634
    %v4636 = vand.u32 %v4635, 4294901760
    %4637 = vmatprep.subr.mxu0 %v4636
    %v4638 = vand.u32 %v133, 4294901760
    %v4639 = vsub.f32 %v133, %v4638
    %v4640 = vand.u32 %v4639, 4294901760
    %4641 = vmatpush1.msra.mxu0 %v4640
    %v4642 = vand.u32 %v120, 4294901760
    %v4643 = vsub.f32 %v120, %v4642
    %v4644 = vand.u32 %v4643, 4294901760
    %4645 = vmatprep.subr.mxu0 %v4644
    %v4646 = vand.u32 %v119, 4294901760
    %v4647 = vsub.f32 %v119, %v4646
    %v4648 = vand.u32 %v4647, 4294901760
    %4649 = vmatpush1.msra.mxu0 %v4648
    %v4650 = vand.u32 %v106, 4294901760
    %v4651 = vsub.f32 %v106, %v4650
    %v4652 = vand.u32 %v4651, 4294901760
    %4653 = vmatprep.subr.mxu0 %v4652
    %v4654 = vand.u32 %v105, 4294901760
    %v4655 = vsub.f32 %v105, %v4654
    %v4656 = vand.u32 %v4655, 4294901760
    %4657 = vmatpush1.msra.mxu0 %v4656
    %v4658 = vand.u32 %v92, 4294901760
    %v4659 = vsub.f32 %v92, %v4658
    %v4660 = vand.u32 %v4659, 4294901760
    %4661 = vmatprep.subr.mxu0 %v4660
    %v4662 = vand.u32 %v91, 4294901760
    %v4663 = vsub.f32 %v91, %v4662
    %v4664 = vand.u32 %v4663, 4294901760
    %4665 = vmatpush1.msra.mxu0 %v4664
    %v4666 = vand.u32 %v78, 4294901760
    %v4667 = vsub.f32 %v78, %v4666
    %v4668 = vand.u32 %v4667, 4294901760
    %4669 = vmatprep.subr.mxu0 %v4668
    %v4670 = vand.u32 %v77, 4294901760
    %v4671 = vsub.f32 %v77, %v4670
    %v4672 = vand.u32 %v4671, 4294901760
    %4673 = vmatpush1.msra.mxu0 %v4672
    %v4674 = vand.u32 %v64, 4294901760
    %v4675 = vsub.f32 %v64, %v4674
    %v4676 = vand.u32 %v4675, 4294901760
    %4677 = vmatprep.subr.mxu0 %v4676
    %v4678 = vand.u32 %v63, 4294901760
    %v4679 = vsub.f32 %v63, %v4678
    %v4680 = vand.u32 %v4679, 4294901760
    %4681 = vmatpush1.msra.mxu0 %v4680
    %v4682 = vand.u32 %v50, 4294901760
    %v4683 = vsub.f32 %v50, %v4682
    %v4684 = vand.u32 %v4683, 4294901760
    %4685 = vmatprep.subr.mxu0 %v4684
    %v4686 = vand.u32 %v49, 4294901760
    %v4687 = vsub.f32 %v49, %v4686
    %v4688 = vand.u32 %v4687, 4294901760
    %4689 = vmatpush1.msra.mxu0 %v4688
    %v4690 = vand.u32 %v36, 4294901760
    %v4691 = vsub.f32 %v36, %v4690
    %v4692 = vand.u32 %v4691, 4294901760
    %4693 = vmatprep.subr.mxu0 %v4692
    %v4694 = vand.u32 %v35, 4294901760
    %v4695 = vsub.f32 %v35, %v4694
    %v4696 = vand.u32 %v4695, 4294901760
    %4697 = vmatpush1.msra.mxu0 %v4696
    %4698 = vmatprep.subr.mxu0 0.0
    %4699 = vmatpush2.msra.mxu0 0.0
    %4700 = vmatprep.subr.mxu0 0.0
    %4701 = vmatpush2.msra.mxu0 0.0
    %4702 = vmatprep.subr.mxu0 0.0
    %4703 = vmatpush2.msra.mxu0 0.0
    %4704 = vmatprep.subr.mxu0 0.0
    %4705 = vmatpush2.msra.mxu0 0.0
    %4706 = vmatprep.subr.mxu0 0.0
    %4707 = vmatpush2.msra.mxu0 0.0
    %4708 = vmatprep.subr.mxu0 0.0
    %4709 = vmatpush2.msra.mxu0 0.0
    %4710 = vmatprep.subr.mxu0 0.0
    %4711 = vmatpush2.msra.mxu0 0.0
    %4712 = vmatprep.subr.mxu0 0.0
    %4713 = vmatpush2.msra.mxu0 0.0
    %v4714 = vand.u32 %v358, 4294901760
    %v4715 = vsub.f32 %v358, %v4714
    %v4716 = vand.u32 %v4715, 4294901760
    %4717 = vmatprep.subr.mxu0 %v4716
    %v4718 = vand.u32 %v357, 4294901760
    %v4719 = vsub.f32 %v357, %v4718
    %v4720 = vand.u32 %v4719, 4294901760
    %4721 = vmatpush2.msra.mxu0 %v4720
    %v4722 = vand.u32 %v344, 4294901760
    %v4723 = vsub.f32 %v344, %v4722
    %v4724 = vand.u32 %v4723, 4294901760
    %4725 = vmatprep.subr.mxu0 %v4724
    %v4726 = vand.u32 %v343, 4294901760
    %v4727 = vsub.f32 %v343, %v4726
    %v4728 = vand.u32 %v4727, 4294901760
    %4729 = vmatpush2.msra.mxu0 %v4728
    %v4730 = vand.u32 %v330, 4294901760
    %v4731 = vsub.f32 %v330, %v4730
    %v4732 = vand.u32 %v4731, 4294901760
    %4733 = vmatprep.subr.mxu0 %v4732
    %v4734 = vand.u32 %v329, 4294901760
    %v4735 = vsub.f32 %v329, %v4734
    %v4736 = vand.u32 %v4735, 4294901760
    %4737 = vmatpush2.msra.mxu0 %v4736
    %v4738 = vand.u32 %v316, 4294901760
    %v4739 = vsub.f32 %v316, %v4738
    %v4740 = vand.u32 %v4739, 4294901760
    %4741 = vmatprep.subr.mxu0 %v4740
    %v4742 = vand.u32 %v315, 4294901760
    %v4743 = vsub.f32 %v315, %v4742
    %v4744 = vand.u32 %v4743, 4294901760
    %4745 = vmatpush2.msra.mxu0 %v4744
    %v4746 = vand.u32 %v302, 4294901760
    %v4747 = vsub.f32 %v302, %v4746
    %v4748 = vand.u32 %v4747, 4294901760
    %4749 = vmatprep.subr.mxu0 %v4748
    %v4750 = vand.u32 %v301, 4294901760
    %v4751 = vsub.f32 %v301, %v4750
    %v4752 = vand.u32 %v4751, 4294901760
    %4753 = vmatpush2.msra.mxu0 %v4752
    %v4754 = vand.u32 %v288, 4294901760
    %v4755 = vsub.f32 %v288, %v4754
    %v4756 = vand.u32 %v4755, 4294901760
    %4757 = vmatprep.subr.mxu0 %v4756
    %v4758 = vand.u32 %v287, 4294901760
    %v4759 = vsub.f32 %v287, %v4758
    %v4760 = vand.u32 %v4759, 4294901760
    %4761 = vmatpush2.msra.mxu0 %v4760
    %v4762 = vand.u32 %v274, 4294901760
    %v4763 = vsub.f32 %v274, %v4762
    %v4764 = vand.u32 %v4763, 4294901760
    %4765 = vmatprep.subr.mxu0 %v4764
    %v4766 = vand.u32 %v273, 4294901760
    %v4767 = vsub.f32 %v273, %v4766
    %v4768 = vand.u32 %v4767, 4294901760
    %4769 = vmatpush2.msra.mxu0 %v4768
    %v4770 = vand.u32 %v260, 4294901760
    %v4771 = vsub.f32 %v260, %v4770
    %v4772 = vand.u32 %v4771, 4294901760
    %4773 = vmatprep.subr.mxu0 %v4772
    %v4774 = vand.u32 %v259, 4294901760
    %v4775 = vsub.f32 %v259, %v4774
    %v4776 = vand.u32 %v4775, 4294901760
    %4777 = vmatpush2.msra.mxu0 %v4776
    %v4778 = vand.u32 %v367, 4294901760
    %4779 = vmatprep.mubr.f32.mxu0 %v4778
    %v4780 = vand.u32 %v25, 4294901760
    %4781 = vmatmul.mubr.f32.gmra.mxu0 %v4780
    %v4782 = vpop.f32.mrf.mxu0
    %v4783 = vadd.f32 %v4554, %v4782
    %v4784 = vpop.f32.mrf.mxu0
    %v4785 = vadd.f32 %v4556, %v4784
    %v4786 = vand.u32 %v370, 4294901760
    %4787 = vmatprep.mubr.f32.mxu0 %v4786
    %v4788 = vand.u32 %v27, 4294901760
    %4789 = vmatmul.mubr.f32.gmra.mxu0 %v4788
    %v4790 = vpop.f32.mrf.mxu0
    %v4791 = vadd.f32 %v4566, %v4790
    %v4792 = vpop.f32.mrf.mxu0
    %v4793 = vadd.f32 %v4568, %v4792
    %4794 = vdwg.mxu0
    %v4795 = vand.u32 %v246, 4294901760
    %4796 = vmatprep.subr.mxu0 %v4795
    %v4797 = vand.u32 %v245, 4294901760
    %4798 = vmatpush1.msra.mxu0 %v4797
    %v4799 = vand.u32 %v232, 4294901760
    %4800 = vmatprep.subr.mxu0 %v4799
    %v4801 = vand.u32 %v231, 4294901760
    %4802 = vmatpush1.msra.mxu0 %v4801
    %v4803 = vand.u32 %v218, 4294901760
    %4804 = vmatprep.subr.mxu0 %v4803
    %v4805 = vand.u32 %v217, 4294901760
    %4806 = vmatpush1.msra.mxu0 %v4805
    %v4807 = vand.u32 %v204, 4294901760
    %4808 = vmatprep.subr.mxu0 %v4807
    %v4809 = vand.u32 %v203, 4294901760
    %4810 = vmatpush1.msra.mxu0 %v4809
    %v4811 = vand.u32 %v190, 4294901760
    %4812 = vmatprep.subr.mxu0 %v4811
    %v4813 = vand.u32 %v189, 4294901760
    %4814 = vmatpush1.msra.mxu0 %v4813
    %v4815 = vand.u32 %v176, 4294901760
    %4816 = vmatprep.subr.mxu0 %v4815
    %v4817 = vand.u32 %v175, 4294901760
    %4818 = vmatpush1.msra.mxu0 %v4817
    %v4819 = vand.u32 %v162, 4294901760
    %4820 = vmatprep.subr.mxu0 %v4819
    %v4821 = vand.u32 %v161, 4294901760
    %4822 = vmatpush1.msra.mxu0 %v4821
    %v4823 = vand.u32 %v148, 4294901760
    %4824 = vmatprep.subr.mxu0 %v4823
    %v4825 = vand.u32 %v147, 4294901760
    %4826 = vmatpush1.msra.mxu0 %v4825
    %v4827 = vand.u32 %v134, 4294901760
    %4828 = vmatprep.subr.mxu0 %v4827
    %v4829 = vand.u32 %v133, 4294901760
    %4830 = vmatpush1.msra.mxu0 %v4829
    %v4831 = vand.u32 %v120, 4294901760
    %4832 = vmatprep.subr.mxu0 %v4831
    %v4833 = vand.u32 %v119, 4294901760
    %4834 = vmatpush1.msra.mxu0 %v4833
    %v4835 = vand.u32 %v106, 4294901760
    %4836 = vmatprep.subr.mxu0 %v4835
    %v4837 = vand.u32 %v105, 4294901760
    %4838 = vmatpush1.msra.mxu0 %v4837
    %v4839 = vand.u32 %v92, 4294901760
    %4840 = vmatprep.subr.mxu0 %v4839
    %v4841 = vand.u32 %v91, 4294901760
    %4842 = vmatpush1.msra.mxu0 %v4841
    %v4843 = vand.u32 %v78, 4294901760
    %4844 = vmatprep.subr.mxu0 %v4843
    %v4845 = vand.u32 %v77, 4294901760
    %4846 = vmatpush1.msra.mxu0 %v4845
    %v4847 = vand.u32 %v64, 4294901760
    %4848 = vmatprep.subr.mxu0 %v4847
    %v4849 = vand.u32 %v63, 4294901760
    %4850 = vmatpush1.msra.mxu0 %v4849
    %v4851 = vand.u32 %v50, 4294901760
    %4852 = vmatprep.subr.mxu0 %v4851
    %v4853 = vand.u32 %v49, 4294901760
    %4854 = vmatpush1.msra.mxu0 %v4853
    %v4855 = vand.u32 %v36, 4294901760
    %4856 = vmatprep.subr.mxu0 %v4855
    %v4857 = vand.u32 %v35, 4294901760
    %4858 = vmatpush1.msra.mxu0 %v4857
    %4859 = vmatprep.subr.mxu0 0.0
    %4860 = vmatpush2.msra.mxu0 0.0
    %4861 = vmatprep.subr.mxu0 0.0
    %4862 = vmatpush2.msra.mxu0 0.0
    %4863 = vmatprep.subr.mxu0 0.0
    %4864 = vmatpush2.msra.mxu0 0.0
    %4865 = vmatprep.subr.mxu0 0.0
    %4866 = vmatpush2.msra.mxu0 0.0
    %4867 = vmatprep.subr.mxu0 0.0
    %4868 = vmatpush2.msra.mxu0 0.0
    %4869 = vmatprep.subr.mxu0 0.0
    %4870 = vmatpush2.msra.mxu0 0.0
    %4871 = vmatprep.subr.mxu0 0.0
    %4872 = vmatpush2.msra.mxu0 0.0
    %4873 = vmatprep.subr.mxu0 0.0
    %4874 = vmatpush2.msra.mxu0 0.0
    %v4875 = vand.u32 %v358, 4294901760
    %4876 = vmatprep.subr.mxu0 %v4875
    %v4877 = vand.u32 %v357, 4294901760
    %4878 = vmatpush2.msra.mxu0 %v4877
    %v4879 = vand.u32 %v344, 4294901760
    %4880 = vmatprep.subr.mxu0 %v4879
    %v4881 = vand.u32 %v343, 4294901760
    %4882 = vmatpush2.msra.mxu0 %v4881
    %v4883 = vand.u32 %v330, 4294901760
    %4884 = vmatprep.subr.mxu0 %v4883
    %v4885 = vand.u32 %v329, 4294901760
    %4886 = vmatpush2.msra.mxu0 %v4885
    %v4887 = vand.u32 %v316, 4294901760
    %4888 = vmatprep.subr.mxu0 %v4887
    %v4889 = vand.u32 %v315, 4294901760
    %4890 = vmatpush2.msra.mxu0 %v4889
    %v4891 = vand.u32 %v302, 4294901760
    %4892 = vmatprep.subr.mxu0 %v4891
    %v4893 = vand.u32 %v301, 4294901760
    %4894 = vmatpush2.msra.mxu0 %v4893
    %v4895 = vand.u32 %v288, 4294901760
    %4896 = vmatprep.subr.mxu0 %v4895
    %v4897 = vand.u32 %v287, 4294901760
    %4898 = vmatpush2.msra.mxu0 %v4897
    %v4899 = vand.u32 %v274, 4294901760
    %4900 = vmatprep.subr.mxu0 %v4899
    %v4901 = vand.u32 %v273, 4294901760
    %4902 = vmatpush2.msra.mxu0 %v4901
    %v4903 = vand.u32 %v260, 4294901760
    %4904 = vmatprep.subr.mxu0 %v4903
    %v4905 = vand.u32 %v259, 4294901760
    %4906 = vmatpush2.msra.mxu0 %v4905
    %v4907 = vand.u32 %v367, 4294901760
    %4908 = vmatprep.mubr.f32.mxu0 %v4907
    %v4909 = vand.u32 %v25, 4294901760
    %4910 = vmatmul.mubr.f32.gmra.mxu0 %v4909
    %v4911 = vpop.f32.mrf.mxu0
    %v4912 = vadd.f32 %v4783, %v4911
    %v4913 = vpop.f32.mrf.mxu0
    %v4914 = vadd.f32 %v4785, %v4913
    %v4915 = vand.u32 %v370, 4294901760
    %4916 = vmatprep.mubr.f32.mxu0 %v4915
    %v4917 = vand.u32 %v27, 4294901760
    %4918 = vmatmul.mubr.f32.gmra.mxu0 %v4917
    %v4919 = vpop.f32.mrf.mxu0
    %v4920 = vadd.f32 %v4791, %v4919
    %v4921 = vpop.f32.mrf.mxu0
    %v4922 = vadd.f32 %v4793, %v4921
    %4923 = vdwg.mxu0
    %v4924 = vand.u32 %v248, 4294901760
    %4925 = vmatprep.subr.mxu0 %v4924
    %v4926 = vand.u32 %v247, 4294901760
    %4927 = vmatpush1.msra.mxu0 %v4926
    %v4928 = vand.u32 %v234, 4294901760
    %4929 = vmatprep.subr.mxu0 %v4928
    %v4930 = vand.u32 %v233, 4294901760
    %4931 = vmatpush1.msra.mxu0 %v4930
    %v4932 = vand.u32 %v220, 4294901760
    %4933 = vmatprep.subr.mxu0 %v4932
    %v4934 = vand.u32 %v219, 4294901760
    %4935 = vmatpush1.msra.mxu0 %v4934
    %v4936 = vand.u32 %v206, 4294901760
    %4937 = vmatprep.subr.mxu0 %v4936
    %v4938 = vand.u32 %v205, 4294901760
    %4939 = vmatpush1.msra.mxu0 %v4938
    %v4940 = vand.u32 %v192, 4294901760
    %4941 = vmatprep.subr.mxu0 %v4940
    %v4942 = vand.u32 %v191, 4294901760
    %4943 = vmatpush1.msra.mxu0 %v4942
    %v4944 = vand.u32 %v178, 4294901760
    %4945 = vmatprep.subr.mxu0 %v4944
    %v4946 = vand.u32 %v177, 4294901760
    %4947 = vmatpush1.msra.mxu0 %v4946
    %v4948 = vand.u32 %v164, 4294901760
    %4949 = vmatprep.subr.mxu0 %v4948
    %v4950 = vand.u32 %v163, 4294901760
    %4951 = vmatpush1.msra.mxu0 %v4950
    %v4952 = vand.u32 %v150, 4294901760
    %4953 = vmatprep.subr.mxu0 %v4952
    %v4954 = vand.u32 %v149, 4294901760
    %4955 = vmatpush1.msra.mxu0 %v4954
    %v4956 = vand.u32 %v136, 4294901760
    %4957 = vmatprep.subr.mxu0 %v4956
    %v4958 = vand.u32 %v135, 4294901760
    %4959 = vmatpush1.msra.mxu0 %v4958
    %v4960 = vand.u32 %v122, 4294901760
    %4961 = vmatprep.subr.mxu0 %v4960
    %v4962 = vand.u32 %v121, 4294901760
    %4963 = vmatpush1.msra.mxu0 %v4962
    %v4964 = vand.u32 %v108, 4294901760
    %4965 = vmatprep.subr.mxu0 %v4964
    %v4966 = vand.u32 %v107, 4294901760
    %4967 = vmatpush1.msra.mxu0 %v4966
    %v4968 = vand.u32 %v94, 4294901760
    %4969 = vmatprep.subr.mxu0 %v4968
    %v4970 = vand.u32 %v93, 4294901760
    %4971 = vmatpush1.msra.mxu0 %v4970
    %v4972 = vand.u32 %v80, 4294901760
    %4973 = vmatprep.subr.mxu0 %v4972
    %v4974 = vand.u32 %v79, 4294901760
    %4975 = vmatpush1.msra.mxu0 %v4974
    %v4976 = vand.u32 %v66, 4294901760
    %4977 = vmatprep.subr.mxu0 %v4976
    %v4978 = vand.u32 %v65, 4294901760
    %4979 = vmatpush1.msra.mxu0 %v4978
    %v4980 = vand.u32 %v52, 4294901760
    %4981 = vmatprep.subr.mxu0 %v4980
    %v4982 = vand.u32 %v51, 4294901760
    %4983 = vmatpush1.msra.mxu0 %v4982
    %v4984 = vand.u32 %v38, 4294901760
    %4985 = vmatprep.subr.mxu0 %v4984
    %v4986 = vand.u32 %v37, 4294901760
    %4987 = vmatpush1.msra.mxu0 %v4986
    %4988 = vmatprep.subr.mxu0 0.0
    %4989 = vmatpush2.msra.mxu0 0.0
    %4990 = vmatprep.subr.mxu0 0.0
    %4991 = vmatpush2.msra.mxu0 0.0
    %4992 = vmatprep.subr.mxu0 0.0
    %4993 = vmatpush2.msra.mxu0 0.0
    %4994 = vmatprep.subr.mxu0 0.0
    %4995 = vmatpush2.msra.mxu0 0.0
    %4996 = vmatprep.subr.mxu0 0.0
    %4997 = vmatpush2.msra.mxu0 0.0
    %4998 = vmatprep.subr.mxu0 0.0
    %4999 = vmatpush2.msra.mxu0 0.0
    %5000 = vmatprep.subr.mxu0 0.0
    %5001 = vmatpush2.msra.mxu0 0.0
    %5002 = vmatprep.subr.mxu0 0.0
    %5003 = vmatpush2.msra.mxu0 0.0
    %v5004 = vand.u32 %v360, 4294901760
    %5005 = vmatprep.subr.mxu0 %v5004
    %v5006 = vand.u32 %v359, 4294901760
    %5007 = vmatpush2.msra.mxu0 %v5006
    %v5008 = vand.u32 %v346, 4294901760
    %5009 = vmatprep.subr.mxu0 %v5008
    %v5010 = vand.u32 %v345, 4294901760
    %5011 = vmatpush2.msra.mxu0 %v5010
    %v5012 = vand.u32 %v332, 4294901760
    %5013 = vmatprep.subr.mxu0 %v5012
    %v5014 = vand.u32 %v331, 4294901760
    %5015 = vmatpush2.msra.mxu0 %v5014
    %v5016 = vand.u32 %v318, 4294901760
    %5017 = vmatprep.subr.mxu0 %v5016
    %v5018 = vand.u32 %v317, 4294901760
    %5019 = vmatpush2.msra.mxu0 %v5018
    %v5020 = vand.u32 %v304, 4294901760
    %5021 = vmatprep.subr.mxu0 %v5020
    %v5022 = vand.u32 %v303, 4294901760
    %5023 = vmatpush2.msra.mxu0 %v5022
    %v5024 = vand.u32 %v290, 4294901760
    %5025 = vmatprep.subr.mxu0 %v5024
    %v5026 = vand.u32 %v289, 4294901760
    %5027 = vmatpush2.msra.mxu0 %v5026
    %v5028 = vand.u32 %v276, 4294901760
    %5029 = vmatprep.subr.mxu0 %v5028
    %v5030 = vand.u32 %v275, 4294901760
    %5031 = vmatpush2.msra.mxu0 %v5030
    %v5032 = vand.u32 %v262, 4294901760
    %5033 = vmatprep.subr.mxu0 %v5032
    %v5034 = vand.u32 %v261, 4294901760
    %5035 = vmatpush2.msra.mxu0 %v5034
    %v5036 = vand.u32 %v367, 4294901760
    %v5037 = vsub.f32 %v367, %v5036
    %v5038 = vand.u32 %v5037, 4294901760
    %v5039 = vsub.f32 %v5037, %v5038
    %v5040 = vand.u32 %v5039, 4294901760
    %5041 = vmatprep.mubr.f32.mxu0 %v5040
    %v5042 = vand.u32 %v25, 4294901760
    %v5043 = vsub.f32 %v25, %v5042
    %v5044 = vand.u32 %v5043, 4294901760
    %v5045 = vsub.f32 %v5043, %v5044
    %v5046 = vand.u32 %v5045, 4294901760
    %5047 = vmatmul.mubr.f32.gmra.mxu0 %v5046
    %v5048 = vpop.f32.mrf.mxu0
    %v5049 = vadd.f32 0.0, %v5048
    %v5050 = vpop.f32.mrf.mxu0
    %v5051 = vadd.f32 0.0, %v5050
    %v5052 = vand.u32 %v370, 4294901760
    %v5053 = vsub.f32 %v370, %v5052
    %v5054 = vand.u32 %v5053, 4294901760
    %v5055 = vsub.f32 %v5053, %v5054
    %v5056 = vand.u32 %v5055, 4294901760
    %5057 = vmatprep.mubr.f32.mxu0 %v5056
    %v5058 = vand.u32 %v27, 4294901760
    %v5059 = vsub.f32 %v27, %v5058
    %v5060 = vand.u32 %v5059, 4294901760
    %v5061 = vsub.f32 %v5059, %v5060
    %v5062 = vand.u32 %v5061, 4294901760
    %5063 = vmatmul.mubr.f32.gmra.mxu0 %v5062
    %v5064 = vpop.f32.mrf.mxu0
    %v5065 = vadd.f32 0.0, %v5064
    %v5066 = vpop.f32.mrf.mxu0
    %v5067 = vadd.f32 0.0, %v5066
    %5068 = vdwg.mxu0
    %v5069 = vand.u32 %v248, 4294901760
    %v5070 = vsub.f32 %v248, %v5069
    %v5071 = vand.u32 %v5070, 4294901760
    %v5072 = vsub.f32 %v5070, %v5071
    %v5073 = vand.u32 %v5072, 4294901760
    %5074 = vmatprep.subr.mxu0 %v5073
    %v5075 = vand.u32 %v247, 4294901760
    %v5076 = vsub.f32 %v247, %v5075
    %v5077 = vand.u32 %v5076, 4294901760
    %v5078 = vsub.f32 %v5076, %v5077
    %v5079 = vand.u32 %v5078, 4294901760
    %5080 = vmatpush1.msra.mxu0 %v5079
    %v5081 = vand.u32 %v234, 4294901760
    %v5082 = vsub.f32 %v234, %v5081
    %v5083 = vand.u32 %v5082, 4294901760
    %v5084 = vsub.f32 %v5082, %v5083
    %v5085 = vand.u32 %v5084, 4294901760
    %5086 = vmatprep.subr.mxu0 %v5085
    %v5087 = vand.u32 %v233, 4294901760
    %v5088 = vsub.f32 %v233, %v5087
    %v5089 = vand.u32 %v5088, 4294901760
    %v5090 = vsub.f32 %v5088, %v5089
    %v5091 = vand.u32 %v5090, 4294901760
    %5092 = vmatpush1.msra.mxu0 %v5091
    %v5093 = vand.u32 %v220, 4294901760
    %v5094 = vsub.f32 %v220, %v5093
    %v5095 = vand.u32 %v5094, 4294901760
    %v5096 = vsub.f32 %v5094, %v5095
    %v5097 = vand.u32 %v5096, 4294901760
    %5098 = vmatprep.subr.mxu0 %v5097
    %v5099 = vand.u32 %v219, 4294901760
    %v5100 = vsub.f32 %v219, %v5099
    %v5101 = vand.u32 %v5100, 4294901760
    %v5102 = vsub.f32 %v5100, %v5101
    %v5103 = vand.u32 %v5102, 4294901760
    %5104 = vmatpush1.msra.mxu0 %v5103
    %v5105 = vand.u32 %v206, 4294901760
    %v5106 = vsub.f32 %v206, %v5105
    %v5107 = vand.u32 %v5106, 4294901760
    %v5108 = vsub.f32 %v5106, %v5107
    %v5109 = vand.u32 %v5108, 4294901760
    %5110 = vmatprep.subr.mxu0 %v5109
    %v5111 = vand.u32 %v205, 4294901760
    %v5112 = vsub.f32 %v205, %v5111
    %v5113 = vand.u32 %v5112, 4294901760
    %v5114 = vsub.f32 %v5112, %v5113
    %v5115 = vand.u32 %v5114, 4294901760
    %5116 = vmatpush1.msra.mxu0 %v5115
    %v5117 = vand.u32 %v192, 4294901760
    %v5118 = vsub.f32 %v192, %v5117
    %v5119 = vand.u32 %v5118, 4294901760
    %v5120 = vsub.f32 %v5118, %v5119
    %v5121 = vand.u32 %v5120, 4294901760
    %5122 = vmatprep.subr.mxu0 %v5121
    %v5123 = vand.u32 %v191, 4294901760
    %v5124 = vsub.f32 %v191, %v5123
    %v5125 = vand.u32 %v5124, 4294901760
    %v5126 = vsub.f32 %v5124, %v5125
    %v5127 = vand.u32 %v5126, 4294901760
    %5128 = vmatpush1.msra.mxu0 %v5127
    %v5129 = vand.u32 %v178, 4294901760
    %v5130 = vsub.f32 %v178, %v5129
    %v5131 = vand.u32 %v5130, 4294901760
    %v5132 = vsub.f32 %v5130, %v5131
    %v5133 = vand.u32 %v5132, 4294901760
    %5134 = vmatprep.subr.mxu0 %v5133
    %v5135 = vand.u32 %v177, 4294901760
    %v5136 = vsub.f32 %v177, %v5135
    %v5137 = vand.u32 %v5136, 4294901760
    %v5138 = vsub.f32 %v5136, %v5137
    %v5139 = vand.u32 %v5138, 4294901760
    %5140 = vmatpush1.msra.mxu0 %v5139
    %v5141 = vand.u32 %v164, 4294901760
    %v5142 = vsub.f32 %v164, %v5141
    %v5143 = vand.u32 %v5142, 4294901760
    %v5144 = vsub.f32 %v5142, %v5143
    %v5145 = vand.u32 %v5144, 4294901760
    %5146 = vmatprep.subr.mxu0 %v5145
    %v5147 = vand.u32 %v163, 4294901760
    %v5148 = vsub.f32 %v163, %v5147
    %v5149 = vand.u32 %v5148, 4294901760
    %v5150 = vsub.f32 %v5148, %v5149
    %v5151 = vand.u32 %v5150, 4294901760
    %5152 = vmatpush1.msra.mxu0 %v5151
    %v5153 = vand.u32 %v150, 4294901760
    %v5154 = vsub.f32 %v150, %v5153
    %v5155 = vand.u32 %v5154, 4294901760
    %v5156 = vsub.f32 %v5154, %v5155
    %v5157 = vand.u32 %v5156, 4294901760
    %5158 = vmatprep.subr.mxu0 %v5157
    %v5159 = vand.u32 %v149, 4294901760
    %v5160 = vsub.f32 %v149, %v5159
    %v5161 = vand.u32 %v5160, 4294901760
    %v5162 = vsub.f32 %v5160, %v5161
    %v5163 = vand.u32 %v5162, 4294901760
    %5164 = vmatpush1.msra.mxu0 %v5163
    %v5165 = vand.u32 %v136, 4294901760
    %v5166 = vsub.f32 %v136, %v5165
    %v5167 = vand.u32 %v5166, 4294901760
    %v5168 = vsub.f32 %v5166, %v5167
    %v5169 = vand.u32 %v5168, 4294901760
    %5170 = vmatprep.subr.mxu0 %v5169
    %v5171 = vand.u32 %v135, 4294901760
    %v5172 = vsub.f32 %v135, %v5171
    %v5173 = vand.u32 %v5172, 4294901760
    %v5174 = vsub.f32 %v5172, %v5173
    %v5175 = vand.u32 %v5174, 4294901760
    %5176 = vmatpush1.msra.mxu0 %v5175
    %v5177 = vand.u32 %v122, 4294901760
    %v5178 = vsub.f32 %v122, %v5177
    %v5179 = vand.u32 %v5178, 4294901760
    %v5180 = vsub.f32 %v5178, %v5179
    %v5181 = vand.u32 %v5180, 4294901760
    %5182 = vmatprep.subr.mxu0 %v5181
    %v5183 = vand.u32 %v121, 4294901760
    %v5184 = vsub.f32 %v121, %v5183
    %v5185 = vand.u32 %v5184, 4294901760
    %v5186 = vsub.f32 %v5184, %v5185
    %v5187 = vand.u32 %v5186, 4294901760
    %5188 = vmatpush1.msra.mxu0 %v5187
    %v5189 = vand.u32 %v108, 4294901760
    %v5190 = vsub.f32 %v108, %v5189
    %v5191 = vand.u32 %v5190, 4294901760
    %v5192 = vsub.f32 %v5190, %v5191
    %v5193 = vand.u32 %v5192, 4294901760
    %5194 = vmatprep.subr.mxu0 %v5193
    %v5195 = vand.u32 %v107, 4294901760
    %v5196 = vsub.f32 %v107, %v5195
    %v5197 = vand.u32 %v5196, 4294901760
    %v5198 = vsub.f32 %v5196, %v5197
    %v5199 = vand.u32 %v5198, 4294901760
    %5200 = vmatpush1.msra.mxu0 %v5199
    %v5201 = vand.u32 %v94, 4294901760
    %v5202 = vsub.f32 %v94, %v5201
    %v5203 = vand.u32 %v5202, 4294901760
    %v5204 = vsub.f32 %v5202, %v5203
    %v5205 = vand.u32 %v5204, 4294901760
    %5206 = vmatprep.subr.mxu0 %v5205
    %v5207 = vand.u32 %v93, 4294901760
    %v5208 = vsub.f32 %v93, %v5207
    %v5209 = vand.u32 %v5208, 4294901760
    %v5210 = vsub.f32 %v5208, %v5209
    %v5211 = vand.u32 %v5210, 4294901760
    %5212 = vmatpush1.msra.mxu0 %v5211
    %v5213 = vand.u32 %v80, 4294901760
    %v5214 = vsub.f32 %v80, %v5213
    %v5215 = vand.u32 %v5214, 4294901760
    %v5216 = vsub.f32 %v5214, %v5215
    %v5217 = vand.u32 %v5216, 4294901760
    %5218 = vmatprep.subr.mxu0 %v5217
    %v5219 = vand.u32 %v79, 4294901760
    %v5220 = vsub.f32 %v79, %v5219
    %v5221 = vand.u32 %v5220, 4294901760
    %v5222 = vsub.f32 %v5220, %v5221
    %v5223 = vand.u32 %v5222, 4294901760
    %5224 = vmatpush1.msra.mxu0 %v5223
    %v5225 = vand.u32 %v66, 4294901760
    %v5226 = vsub.f32 %v66, %v5225
    %v5227 = vand.u32 %v5226, 4294901760
    %v5228 = vsub.f32 %v5226, %v5227
    %v5229 = vand.u32 %v5228, 4294901760
    %5230 = vmatprep.subr.mxu0 %v5229
    %v5231 = vand.u32 %v65, 4294901760
    %v5232 = vsub.f32 %v65, %v5231
    %v5233 = vand.u32 %v5232, 4294901760
    %v5234 = vsub.f32 %v5232, %v5233
    %v5235 = vand.u32 %v5234, 4294901760
    %5236 = vmatpush1.msra.mxu0 %v5235
    %v5237 = vand.u32 %v52, 4294901760
    %v5238 = vsub.f32 %v52, %v5237
    %v5239 = vand.u32 %v5238, 4294901760
    %v5240 = vsub.f32 %v5238, %v5239
    %v5241 = vand.u32 %v5240, 4294901760
    %5242 = vmatprep.subr.mxu0 %v5241
    %v5243 = vand.u32 %v51, 4294901760
    %v5244 = vsub.f32 %v51, %v5243
    %v5245 = vand.u32 %v5244, 4294901760
    %v5246 = vsub.f32 %v5244, %v5245
    %v5247 = vand.u32 %v5246, 4294901760
    %5248 = vmatpush1.msra.mxu0 %v5247
    %v5249 = vand.u32 %v38, 4294901760
    %v5250 = vsub.f32 %v38, %v5249
    %v5251 = vand.u32 %v5250, 4294901760
    %v5252 = vsub.f32 %v5250, %v5251
    %v5253 = vand.u32 %v5252, 4294901760
    %5254 = vmatprep.subr.mxu0 %v5253
    %v5255 = vand.u32 %v37, 4294901760
    %v5256 = vsub.f32 %v37, %v5255
    %v5257 = vand.u32 %v5256, 4294901760
    %v5258 = vsub.f32 %v5256, %v5257
    %v5259 = vand.u32 %v5258, 4294901760
    %5260 = vmatpush1.msra.mxu0 %v5259
    %5261 = vmatprep.subr.mxu0 0.0
    %5262 = vmatpush2.msra.mxu0 0.0
    %5263 = vmatprep.subr.mxu0 0.0
    %5264 = vmatpush2.msra.mxu0 0.0
    %5265 = vmatprep.subr.mxu0 0.0
    %5266 = vmatpush2.msra.mxu0 0.0
    %5267 = vmatprep.subr.mxu0 0.0
    %5268 = vmatpush2.msra.mxu0 0.0
    %5269 = vmatprep.subr.mxu0 0.0
    %5270 = vmatpush2.msra.mxu0 0.0
    %5271 = vmatprep.subr.mxu0 0.0
    %5272 = vmatpush2.msra.mxu0 0.0
    %5273 = vmatprep.subr.mxu0 0.0
    %5274 = vmatpush2.msra.mxu0 0.0
    %5275 = vmatprep.subr.mxu0 0.0
    %5276 = vmatpush2.msra.mxu0 0.0
    %v5277 = vand.u32 %v360, 4294901760
    %v5278 = vsub.f32 %v360, %v5277
    %v5279 = vand.u32 %v5278, 4294901760
    %v5280 = vsub.f32 %v5278, %v5279
    %v5281 = vand.u32 %v5280, 4294901760
    %5282 = vmatprep.subr.mxu0 %v5281
    %v5283 = vand.u32 %v359, 4294901760
    %v5284 = vsub.f32 %v359, %v5283
    %v5285 = vand.u32 %v5284, 4294901760
    %v5286 = vsub.f32 %v5284, %v5285
    %v5287 = vand.u32 %v5286, 4294901760
    %5288 = vmatpush2.msra.mxu0 %v5287
    %v5289 = vand.u32 %v346, 4294901760
    %v5290 = vsub.f32 %v346, %v5289
    %v5291 = vand.u32 %v5290, 4294901760
    %v5292 = vsub.f32 %v5290, %v5291
    %v5293 = vand.u32 %v5292, 4294901760
    %5294 = vmatprep.subr.mxu0 %v5293
    %v5295 = vand.u32 %v345, 4294901760
    %v5296 = vsub.f32 %v345, %v5295
    %v5297 = vand.u32 %v5296, 4294901760
    %v5298 = vsub.f32 %v5296, %v5297
    %v5299 = vand.u32 %v5298, 4294901760
    %5300 = vmatpush2.msra.mxu0 %v5299
    %v5301 = vand.u32 %v332, 4294901760
    %v5302 = vsub.f32 %v332, %v5301
    %v5303 = vand.u32 %v5302, 4294901760
    %v5304 = vsub.f32 %v5302, %v5303
    %v5305 = vand.u32 %v5304, 4294901760
    %5306 = vmatprep.subr.mxu0 %v5305
    %v5307 = vand.u32 %v331, 4294901760
    %v5308 = vsub.f32 %v331, %v5307
    %v5309 = vand.u32 %v5308, 4294901760
    %v5310 = vsub.f32 %v5308, %v5309
    %v5311 = vand.u32 %v5310, 4294901760
    %5312 = vmatpush2.msra.mxu0 %v5311
    %v5313 = vand.u32 %v318, 4294901760
    %v5314 = vsub.f32 %v318, %v5313
    %v5315 = vand.u32 %v5314, 4294901760
    %v5316 = vsub.f32 %v5314, %v5315
    %v5317 = vand.u32 %v5316, 4294901760
    %5318 = vmatprep.subr.mxu0 %v5317
    %v5319 = vand.u32 %v317, 4294901760
    %v5320 = vsub.f32 %v317, %v5319
    %v5321 = vand.u32 %v5320, 4294901760
    %v5322 = vsub.f32 %v5320, %v5321
    %v5323 = vand.u32 %v5322, 4294901760
    %5324 = vmatpush2.msra.mxu0 %v5323
    %v5325 = vand.u32 %v304, 4294901760
    %v5326 = vsub.f32 %v304, %v5325
    %v5327 = vand.u32 %v5326, 4294901760
    %v5328 = vsub.f32 %v5326, %v5327
    %v5329 = vand.u32 %v5328, 4294901760
    %5330 = vmatprep.subr.mxu0 %v5329
    %v5331 = vand.u32 %v303, 4294901760
    %v5332 = vsub.f32 %v303, %v5331
    %v5333 = vand.u32 %v5332, 4294901760
    %v5334 = vsub.f32 %v5332, %v5333
    %v5335 = vand.u32 %v5334, 4294901760
    %5336 = vmatpush2.msra.mxu0 %v5335
    %v5337 = vand.u32 %v290, 4294901760
    %v5338 = vsub.f32 %v290, %v5337
    %v5339 = vand.u32 %v5338, 4294901760
    %v5340 = vsub.f32 %v5338, %v5339
    %v5341 = vand.u32 %v5340, 4294901760
    %5342 = vmatprep.subr.mxu0 %v5341
    %v5343 = vand.u32 %v289, 4294901760
    %v5344 = vsub.f32 %v289, %v5343
    %v5345 = vand.u32 %v5344, 4294901760
    %v5346 = vsub.f32 %v5344, %v5345
    %v5347 = vand.u32 %v5346, 4294901760
    %5348 = vmatpush2.msra.mxu0 %v5347
    %v5349 = vand.u32 %v276, 4294901760
    %v5350 = vsub.f32 %v276, %v5349
    %v5351 = vand.u32 %v5350, 4294901760
    %v5352 = vsub.f32 %v5350, %v5351
    %v5353 = vand.u32 %v5352, 4294901760
    %5354 = vmatprep.subr.mxu0 %v5353
    %v5355 = vand.u32 %v275, 4294901760
    %v5356 = vsub.f32 %v275, %v5355
    %v5357 = vand.u32 %v5356, 4294901760
    %v5358 = vsub.f32 %v5356, %v5357
    %v5359 = vand.u32 %v5358, 4294901760
    %5360 = vmatpush2.msra.mxu0 %v5359
    %v5361 = vand.u32 %v262, 4294901760
    %v5362 = vsub.f32 %v262, %v5361
    %v5363 = vand.u32 %v5362, 4294901760
    %v5364 = vsub.f32 %v5362, %v5363
    %v5365 = vand.u32 %v5364, 4294901760
    %5366 = vmatprep.subr.mxu0 %v5365
    %v5367 = vand.u32 %v261, 4294901760
    %v5368 = vsub.f32 %v261, %v5367
    %v5369 = vand.u32 %v5368, 4294901760
    %v5370 = vsub.f32 %v5368, %v5369
    %v5371 = vand.u32 %v5370, 4294901760
    %5372 = vmatpush2.msra.mxu0 %v5371
    %v5373 = vand.u32 %v367, 4294901760
    %5374 = vmatprep.mubr.f32.mxu0 %v5373
    %v5375 = vand.u32 %v25, 4294901760
    %5376 = vmatmul.mubr.f32.gmra.mxu0 %v5375
    %v5377 = vpop.f32.mrf.mxu0
    %v5378 = vadd.f32 %v5049, %v5377
    %v5379 = vpop.f32.mrf.mxu0
    %v5380 = vadd.f32 %v5051, %v5379
    %v5381 = vand.u32 %v370, 4294901760
    %5382 = vmatprep.mubr.f32.mxu0 %v5381
    %v5383 = vand.u32 %v27, 4294901760
    %5384 = vmatmul.mubr.f32.gmra.mxu0 %v5383
    %v5385 = vpop.f32.mrf.mxu0
    %v5386 = vadd.f32 %v5065, %v5385
    %v5387 = vpop.f32.mrf.mxu0
    %v5388 = vadd.f32 %v5067, %v5387
    %5389 = vdwg.mxu0
    %v5390 = vand.u32 %v248, 4294901760
    %v5391 = vsub.f32 %v248, %v5390
    %5392 = vmatprep.subr.mxu0 %v5391
    %v5393 = vand.u32 %v247, 4294901760
    %v5394 = vsub.f32 %v247, %v5393
    %5395 = vmatpush1.msra.mxu0 %v5394
    %v5396 = vand.u32 %v234, 4294901760
    %v5397 = vsub.f32 %v234, %v5396
    %5398 = vmatprep.subr.mxu0 %v5397
    %v5399 = vand.u32 %v233, 4294901760
    %v5400 = vsub.f32 %v233, %v5399
    %5401 = vmatpush1.msra.mxu0 %v5400
    %v5402 = vand.u32 %v220, 4294901760
    %v5403 = vsub.f32 %v220, %v5402
    %5404 = vmatprep.subr.mxu0 %v5403
    %v5405 = vand.u32 %v219, 4294901760
    %v5406 = vsub.f32 %v219, %v5405
    %5407 = vmatpush1.msra.mxu0 %v5406
    %v5408 = vand.u32 %v206, 4294901760
    %v5409 = vsub.f32 %v206, %v5408
    %5410 = vmatprep.subr.mxu0 %v5409
    %v5411 = vand.u32 %v205, 4294901760
    %v5412 = vsub.f32 %v205, %v5411
    %5413 = vmatpush1.msra.mxu0 %v5412
    %v5414 = vand.u32 %v192, 4294901760
    %v5415 = vsub.f32 %v192, %v5414
    %5416 = vmatprep.subr.mxu0 %v5415
    %v5417 = vand.u32 %v191, 4294901760
    %v5418 = vsub.f32 %v191, %v5417
    %5419 = vmatpush1.msra.mxu0 %v5418
    %v5420 = vand.u32 %v178, 4294901760
    %v5421 = vsub.f32 %v178, %v5420
    %5422 = vmatprep.subr.mxu0 %v5421
    %v5423 = vand.u32 %v177, 4294901760
    %v5424 = vsub.f32 %v177, %v5423
    %5425 = vmatpush1.msra.mxu0 %v5424
    %v5426 = vand.u32 %v164, 4294901760
    %v5427 = vsub.f32 %v164, %v5426
    %5428 = vmatprep.subr.mxu0 %v5427
    %v5429 = vand.u32 %v163, 4294901760
    %v5430 = vsub.f32 %v163, %v5429
    %5431 = vmatpush1.msra.mxu0 %v5430
    %v5432 = vand.u32 %v150, 4294901760
    %v5433 = vsub.f32 %v150, %v5432
    %5434 = vmatprep.subr.mxu0 %v5433
    %v5435 = vand.u32 %v149, 4294901760
    %v5436 = vsub.f32 %v149, %v5435
    %5437 = vmatpush1.msra.mxu0 %v5436
    %v5438 = vand.u32 %v136, 4294901760
    %v5439 = vsub.f32 %v136, %v5438
    %5440 = vmatprep.subr.mxu0 %v5439
    %v5441 = vand.u32 %v135, 4294901760
    %v5442 = vsub.f32 %v135, %v5441
    %5443 = vmatpush1.msra.mxu0 %v5442
    %v5444 = vand.u32 %v122, 4294901760
    %v5445 = vsub.f32 %v122, %v5444
    %5446 = vmatprep.subr.mxu0 %v5445
    %v5447 = vand.u32 %v121, 4294901760
    %v5448 = vsub.f32 %v121, %v5447
    %5449 = vmatpush1.msra.mxu0 %v5448
    %v5450 = vand.u32 %v108, 4294901760
    %v5451 = vsub.f32 %v108, %v5450
    %5452 = vmatprep.subr.mxu0 %v5451
    %v5453 = vand.u32 %v107, 4294901760
    %v5454 = vsub.f32 %v107, %v5453
    %5455 = vmatpush1.msra.mxu0 %v5454
    %v5456 = vand.u32 %v94, 4294901760
    %v5457 = vsub.f32 %v94, %v5456
    %5458 = vmatprep.subr.mxu0 %v5457
    %v5459 = vand.u32 %v93, 4294901760
    %v5460 = vsub.f32 %v93, %v5459
    %5461 = vmatpush1.msra.mxu0 %v5460
    %v5462 = vand.u32 %v80, 4294901760
    %v5463 = vsub.f32 %v80, %v5462
    %5464 = vmatprep.subr.mxu0 %v5463
    %v5465 = vand.u32 %v79, 4294901760
    %v5466 = vsub.f32 %v79, %v5465
    %5467 = vmatpush1.msra.mxu0 %v5466
    %v5468 = vand.u32 %v66, 4294901760
    %v5469 = vsub.f32 %v66, %v5468
    %5470 = vmatprep.subr.mxu0 %v5469
    %v5471 = vand.u32 %v65, 4294901760
    %v5472 = vsub.f32 %v65, %v5471
    %5473 = vmatpush1.msra.mxu0 %v5472
    %v5474 = vand.u32 %v52, 4294901760
    %v5475 = vsub.f32 %v52, %v5474
    %5476 = vmatprep.subr.mxu0 %v5475
    %v5477 = vand.u32 %v51, 4294901760
    %v5478 = vsub.f32 %v51, %v5477
    %5479 = vmatpush1.msra.mxu0 %v5478
    %v5480 = vand.u32 %v38, 4294901760
    %v5481 = vsub.f32 %v38, %v5480
    %5482 = vmatprep.subr.mxu0 %v5481
    %v5483 = vand.u32 %v37, 4294901760
    %v5484 = vsub.f32 %v37, %v5483
    %5485 = vmatpush1.msra.mxu0 %v5484
    %5486 = vmatprep.subr.mxu0 0.0
    %5487 = vmatpush2.msra.mxu0 0.0
    %5488 = vmatprep.subr.mxu0 0.0
    %5489 = vmatpush2.msra.mxu0 0.0
    %5490 = vmatprep.subr.mxu0 0.0
    %5491 = vmatpush2.msra.mxu0 0.0
    %5492 = vmatprep.subr.mxu0 0.0
    %5493 = vmatpush2.msra.mxu0 0.0
    %5494 = vmatprep.subr.mxu0 0.0
    %5495 = vmatpush2.msra.mxu0 0.0
    %5496 = vmatprep.subr.mxu0 0.0
    %5497 = vmatpush2.msra.mxu0 0.0
    %5498 = vmatprep.subr.mxu0 0.0
    %5499 = vmatpush2.msra.mxu0 0.0
    %5500 = vmatprep.subr.mxu0 0.0
    %5501 = vmatpush2.msra.mxu0 0.0
    %v5502 = vand.u32 %v360, 4294901760
    %v5503 = vsub.f32 %v360, %v5502
    %5504 = vmatprep.subr.mxu0 %v5503
    %v5505 = vand.u32 %v359, 4294901760
    %v5506 = vsub.f32 %v359, %v5505
    %5507 = vmatpush2.msra.mxu0 %v5506
    %v5508 = vand.u32 %v346, 4294901760
    %v5509 = vsub.f32 %v346, %v5508
    %5510 = vmatprep.subr.mxu0 %v5509
    %v5511 = vand.u32 %v345, 4294901760
    %v5512 = vsub.f32 %v345, %v5511
    %5513 = vmatpush2.msra.mxu0 %v5512
    %v5514 = vand.u32 %v332, 4294901760
    %v5515 = vsub.f32 %v332, %v5514
    %5516 = vmatprep.subr.mxu0 %v5515
    %v5517 = vand.u32 %v331, 4294901760
    %v5518 = vsub.f32 %v331, %v5517
    %5519 = vmatpush2.msra.mxu0 %v5518
    %v5520 = vand.u32 %v318, 4294901760
    %v5521 = vsub.f32 %v318, %v5520
    %5522 = vmatprep.subr.mxu0 %v5521
    %v5523 = vand.u32 %v317, 4294901760
    %v5524 = vsub.f32 %v317, %v5523
    %5525 = vmatpush2.msra.mxu0 %v5524
    %v5526 = vand.u32 %v304, 4294901760
    %v5527 = vsub.f32 %v304, %v5526
    %5528 = vmatprep.subr.mxu0 %v5527
    %v5529 = vand.u32 %v303, 4294901760
    %v5530 = vsub.f32 %v303, %v5529
    %5531 = vmatpush2.msra.mxu0 %v5530
    %v5532 = vand.u32 %v290, 4294901760
    %v5533 = vsub.f32 %v290, %v5532
    %5534 = vmatprep.subr.mxu0 %v5533
    %v5535 = vand.u32 %v289, 4294901760
    %v5536 = vsub.f32 %v289, %v5535
    %5537 = vmatpush2.msra.mxu0 %v5536
    %v5538 = vand.u32 %v276, 4294901760
    %v5539 = vsub.f32 %v276, %v5538
    %5540 = vmatprep.subr.mxu0 %v5539
    %v5541 = vand.u32 %v275, 4294901760
    %v5542 = vsub.f32 %v275, %v5541
    %5543 = vmatpush2.msra.mxu0 %v5542
    %v5544 = vand.u32 %v262, 4294901760
    %v5545 = vsub.f32 %v262, %v5544
    %5546 = vmatprep.subr.mxu0 %v5545
    %v5547 = vand.u32 %v261, 4294901760
    %v5548 = vsub.f32 %v261, %v5547
    %5549 = vmatpush2.msra.mxu0 %v5548
    %v5550 = vand.u32 %v367, 4294901760
    %v5551 = vsub.f32 %v367, %v5550
    %5552 = vmatprep.mubr.f32.mxu0 %v5551
    %v5553 = vand.u32 %v25, 4294901760
    %v5554 = vsub.f32 %v25, %v5553
    %5555 = vmatmul.mubr.f32.gmra.mxu0 %v5554
    %v5556 = vpop.f32.mrf.mxu0
    %v5557 = vadd.f32 %v5378, %v5556
    %v5558 = vpop.f32.mrf.mxu0
    %v5559 = vadd.f32 %v5380, %v5558
    %v5560 = vand.u32 %v370, 4294901760
    %v5561 = vsub.f32 %v370, %v5560
    %5562 = vmatprep.mubr.f32.mxu0 %v5561
    %v5563 = vand.u32 %v27, 4294901760
    %v5564 = vsub.f32 %v27, %v5563
    %5565 = vmatmul.mubr.f32.gmra.mxu0 %v5564
    %v5566 = vpop.f32.mrf.mxu0
    %v5567 = vadd.f32 %v5386, %v5566
    %v5568 = vpop.f32.mrf.mxu0
    %v5569 = vadd.f32 %v5388, %v5568
    %5570 = vdwg.mxu0
    %v5571 = vand.u32 %v248, 4294901760
    %5572 = vmatprep.subr.mxu0 %v5571
    %v5573 = vand.u32 %v247, 4294901760
    %5574 = vmatpush1.msra.mxu0 %v5573
    %v5575 = vand.u32 %v234, 4294901760
    %5576 = vmatprep.subr.mxu0 %v5575
    %v5577 = vand.u32 %v233, 4294901760
    %5578 = vmatpush1.msra.mxu0 %v5577
    %v5579 = vand.u32 %v220, 4294901760
    %5580 = vmatprep.subr.mxu0 %v5579
    %v5581 = vand.u32 %v219, 4294901760
    %5582 = vmatpush1.msra.mxu0 %v5581
    %v5583 = vand.u32 %v206, 4294901760
    %5584 = vmatprep.subr.mxu0 %v5583
    %v5585 = vand.u32 %v205, 4294901760
    %5586 = vmatpush1.msra.mxu0 %v5585
    %v5587 = vand.u32 %v192, 4294901760
    %5588 = vmatprep.subr.mxu0 %v5587
    %v5589 = vand.u32 %v191, 4294901760
    %5590 = vmatpush1.msra.mxu0 %v5589
    %v5591 = vand.u32 %v178, 4294901760
    %5592 = vmatprep.subr.mxu0 %v5591
    %v5593 = vand.u32 %v177, 4294901760
    %5594 = vmatpush1.msra.mxu0 %v5593
    %v5595 = vand.u32 %v164, 4294901760
    %5596 = vmatprep.subr.mxu0 %v5595
    %v5597 = vand.u32 %v163, 4294901760
    %5598 = vmatpush1.msra.mxu0 %v5597
    %v5599 = vand.u32 %v150, 4294901760
    %5600 = vmatprep.subr.mxu0 %v5599
    %v5601 = vand.u32 %v149, 4294901760
    %5602 = vmatpush1.msra.mxu0 %v5601
    %v5603 = vand.u32 %v136, 4294901760
    %5604 = vmatprep.subr.mxu0 %v5603
    %v5605 = vand.u32 %v135, 4294901760
    %5606 = vmatpush1.msra.mxu0 %v5605
    %v5607 = vand.u32 %v122, 4294901760
    %5608 = vmatprep.subr.mxu0 %v5607
    %v5609 = vand.u32 %v121, 4294901760
    %5610 = vmatpush1.msra.mxu0 %v5609
    %v5611 = vand.u32 %v108, 4294901760
    %5612 = vmatprep.subr.mxu0 %v5611
    %v5613 = vand.u32 %v107, 4294901760
    %5614 = vmatpush1.msra.mxu0 %v5613
    %v5615 = vand.u32 %v94, 4294901760
    %5616 = vmatprep.subr.mxu0 %v5615
    %v5617 = vand.u32 %v93, 4294901760
    %5618 = vmatpush1.msra.mxu0 %v5617
    %v5619 = vand.u32 %v80, 4294901760
    %5620 = vmatprep.subr.mxu0 %v5619
    %v5621 = vand.u32 %v79, 4294901760
    %5622 = vmatpush1.msra.mxu0 %v5621
    %v5623 = vand.u32 %v66, 4294901760
    %5624 = vmatprep.subr.mxu0 %v5623
    %v5625 = vand.u32 %v65, 4294901760
    %5626 = vmatpush1.msra.mxu0 %v5625
    %v5627 = vand.u32 %v52, 4294901760
    %5628 = vmatprep.subr.mxu0 %v5627
    %v5629 = vand.u32 %v51, 4294901760
    %5630 = vmatpush1.msra.mxu0 %v5629
    %v5631 = vand.u32 %v38, 4294901760
    %5632 = vmatprep.subr.mxu0 %v5631
    %v5633 = vand.u32 %v37, 4294901760
    %5634 = vmatpush1.msra.mxu0 %v5633
    %5635 = vmatprep.subr.mxu0 0.0
    %5636 = vmatpush2.msra.mxu0 0.0
    %5637 = vmatprep.subr.mxu0 0.0
    %5638 = vmatpush2.msra.mxu0 0.0
    %5639 = vmatprep.subr.mxu0 0.0
    %5640 = vmatpush2.msra.mxu0 0.0
    %5641 = vmatprep.subr.mxu0 0.0
    %5642 = vmatpush2.msra.mxu0 0.0
    %5643 = vmatprep.subr.mxu0 0.0
    %5644 = vmatpush2.msra.mxu0 0.0
    %5645 = vmatprep.subr.mxu0 0.0
    %5646 = vmatpush2.msra.mxu0 0.0
    %5647 = vmatprep.subr.mxu0 0.0
    %5648 = vmatpush2.msra.mxu0 0.0
    %5649 = vmatprep.subr.mxu0 0.0
    %5650 = vmatpush2.msra.mxu0 0.0
    %v5651 = vand.u32 %v360, 4294901760
    %5652 = vmatprep.subr.mxu0 %v5651
    %v5653 = vand.u32 %v359, 4294901760
    %5654 = vmatpush2.msra.mxu0 %v5653
    %v5655 = vand.u32 %v346, 4294901760
    %5656 = vmatprep.subr.mxu0 %v5655
    %v5657 = vand.u32 %v345, 4294901760
    %5658 = vmatpush2.msra.mxu0 %v5657
    %v5659 = vand.u32 %v332, 4294901760
    %5660 = vmatprep.subr.mxu0 %v5659
    %v5661 = vand.u32 %v331, 4294901760
    %5662 = vmatpush2.msra.mxu0 %v5661
    %v5663 = vand.u32 %v318, 4294901760
    %5664 = vmatprep.subr.mxu0 %v5663
    %v5665 = vand.u32 %v317, 4294901760
    %5666 = vmatpush2.msra.mxu0 %v5665
    %v5667 = vand.u32 %v304, 4294901760
    %5668 = vmatprep.subr.mxu0 %v5667
    %v5669 = vand.u32 %v303, 4294901760
    %5670 = vmatpush2.msra.mxu0 %v5669
    %v5671 = vand.u32 %v290, 4294901760
    %5672 = vmatprep.subr.mxu0 %v5671
    %v5673 = vand.u32 %v289, 4294901760
    %5674 = vmatpush2.msra.mxu0 %v5673
    %v5675 = vand.u32 %v276, 4294901760
    %5676 = vmatprep.subr.mxu0 %v5675
    %v5677 = vand.u32 %v275, 4294901760
    %5678 = vmatpush2.msra.mxu0 %v5677
    %v5679 = vand.u32 %v262, 4294901760
    %5680 = vmatprep.subr.mxu0 %v5679
    %v5681 = vand.u32 %v261, 4294901760
    %5682 = vmatpush2.msra.mxu0 %v5681
    %v5683 = vand.u32 %v367, 4294901760
    %v5684 = vsub.f32 %v367, %v5683
    %v5685 = vand.u32 %v5684, 4294901760
    %5686 = vmatprep.mubr.f32.mxu0 %v5685
    %v5687 = vand.u32 %v25, 4294901760
    %v5688 = vsub.f32 %v25, %v5687
    %v5689 = vand.u32 %v5688, 4294901760
    %5690 = vmatmul.mubr.f32.gmra.mxu0 %v5689
    %v5691 = vpop.f32.mrf.mxu0
    %v5692 = vadd.f32 %v5557, %v5691
    %v5693 = vpop.f32.mrf.mxu0
    %v5694 = vadd.f32 %v5559, %v5693
    %v5695 = vand.u32 %v370, 4294901760
    %v5696 = vsub.f32 %v370, %v5695
    %v5697 = vand.u32 %v5696, 4294901760
    %5698 = vmatprep.mubr.f32.mxu0 %v5697
    %v5699 = vand.u32 %v27, 4294901760
    %v5700 = vsub.f32 %v27, %v5699
    %v5701 = vand.u32 %v5700, 4294901760
    %5702 = vmatmul.mubr.f32.gmra.mxu0 %v5701
    %v5703 = vpop.f32.mrf.mxu0
    %v5704 = vadd.f32 %v5567, %v5703
    %v5705 = vpop.f32.mrf.mxu0
    %v5706 = vadd.f32 %v5569, %v5705
    %5707 = vdwg.mxu0
    %v5708 = vand.u32 %v248, 4294901760
    %v5709 = vsub.f32 %v248, %v5708
    %v5710 = vand.u32 %v5709, 4294901760
    %5711 = vmatprep.subr.mxu0 %v5710
    %v5712 = vand.u32 %v247, 4294901760
    %v5713 = vsub.f32 %v247, %v5712
    %v5714 = vand.u32 %v5713, 4294901760
    %5715 = vmatpush1.msra.mxu0 %v5714
    %v5716 = vand.u32 %v234, 4294901760
    %v5717 = vsub.f32 %v234, %v5716
    %v5718 = vand.u32 %v5717, 4294901760
    %5719 = vmatprep.subr.mxu0 %v5718
    %v5720 = vand.u32 %v233, 4294901760
    %v5721 = vsub.f32 %v233, %v5720
    %v5722 = vand.u32 %v5721, 4294901760
    %5723 = vmatpush1.msra.mxu0 %v5722
    %v5724 = vand.u32 %v220, 4294901760
    %v5725 = vsub.f32 %v220, %v5724
    %v5726 = vand.u32 %v5725, 4294901760
    %5727 = vmatprep.subr.mxu0 %v5726
    %v5728 = vand.u32 %v219, 4294901760
    %v5729 = vsub.f32 %v219, %v5728
    %v5730 = vand.u32 %v5729, 4294901760
    %5731 = vmatpush1.msra.mxu0 %v5730
    %v5732 = vand.u32 %v206, 4294901760
    %v5733 = vsub.f32 %v206, %v5732
    %v5734 = vand.u32 %v5733, 4294901760
    %5735 = vmatprep.subr.mxu0 %v5734
    %v5736 = vand.u32 %v205, 4294901760
    %v5737 = vsub.f32 %v205, %v5736
    %v5738 = vand.u32 %v5737, 4294901760
    %5739 = vmatpush1.msra.mxu0 %v5738
    %v5740 = vand.u32 %v192, 4294901760
    %v5741 = vsub.f32 %v192, %v5740
    %v5742 = vand.u32 %v5741, 4294901760
    %5743 = vmatprep.subr.mxu0 %v5742
    %v5744 = vand.u32 %v191, 4294901760
    %v5745 = vsub.f32 %v191, %v5744
    %v5746 = vand.u32 %v5745, 4294901760
    %5747 = vmatpush1.msra.mxu0 %v5746
    %v5748 = vand.u32 %v178, 4294901760
    %v5749 = vsub.f32 %v178, %v5748
    %v5750 = vand.u32 %v5749, 4294901760
    %5751 = vmatprep.subr.mxu0 %v5750
    %v5752 = vand.u32 %v177, 4294901760
    %v5753 = vsub.f32 %v177, %v5752
    %v5754 = vand.u32 %v5753, 4294901760
    %5755 = vmatpush1.msra.mxu0 %v5754
    %v5756 = vand.u32 %v164, 4294901760
    %v5757 = vsub.f32 %v164, %v5756
    %v5758 = vand.u32 %v5757, 4294901760
    %5759 = vmatprep.subr.mxu0 %v5758
    %v5760 = vand.u32 %v163, 4294901760
    %v5761 = vsub.f32 %v163, %v5760
    %v5762 = vand.u32 %v5761, 4294901760
    %5763 = vmatpush1.msra.mxu0 %v5762
    %v5764 = vand.u32 %v150, 4294901760
    %v5765 = vsub.f32 %v150, %v5764
    %v5766 = vand.u32 %v5765, 4294901760
    %5767 = vmatprep.subr.mxu0 %v5766
    %v5768 = vand.u32 %v149, 4294901760
    %v5769 = vsub.f32 %v149, %v5768
    %v5770 = vand.u32 %v5769, 4294901760
    %5771 = vmatpush1.msra.mxu0 %v5770
    %v5772 = vand.u32 %v136, 4294901760
    %v5773 = vsub.f32 %v136, %v5772
    %v5774 = vand.u32 %v5773, 4294901760
    %5775 = vmatprep.subr.mxu0 %v5774
    %v5776 = vand.u32 %v135, 4294901760
    %v5777 = vsub.f32 %v135, %v5776
    %v5778 = vand.u32 %v5777, 4294901760
    %5779 = vmatpush1.msra.mxu0 %v5778
    %v5780 = vand.u32 %v122, 4294901760
    %v5781 = vsub.f32 %v122, %v5780
    %v5782 = vand.u32 %v5781, 4294901760
    %5783 = vmatprep.subr.mxu0 %v5782
    %v5784 = vand.u32 %v121, 4294901760
    %v5785 = vsub.f32 %v121, %v5784
    %v5786 = vand.u32 %v5785, 4294901760
    %5787 = vmatpush1.msra.mxu0 %v5786
    %v5788 = vand.u32 %v108, 4294901760
    %v5789 = vsub.f32 %v108, %v5788
    %v5790 = vand.u32 %v5789, 4294901760
    %5791 = vmatprep.subr.mxu0 %v5790
    %v5792 = vand.u32 %v107, 4294901760
    %v5793 = vsub.f32 %v107, %v5792
    %v5794 = vand.u32 %v5793, 4294901760
    %5795 = vmatpush1.msra.mxu0 %v5794
    %v5796 = vand.u32 %v94, 4294901760
    %v5797 = vsub.f32 %v94, %v5796
    %v5798 = vand.u32 %v5797, 4294901760
    %5799 = vmatprep.subr.mxu0 %v5798
    %v5800 = vand.u32 %v93, 4294901760
    %v5801 = vsub.f32 %v93, %v5800
    %v5802 = vand.u32 %v5801, 4294901760
    %5803 = vmatpush1.msra.mxu0 %v5802
    %v5804 = vand.u32 %v80, 4294901760
    %v5805 = vsub.f32 %v80, %v5804
    %v5806 = vand.u32 %v5805, 4294901760
    %5807 = vmatprep.subr.mxu0 %v5806
    %v5808 = vand.u32 %v79, 4294901760
    %v5809 = vsub.f32 %v79, %v5808
    %v5810 = vand.u32 %v5809, 4294901760
    %5811 = vmatpush1.msra.mxu0 %v5810
    %v5812 = vand.u32 %v66, 4294901760
    %v5813 = vsub.f32 %v66, %v5812
    %v5814 = vand.u32 %v5813, 4294901760
    %5815 = vmatprep.subr.mxu0 %v5814
    %v5816 = vand.u32 %v65, 4294901760
    %v5817 = vsub.f32 %v65, %v5816
    %v5818 = vand.u32 %v5817, 4294901760
    %5819 = vmatpush1.msra.mxu0 %v5818
    %v5820 = vand.u32 %v52, 4294901760
    %v5821 = vsub.f32 %v52, %v5820
    %v5822 = vand.u32 %v5821, 4294901760
    %5823 = vmatprep.subr.mxu0 %v5822
    %v5824 = vand.u32 %v51, 4294901760
    %v5825 = vsub.f32 %v51, %v5824
    %v5826 = vand.u32 %v5825, 4294901760
    %5827 = vmatpush1.msra.mxu0 %v5826
    %v5828 = vand.u32 %v38, 4294901760
    %v5829 = vsub.f32 %v38, %v5828
    %v5830 = vand.u32 %v5829, 4294901760
    %5831 = vmatprep.subr.mxu0 %v5830
    %v5832 = vand.u32 %v37, 4294901760
    %v5833 = vsub.f32 %v37, %v5832
    %v5834 = vand.u32 %v5833, 4294901760
    %5835 = vmatpush1.msra.mxu0 %v5834
    %5836 = vmatprep.subr.mxu0 0.0
    %5837 = vmatpush2.msra.mxu0 0.0
    %5838 = vmatprep.subr.mxu0 0.0
    %5839 = vmatpush2.msra.mxu0 0.0
    %5840 = vmatprep.subr.mxu0 0.0
    %5841 = vmatpush2.msra.mxu0 0.0
    %5842 = vmatprep.subr.mxu0 0.0
    %5843 = vmatpush2.msra.mxu0 0.0
    %5844 = vmatprep.subr.mxu0 0.0
    %5845 = vmatpush2.msra.mxu0 0.0
    %5846 = vmatprep.subr.mxu0 0.0
    %5847 = vmatpush2.msra.mxu0 0.0
    %5848 = vmatprep.subr.mxu0 0.0
    %5849 = vmatpush2.msra.mxu0 0.0
    %5850 = vmatprep.subr.mxu0 0.0
    %5851 = vmatpush2.msra.mxu0 0.0
    %v5852 = vand.u32 %v360, 4294901760
    %v5853 = vsub.f32 %v360, %v5852
    %v5854 = vand.u32 %v5853, 4294901760
    %5855 = vmatprep.subr.mxu0 %v5854
    %v5856 = vand.u32 %v359, 4294901760
    %v5857 = vsub.f32 %v359, %v5856
    %v5858 = vand.u32 %v5857, 4294901760
    %5859 = vmatpush2.msra.mxu0 %v5858
    %v5860 = vand.u32 %v346, 4294901760
    %v5861 = vsub.f32 %v346, %v5860
    %v5862 = vand.u32 %v5861, 4294901760
    %5863 = vmatprep.subr.mxu0 %v5862
    %v5864 = vand.u32 %v345, 4294901760
    %v5865 = vsub.f32 %v345, %v5864
    %v5866 = vand.u32 %v5865, 4294901760
    %5867 = vmatpush2.msra.mxu0 %v5866
    %v5868 = vand.u32 %v332, 4294901760
    %v5869 = vsub.f32 %v332, %v5868
    %v5870 = vand.u32 %v5869, 4294901760
    %5871 = vmatprep.subr.mxu0 %v5870
    %v5872 = vand.u32 %v331, 4294901760
    %v5873 = vsub.f32 %v331, %v5872
    %v5874 = vand.u32 %v5873, 4294901760
    %5875 = vmatpush2.msra.mxu0 %v5874
    %v5876 = vand.u32 %v318, 4294901760
    %v5877 = vsub.f32 %v318, %v5876
    %v5878 = vand.u32 %v5877, 4294901760
    %5879 = vmatprep.subr.mxu0 %v5878
    %v5880 = vand.u32 %v317, 4294901760
    %v5881 = vsub.f32 %v317, %v5880
    %v5882 = vand.u32 %v5881, 4294901760
    %5883 = vmatpush2.msra.mxu0 %v5882
    %v5884 = vand.u32 %v304, 4294901760
    %v5885 = vsub.f32 %v304, %v5884
    %v5886 = vand.u32 %v5885, 4294901760
    %5887 = vmatprep.subr.mxu0 %v5886
    %v5888 = vand.u32 %v303, 4294901760
    %v5889 = vsub.f32 %v303, %v5888
    %v5890 = vand.u32 %v5889, 4294901760
    %5891 = vmatpush2.msra.mxu0 %v5890
    %v5892 = vand.u32 %v290, 4294901760
    %v5893 = vsub.f32 %v290, %v5892
    %v5894 = vand.u32 %v5893, 4294901760
    %5895 = vmatprep.subr.mxu0 %v5894
    %v5896 = vand.u32 %v289, 4294901760
    %v5897 = vsub.f32 %v289, %v5896
    %v5898 = vand.u32 %v5897, 4294901760
    %5899 = vmatpush2.msra.mxu0 %v5898
    %v5900 = vand.u32 %v276, 4294901760
    %v5901 = vsub.f32 %v276, %v5900
    %v5902 = vand.u32 %v5901, 4294901760
    %5903 = vmatprep.subr.mxu0 %v5902
    %v5904 = vand.u32 %v275, 4294901760
    %v5905 = vsub.f32 %v275, %v5904
    %v5906 = vand.u32 %v5905, 4294901760
    %5907 = vmatpush2.msra.mxu0 %v5906
    %v5908 = vand.u32 %v262, 4294901760
    %v5909 = vsub.f32 %v262, %v5908
    %v5910 = vand.u32 %v5909, 4294901760
    %5911 = vmatprep.subr.mxu0 %v5910
    %v5912 = vand.u32 %v261, 4294901760
    %v5913 = vsub.f32 %v261, %v5912
    %v5914 = vand.u32 %v5913, 4294901760
    %5915 = vmatpush2.msra.mxu0 %v5914
    %v5916 = vand.u32 %v367, 4294901760
    %5917 = vmatprep.mubr.f32.mxu0 %v5916
    %v5918 = vand.u32 %v25, 4294901760
    %5919 = vmatmul.mubr.f32.gmra.mxu0 %v5918
    %v5920 = vpop.f32.mrf.mxu0
    %v5921 = vadd.f32 %v5692, %v5920
    %v5922 = vpop.f32.mrf.mxu0
    %v5923 = vadd.f32 %v5694, %v5922
    %v5924 = vand.u32 %v370, 4294901760
    %5925 = vmatprep.mubr.f32.mxu0 %v5924
    %v5926 = vand.u32 %v27, 4294901760
    %5927 = vmatmul.mubr.f32.gmra.mxu0 %v5926
    %v5928 = vpop.f32.mrf.mxu0
    %v5929 = vadd.f32 %v5704, %v5928
    %v5930 = vpop.f32.mrf.mxu0
    %v5931 = vadd.f32 %v5706, %v5930
    %5932 = vdwg.mxu0
    %v5933 = vand.u32 %v248, 4294901760
    %5934 = vmatprep.subr.mxu0 %v5933
    %v5935 = vand.u32 %v247, 4294901760
    %5936 = vmatpush1.msra.mxu0 %v5935
    %v5937 = vand.u32 %v234, 4294901760
    %5938 = vmatprep.subr.mxu0 %v5937
    %v5939 = vand.u32 %v233, 4294901760
    %5940 = vmatpush1.msra.mxu0 %v5939
    %v5941 = vand.u32 %v220, 4294901760
    %5942 = vmatprep.subr.mxu0 %v5941
    %v5943 = vand.u32 %v219, 4294901760
    %5944 = vmatpush1.msra.mxu0 %v5943
    %v5945 = vand.u32 %v206, 4294901760
    %5946 = vmatprep.subr.mxu0 %v5945
    %v5947 = vand.u32 %v205, 4294901760
    %5948 = vmatpush1.msra.mxu0 %v5947
    %v5949 = vand.u32 %v192, 4294901760
    %5950 = vmatprep.subr.mxu0 %v5949
    %v5951 = vand.u32 %v191, 4294901760
    %5952 = vmatpush1.msra.mxu0 %v5951
    %v5953 = vand.u32 %v178, 4294901760
    %5954 = vmatprep.subr.mxu0 %v5953
    %v5955 = vand.u32 %v177, 4294901760
    %5956 = vmatpush1.msra.mxu0 %v5955
    %v5957 = vand.u32 %v164, 4294901760
    %5958 = vmatprep.subr.mxu0 %v5957
    %v5959 = vand.u32 %v163, 4294901760
    %5960 = vmatpush1.msra.mxu0 %v5959
    %v5961 = vand.u32 %v150, 4294901760
    %5962 = vmatprep.subr.mxu0 %v5961
    %v5963 = vand.u32 %v149, 4294901760
    %5964 = vmatpush1.msra.mxu0 %v5963
    %v5965 = vand.u32 %v136, 4294901760
    %5966 = vmatprep.subr.mxu0 %v5965
    %v5967 = vand.u32 %v135, 4294901760
    %5968 = vmatpush1.msra.mxu0 %v5967
    %v5969 = vand.u32 %v122, 4294901760
    %5970 = vmatprep.subr.mxu0 %v5969
    %v5971 = vand.u32 %v121, 4294901760
    %5972 = vmatpush1.msra.mxu0 %v5971
    %v5973 = vand.u32 %v108, 4294901760
    %5974 = vmatprep.subr.mxu0 %v5973
    %v5975 = vand.u32 %v107, 4294901760
    %5976 = vmatpush1.msra.mxu0 %v5975
    %v5977 = vand.u32 %v94, 4294901760
    %5978 = vmatprep.subr.mxu0 %v5977
    %v5979 = vand.u32 %v93, 4294901760
    %5980 = vmatpush1.msra.mxu0 %v5979
    %v5981 = vand.u32 %v80, 4294901760
    %5982 = vmatprep.subr.mxu0 %v5981
    %v5983 = vand.u32 %v79, 4294901760
    %5984 = vmatpush1.msra.mxu0 %v5983
    %v5985 = vand.u32 %v66, 4294901760
    %5986 = vmatprep.subr.mxu0 %v5985
    %v5987 = vand.u32 %v65, 4294901760
    %5988 = vmatpush1.msra.mxu0 %v5987
    %v5989 = vand.u32 %v52, 4294901760
    %5990 = vmatprep.subr.mxu0 %v5989
    %v5991 = vand.u32 %v51, 4294901760
    %5992 = vmatpush1.msra.mxu0 %v5991
    %v5993 = vand.u32 %v38, 4294901760
    %5994 = vmatprep.subr.mxu0 %v5993
    %v5995 = vand.u32 %v37, 4294901760
    %5996 = vmatpush1.msra.mxu0 %v5995
    %5997 = vmatprep.subr.mxu0 0.0
    %5998 = vmatpush2.msra.mxu0 0.0
    %5999 = vmatprep.subr.mxu0 0.0
    %6000 = vmatpush2.msra.mxu0 0.0
    %6001 = vmatprep.subr.mxu0 0.0
    %6002 = vmatpush2.msra.mxu0 0.0
    %6003 = vmatprep.subr.mxu0 0.0
    %6004 = vmatpush2.msra.mxu0 0.0
    %6005 = vmatprep.subr.mxu0 0.0
    %6006 = vmatpush2.msra.mxu0 0.0
    %6007 = vmatprep.subr.mxu0 0.0
    %6008 = vmatpush2.msra.mxu0 0.0
    %6009 = vmatprep.subr.mxu0 0.0
    %6010 = vmatpush2.msra.mxu0 0.0
    %6011 = vmatprep.subr.mxu0 0.0
    %6012 = vmatpush2.msra.mxu0 0.0
    %v6013 = vand.u32 %v360, 4294901760
    %6014 = vmatprep.subr.mxu0 %v6013
    %v6015 = vand.u32 %v359, 4294901760
    %6016 = vmatpush2.msra.mxu0 %v6015
    %v6017 = vand.u32 %v346, 4294901760
    %6018 = vmatprep.subr.mxu0 %v6017
    %v6019 = vand.u32 %v345, 4294901760
    %6020 = vmatpush2.msra.mxu0 %v6019
    %v6021 = vand.u32 %v332, 4294901760
    %6022 = vmatprep.subr.mxu0 %v6021
    %v6023 = vand.u32 %v331, 4294901760
    %6024 = vmatpush2.msra.mxu0 %v6023
    %v6025 = vand.u32 %v318, 4294901760
    %6026 = vmatprep.subr.mxu0 %v6025
    %v6027 = vand.u32 %v317, 4294901760
    %6028 = vmatpush2.msra.mxu0 %v6027
    %v6029 = vand.u32 %v304, 4294901760
    %6030 = vmatprep.subr.mxu0 %v6029
    %v6031 = vand.u32 %v303, 4294901760
    %6032 = vmatpush2.msra.mxu0 %v6031
    %v6033 = vand.u32 %v290, 4294901760
    %6034 = vmatprep.subr.mxu0 %v6033
    %v6035 = vand.u32 %v289, 4294901760
    %6036 = vmatpush2.msra.mxu0 %v6035
    %v6037 = vand.u32 %v276, 4294901760
    %6038 = vmatprep.subr.mxu0 %v6037
    %v6039 = vand.u32 %v275, 4294901760
    %6040 = vmatpush2.msra.mxu0 %v6039
    %v6041 = vand.u32 %v262, 4294901760
    %6042 = vmatprep.subr.mxu0 %v6041
    %v6043 = vand.u32 %v261, 4294901760
    %6044 = vmatpush2.msra.mxu0 %v6043
    %v6045 = vand.u32 %v367, 4294901760
    %6046 = vmatprep.mubr.f32.mxu0 %v6045
    %v6047 = vand.u32 %v25, 4294901760
    %6048 = vmatmul.mubr.f32.gmra.mxu0 %v6047
    %v6049 = vpop.f32.mrf.mxu0
    %v6050 = vadd.f32 %v5921, %v6049
    %v6051 = vpop.f32.mrf.mxu0
    %v6052 = vadd.f32 %v5923, %v6051
    %v6053 = vand.u32 %v370, 4294901760
    %6054 = vmatprep.mubr.f32.mxu0 %v6053
    %v6055 = vand.u32 %v27, 4294901760
    %6056 = vmatmul.mubr.f32.gmra.mxu0 %v6055
    %v6057 = vpop.f32.mrf.mxu0
    %v6058 = vadd.f32 %v5929, %v6057
    %v6059 = vpop.f32.mrf.mxu0
    %v6060 = vadd.f32 %v5931, %v6059
    %6061 = vdwg.mxu0
    %v6062 = vand.u32 %v250, 4294901760
    %6063 = vmatprep.subr.mxu0 %v6062
    %v6064 = vand.u32 %v249, 4294901760
    %6065 = vmatpush1.msra.mxu0 %v6064
    %v6066 = vand.u32 %v236, 4294901760
    %6067 = vmatprep.subr.mxu0 %v6066
    %v6068 = vand.u32 %v235, 4294901760
    %6069 = vmatpush1.msra.mxu0 %v6068
    %v6070 = vand.u32 %v222, 4294901760
    %6071 = vmatprep.subr.mxu0 %v6070
    %v6072 = vand.u32 %v221, 4294901760
    %6073 = vmatpush1.msra.mxu0 %v6072
    %v6074 = vand.u32 %v208, 4294901760
    %6075 = vmatprep.subr.mxu0 %v6074
    %v6076 = vand.u32 %v207, 4294901760
    %6077 = vmatpush1.msra.mxu0 %v6076
    %v6078 = vand.u32 %v194, 4294901760
    %6079 = vmatprep.subr.mxu0 %v6078
    %v6080 = vand.u32 %v193, 4294901760
    %6081 = vmatpush1.msra.mxu0 %v6080
    %v6082 = vand.u32 %v180, 4294901760
    %6083 = vmatprep.subr.mxu0 %v6082
    %v6084 = vand.u32 %v179, 4294901760
    %6085 = vmatpush1.msra.mxu0 %v6084
    %v6086 = vand.u32 %v166, 4294901760
    %6087 = vmatprep.subr.mxu0 %v6086
    %v6088 = vand.u32 %v165, 4294901760
    %6089 = vmatpush1.msra.mxu0 %v6088
    %v6090 = vand.u32 %v152, 4294901760
    %6091 = vmatprep.subr.mxu0 %v6090
    %v6092 = vand.u32 %v151, 4294901760
    %6093 = vmatpush1.msra.mxu0 %v6092
    %v6094 = vand.u32 %v138, 4294901760
    %6095 = vmatprep.subr.mxu0 %v6094
    %v6096 = vand.u32 %v137, 4294901760
    %6097 = vmatpush1.msra.mxu0 %v6096
    %v6098 = vand.u32 %v124, 4294901760
    %6099 = vmatprep.subr.mxu0 %v6098
    %v6100 = vand.u32 %v123, 4294901760
    %6101 = vmatpush1.msra.mxu0 %v6100
    %v6102 = vand.u32 %v110, 4294901760
    %6103 = vmatprep.subr.mxu0 %v6102
    %v6104 = vand.u32 %v109, 4294901760
    %6105 = vmatpush1.msra.mxu0 %v6104
    %v6106 = vand.u32 %v96, 4294901760
    %6107 = vmatprep.subr.mxu0 %v6106
    %v6108 = vand.u32 %v95, 4294901760
    %6109 = vmatpush1.msra.mxu0 %v6108
    %v6110 = vand.u32 %v82, 4294901760
    %6111 = vmatprep.subr.mxu0 %v6110
    %v6112 = vand.u32 %v81, 4294901760
    %6113 = vmatpush1.msra.mxu0 %v6112
    %v6114 = vand.u32 %v68, 4294901760
    %6115 = vmatprep.subr.mxu0 %v6114
    %v6116 = vand.u32 %v67, 4294901760
    %6117 = vmatpush1.msra.mxu0 %v6116
    %v6118 = vand.u32 %v54, 4294901760
    %6119 = vmatprep.subr.mxu0 %v6118
    %v6120 = vand.u32 %v53, 4294901760
    %6121 = vmatpush1.msra.mxu0 %v6120
    %v6122 = vand.u32 %v40, 4294901760
    %6123 = vmatprep.subr.mxu0 %v6122
    %v6124 = vand.u32 %v39, 4294901760
    %6125 = vmatpush1.msra.mxu0 %v6124
    %6126 = vmatprep.subr.mxu0 0.0
    %6127 = vmatpush2.msra.mxu0 0.0
    %6128 = vmatprep.subr.mxu0 0.0
    %6129 = vmatpush2.msra.mxu0 0.0
    %6130 = vmatprep.subr.mxu0 0.0
    %6131 = vmatpush2.msra.mxu0 0.0
    %6132 = vmatprep.subr.mxu0 0.0
    %6133 = vmatpush2.msra.mxu0 0.0
    %6134 = vmatprep.subr.mxu0 0.0
    %6135 = vmatpush2.msra.mxu0 0.0
    %6136 = vmatprep.subr.mxu0 0.0
    %6137 = vmatpush2.msra.mxu0 0.0
    %6138 = vmatprep.subr.mxu0 0.0
    %6139 = vmatpush2.msra.mxu0 0.0
    %6140 = vmatprep.subr.mxu0 0.0
    %6141 = vmatpush2.msra.mxu0 0.0
    %v6142 = vand.u32 %v362, 4294901760
    %6143 = vmatprep.subr.mxu0 %v6142
    %v6144 = vand.u32 %v361, 4294901760
    %6145 = vmatpush2.msra.mxu0 %v6144
    %v6146 = vand.u32 %v348, 4294901760
    %6147 = vmatprep.subr.mxu0 %v6146
    %v6148 = vand.u32 %v347, 4294901760
    %6149 = vmatpush2.msra.mxu0 %v6148
    %v6150 = vand.u32 %v334, 4294901760
    %6151 = vmatprep.subr.mxu0 %v6150
    %v6152 = vand.u32 %v333, 4294901760
    %6153 = vmatpush2.msra.mxu0 %v6152
    %v6154 = vand.u32 %v320, 4294901760
    %6155 = vmatprep.subr.mxu0 %v6154
    %v6156 = vand.u32 %v319, 4294901760
    %6157 = vmatpush2.msra.mxu0 %v6156
    %v6158 = vand.u32 %v306, 4294901760
    %6159 = vmatprep.subr.mxu0 %v6158
    %v6160 = vand.u32 %v305, 4294901760
    %6161 = vmatpush2.msra.mxu0 %v6160
    %v6162 = vand.u32 %v292, 4294901760
    %6163 = vmatprep.subr.mxu0 %v6162
    %v6164 = vand.u32 %v291, 4294901760
    %6165 = vmatpush2.msra.mxu0 %v6164
    %v6166 = vand.u32 %v278, 4294901760
    %6167 = vmatprep.subr.mxu0 %v6166
    %v6168 = vand.u32 %v277, 4294901760
    %6169 = vmatpush2.msra.mxu0 %v6168
    %v6170 = vand.u32 %v264, 4294901760
    %6171 = vmatprep.subr.mxu0 %v6170
    %v6172 = vand.u32 %v263, 4294901760
    %6173 = vmatpush2.msra.mxu0 %v6172
    %v6174 = vand.u32 %v367, 4294901760
    %v6175 = vsub.f32 %v367, %v6174
    %v6176 = vand.u32 %v6175, 4294901760
    %v6177 = vsub.f32 %v6175, %v6176
    %v6178 = vand.u32 %v6177, 4294901760
    %6179 = vmatprep.mubr.f32.mxu0 %v6178
    %v6180 = vand.u32 %v25, 4294901760
    %v6181 = vsub.f32 %v25, %v6180
    %v6182 = vand.u32 %v6181, 4294901760
    %v6183 = vsub.f32 %v6181, %v6182
    %v6184 = vand.u32 %v6183, 4294901760
    %6185 = vmatmul.mubr.f32.gmra.mxu0 %v6184
    %v6186 = vpop.f32.mrf.mxu0
    %v6187 = vadd.f32 0.0, %v6186
    %v6188 = vpop.f32.mrf.mxu0
    %v6189 = vadd.f32 0.0, %v6188
    %v6190 = vand.u32 %v370, 4294901760
    %v6191 = vsub.f32 %v370, %v6190
    %v6192 = vand.u32 %v6191, 4294901760
    %v6193 = vsub.f32 %v6191, %v6192
    %v6194 = vand.u32 %v6193, 4294901760
    %6195 = vmatprep.mubr.f32.mxu0 %v6194
    %v6196 = vand.u32 %v27, 4294901760
    %v6197 = vsub.f32 %v27, %v6196
    %v6198 = vand.u32 %v6197, 4294901760
    %v6199 = vsub.f32 %v6197, %v6198
    %v6200 = vand.u32 %v6199, 4294901760
    %6201 = vmatmul.mubr.f32.gmra.mxu0 %v6200
    %v6202 = vpop.f32.mrf.mxu0
    %v6203 = vadd.f32 0.0, %v6202
    %v6204 = vpop.f32.mrf.mxu0
    %v6205 = vadd.f32 0.0, %v6204
    %6206 = vdwg.mxu0
    %v6207 = vand.u32 %v250, 4294901760
    %v6208 = vsub.f32 %v250, %v6207
    %v6209 = vand.u32 %v6208, 4294901760
    %v6210 = vsub.f32 %v6208, %v6209
    %v6211 = vand.u32 %v6210, 4294901760
    %6212 = vmatprep.subr.mxu0 %v6211
    %v6213 = vand.u32 %v249, 4294901760
    %v6214 = vsub.f32 %v249, %v6213
    %v6215 = vand.u32 %v6214, 4294901760
    %v6216 = vsub.f32 %v6214, %v6215
    %v6217 = vand.u32 %v6216, 4294901760
    %6218 = vmatpush1.msra.mxu0 %v6217
    %v6219 = vand.u32 %v236, 4294901760
    %v6220 = vsub.f32 %v236, %v6219
    %v6221 = vand.u32 %v6220, 4294901760
    %v6222 = vsub.f32 %v6220, %v6221
    %v6223 = vand.u32 %v6222, 4294901760
    %6224 = vmatprep.subr.mxu0 %v6223
    %v6225 = vand.u32 %v235, 4294901760
    %v6226 = vsub.f32 %v235, %v6225
    %v6227 = vand.u32 %v6226, 4294901760
    %v6228 = vsub.f32 %v6226, %v6227
    %v6229 = vand.u32 %v6228, 4294901760
    %6230 = vmatpush1.msra.mxu0 %v6229
    %v6231 = vand.u32 %v222, 4294901760
    %v6232 = vsub.f32 %v222, %v6231
    %v6233 = vand.u32 %v6232, 4294901760
    %v6234 = vsub.f32 %v6232, %v6233
    %v6235 = vand.u32 %v6234, 4294901760
    %6236 = vmatprep.subr.mxu0 %v6235
    %v6237 = vand.u32 %v221, 4294901760
    %v6238 = vsub.f32 %v221, %v6237
    %v6239 = vand.u32 %v6238, 4294901760
    %v6240 = vsub.f32 %v6238, %v6239
    %v6241 = vand.u32 %v6240, 4294901760
    %6242 = vmatpush1.msra.mxu0 %v6241
    %v6243 = vand.u32 %v208, 4294901760
    %v6244 = vsub.f32 %v208, %v6243
    %v6245 = vand.u32 %v6244, 4294901760
    %v6246 = vsub.f32 %v6244, %v6245
    %v6247 = vand.u32 %v6246, 4294901760
    %6248 = vmatprep.subr.mxu0 %v6247
    %v6249 = vand.u32 %v207, 4294901760
    %v6250 = vsub.f32 %v207, %v6249
    %v6251 = vand.u32 %v6250, 4294901760
    %v6252 = vsub.f32 %v6250, %v6251
    %v6253 = vand.u32 %v6252, 4294901760
    %6254 = vmatpush1.msra.mxu0 %v6253
    %v6255 = vand.u32 %v194, 4294901760
    %v6256 = vsub.f32 %v194, %v6255
    %v6257 = vand.u32 %v6256, 4294901760
    %v6258 = vsub.f32 %v6256, %v6257
    %v6259 = vand.u32 %v6258, 4294901760
    %6260 = vmatprep.subr.mxu0 %v6259
    %v6261 = vand.u32 %v193, 4294901760
    %v6262 = vsub.f32 %v193, %v6261
    %v6263 = vand.u32 %v6262, 4294901760
    %v6264 = vsub.f32 %v6262, %v6263
    %v6265 = vand.u32 %v6264, 4294901760
    %6266 = vmatpush1.msra.mxu0 %v6265
    %v6267 = vand.u32 %v180, 4294901760
    %v6268 = vsub.f32 %v180, %v6267
    %v6269 = vand.u32 %v6268, 4294901760
    %v6270 = vsub.f32 %v6268, %v6269
    %v6271 = vand.u32 %v6270, 4294901760
    %6272 = vmatprep.subr.mxu0 %v6271
    %v6273 = vand.u32 %v179, 4294901760
    %v6274 = vsub.f32 %v179, %v6273
    %v6275 = vand.u32 %v6274, 4294901760
    %v6276 = vsub.f32 %v6274, %v6275
    %v6277 = vand.u32 %v6276, 4294901760
    %6278 = vmatpush1.msra.mxu0 %v6277
    %v6279 = vand.u32 %v166, 4294901760
    %v6280 = vsub.f32 %v166, %v6279
    %v6281 = vand.u32 %v6280, 4294901760
    %v6282 = vsub.f32 %v6280, %v6281
    %v6283 = vand.u32 %v6282, 4294901760
    %6284 = vmatprep.subr.mxu0 %v6283
    %v6285 = vand.u32 %v165, 4294901760
    %v6286 = vsub.f32 %v165, %v6285
    %v6287 = vand.u32 %v6286, 4294901760
    %v6288 = vsub.f32 %v6286, %v6287
    %v6289 = vand.u32 %v6288, 4294901760
    %6290 = vmatpush1.msra.mxu0 %v6289
    %v6291 = vand.u32 %v152, 4294901760
    %v6292 = vsub.f32 %v152, %v6291
    %v6293 = vand.u32 %v6292, 4294901760
    %v6294 = vsub.f32 %v6292, %v6293
    %v6295 = vand.u32 %v6294, 4294901760
    %6296 = vmatprep.subr.mxu0 %v6295
    %v6297 = vand.u32 %v151, 4294901760
    %v6298 = vsub.f32 %v151, %v6297
    %v6299 = vand.u32 %v6298, 4294901760
    %v6300 = vsub.f32 %v6298, %v6299
    %v6301 = vand.u32 %v6300, 4294901760
    %6302 = vmatpush1.msra.mxu0 %v6301
    %v6303 = vand.u32 %v138, 4294901760
    %v6304 = vsub.f32 %v138, %v6303
    %v6305 = vand.u32 %v6304, 4294901760
    %v6306 = vsub.f32 %v6304, %v6305
    %v6307 = vand.u32 %v6306, 4294901760
    %6308 = vmatprep.subr.mxu0 %v6307
    %v6309 = vand.u32 %v137, 4294901760
    %v6310 = vsub.f32 %v137, %v6309
    %v6311 = vand.u32 %v6310, 4294901760
    %v6312 = vsub.f32 %v6310, %v6311
    %v6313 = vand.u32 %v6312, 4294901760
    %6314 = vmatpush1.msra.mxu0 %v6313
    %v6315 = vand.u32 %v124, 4294901760
    %v6316 = vsub.f32 %v124, %v6315
    %v6317 = vand.u32 %v6316, 4294901760
    %v6318 = vsub.f32 %v6316, %v6317
    %v6319 = vand.u32 %v6318, 4294901760
    %6320 = vmatprep.subr.mxu0 %v6319
    %v6321 = vand.u32 %v123, 4294901760
    %v6322 = vsub.f32 %v123, %v6321
    %v6323 = vand.u32 %v6322, 4294901760
    %v6324 = vsub.f32 %v6322, %v6323
    %v6325 = vand.u32 %v6324, 4294901760
    %6326 = vmatpush1.msra.mxu0 %v6325
    %v6327 = vand.u32 %v110, 4294901760
    %v6328 = vsub.f32 %v110, %v6327
    %v6329 = vand.u32 %v6328, 4294901760
    %v6330 = vsub.f32 %v6328, %v6329
    %v6331 = vand.u32 %v6330, 4294901760
    %6332 = vmatprep.subr.mxu0 %v6331
    %v6333 = vand.u32 %v109, 4294901760
    %v6334 = vsub.f32 %v109, %v6333
    %v6335 = vand.u32 %v6334, 4294901760
    %v6336 = vsub.f32 %v6334, %v6335
    %v6337 = vand.u32 %v6336, 4294901760
    %6338 = vmatpush1.msra.mxu0 %v6337
    %v6339 = vand.u32 %v96, 4294901760
    %v6340 = vsub.f32 %v96, %v6339
    %v6341 = vand.u32 %v6340, 4294901760
    %v6342 = vsub.f32 %v6340, %v6341
    %v6343 = vand.u32 %v6342, 4294901760
    %6344 = vmatprep.subr.mxu0 %v6343
    %v6345 = vand.u32 %v95, 4294901760
    %v6346 = vsub.f32 %v95, %v6345
    %v6347 = vand.u32 %v6346, 4294901760
    %v6348 = vsub.f32 %v6346, %v6347
    %v6349 = vand.u32 %v6348, 4294901760
    %6350 = vmatpush1.msra.mxu0 %v6349
    %v6351 = vand.u32 %v82, 4294901760
    %v6352 = vsub.f32 %v82, %v6351
    %v6353 = vand.u32 %v6352, 4294901760
    %v6354 = vsub.f32 %v6352, %v6353
    %v6355 = vand.u32 %v6354, 4294901760
    %6356 = vmatprep.subr.mxu0 %v6355
    %v6357 = vand.u32 %v81, 4294901760
    %v6358 = vsub.f32 %v81, %v6357
    %v6359 = vand.u32 %v6358, 4294901760
    %v6360 = vsub.f32 %v6358, %v6359
    %v6361 = vand.u32 %v6360, 4294901760
    %6362 = vmatpush1.msra.mxu0 %v6361
    %v6363 = vand.u32 %v68, 4294901760
    %v6364 = vsub.f32 %v68, %v6363
    %v6365 = vand.u32 %v6364, 4294901760
    %v6366 = vsub.f32 %v6364, %v6365
    %v6367 = vand.u32 %v6366, 4294901760
    %6368 = vmatprep.subr.mxu0 %v6367
    %v6369 = vand.u32 %v67, 4294901760
    %v6370 = vsub.f32 %v67, %v6369
    %v6371 = vand.u32 %v6370, 4294901760
    %v6372 = vsub.f32 %v6370, %v6371
    %v6373 = vand.u32 %v6372, 4294901760
    %6374 = vmatpush1.msra.mxu0 %v6373
    %v6375 = vand.u32 %v54, 4294901760
    %v6376 = vsub.f32 %v54, %v6375
    %v6377 = vand.u32 %v6376, 4294901760
    %v6378 = vsub.f32 %v6376, %v6377
    %v6379 = vand.u32 %v6378, 4294901760
    %6380 = vmatprep.subr.mxu0 %v6379
    %v6381 = vand.u32 %v53, 4294901760
    %v6382 = vsub.f32 %v53, %v6381
    %v6383 = vand.u32 %v6382, 4294901760
    %v6384 = vsub.f32 %v6382, %v6383
    %v6385 = vand.u32 %v6384, 4294901760
    %6386 = vmatpush1.msra.mxu0 %v6385
    %v6387 = vand.u32 %v40, 4294901760
    %v6388 = vsub.f32 %v40, %v6387
    %v6389 = vand.u32 %v6388, 4294901760
    %v6390 = vsub.f32 %v6388, %v6389
    %v6391 = vand.u32 %v6390, 4294901760
    %6392 = vmatprep.subr.mxu0 %v6391
    %v6393 = vand.u32 %v39, 4294901760
    %v6394 = vsub.f32 %v39, %v6393
    %v6395 = vand.u32 %v6394, 4294901760
    %v6396 = vsub.f32 %v6394, %v6395
    %v6397 = vand.u32 %v6396, 4294901760
    %6398 = vmatpush1.msra.mxu0 %v6397
    %6399 = vmatprep.subr.mxu0 0.0
    %6400 = vmatpush2.msra.mxu0 0.0
    %6401 = vmatprep.subr.mxu0 0.0
    %6402 = vmatpush2.msra.mxu0 0.0
    %6403 = vmatprep.subr.mxu0 0.0
    %6404 = vmatpush2.msra.mxu0 0.0
    %6405 = vmatprep.subr.mxu0 0.0
    %6406 = vmatpush2.msra.mxu0 0.0
    %6407 = vmatprep.subr.mxu0 0.0
    %6408 = vmatpush2.msra.mxu0 0.0
    %6409 = vmatprep.subr.mxu0 0.0
    %6410 = vmatpush2.msra.mxu0 0.0
    %6411 = vmatprep.subr.mxu0 0.0
    %6412 = vmatpush2.msra.mxu0 0.0
    %6413 = vmatprep.subr.mxu0 0.0
    %6414 = vmatpush2.msra.mxu0 0.0
    %v6415 = vand.u32 %v362, 4294901760
    %v6416 = vsub.f32 %v362, %v6415
    %v6417 = vand.u32 %v6416, 4294901760
    %v6418 = vsub.f32 %v6416, %v6417
    %v6419 = vand.u32 %v6418, 4294901760
    %6420 = vmatprep.subr.mxu0 %v6419
    %v6421 = vand.u32 %v361, 4294901760
    %v6422 = vsub.f32 %v361, %v6421
    %v6423 = vand.u32 %v6422, 4294901760
    %v6424 = vsub.f32 %v6422, %v6423
    %v6425 = vand.u32 %v6424, 4294901760
    %6426 = vmatpush2.msra.mxu0 %v6425
    %v6427 = vand.u32 %v348, 4294901760
    %v6428 = vsub.f32 %v348, %v6427
    %v6429 = vand.u32 %v6428, 4294901760
    %v6430 = vsub.f32 %v6428, %v6429
    %v6431 = vand.u32 %v6430, 4294901760
    %6432 = vmatprep.subr.mxu0 %v6431
    %v6433 = vand.u32 %v347, 4294901760
    %v6434 = vsub.f32 %v347, %v6433
    %v6435 = vand.u32 %v6434, 4294901760
    %v6436 = vsub.f32 %v6434, %v6435
    %v6437 = vand.u32 %v6436, 4294901760
    %6438 = vmatpush2.msra.mxu0 %v6437
    %v6439 = vand.u32 %v334, 4294901760
    %v6440 = vsub.f32 %v334, %v6439
    %v6441 = vand.u32 %v6440, 4294901760
    %v6442 = vsub.f32 %v6440, %v6441
    %v6443 = vand.u32 %v6442, 4294901760
    %6444 = vmatprep.subr.mxu0 %v6443
    %v6445 = vand.u32 %v333, 4294901760
    %v6446 = vsub.f32 %v333, %v6445
    %v6447 = vand.u32 %v6446, 4294901760
    %v6448 = vsub.f32 %v6446, %v6447
    %v6449 = vand.u32 %v6448, 4294901760
    %6450 = vmatpush2.msra.mxu0 %v6449
    %v6451 = vand.u32 %v320, 4294901760
    %v6452 = vsub.f32 %v320, %v6451
    %v6453 = vand.u32 %v6452, 4294901760
    %v6454 = vsub.f32 %v6452, %v6453
    %v6455 = vand.u32 %v6454, 4294901760
    %6456 = vmatprep.subr.mxu0 %v6455
    %v6457 = vand.u32 %v319, 4294901760
    %v6458 = vsub.f32 %v319, %v6457
    %v6459 = vand.u32 %v6458, 4294901760
    %v6460 = vsub.f32 %v6458, %v6459
    %v6461 = vand.u32 %v6460, 4294901760
    %6462 = vmatpush2.msra.mxu0 %v6461
    %v6463 = vand.u32 %v306, 4294901760
    %v6464 = vsub.f32 %v306, %v6463
    %v6465 = vand.u32 %v6464, 4294901760
    %v6466 = vsub.f32 %v6464, %v6465
    %v6467 = vand.u32 %v6466, 4294901760
    %6468 = vmatprep.subr.mxu0 %v6467
    %v6469 = vand.u32 %v305, 4294901760
    %v6470 = vsub.f32 %v305, %v6469
    %v6471 = vand.u32 %v6470, 4294901760
    %v6472 = vsub.f32 %v6470, %v6471
    %v6473 = vand.u32 %v6472, 4294901760
    %6474 = vmatpush2.msra.mxu0 %v6473
    %v6475 = vand.u32 %v292, 4294901760
    %v6476 = vsub.f32 %v292, %v6475
    %v6477 = vand.u32 %v6476, 4294901760
    %v6478 = vsub.f32 %v6476, %v6477
    %v6479 = vand.u32 %v6478, 4294901760
    %6480 = vmatprep.subr.mxu0 %v6479
    %v6481 = vand.u32 %v291, 4294901760
    %v6482 = vsub.f32 %v291, %v6481
    %v6483 = vand.u32 %v6482, 4294901760
    %v6484 = vsub.f32 %v6482, %v6483
    %v6485 = vand.u32 %v6484, 4294901760
    %6486 = vmatpush2.msra.mxu0 %v6485
    %v6487 = vand.u32 %v278, 4294901760
    %v6488 = vsub.f32 %v278, %v6487
    %v6489 = vand.u32 %v6488, 4294901760
    %v6490 = vsub.f32 %v6488, %v6489
    %v6491 = vand.u32 %v6490, 4294901760
    %6492 = vmatprep.subr.mxu0 %v6491
    %v6493 = vand.u32 %v277, 4294901760
    %v6494 = vsub.f32 %v277, %v6493
    %v6495 = vand.u32 %v6494, 4294901760
    %v6496 = vsub.f32 %v6494, %v6495
    %v6497 = vand.u32 %v6496, 4294901760
    %6498 = vmatpush2.msra.mxu0 %v6497
    %v6499 = vand.u32 %v264, 4294901760
    %v6500 = vsub.f32 %v264, %v6499
    %v6501 = vand.u32 %v6500, 4294901760
    %v6502 = vsub.f32 %v6500, %v6501
    %v6503 = vand.u32 %v6502, 4294901760
    %6504 = vmatprep.subr.mxu0 %v6503
    %v6505 = vand.u32 %v263, 4294901760
    %v6506 = vsub.f32 %v263, %v6505
    %v6507 = vand.u32 %v6506, 4294901760
    %v6508 = vsub.f32 %v6506, %v6507
    %v6509 = vand.u32 %v6508, 4294901760
    %6510 = vmatpush2.msra.mxu0 %v6509
    %v6511 = vand.u32 %v367, 4294901760
    %6512 = vmatprep.mubr.f32.mxu0 %v6511
    %v6513 = vand.u32 %v25, 4294901760
    %6514 = vmatmul.mubr.f32.gmra.mxu0 %v6513
    %v6515 = vpop.f32.mrf.mxu0
    %v6516 = vadd.f32 %v6187, %v6515
    %v6517 = vpop.f32.mrf.mxu0
    %v6518 = vadd.f32 %v6189, %v6517
    %v6519 = vand.u32 %v370, 4294901760
    %6520 = vmatprep.mubr.f32.mxu0 %v6519
    %v6521 = vand.u32 %v27, 4294901760
    %6522 = vmatmul.mubr.f32.gmra.mxu0 %v6521
    %v6523 = vpop.f32.mrf.mxu0
    %v6524 = vadd.f32 %v6203, %v6523
    %v6525 = vpop.f32.mrf.mxu0
    %v6526 = vadd.f32 %v6205, %v6525
    %6527 = vdwg.mxu0
    %v6528 = vand.u32 %v250, 4294901760
    %v6529 = vsub.f32 %v250, %v6528
    %6530 = vmatprep.subr.mxu0 %v6529
    %v6531 = vand.u32 %v249, 4294901760
    %v6532 = vsub.f32 %v249, %v6531
    %6533 = vmatpush1.msra.mxu0 %v6532
    %v6534 = vand.u32 %v236, 4294901760
    %v6535 = vsub.f32 %v236, %v6534
    %6536 = vmatprep.subr.mxu0 %v6535
    %v6537 = vand.u32 %v235, 4294901760
    %v6538 = vsub.f32 %v235, %v6537
    %6539 = vmatpush1.msra.mxu0 %v6538
    %v6540 = vand.u32 %v222, 4294901760
    %v6541 = vsub.f32 %v222, %v6540
    %6542 = vmatprep.subr.mxu0 %v6541
    %v6543 = vand.u32 %v221, 4294901760
    %v6544 = vsub.f32 %v221, %v6543
    %6545 = vmatpush1.msra.mxu0 %v6544
    %v6546 = vand.u32 %v208, 4294901760
    %v6547 = vsub.f32 %v208, %v6546
    %6548 = vmatprep.subr.mxu0 %v6547
    %v6549 = vand.u32 %v207, 4294901760
    %v6550 = vsub.f32 %v207, %v6549
    %6551 = vmatpush1.msra.mxu0 %v6550
    %v6552 = vand.u32 %v194, 4294901760
    %v6553 = vsub.f32 %v194, %v6552
    %6554 = vmatprep.subr.mxu0 %v6553
    %v6555 = vand.u32 %v193, 4294901760
    %v6556 = vsub.f32 %v193, %v6555
    %6557 = vmatpush1.msra.mxu0 %v6556
    %v6558 = vand.u32 %v180, 4294901760
    %v6559 = vsub.f32 %v180, %v6558
    %6560 = vmatprep.subr.mxu0 %v6559
    %v6561 = vand.u32 %v179, 4294901760
    %v6562 = vsub.f32 %v179, %v6561
    %6563 = vmatpush1.msra.mxu0 %v6562
    %v6564 = vand.u32 %v166, 4294901760
    %v6565 = vsub.f32 %v166, %v6564
    %6566 = vmatprep.subr.mxu0 %v6565
    %v6567 = vand.u32 %v165, 4294901760
    %v6568 = vsub.f32 %v165, %v6567
    %6569 = vmatpush1.msra.mxu0 %v6568
    %v6570 = vand.u32 %v152, 4294901760
    %v6571 = vsub.f32 %v152, %v6570
    %6572 = vmatprep.subr.mxu0 %v6571
    %v6573 = vand.u32 %v151, 4294901760
    %v6574 = vsub.f32 %v151, %v6573
    %6575 = vmatpush1.msra.mxu0 %v6574
    %v6576 = vand.u32 %v138, 4294901760
    %v6577 = vsub.f32 %v138, %v6576
    %6578 = vmatprep.subr.mxu0 %v6577
    %v6579 = vand.u32 %v137, 4294901760
    %v6580 = vsub.f32 %v137, %v6579
    %6581 = vmatpush1.msra.mxu0 %v6580
    %v6582 = vand.u32 %v124, 4294901760
    %v6583 = vsub.f32 %v124, %v6582
    %6584 = vmatprep.subr.mxu0 %v6583
    %v6585 = vand.u32 %v123, 4294901760
    %v6586 = vsub.f32 %v123, %v6585
    %6587 = vmatpush1.msra.mxu0 %v6586
    %v6588 = vand.u32 %v110, 4294901760
    %v6589 = vsub.f32 %v110, %v6588
    %6590 = vmatprep.subr.mxu0 %v6589
    %v6591 = vand.u32 %v109, 4294901760
    %v6592 = vsub.f32 %v109, %v6591
    %6593 = vmatpush1.msra.mxu0 %v6592
    %v6594 = vand.u32 %v96, 4294901760
    %v6595 = vsub.f32 %v96, %v6594
    %6596 = vmatprep.subr.mxu0 %v6595
    %v6597 = vand.u32 %v95, 4294901760
    %v6598 = vsub.f32 %v95, %v6597
    %6599 = vmatpush1.msra.mxu0 %v6598
    %v6600 = vand.u32 %v82, 4294901760
    %v6601 = vsub.f32 %v82, %v6600
    %6602 = vmatprep.subr.mxu0 %v6601
    %v6603 = vand.u32 %v81, 4294901760
    %v6604 = vsub.f32 %v81, %v6603
    %6605 = vmatpush1.msra.mxu0 %v6604
    %v6606 = vand.u32 %v68, 4294901760
    %v6607 = vsub.f32 %v68, %v6606
    %6608 = vmatprep.subr.mxu0 %v6607
    %v6609 = vand.u32 %v67, 4294901760
    %v6610 = vsub.f32 %v67, %v6609
    %6611 = vmatpush1.msra.mxu0 %v6610
    %v6612 = vand.u32 %v54, 4294901760
    %v6613 = vsub.f32 %v54, %v6612
    %6614 = vmatprep.subr.mxu0 %v6613
    %v6615 = vand.u32 %v53, 4294901760
    %v6616 = vsub.f32 %v53, %v6615
    %6617 = vmatpush1.msra.mxu0 %v6616
    %v6618 = vand.u32 %v40, 4294901760
    %v6619 = vsub.f32 %v40, %v6618
    %6620 = vmatprep.subr.mxu0 %v6619
    %v6621 = vand.u32 %v39, 4294901760
    %v6622 = vsub.f32 %v39, %v6621
    %6623 = vmatpush1.msra.mxu0 %v6622
    %6624 = vmatprep.subr.mxu0 0.0
    %6625 = vmatpush2.msra.mxu0 0.0
    %6626 = vmatprep.subr.mxu0 0.0
    %6627 = vmatpush2.msra.mxu0 0.0
    %6628 = vmatprep.subr.mxu0 0.0
    %6629 = vmatpush2.msra.mxu0 0.0
    %6630 = vmatprep.subr.mxu0 0.0
    %6631 = vmatpush2.msra.mxu0 0.0
    %6632 = vmatprep.subr.mxu0 0.0
    %6633 = vmatpush2.msra.mxu0 0.0
    %6634 = vmatprep.subr.mxu0 0.0
    %6635 = vmatpush2.msra.mxu0 0.0
    %6636 = vmatprep.subr.mxu0 0.0
    %6637 = vmatpush2.msra.mxu0 0.0
    %6638 = vmatprep.subr.mxu0 0.0
    %6639 = vmatpush2.msra.mxu0 0.0
    %v6640 = vand.u32 %v362, 4294901760
    %v6641 = vsub.f32 %v362, %v6640
    %6642 = vmatprep.subr.mxu0 %v6641
    %v6643 = vand.u32 %v361, 4294901760
    %v6644 = vsub.f32 %v361, %v6643
    %6645 = vmatpush2.msra.mxu0 %v6644
    %v6646 = vand.u32 %v348, 4294901760
    %v6647 = vsub.f32 %v348, %v6646
    %6648 = vmatprep.subr.mxu0 %v6647
    %v6649 = vand.u32 %v347, 4294901760
    %v6650 = vsub.f32 %v347, %v6649
    %6651 = vmatpush2.msra.mxu0 %v6650
    %v6652 = vand.u32 %v334, 4294901760
    %v6653 = vsub.f32 %v334, %v6652
    %6654 = vmatprep.subr.mxu0 %v6653
    %v6655 = vand.u32 %v333, 4294901760
    %v6656 = vsub.f32 %v333, %v6655
    %6657 = vmatpush2.msra.mxu0 %v6656
    %v6658 = vand.u32 %v320, 4294901760
    %v6659 = vsub.f32 %v320, %v6658
    %6660 = vmatprep.subr.mxu0 %v6659
    %v6661 = vand.u32 %v319, 4294901760
    %v6662 = vsub.f32 %v319, %v6661
    %6663 = vmatpush2.msra.mxu0 %v6662
    %v6664 = vand.u32 %v306, 4294901760
    %v6665 = vsub.f32 %v306, %v6664
    %6666 = vmatprep.subr.mxu0 %v6665
    %v6667 = vand.u32 %v305, 4294901760
    %v6668 = vsub.f32 %v305, %v6667
    %6669 = vmatpush2.msra.mxu0 %v6668
    %v6670 = vand.u32 %v292, 4294901760
    %v6671 = vsub.f32 %v292, %v6670
    %6672 = vmatprep.subr.mxu0 %v6671
    %v6673 = vand.u32 %v291, 4294901760
    %v6674 = vsub.f32 %v291, %v6673
    %6675 = vmatpush2.msra.mxu0 %v6674
    %v6676 = vand.u32 %v278, 4294901760
    %v6677 = vsub.f32 %v278, %v6676
    %6678 = vmatprep.subr.mxu0 %v6677
    %v6679 = vand.u32 %v277, 4294901760
    %v6680 = vsub.f32 %v277, %v6679
    %6681 = vmatpush2.msra.mxu0 %v6680
    %v6682 = vand.u32 %v264, 4294901760
    %v6683 = vsub.f32 %v264, %v6682
    %6684 = vmatprep.subr.mxu0 %v6683
    %v6685 = vand.u32 %v263, 4294901760
    %v6686 = vsub.f32 %v263, %v6685
    %6687 = vmatpush2.msra.mxu0 %v6686
    %v6688 = vand.u32 %v367, 4294901760
    %v6689 = vsub.f32 %v367, %v6688
    %6690 = vmatprep.mubr.f32.mxu0 %v6689
    %v6691 = vand.u32 %v25, 4294901760
    %v6692 = vsub.f32 %v25, %v6691
    %6693 = vmatmul.mubr.f32.gmra.mxu0 %v6692
    %v6694 = vpop.f32.mrf.mxu0
    %v6695 = vadd.f32 %v6516, %v6694
    %v6696 = vpop.f32.mrf.mxu0
    %v6697 = vadd.f32 %v6518, %v6696
    %v6698 = vand.u32 %v370, 4294901760
    %v6699 = vsub.f32 %v370, %v6698
    %6700 = vmatprep.mubr.f32.mxu0 %v6699
    %v6701 = vand.u32 %v27, 4294901760
    %v6702 = vsub.f32 %v27, %v6701
    %6703 = vmatmul.mubr.f32.gmra.mxu0 %v6702
    %v6704 = vpop.f32.mrf.mxu0
    %v6705 = vadd.f32 %v6524, %v6704
    %v6706 = vpop.f32.mrf.mxu0
    %v6707 = vadd.f32 %v6526, %v6706
    %6708 = vdwg.mxu0
    %v6709 = vand.u32 %v250, 4294901760
    %6710 = vmatprep.subr.mxu0 %v6709
    %v6711 = vand.u32 %v249, 4294901760
    %6712 = vmatpush1.msra.mxu0 %v6711
    %v6713 = vand.u32 %v236, 4294901760
    %6714 = vmatprep.subr.mxu0 %v6713
    %v6715 = vand.u32 %v235, 4294901760
    %6716 = vmatpush1.msra.mxu0 %v6715
    %v6717 = vand.u32 %v222, 4294901760
    %6718 = vmatprep.subr.mxu0 %v6717
    %v6719 = vand.u32 %v221, 4294901760
    %6720 = vmatpush1.msra.mxu0 %v6719
    %v6721 = vand.u32 %v208, 4294901760
    %6722 = vmatprep.subr.mxu0 %v6721
    %v6723 = vand.u32 %v207, 4294901760
    %6724 = vmatpush1.msra.mxu0 %v6723
    %v6725 = vand.u32 %v194, 4294901760
    %6726 = vmatprep.subr.mxu0 %v6725
    %v6727 = vand.u32 %v193, 4294901760
    %6728 = vmatpush1.msra.mxu0 %v6727
    %v6729 = vand.u32 %v180, 4294901760
    %6730 = vmatprep.subr.mxu0 %v6729
    %v6731 = vand.u32 %v179, 4294901760
    %6732 = vmatpush1.msra.mxu0 %v6731
    %v6733 = vand.u32 %v166, 4294901760
    %6734 = vmatprep.subr.mxu0 %v6733
    %v6735 = vand.u32 %v165, 4294901760
    %6736 = vmatpush1.msra.mxu0 %v6735
    %v6737 = vand.u32 %v152, 4294901760
    %6738 = vmatprep.subr.mxu0 %v6737
    %v6739 = vand.u32 %v151, 4294901760
    %6740 = vmatpush1.msra.mxu0 %v6739
    %v6741 = vand.u32 %v138, 4294901760
    %6742 = vmatprep.subr.mxu0 %v6741
    %v6743 = vand.u32 %v137, 4294901760
    %6744 = vmatpush1.msra.mxu0 %v6743
    %v6745 = vand.u32 %v124, 4294901760
    %6746 = vmatprep.subr.mxu0 %v6745
    %v6747 = vand.u32 %v123, 4294901760
    %6748 = vmatpush1.msra.mxu0 %v6747
    %v6749 = vand.u32 %v110, 4294901760
    %6750 = vmatprep.subr.mxu0 %v6749
    %v6751 = vand.u32 %v109, 4294901760
    %6752 = vmatpush1.msra.mxu0 %v6751
    %v6753 = vand.u32 %v96, 4294901760
    %6754 = vmatprep.subr.mxu0 %v6753
    %v6755 = vand.u32 %v95, 4294901760
    %6756 = vmatpush1.msra.mxu0 %v6755
    %v6757 = vand.u32 %v82, 4294901760
    %6758 = vmatprep.subr.mxu0 %v6757
    %v6759 = vand.u32 %v81, 4294901760
    %6760 = vmatpush1.msra.mxu0 %v6759
    %v6761 = vand.u32 %v68, 4294901760
    %6762 = vmatprep.subr.mxu0 %v6761
    %v6763 = vand.u32 %v67, 4294901760
    %6764 = vmatpush1.msra.mxu0 %v6763
    %v6765 = vand.u32 %v54, 4294901760
    %6766 = vmatprep.subr.mxu0 %v6765
    %v6767 = vand.u32 %v53, 4294901760
    %6768 = vmatpush1.msra.mxu0 %v6767
    %v6769 = vand.u32 %v40, 4294901760
    %6770 = vmatprep.subr.mxu0 %v6769
    %v6771 = vand.u32 %v39, 4294901760
    %6772 = vmatpush1.msra.mxu0 %v6771
    %6773 = vmatprep.subr.mxu0 0.0
    %6774 = vmatpush2.msra.mxu0 0.0
    %6775 = vmatprep.subr.mxu0 0.0
    %6776 = vmatpush2.msra.mxu0 0.0
    %6777 = vmatprep.subr.mxu0 0.0
    %6778 = vmatpush2.msra.mxu0 0.0
    %6779 = vmatprep.subr.mxu0 0.0
    %6780 = vmatpush2.msra.mxu0 0.0
    %6781 = vmatprep.subr.mxu0 0.0
    %6782 = vmatpush2.msra.mxu0 0.0
    %6783 = vmatprep.subr.mxu0 0.0
    %6784 = vmatpush2.msra.mxu0 0.0
    %6785 = vmatprep.subr.mxu0 0.0
    %6786 = vmatpush2.msra.mxu0 0.0
    %6787 = vmatprep.subr.mxu0 0.0
    %6788 = vmatpush2.msra.mxu0 0.0
    %v6789 = vand.u32 %v362, 4294901760
    %6790 = vmatprep.subr.mxu0 %v6789
    %v6791 = vand.u32 %v361, 4294901760
    %6792 = vmatpush2.msra.mxu0 %v6791
    %v6793 = vand.u32 %v348, 4294901760
    %6794 = vmatprep.subr.mxu0 %v6793
    %v6795 = vand.u32 %v347, 4294901760
    %6796 = vmatpush2.msra.mxu0 %v6795
    %v6797 = vand.u32 %v334, 4294901760
    %6798 = vmatprep.subr.mxu0 %v6797
    %v6799 = vand.u32 %v333, 4294901760
    %6800 = vmatpush2.msra.mxu0 %v6799
    %v6801 = vand.u32 %v320, 4294901760
    %6802 = vmatprep.subr.mxu0 %v6801
    %v6803 = vand.u32 %v319, 4294901760
    %6804 = vmatpush2.msra.mxu0 %v6803
    %v6805 = vand.u32 %v306, 4294901760
    %6806 = vmatprep.subr.mxu0 %v6805
    %v6807 = vand.u32 %v305, 4294901760
    %6808 = vmatpush2.msra.mxu0 %v6807
    %v6809 = vand.u32 %v292, 4294901760
    %6810 = vmatprep.subr.mxu0 %v6809
    %v6811 = vand.u32 %v291, 4294901760
    %6812 = vmatpush2.msra.mxu0 %v6811
    %v6813 = vand.u32 %v278, 4294901760
    %6814 = vmatprep.subr.mxu0 %v6813
    %v6815 = vand.u32 %v277, 4294901760
    %6816 = vmatpush2.msra.mxu0 %v6815
    %v6817 = vand.u32 %v264, 4294901760
    %6818 = vmatprep.subr.mxu0 %v6817
    %v6819 = vand.u32 %v263, 4294901760
    %6820 = vmatpush2.msra.mxu0 %v6819
    %v6821 = vand.u32 %v367, 4294901760
    %v6822 = vsub.f32 %v367, %v6821
    %v6823 = vand.u32 %v6822, 4294901760
    %6824 = vmatprep.mubr.f32.mxu0 %v6823
    %v6825 = vand.u32 %v25, 4294901760
    %v6826 = vsub.f32 %v25, %v6825
    %v6827 = vand.u32 %v6826, 4294901760
    %6828 = vmatmul.mubr.f32.gmra.mxu0 %v6827
    %v6829 = vpop.f32.mrf.mxu0
    %v6830 = vadd.f32 %v6695, %v6829
    %v6831 = vpop.f32.mrf.mxu0
    %v6832 = vadd.f32 %v6697, %v6831
    %v6833 = vand.u32 %v370, 4294901760
    %v6834 = vsub.f32 %v370, %v6833
    %v6835 = vand.u32 %v6834, 4294901760
    %6836 = vmatprep.mubr.f32.mxu0 %v6835
    %v6837 = vand.u32 %v27, 4294901760
    %v6838 = vsub.f32 %v27, %v6837
    %v6839 = vand.u32 %v6838, 4294901760
    %6840 = vmatmul.mubr.f32.gmra.mxu0 %v6839
    %v6841 = vpop.f32.mrf.mxu0
    %v6842 = vadd.f32 %v6705, %v6841
    %v6843 = vpop.f32.mrf.mxu0
    %v6844 = vadd.f32 %v6707, %v6843
    %6845 = vdwg.mxu0
    %v6846 = vand.u32 %v250, 4294901760
    %v6847 = vsub.f32 %v250, %v6846
    %v6848 = vand.u32 %v6847, 4294901760
    %6849 = vmatprep.subr.mxu0 %v6848
    %v6850 = vand.u32 %v249, 4294901760
    %v6851 = vsub.f32 %v249, %v6850
    %v6852 = vand.u32 %v6851, 4294901760
    %6853 = vmatpush1.msra.mxu0 %v6852
    %v6854 = vand.u32 %v236, 4294901760
    %v6855 = vsub.f32 %v236, %v6854
    %v6856 = vand.u32 %v6855, 4294901760
    %6857 = vmatprep.subr.mxu0 %v6856
    %v6858 = vand.u32 %v235, 4294901760
    %v6859 = vsub.f32 %v235, %v6858
    %v6860 = vand.u32 %v6859, 4294901760
    %6861 = vmatpush1.msra.mxu0 %v6860
    %v6862 = vand.u32 %v222, 4294901760
    %v6863 = vsub.f32 %v222, %v6862
    %v6864 = vand.u32 %v6863, 4294901760
    %6865 = vmatprep.subr.mxu0 %v6864
    %v6866 = vand.u32 %v221, 4294901760
    %v6867 = vsub.f32 %v221, %v6866
    %v6868 = vand.u32 %v6867, 4294901760
    %6869 = vmatpush1.msra.mxu0 %v6868
    %v6870 = vand.u32 %v208, 4294901760
    %v6871 = vsub.f32 %v208, %v6870
    %v6872 = vand.u32 %v6871, 4294901760
    %6873 = vmatprep.subr.mxu0 %v6872
    %v6874 = vand.u32 %v207, 4294901760
    %v6875 = vsub.f32 %v207, %v6874
    %v6876 = vand.u32 %v6875, 4294901760
    %6877 = vmatpush1.msra.mxu0 %v6876
    %v6878 = vand.u32 %v194, 4294901760
    %v6879 = vsub.f32 %v194, %v6878
    %v6880 = vand.u32 %v6879, 4294901760
    %6881 = vmatprep.subr.mxu0 %v6880
    %v6882 = vand.u32 %v193, 4294901760
    %v6883 = vsub.f32 %v193, %v6882
    %v6884 = vand.u32 %v6883, 4294901760
    %6885 = vmatpush1.msra.mxu0 %v6884
    %v6886 = vand.u32 %v180, 4294901760
    %v6887 = vsub.f32 %v180, %v6886
    %v6888 = vand.u32 %v6887, 4294901760
    %6889 = vmatprep.subr.mxu0 %v6888
    %v6890 = vand.u32 %v179, 4294901760
    %v6891 = vsub.f32 %v179, %v6890
    %v6892 = vand.u32 %v6891, 4294901760
    %6893 = vmatpush1.msra.mxu0 %v6892
    %v6894 = vand.u32 %v166, 4294901760
    %v6895 = vsub.f32 %v166, %v6894
    %v6896 = vand.u32 %v6895, 4294901760
    %6897 = vmatprep.subr.mxu0 %v6896
    %v6898 = vand.u32 %v165, 4294901760
    %v6899 = vsub.f32 %v165, %v6898
    %v6900 = vand.u32 %v6899, 4294901760
    %6901 = vmatpush1.msra.mxu0 %v6900
    %v6902 = vand.u32 %v152, 4294901760
    %v6903 = vsub.f32 %v152, %v6902
    %v6904 = vand.u32 %v6903, 4294901760
    %6905 = vmatprep.subr.mxu0 %v6904
    %v6906 = vand.u32 %v151, 4294901760
    %v6907 = vsub.f32 %v151, %v6906
    %v6908 = vand.u32 %v6907, 4294901760
    %6909 = vmatpush1.msra.mxu0 %v6908
    %v6910 = vand.u32 %v138, 4294901760
    %v6911 = vsub.f32 %v138, %v6910
    %v6912 = vand.u32 %v6911, 4294901760
    %6913 = vmatprep.subr.mxu0 %v6912
    %v6914 = vand.u32 %v137, 4294901760
    %v6915 = vsub.f32 %v137, %v6914
    %v6916 = vand.u32 %v6915, 4294901760
    %6917 = vmatpush1.msra.mxu0 %v6916
    %v6918 = vand.u32 %v124, 4294901760
    %v6919 = vsub.f32 %v124, %v6918
    %v6920 = vand.u32 %v6919, 4294901760
    %6921 = vmatprep.subr.mxu0 %v6920
    %v6922 = vand.u32 %v123, 4294901760
    %v6923 = vsub.f32 %v123, %v6922
    %v6924 = vand.u32 %v6923, 4294901760
    %6925 = vmatpush1.msra.mxu0 %v6924
    %v6926 = vand.u32 %v110, 4294901760
    %v6927 = vsub.f32 %v110, %v6926
    %v6928 = vand.u32 %v6927, 4294901760
    %6929 = vmatprep.subr.mxu0 %v6928
    %v6930 = vand.u32 %v109, 4294901760
    %v6931 = vsub.f32 %v109, %v6930
    %v6932 = vand.u32 %v6931, 4294901760
    %6933 = vmatpush1.msra.mxu0 %v6932
    %v6934 = vand.u32 %v96, 4294901760
    %v6935 = vsub.f32 %v96, %v6934
    %v6936 = vand.u32 %v6935, 4294901760
    %6937 = vmatprep.subr.mxu0 %v6936
    %v6938 = vand.u32 %v95, 4294901760
    %v6939 = vsub.f32 %v95, %v6938
    %v6940 = vand.u32 %v6939, 4294901760
    %6941 = vmatpush1.msra.mxu0 %v6940
    %v6942 = vand.u32 %v82, 4294901760
    %v6943 = vsub.f32 %v82, %v6942
    %v6944 = vand.u32 %v6943, 4294901760
    %6945 = vmatprep.subr.mxu0 %v6944
    %v6946 = vand.u32 %v81, 4294901760
    %v6947 = vsub.f32 %v81, %v6946
    %v6948 = vand.u32 %v6947, 4294901760
    %6949 = vmatpush1.msra.mxu0 %v6948
    %v6950 = vand.u32 %v68, 4294901760
    %v6951 = vsub.f32 %v68, %v6950
    %v6952 = vand.u32 %v6951, 4294901760
    %6953 = vmatprep.subr.mxu0 %v6952
    %v6954 = vand.u32 %v67, 4294901760
    %v6955 = vsub.f32 %v67, %v6954
    %v6956 = vand.u32 %v6955, 4294901760
    %6957 = vmatpush1.msra.mxu0 %v6956
    %v6958 = vand.u32 %v54, 4294901760
    %v6959 = vsub.f32 %v54, %v6958
    %v6960 = vand.u32 %v6959, 4294901760
    %6961 = vmatprep.subr.mxu0 %v6960
    %v6962 = vand.u32 %v53, 4294901760
    %v6963 = vsub.f32 %v53, %v6962
    %v6964 = vand.u32 %v6963, 4294901760
    %6965 = vmatpush1.msra.mxu0 %v6964
    %v6966 = vand.u32 %v40, 4294901760
    %v6967 = vsub.f32 %v40, %v6966
    %v6968 = vand.u32 %v6967, 4294901760
    %6969 = vmatprep.subr.mxu0 %v6968
    %v6970 = vand.u32 %v39, 4294901760
    %v6971 = vsub.f32 %v39, %v6970
    %v6972 = vand.u32 %v6971, 4294901760
    %6973 = vmatpush1.msra.mxu0 %v6972
    %6974 = vmatprep.subr.mxu0 0.0
    %6975 = vmatpush2.msra.mxu0 0.0
    %6976 = vmatprep.subr.mxu0 0.0
    %6977 = vmatpush2.msra.mxu0 0.0
    %6978 = vmatprep.subr.mxu0 0.0
    %6979 = vmatpush2.msra.mxu0 0.0
    %6980 = vmatprep.subr.mxu0 0.0
    %6981 = vmatpush2.msra.mxu0 0.0
    %6982 = vmatprep.subr.mxu0 0.0
    %6983 = vmatpush2.msra.mxu0 0.0
    %6984 = vmatprep.subr.mxu0 0.0
    %6985 = vmatpush2.msra.mxu0 0.0
    %6986 = vmatprep.subr.mxu0 0.0
    %6987 = vmatpush2.msra.mxu0 0.0
    %6988 = vmatprep.subr.mxu0 0.0
    %6989 = vmatpush2.msra.mxu0 0.0
    %v6990 = vand.u32 %v362, 4294901760
    %v6991 = vsub.f32 %v362, %v6990
    %v6992 = vand.u32 %v6991, 4294901760
    %6993 = vmatprep.subr.mxu0 %v6992
    %v6994 = vand.u32 %v361, 4294901760
    %v6995 = vsub.f32 %v361, %v6994
    %v6996 = vand.u32 %v6995, 4294901760
    %6997 = vmatpush2.msra.mxu0 %v6996
    %v6998 = vand.u32 %v348, 4294901760
    %v6999 = vsub.f32 %v348, %v6998
    %v7000 = vand.u32 %v6999, 4294901760
    %7001 = vmatprep.subr.mxu0 %v7000
    %v7002 = vand.u32 %v347, 4294901760
    %v7003 = vsub.f32 %v347, %v7002
    %v7004 = vand.u32 %v7003, 4294901760
    %7005 = vmatpush2.msra.mxu0 %v7004
    %v7006 = vand.u32 %v334, 4294901760
    %v7007 = vsub.f32 %v334, %v7006
    %v7008 = vand.u32 %v7007, 4294901760
    %7009 = vmatprep.subr.mxu0 %v7008
    %v7010 = vand.u32 %v333, 4294901760
    %v7011 = vsub.f32 %v333, %v7010
    %v7012 = vand.u32 %v7011, 4294901760
    %7013 = vmatpush2.msra.mxu0 %v7012
    %v7014 = vand.u32 %v320, 4294901760
    %v7015 = vsub.f32 %v320, %v7014
    %v7016 = vand.u32 %v7015, 4294901760
    %7017 = vmatprep.subr.mxu0 %v7016
    %v7018 = vand.u32 %v319, 4294901760
    %v7019 = vsub.f32 %v319, %v7018
    %v7020 = vand.u32 %v7019, 4294901760
    %7021 = vmatpush2.msra.mxu0 %v7020
    %v7022 = vand.u32 %v306, 4294901760
    %v7023 = vsub.f32 %v306, %v7022
    %v7024 = vand.u32 %v7023, 4294901760
    %7025 = vmatprep.subr.mxu0 %v7024
    %v7026 = vand.u32 %v305, 4294901760
    %v7027 = vsub.f32 %v305, %v7026
    %v7028 = vand.u32 %v7027, 4294901760
    %7029 = vmatpush2.msra.mxu0 %v7028
    %v7030 = vand.u32 %v292, 4294901760
    %v7031 = vsub.f32 %v292, %v7030
    %v7032 = vand.u32 %v7031, 4294901760
    %7033 = vmatprep.subr.mxu0 %v7032
    %v7034 = vand.u32 %v291, 4294901760
    %v7035 = vsub.f32 %v291, %v7034
    %v7036 = vand.u32 %v7035, 4294901760
    %7037 = vmatpush2.msra.mxu0 %v7036
    %v7038 = vand.u32 %v278, 4294901760
    %v7039 = vsub.f32 %v278, %v7038
    %v7040 = vand.u32 %v7039, 4294901760
    %7041 = vmatprep.subr.mxu0 %v7040
    %v7042 = vand.u32 %v277, 4294901760
    %v7043 = vsub.f32 %v277, %v7042
    %v7044 = vand.u32 %v7043, 4294901760
    %7045 = vmatpush2.msra.mxu0 %v7044
    %v7046 = vand.u32 %v264, 4294901760
    %v7047 = vsub.f32 %v264, %v7046
    %v7048 = vand.u32 %v7047, 4294901760
    %7049 = vmatprep.subr.mxu0 %v7048
    %v7050 = vand.u32 %v263, 4294901760
    %v7051 = vsub.f32 %v263, %v7050
    %v7052 = vand.u32 %v7051, 4294901760
    %7053 = vmatpush2.msra.mxu0 %v7052
    %v7054 = vand.u32 %v367, 4294901760
    %7055 = vmatprep.mubr.f32.mxu0 %v7054
    %v7056 = vand.u32 %v25, 4294901760
    %7057 = vmatmul.mubr.f32.gmra.mxu0 %v7056
    %v7058 = vpop.f32.mrf.mxu0
    %v7059 = vadd.f32 %v6830, %v7058
    %v7060 = vpop.f32.mrf.mxu0
    %v7061 = vadd.f32 %v6832, %v7060
    %v7062 = vand.u32 %v370, 4294901760
    %7063 = vmatprep.mubr.f32.mxu0 %v7062
    %v7064 = vand.u32 %v27, 4294901760
    %7065 = vmatmul.mubr.f32.gmra.mxu0 %v7064
    %v7066 = vpop.f32.mrf.mxu0
    %v7067 = vadd.f32 %v6842, %v7066
    %v7068 = vpop.f32.mrf.mxu0
    %v7069 = vadd.f32 %v6844, %v7068
    %7070 = vdwg.mxu0
    %v7071 = vand.u32 %v250, 4294901760
    %7072 = vmatprep.subr.mxu0 %v7071
    %v7073 = vand.u32 %v249, 4294901760
    %7074 = vmatpush1.msra.mxu0 %v7073
    %v7075 = vand.u32 %v236, 4294901760
    %7076 = vmatprep.subr.mxu0 %v7075
    %v7077 = vand.u32 %v235, 4294901760
    %7078 = vmatpush1.msra.mxu0 %v7077
    %v7079 = vand.u32 %v222, 4294901760
    %7080 = vmatprep.subr.mxu0 %v7079
    %v7081 = vand.u32 %v221, 4294901760
    %7082 = vmatpush1.msra.mxu0 %v7081
    %v7083 = vand.u32 %v208, 4294901760
    %7084 = vmatprep.subr.mxu0 %v7083
    %v7085 = vand.u32 %v207, 4294901760
    %7086 = vmatpush1.msra.mxu0 %v7085
    %v7087 = vand.u32 %v194, 4294901760
    %7088 = vmatprep.subr.mxu0 %v7087
    %v7089 = vand.u32 %v193, 4294901760
    %7090 = vmatpush1.msra.mxu0 %v7089
    %v7091 = vand.u32 %v180, 4294901760
    %7092 = vmatprep.subr.mxu0 %v7091
    %v7093 = vand.u32 %v179, 4294901760
    %7094 = vmatpush1.msra.mxu0 %v7093
    %v7095 = vand.u32 %v166, 4294901760
    %7096 = vmatprep.subr.mxu0 %v7095
    %v7097 = vand.u32 %v165, 4294901760
    %7098 = vmatpush1.msra.mxu0 %v7097
    %v7099 = vand.u32 %v152, 4294901760
    %7100 = vmatprep.subr.mxu0 %v7099
    %v7101 = vand.u32 %v151, 4294901760
    %7102 = vmatpush1.msra.mxu0 %v7101
    %v7103 = vand.u32 %v138, 4294901760
    %7104 = vmatprep.subr.mxu0 %v7103
    %v7105 = vand.u32 %v137, 4294901760
    %7106 = vmatpush1.msra.mxu0 %v7105
    %v7107 = vand.u32 %v124, 4294901760
    %7108 = vmatprep.subr.mxu0 %v7107
    %v7109 = vand.u32 %v123, 4294901760
    %7110 = vmatpush1.msra.mxu0 %v7109
    %v7111 = vand.u32 %v110, 4294901760
    %7112 = vmatprep.subr.mxu0 %v7111
    %v7113 = vand.u32 %v109, 4294901760
    %7114 = vmatpush1.msra.mxu0 %v7113
    %v7115 = vand.u32 %v96, 4294901760
    %7116 = vmatprep.subr.mxu0 %v7115
    %v7117 = vand.u32 %v95, 4294901760
    %7118 = vmatpush1.msra.mxu0 %v7117
    %v7119 = vand.u32 %v82, 4294901760
    %7120 = vmatprep.subr.mxu0 %v7119
    %v7121 = vand.u32 %v81, 4294901760
    %7122 = vmatpush1.msra.mxu0 %v7121
    %v7123 = vand.u32 %v68, 4294901760
    %7124 = vmatprep.subr.mxu0 %v7123
    %v7125 = vand.u32 %v67, 4294901760
    %7126 = vmatpush1.msra.mxu0 %v7125
    %v7127 = vand.u32 %v54, 4294901760
    %7128 = vmatprep.subr.mxu0 %v7127
    %v7129 = vand.u32 %v53, 4294901760
    %7130 = vmatpush1.msra.mxu0 %v7129
    %v7131 = vand.u32 %v40, 4294901760
    %7132 = vmatprep.subr.mxu0 %v7131
    %v7133 = vand.u32 %v39, 4294901760
    %7134 = vmatpush1.msra.mxu0 %v7133
    %7135 = vmatprep.subr.mxu0 0.0
    %7136 = vmatpush2.msra.mxu0 0.0
    %7137 = vmatprep.subr.mxu0 0.0
    %7138 = vmatpush2.msra.mxu0 0.0
    %7139 = vmatprep.subr.mxu0 0.0
    %7140 = vmatpush2.msra.mxu0 0.0
    %7141 = vmatprep.subr.mxu0 0.0
    %7142 = vmatpush2.msra.mxu0 0.0
    %7143 = vmatprep.subr.mxu0 0.0
    %7144 = vmatpush2.msra.mxu0 0.0
    %7145 = vmatprep.subr.mxu0 0.0
    %7146 = vmatpush2.msra.mxu0 0.0
    %7147 = vmatprep.subr.mxu0 0.0
    %7148 = vmatpush2.msra.mxu0 0.0
    %7149 = vmatprep.subr.mxu0 0.0
    %7150 = vmatpush2.msra.mxu0 0.0
    %v7151 = vand.u32 %v362, 4294901760
    %7152 = vmatprep.subr.mxu0 %v7151
    %v7153 = vand.u32 %v361, 4294901760
    %7154 = vmatpush2.msra.mxu0 %v7153
    %v7155 = vand.u32 %v348, 4294901760
    %7156 = vmatprep.subr.mxu0 %v7155
    %v7157 = vand.u32 %v347, 4294901760
    %7158 = vmatpush2.msra.mxu0 %v7157
    %v7159 = vand.u32 %v334, 4294901760
    %7160 = vmatprep.subr.mxu0 %v7159
    %v7161 = vand.u32 %v333, 4294901760
    %7162 = vmatpush2.msra.mxu0 %v7161
    %v7163 = vand.u32 %v320, 4294901760
    %7164 = vmatprep.subr.mxu0 %v7163
    %v7165 = vand.u32 %v319, 4294901760
    %7166 = vmatpush2.msra.mxu0 %v7165
    %v7167 = vand.u32 %v306, 4294901760
    %7168 = vmatprep.subr.mxu0 %v7167
    %v7169 = vand.u32 %v305, 4294901760
    %7170 = vmatpush2.msra.mxu0 %v7169
    %v7171 = vand.u32 %v292, 4294901760
    %7172 = vmatprep.subr.mxu0 %v7171
    %v7173 = vand.u32 %v291, 4294901760
    %7174 = vmatpush2.msra.mxu0 %v7173
    %v7175 = vand.u32 %v278, 4294901760
    %7176 = vmatprep.subr.mxu0 %v7175
    %v7177 = vand.u32 %v277, 4294901760
    %7178 = vmatpush2.msra.mxu0 %v7177
    %v7179 = vand.u32 %v264, 4294901760
    %7180 = vmatprep.subr.mxu0 %v7179
    %v7181 = vand.u32 %v263, 4294901760
    %7182 = vmatpush2.msra.mxu0 %v7181
    %v7183 = vand.u32 %v367, 4294901760
    %7184 = vmatprep.mubr.f32.mxu0 %v7183
    %v7185 = vand.u32 %v25, 4294901760
    %7186 = vmatmul.mubr.f32.gmra.mxu0 %v7185
    %v7187 = vpop.f32.mrf.mxu0
    %v7188 = vadd.f32 %v7059, %v7187
    %v7189 = vpop.f32.mrf.mxu0
    %v7190 = vadd.f32 %v7061, %v7189
    %v7191 = vand.u32 %v370, 4294901760
    %7192 = vmatprep.mubr.f32.mxu0 %v7191
    %v7193 = vand.u32 %v27, 4294901760
    %7194 = vmatmul.mubr.f32.gmra.mxu0 %v7193
    %v7195 = vpop.f32.mrf.mxu0
    %v7196 = vadd.f32 %v7067, %v7195
    %v7197 = vpop.f32.mrf.mxu0
    %v7198 = vadd.f32 %v7069, %v7197
    %7199 = vdwg.mxu0
    %v7200 = vand.u32 %v252, 4294901760
    %7201 = vmatprep.subr.mxu0 %v7200
    %v7202 = vand.u32 %v251, 4294901760
    %7203 = vmatpush1.msra.mxu0 %v7202
    %v7204 = vand.u32 %v238, 4294901760
    %7205 = vmatprep.subr.mxu0 %v7204
    %v7206 = vand.u32 %v237, 4294901760
    %7207 = vmatpush1.msra.mxu0 %v7206
    %v7208 = vand.u32 %v224, 4294901760
    %7209 = vmatprep.subr.mxu0 %v7208
    %v7210 = vand.u32 %v223, 4294901760
    %7211 = vmatpush1.msra.mxu0 %v7210
    %v7212 = vand.u32 %v210, 4294901760
    %7213 = vmatprep.subr.mxu0 %v7212
    %v7214 = vand.u32 %v209, 4294901760
    %7215 = vmatpush1.msra.mxu0 %v7214
    %v7216 = vand.u32 %v196, 4294901760
    %7217 = vmatprep.subr.mxu0 %v7216
    %v7218 = vand.u32 %v195, 4294901760
    %7219 = vmatpush1.msra.mxu0 %v7218
    %v7220 = vand.u32 %v182, 4294901760
    %7221 = vmatprep.subr.mxu0 %v7220
    %v7222 = vand.u32 %v181, 4294901760
    %7223 = vmatpush1.msra.mxu0 %v7222
    %v7224 = vand.u32 %v168, 4294901760
    %7225 = vmatprep.subr.mxu0 %v7224
    %v7226 = vand.u32 %v167, 4294901760
    %7227 = vmatpush1.msra.mxu0 %v7226
    %v7228 = vand.u32 %v154, 4294901760
    %7229 = vmatprep.subr.mxu0 %v7228
    %v7230 = vand.u32 %v153, 4294901760
    %7231 = vmatpush1.msra.mxu0 %v7230
    %v7232 = vand.u32 %v140, 4294901760
    %7233 = vmatprep.subr.mxu0 %v7232
    %v7234 = vand.u32 %v139, 4294901760
    %7235 = vmatpush1.msra.mxu0 %v7234
    %v7236 = vand.u32 %v126, 4294901760
    %7237 = vmatprep.subr.mxu0 %v7236
    %v7238 = vand.u32 %v125, 4294901760
    %7239 = vmatpush1.msra.mxu0 %v7238
    %v7240 = vand.u32 %v112, 4294901760
    %7241 = vmatprep.subr.mxu0 %v7240
    %v7242 = vand.u32 %v111, 4294901760
    %7243 = vmatpush1.msra.mxu0 %v7242
    %v7244 = vand.u32 %v98, 4294901760
    %7245 = vmatprep.subr.mxu0 %v7244
    %v7246 = vand.u32 %v97, 4294901760
    %7247 = vmatpush1.msra.mxu0 %v7246
    %v7248 = vand.u32 %v84, 4294901760
    %7249 = vmatprep.subr.mxu0 %v7248
    %v7250 = vand.u32 %v83, 4294901760
    %7251 = vmatpush1.msra.mxu0 %v7250
    %v7252 = vand.u32 %v70, 4294901760
    %7253 = vmatprep.subr.mxu0 %v7252
    %v7254 = vand.u32 %v69, 4294901760
    %7255 = vmatpush1.msra.mxu0 %v7254
    %v7256 = vand.u32 %v56, 4294901760
    %7257 = vmatprep.subr.mxu0 %v7256
    %v7258 = vand.u32 %v55, 4294901760
    %7259 = vmatpush1.msra.mxu0 %v7258
    %v7260 = vand.u32 %v42, 4294901760
    %7261 = vmatprep.subr.mxu0 %v7260
    %v7262 = vand.u32 %v41, 4294901760
    %7263 = vmatpush1.msra.mxu0 %v7262
    %7264 = vmatprep.subr.mxu0 0.0
    %7265 = vmatpush2.msra.mxu0 0.0
    %7266 = vmatprep.subr.mxu0 0.0
    %7267 = vmatpush2.msra.mxu0 0.0
    %7268 = vmatprep.subr.mxu0 0.0
    %7269 = vmatpush2.msra.mxu0 0.0
    %7270 = vmatprep.subr.mxu0 0.0
    %7271 = vmatpush2.msra.mxu0 0.0
    %7272 = vmatprep.subr.mxu0 0.0
    %7273 = vmatpush2.msra.mxu0 0.0
    %7274 = vmatprep.subr.mxu0 0.0
    %7275 = vmatpush2.msra.mxu0 0.0
    %7276 = vmatprep.subr.mxu0 0.0
    %7277 = vmatpush2.msra.mxu0 0.0
    %7278 = vmatprep.subr.mxu0 0.0
    %7279 = vmatpush2.msra.mxu0 0.0
    %v7280 = vand.u32 %v364, 4294901760
    %7281 = vmatprep.subr.mxu0 %v7280
    %v7282 = vand.u32 %v363, 4294901760
    %7283 = vmatpush2.msra.mxu0 %v7282
    %v7284 = vand.u32 %v350, 4294901760
    %7285 = vmatprep.subr.mxu0 %v7284
    %v7286 = vand.u32 %v349, 4294901760
    %7287 = vmatpush2.msra.mxu0 %v7286
    %v7288 = vand.u32 %v336, 4294901760
    %7289 = vmatprep.subr.mxu0 %v7288
    %v7290 = vand.u32 %v335, 4294901760
    %7291 = vmatpush2.msra.mxu0 %v7290
    %v7292 = vand.u32 %v322, 4294901760
    %7293 = vmatprep.subr.mxu0 %v7292
    %v7294 = vand.u32 %v321, 4294901760
    %7295 = vmatpush2.msra.mxu0 %v7294
    %v7296 = vand.u32 %v308, 4294901760
    %7297 = vmatprep.subr.mxu0 %v7296
    %v7298 = vand.u32 %v307, 4294901760
    %7299 = vmatpush2.msra.mxu0 %v7298
    %v7300 = vand.u32 %v294, 4294901760
    %7301 = vmatprep.subr.mxu0 %v7300
    %v7302 = vand.u32 %v293, 4294901760
    %7303 = vmatpush2.msra.mxu0 %v7302
    %v7304 = vand.u32 %v280, 4294901760
    %7305 = vmatprep.subr.mxu0 %v7304
    %v7306 = vand.u32 %v279, 4294901760
    %7307 = vmatpush2.msra.mxu0 %v7306
    %v7308 = vand.u32 %v266, 4294901760
    %7309 = vmatprep.subr.mxu0 %v7308
    %v7310 = vand.u32 %v265, 4294901760
    %7311 = vmatpush2.msra.mxu0 %v7310
    %v7312 = vand.u32 %v367, 4294901760
    %v7313 = vsub.f32 %v367, %v7312
    %v7314 = vand.u32 %v7313, 4294901760
    %v7315 = vsub.f32 %v7313, %v7314
    %v7316 = vand.u32 %v7315, 4294901760
    %7317 = vmatprep.mubr.f32.mxu0 %v7316
    %v7318 = vand.u32 %v25, 4294901760
    %v7319 = vsub.f32 %v25, %v7318
    %v7320 = vand.u32 %v7319, 4294901760
    %v7321 = vsub.f32 %v7319, %v7320
    %v7322 = vand.u32 %v7321, 4294901760
    %7323 = vmatmul.mubr.f32.gmra.mxu0 %v7322
    %v7324 = vpop.f32.mrf.mxu0
    %v7325 = vadd.f32 0.0, %v7324
    %v7326 = vpop.f32.mrf.mxu0
    %v7327 = vadd.f32 0.0, %v7326
    %v7328 = vand.u32 %v370, 4294901760
    %v7329 = vsub.f32 %v370, %v7328
    %v7330 = vand.u32 %v7329, 4294901760
    %v7331 = vsub.f32 %v7329, %v7330
    %v7332 = vand.u32 %v7331, 4294901760
    %7333 = vmatprep.mubr.f32.mxu0 %v7332
    %v7334 = vand.u32 %v27, 4294901760
    %v7335 = vsub.f32 %v27, %v7334
    %v7336 = vand.u32 %v7335, 4294901760
    %v7337 = vsub.f32 %v7335, %v7336
    %v7338 = vand.u32 %v7337, 4294901760
    %7339 = vmatmul.mubr.f32.gmra.mxu0 %v7338
    %v7340 = vpop.f32.mrf.mxu0
    %v7341 = vadd.f32 0.0, %v7340
    %v7342 = vpop.f32.mrf.mxu0
    %v7343 = vadd.f32 0.0, %v7342
    %7344 = vdwg.mxu0
    %v7345 = vand.u32 %v252, 4294901760
    %v7346 = vsub.f32 %v252, %v7345
    %v7347 = vand.u32 %v7346, 4294901760
    %v7348 = vsub.f32 %v7346, %v7347
    %v7349 = vand.u32 %v7348, 4294901760
    %7350 = vmatprep.subr.mxu0 %v7349
    %v7351 = vand.u32 %v251, 4294901760
    %v7352 = vsub.f32 %v251, %v7351
    %v7353 = vand.u32 %v7352, 4294901760
    %v7354 = vsub.f32 %v7352, %v7353
    %v7355 = vand.u32 %v7354, 4294901760
    %7356 = vmatpush1.msra.mxu0 %v7355
    %v7357 = vand.u32 %v238, 4294901760
    %v7358 = vsub.f32 %v238, %v7357
    %v7359 = vand.u32 %v7358, 4294901760
    %v7360 = vsub.f32 %v7358, %v7359
    %v7361 = vand.u32 %v7360, 4294901760
    %7362 = vmatprep.subr.mxu0 %v7361
    %v7363 = vand.u32 %v237, 4294901760
    %v7364 = vsub.f32 %v237, %v7363
    %v7365 = vand.u32 %v7364, 4294901760
    %v7366 = vsub.f32 %v7364, %v7365
    %v7367 = vand.u32 %v7366, 4294901760
    %7368 = vmatpush1.msra.mxu0 %v7367
    %v7369 = vand.u32 %v224, 4294901760
    %v7370 = vsub.f32 %v224, %v7369
    %v7371 = vand.u32 %v7370, 4294901760
    %v7372 = vsub.f32 %v7370, %v7371
    %v7373 = vand.u32 %v7372, 4294901760
    %7374 = vmatprep.subr.mxu0 %v7373
    %v7375 = vand.u32 %v223, 4294901760
    %v7376 = vsub.f32 %v223, %v7375
    %v7377 = vand.u32 %v7376, 4294901760
    %v7378 = vsub.f32 %v7376, %v7377
    %v7379 = vand.u32 %v7378, 4294901760
    %7380 = vmatpush1.msra.mxu0 %v7379
    %v7381 = vand.u32 %v210, 4294901760
    %v7382 = vsub.f32 %v210, %v7381
    %v7383 = vand.u32 %v7382, 4294901760
    %v7384 = vsub.f32 %v7382, %v7383
    %v7385 = vand.u32 %v7384, 4294901760
    %7386 = vmatprep.subr.mxu0 %v7385
    %v7387 = vand.u32 %v209, 4294901760
    %v7388 = vsub.f32 %v209, %v7387
    %v7389 = vand.u32 %v7388, 4294901760
    %v7390 = vsub.f32 %v7388, %v7389
    %v7391 = vand.u32 %v7390, 4294901760
    %7392 = vmatpush1.msra.mxu0 %v7391
    %v7393 = vand.u32 %v196, 4294901760
    %v7394 = vsub.f32 %v196, %v7393
    %v7395 = vand.u32 %v7394, 4294901760
    %v7396 = vsub.f32 %v7394, %v7395
    %v7397 = vand.u32 %v7396, 4294901760
    %7398 = vmatprep.subr.mxu0 %v7397
    %v7399 = vand.u32 %v195, 4294901760
    %v7400 = vsub.f32 %v195, %v7399
    %v7401 = vand.u32 %v7400, 4294901760
    %v7402 = vsub.f32 %v7400, %v7401
    %v7403 = vand.u32 %v7402, 4294901760
    %7404 = vmatpush1.msra.mxu0 %v7403
    %v7405 = vand.u32 %v182, 4294901760
    %v7406 = vsub.f32 %v182, %v7405
    %v7407 = vand.u32 %v7406, 4294901760
    %v7408 = vsub.f32 %v7406, %v7407
    %v7409 = vand.u32 %v7408, 4294901760
    %7410 = vmatprep.subr.mxu0 %v7409
    %v7411 = vand.u32 %v181, 4294901760
    %v7412 = vsub.f32 %v181, %v7411
    %v7413 = vand.u32 %v7412, 4294901760
    %v7414 = vsub.f32 %v7412, %v7413
    %v7415 = vand.u32 %v7414, 4294901760
    %7416 = vmatpush1.msra.mxu0 %v7415
    %v7417 = vand.u32 %v168, 4294901760
    %v7418 = vsub.f32 %v168, %v7417
    %v7419 = vand.u32 %v7418, 4294901760
    %v7420 = vsub.f32 %v7418, %v7419
    %v7421 = vand.u32 %v7420, 4294901760
    %7422 = vmatprep.subr.mxu0 %v7421
    %v7423 = vand.u32 %v167, 4294901760
    %v7424 = vsub.f32 %v167, %v7423
    %v7425 = vand.u32 %v7424, 4294901760
    %v7426 = vsub.f32 %v7424, %v7425
    %v7427 = vand.u32 %v7426, 4294901760
    %7428 = vmatpush1.msra.mxu0 %v7427
    %v7429 = vand.u32 %v154, 4294901760
    %v7430 = vsub.f32 %v154, %v7429
    %v7431 = vand.u32 %v7430, 4294901760
    %v7432 = vsub.f32 %v7430, %v7431
    %v7433 = vand.u32 %v7432, 4294901760
    %7434 = vmatprep.subr.mxu0 %v7433
    %v7435 = vand.u32 %v153, 4294901760
    %v7436 = vsub.f32 %v153, %v7435
    %v7437 = vand.u32 %v7436, 4294901760
    %v7438 = vsub.f32 %v7436, %v7437
    %v7439 = vand.u32 %v7438, 4294901760
    %7440 = vmatpush1.msra.mxu0 %v7439
    %v7441 = vand.u32 %v140, 4294901760
    %v7442 = vsub.f32 %v140, %v7441
    %v7443 = vand.u32 %v7442, 4294901760
    %v7444 = vsub.f32 %v7442, %v7443
    %v7445 = vand.u32 %v7444, 4294901760
    %7446 = vmatprep.subr.mxu0 %v7445
    %v7447 = vand.u32 %v139, 4294901760
    %v7448 = vsub.f32 %v139, %v7447
    %v7449 = vand.u32 %v7448, 4294901760
    %v7450 = vsub.f32 %v7448, %v7449
    %v7451 = vand.u32 %v7450, 4294901760
    %7452 = vmatpush1.msra.mxu0 %v7451
    %v7453 = vand.u32 %v126, 4294901760
    %v7454 = vsub.f32 %v126, %v7453
    %v7455 = vand.u32 %v7454, 4294901760
    %v7456 = vsub.f32 %v7454, %v7455
    %v7457 = vand.u32 %v7456, 4294901760
    %7458 = vmatprep.subr.mxu0 %v7457
    %v7459 = vand.u32 %v125, 4294901760
    %v7460 = vsub.f32 %v125, %v7459
    %v7461 = vand.u32 %v7460, 4294901760
    %v7462 = vsub.f32 %v7460, %v7461
    %v7463 = vand.u32 %v7462, 4294901760
    %7464 = vmatpush1.msra.mxu0 %v7463
    %v7465 = vand.u32 %v112, 4294901760
    %v7466 = vsub.f32 %v112, %v7465
    %v7467 = vand.u32 %v7466, 4294901760
    %v7468 = vsub.f32 %v7466, %v7467
    %v7469 = vand.u32 %v7468, 4294901760
    %7470 = vmatprep.subr.mxu0 %v7469
    %v7471 = vand.u32 %v111, 4294901760
    %v7472 = vsub.f32 %v111, %v7471
    %v7473 = vand.u32 %v7472, 4294901760
    %v7474 = vsub.f32 %v7472, %v7473
    %v7475 = vand.u32 %v7474, 4294901760
    %7476 = vmatpush1.msra.mxu0 %v7475
    %v7477 = vand.u32 %v98, 4294901760
    %v7478 = vsub.f32 %v98, %v7477
    %v7479 = vand.u32 %v7478, 4294901760
    %v7480 = vsub.f32 %v7478, %v7479
    %v7481 = vand.u32 %v7480, 4294901760
    %7482 = vmatprep.subr.mxu0 %v7481
    %v7483 = vand.u32 %v97, 4294901760
    %v7484 = vsub.f32 %v97, %v7483
    %v7485 = vand.u32 %v7484, 4294901760
    %v7486 = vsub.f32 %v7484, %v7485
    %v7487 = vand.u32 %v7486, 4294901760
    %7488 = vmatpush1.msra.mxu0 %v7487
    %v7489 = vand.u32 %v84, 4294901760
    %v7490 = vsub.f32 %v84, %v7489
    %v7491 = vand.u32 %v7490, 4294901760
    %v7492 = vsub.f32 %v7490, %v7491
    %v7493 = vand.u32 %v7492, 4294901760
    %7494 = vmatprep.subr.mxu0 %v7493
    %v7495 = vand.u32 %v83, 4294901760
    %v7496 = vsub.f32 %v83, %v7495
    %v7497 = vand.u32 %v7496, 4294901760
    %v7498 = vsub.f32 %v7496, %v7497
    %v7499 = vand.u32 %v7498, 4294901760
    %7500 = vmatpush1.msra.mxu0 %v7499
    %v7501 = vand.u32 %v70, 4294901760
    %v7502 = vsub.f32 %v70, %v7501
    %v7503 = vand.u32 %v7502, 4294901760
    %v7504 = vsub.f32 %v7502, %v7503
    %v7505 = vand.u32 %v7504, 4294901760
    %7506 = vmatprep.subr.mxu0 %v7505
    %v7507 = vand.u32 %v69, 4294901760
    %v7508 = vsub.f32 %v69, %v7507
    %v7509 = vand.u32 %v7508, 4294901760
    %v7510 = vsub.f32 %v7508, %v7509
    %v7511 = vand.u32 %v7510, 4294901760
    %7512 = vmatpush1.msra.mxu0 %v7511
    %v7513 = vand.u32 %v56, 4294901760
    %v7514 = vsub.f32 %v56, %v7513
    %v7515 = vand.u32 %v7514, 4294901760
    %v7516 = vsub.f32 %v7514, %v7515
    %v7517 = vand.u32 %v7516, 4294901760
    %7518 = vmatprep.subr.mxu0 %v7517
    %v7519 = vand.u32 %v55, 4294901760
    %v7520 = vsub.f32 %v55, %v7519
    %v7521 = vand.u32 %v7520, 4294901760
    %v7522 = vsub.f32 %v7520, %v7521
    %v7523 = vand.u32 %v7522, 4294901760
    %7524 = vmatpush1.msra.mxu0 %v7523
    %v7525 = vand.u32 %v42, 4294901760
    %v7526 = vsub.f32 %v42, %v7525
    %v7527 = vand.u32 %v7526, 4294901760
    %v7528 = vsub.f32 %v7526, %v7527
    %v7529 = vand.u32 %v7528, 4294901760
    %7530 = vmatprep.subr.mxu0 %v7529
    %v7531 = vand.u32 %v41, 4294901760
    %v7532 = vsub.f32 %v41, %v7531
    %v7533 = vand.u32 %v7532, 4294901760
    %v7534 = vsub.f32 %v7532, %v7533
    %v7535 = vand.u32 %v7534, 4294901760
    %7536 = vmatpush1.msra.mxu0 %v7535
    %7537 = vmatprep.subr.mxu0 0.0
    %7538 = vmatpush2.msra.mxu0 0.0
    %7539 = vmatprep.subr.mxu0 0.0
    %7540 = vmatpush2.msra.mxu0 0.0
    %7541 = vmatprep.subr.mxu0 0.0
    %7542 = vmatpush2.msra.mxu0 0.0
    %7543 = vmatprep.subr.mxu0 0.0
    %7544 = vmatpush2.msra.mxu0 0.0
    %7545 = vmatprep.subr.mxu0 0.0
    %7546 = vmatpush2.msra.mxu0 0.0
    %7547 = vmatprep.subr.mxu0 0.0
    %7548 = vmatpush2.msra.mxu0 0.0
    %7549 = vmatprep.subr.mxu0 0.0
    %7550 = vmatpush2.msra.mxu0 0.0
    %7551 = vmatprep.subr.mxu0 0.0
    %7552 = vmatpush2.msra.mxu0 0.0
    %v7553 = vand.u32 %v364, 4294901760
    %v7554 = vsub.f32 %v364, %v7553
    %v7555 = vand.u32 %v7554, 4294901760
    %v7556 = vsub.f32 %v7554, %v7555
    %v7557 = vand.u32 %v7556, 4294901760
    %7558 = vmatprep.subr.mxu0 %v7557
    %v7559 = vand.u32 %v363, 4294901760
    %v7560 = vsub.f32 %v363, %v7559
    %v7561 = vand.u32 %v7560, 4294901760
    %v7562 = vsub.f32 %v7560, %v7561
    %v7563 = vand.u32 %v7562, 4294901760
    %7564 = vmatpush2.msra.mxu0 %v7563
    %v7565 = vand.u32 %v350, 4294901760
    %v7566 = vsub.f32 %v350, %v7565
    %v7567 = vand.u32 %v7566, 4294901760
    %v7568 = vsub.f32 %v7566, %v7567
    %v7569 = vand.u32 %v7568, 4294901760
    %7570 = vmatprep.subr.mxu0 %v7569
    %v7571 = vand.u32 %v349, 4294901760
    %v7572 = vsub.f32 %v349, %v7571
    %v7573 = vand.u32 %v7572, 4294901760
    %v7574 = vsub.f32 %v7572, %v7573
    %v7575 = vand.u32 %v7574, 4294901760
    %7576 = vmatpush2.msra.mxu0 %v7575
    %v7577 = vand.u32 %v336, 4294901760
    %v7578 = vsub.f32 %v336, %v7577
    %v7579 = vand.u32 %v7578, 4294901760
    %v7580 = vsub.f32 %v7578, %v7579
    %v7581 = vand.u32 %v7580, 4294901760
    %7582 = vmatprep.subr.mxu0 %v7581
    %v7583 = vand.u32 %v335, 4294901760
    %v7584 = vsub.f32 %v335, %v7583
    %v7585 = vand.u32 %v7584, 4294901760
    %v7586 = vsub.f32 %v7584, %v7585
    %v7587 = vand.u32 %v7586, 4294901760
    %7588 = vmatpush2.msra.mxu0 %v7587
    %v7589 = vand.u32 %v322, 4294901760
    %v7590 = vsub.f32 %v322, %v7589
    %v7591 = vand.u32 %v7590, 4294901760
    %v7592 = vsub.f32 %v7590, %v7591
    %v7593 = vand.u32 %v7592, 4294901760
    %7594 = vmatprep.subr.mxu0 %v7593
    %v7595 = vand.u32 %v321, 4294901760
    %v7596 = vsub.f32 %v321, %v7595
    %v7597 = vand.u32 %v7596, 4294901760
    %v7598 = vsub.f32 %v7596, %v7597
    %v7599 = vand.u32 %v7598, 4294901760
    %7600 = vmatpush2.msra.mxu0 %v7599
    %v7601 = vand.u32 %v308, 4294901760
    %v7602 = vsub.f32 %v308, %v7601
    %v7603 = vand.u32 %v7602, 4294901760
    %v7604 = vsub.f32 %v7602, %v7603
    %v7605 = vand.u32 %v7604, 4294901760
    %7606 = vmatprep.subr.mxu0 %v7605
    %v7607 = vand.u32 %v307, 4294901760
    %v7608 = vsub.f32 %v307, %v7607
    %v7609 = vand.u32 %v7608, 4294901760
    %v7610 = vsub.f32 %v7608, %v7609
    %v7611 = vand.u32 %v7610, 4294901760
    %7612 = vmatpush2.msra.mxu0 %v7611
    %v7613 = vand.u32 %v294, 4294901760
    %v7614 = vsub.f32 %v294, %v7613
    %v7615 = vand.u32 %v7614, 4294901760
    %v7616 = vsub.f32 %v7614, %v7615
    %v7617 = vand.u32 %v7616, 4294901760
    %7618 = vmatprep.subr.mxu0 %v7617
    %v7619 = vand.u32 %v293, 4294901760
    %v7620 = vsub.f32 %v293, %v7619
    %v7621 = vand.u32 %v7620, 4294901760
    %v7622 = vsub.f32 %v7620, %v7621
    %v7623 = vand.u32 %v7622, 4294901760
    %7624 = vmatpush2.msra.mxu0 %v7623
    %v7625 = vand.u32 %v280, 4294901760
    %v7626 = vsub.f32 %v280, %v7625
    %v7627 = vand.u32 %v7626, 4294901760
    %v7628 = vsub.f32 %v7626, %v7627
    %v7629 = vand.u32 %v7628, 4294901760
    %7630 = vmatprep.subr.mxu0 %v7629
    %v7631 = vand.u32 %v279, 4294901760
    %v7632 = vsub.f32 %v279, %v7631
    %v7633 = vand.u32 %v7632, 4294901760
    %v7634 = vsub.f32 %v7632, %v7633
    %v7635 = vand.u32 %v7634, 4294901760
    %7636 = vmatpush2.msra.mxu0 %v7635
    %v7637 = vand.u32 %v266, 4294901760
    %v7638 = vsub.f32 %v266, %v7637
    %v7639 = vand.u32 %v7638, 4294901760
    %v7640 = vsub.f32 %v7638, %v7639
    %v7641 = vand.u32 %v7640, 4294901760
    %7642 = vmatprep.subr.mxu0 %v7641
    %v7643 = vand.u32 %v265, 4294901760
    %v7644 = vsub.f32 %v265, %v7643
    %v7645 = vand.u32 %v7644, 4294901760
    %v7646 = vsub.f32 %v7644, %v7645
    %v7647 = vand.u32 %v7646, 4294901760
    %7648 = vmatpush2.msra.mxu0 %v7647
    %v7649 = vand.u32 %v367, 4294901760
    %7650 = vmatprep.mubr.f32.mxu0 %v7649
    %v7651 = vand.u32 %v25, 4294901760
    %7652 = vmatmul.mubr.f32.gmra.mxu0 %v7651
    %v7653 = vpop.f32.mrf.mxu0
    %v7654 = vadd.f32 %v7325, %v7653
    %v7655 = vpop.f32.mrf.mxu0
    %v7656 = vadd.f32 %v7327, %v7655
    %v7657 = vand.u32 %v370, 4294901760
    %7658 = vmatprep.mubr.f32.mxu0 %v7657
    %v7659 = vand.u32 %v27, 4294901760
    %7660 = vmatmul.mubr.f32.gmra.mxu0 %v7659
    %v7661 = vpop.f32.mrf.mxu0
    %v7662 = vadd.f32 %v7341, %v7661
    %v7663 = vpop.f32.mrf.mxu0
    %v7664 = vadd.f32 %v7343, %v7663
    %7665 = vdwg.mxu0
    %v7666 = vand.u32 %v252, 4294901760
    %v7667 = vsub.f32 %v252, %v7666
    %7668 = vmatprep.subr.mxu0 %v7667
    %v7669 = vand.u32 %v251, 4294901760
    %v7670 = vsub.f32 %v251, %v7669
    %7671 = vmatpush1.msra.mxu0 %v7670
    %v7672 = vand.u32 %v238, 4294901760
    %v7673 = vsub.f32 %v238, %v7672
    %7674 = vmatprep.subr.mxu0 %v7673
    %v7675 = vand.u32 %v237, 4294901760
    %v7676 = vsub.f32 %v237, %v7675
    %7677 = vmatpush1.msra.mxu0 %v7676
    %v7678 = vand.u32 %v224, 4294901760
    %v7679 = vsub.f32 %v224, %v7678
    %7680 = vmatprep.subr.mxu0 %v7679
    %v7681 = vand.u32 %v223, 4294901760
    %v7682 = vsub.f32 %v223, %v7681
    %7683 = vmatpush1.msra.mxu0 %v7682
    %v7684 = vand.u32 %v210, 4294901760
    %v7685 = vsub.f32 %v210, %v7684
    %7686 = vmatprep.subr.mxu0 %v7685
    %v7687 = vand.u32 %v209, 4294901760
    %v7688 = vsub.f32 %v209, %v7687
    %7689 = vmatpush1.msra.mxu0 %v7688
    %v7690 = vand.u32 %v196, 4294901760
    %v7691 = vsub.f32 %v196, %v7690
    %7692 = vmatprep.subr.mxu0 %v7691
    %v7693 = vand.u32 %v195, 4294901760
    %v7694 = vsub.f32 %v195, %v7693
    %7695 = vmatpush1.msra.mxu0 %v7694
    %v7696 = vand.u32 %v182, 4294901760
    %v7697 = vsub.f32 %v182, %v7696
    %7698 = vmatprep.subr.mxu0 %v7697
    %v7699 = vand.u32 %v181, 4294901760
    %v7700 = vsub.f32 %v181, %v7699
    %7701 = vmatpush1.msra.mxu0 %v7700
    %v7702 = vand.u32 %v168, 4294901760
    %v7703 = vsub.f32 %v168, %v7702
    %7704 = vmatprep.subr.mxu0 %v7703
    %v7705 = vand.u32 %v167, 4294901760
    %v7706 = vsub.f32 %v167, %v7705
    %7707 = vmatpush1.msra.mxu0 %v7706
    %v7708 = vand.u32 %v154, 4294901760
    %v7709 = vsub.f32 %v154, %v7708
    %7710 = vmatprep.subr.mxu0 %v7709
    %v7711 = vand.u32 %v153, 4294901760
    %v7712 = vsub.f32 %v153, %v7711
    %7713 = vmatpush1.msra.mxu0 %v7712
    %v7714 = vand.u32 %v140, 4294901760
    %v7715 = vsub.f32 %v140, %v7714
    %7716 = vmatprep.subr.mxu0 %v7715
    %v7717 = vand.u32 %v139, 4294901760
    %v7718 = vsub.f32 %v139, %v7717
    %7719 = vmatpush1.msra.mxu0 %v7718
    %v7720 = vand.u32 %v126, 4294901760
    %v7721 = vsub.f32 %v126, %v7720
    %7722 = vmatprep.subr.mxu0 %v7721
    %v7723 = vand.u32 %v125, 4294901760
    %v7724 = vsub.f32 %v125, %v7723
    %7725 = vmatpush1.msra.mxu0 %v7724
    %v7726 = vand.u32 %v112, 4294901760
    %v7727 = vsub.f32 %v112, %v7726
    %7728 = vmatprep.subr.mxu0 %v7727
    %v7729 = vand.u32 %v111, 4294901760
    %v7730 = vsub.f32 %v111, %v7729
    %7731 = vmatpush1.msra.mxu0 %v7730
    %v7732 = vand.u32 %v98, 4294901760
    %v7733 = vsub.f32 %v98, %v7732
    %7734 = vmatprep.subr.mxu0 %v7733
    %v7735 = vand.u32 %v97, 4294901760
    %v7736 = vsub.f32 %v97, %v7735
    %7737 = vmatpush1.msra.mxu0 %v7736
    %v7738 = vand.u32 %v84, 4294901760
    %v7739 = vsub.f32 %v84, %v7738
    %7740 = vmatprep.subr.mxu0 %v7739
    %v7741 = vand.u32 %v83, 4294901760
    %v7742 = vsub.f32 %v83, %v7741
    %7743 = vmatpush1.msra.mxu0 %v7742
    %v7744 = vand.u32 %v70, 4294901760
    %v7745 = vsub.f32 %v70, %v7744
    %7746 = vmatprep.subr.mxu0 %v7745
    %v7747 = vand.u32 %v69, 4294901760
    %v7748 = vsub.f32 %v69, %v7747
    %7749 = vmatpush1.msra.mxu0 %v7748
    %v7750 = vand.u32 %v56, 4294901760
    %v7751 = vsub.f32 %v56, %v7750
    %7752 = vmatprep.subr.mxu0 %v7751
    %v7753 = vand.u32 %v55, 4294901760
    %v7754 = vsub.f32 %v55, %v7753
    %7755 = vmatpush1.msra.mxu0 %v7754
    %v7756 = vand.u32 %v42, 4294901760
    %v7757 = vsub.f32 %v42, %v7756
    %7758 = vmatprep.subr.mxu0 %v7757
    %v7759 = vand.u32 %v41, 4294901760
    %v7760 = vsub.f32 %v41, %v7759
    %7761 = vmatpush1.msra.mxu0 %v7760
    %7762 = vmatprep.subr.mxu0 0.0
    %7763 = vmatpush2.msra.mxu0 0.0
    %7764 = vmatprep.subr.mxu0 0.0
    %7765 = vmatpush2.msra.mxu0 0.0
    %7766 = vmatprep.subr.mxu0 0.0
    %7767 = vmatpush2.msra.mxu0 0.0
    %7768 = vmatprep.subr.mxu0 0.0
    %7769 = vmatpush2.msra.mxu0 0.0
    %7770 = vmatprep.subr.mxu0 0.0
    %7771 = vmatpush2.msra.mxu0 0.0
    %7772 = vmatprep.subr.mxu0 0.0
    %7773 = vmatpush2.msra.mxu0 0.0
    %7774 = vmatprep.subr.mxu0 0.0
    %7775 = vmatpush2.msra.mxu0 0.0
    %7776 = vmatprep.subr.mxu0 0.0
    %7777 = vmatpush2.msra.mxu0 0.0
    %v7778 = vand.u32 %v364, 4294901760
    %v7779 = vsub.f32 %v364, %v7778
    %7780 = vmatprep.subr.mxu0 %v7779
    %v7781 = vand.u32 %v363, 4294901760
    %v7782 = vsub.f32 %v363, %v7781
    %7783 = vmatpush2.msra.mxu0 %v7782
    %v7784 = vand.u32 %v350, 4294901760
    %v7785 = vsub.f32 %v350, %v7784
    %7786 = vmatprep.subr.mxu0 %v7785
    %v7787 = vand.u32 %v349, 4294901760
    %v7788 = vsub.f32 %v349, %v7787
    %7789 = vmatpush2.msra.mxu0 %v7788
    %v7790 = vand.u32 %v336, 4294901760
    %v7791 = vsub.f32 %v336, %v7790
    %7792 = vmatprep.subr.mxu0 %v7791
    %v7793 = vand.u32 %v335, 4294901760
    %v7794 = vsub.f32 %v335, %v7793
    %7795 = vmatpush2.msra.mxu0 %v7794
    %v7796 = vand.u32 %v322, 4294901760
    %v7797 = vsub.f32 %v322, %v7796
    %7798 = vmatprep.subr.mxu0 %v7797
    %v7799 = vand.u32 %v321, 4294901760
    %v7800 = vsub.f32 %v321, %v7799
    %7801 = vmatpush2.msra.mxu0 %v7800
    %v7802 = vand.u32 %v308, 4294901760
    %v7803 = vsub.f32 %v308, %v7802
    %7804 = vmatprep.subr.mxu0 %v7803
    %v7805 = vand.u32 %v307, 4294901760
    %v7806 = vsub.f32 %v307, %v7805
    %7807 = vmatpush2.msra.mxu0 %v7806
    %v7808 = vand.u32 %v294, 4294901760
    %v7809 = vsub.f32 %v294, %v7808
    %7810 = vmatprep.subr.mxu0 %v7809
    %v7811 = vand.u32 %v293, 4294901760
    %v7812 = vsub.f32 %v293, %v7811
    %7813 = vmatpush2.msra.mxu0 %v7812
    %v7814 = vand.u32 %v280, 4294901760
    %v7815 = vsub.f32 %v280, %v7814
    %7816 = vmatprep.subr.mxu0 %v7815
    %v7817 = vand.u32 %v279, 4294901760
    %v7818 = vsub.f32 %v279, %v7817
    %7819 = vmatpush2.msra.mxu0 %v7818
    %v7820 = vand.u32 %v266, 4294901760
    %v7821 = vsub.f32 %v266, %v7820
    %7822 = vmatprep.subr.mxu0 %v7821
    %v7823 = vand.u32 %v265, 4294901760
    %v7824 = vsub.f32 %v265, %v7823
    %7825 = vmatpush2.msra.mxu0 %v7824
    %v7826 = vand.u32 %v367, 4294901760
    %v7827 = vsub.f32 %v367, %v7826
    %7828 = vmatprep.mubr.f32.mxu0 %v7827
    %v7829 = vand.u32 %v25, 4294901760
    %v7830 = vsub.f32 %v25, %v7829
    %7831 = vmatmul.mubr.f32.gmra.mxu0 %v7830
    %v7832 = vpop.f32.mrf.mxu0
    %v7833 = vadd.f32 %v7654, %v7832
    %v7834 = vpop.f32.mrf.mxu0
    %v7835 = vadd.f32 %v7656, %v7834
    %v7836 = vand.u32 %v370, 4294901760
    %v7837 = vsub.f32 %v370, %v7836
    %7838 = vmatprep.mubr.f32.mxu0 %v7837
    %v7839 = vand.u32 %v27, 4294901760
    %v7840 = vsub.f32 %v27, %v7839
    %7841 = vmatmul.mubr.f32.gmra.mxu0 %v7840
    %v7842 = vpop.f32.mrf.mxu0
    %v7843 = vadd.f32 %v7662, %v7842
    %v7844 = vpop.f32.mrf.mxu0
    %v7845 = vadd.f32 %v7664, %v7844
    %7846 = vdwg.mxu0
    %v7847 = vand.u32 %v252, 4294901760
    %7848 = vmatprep.subr.mxu0 %v7847
    %v7849 = vand.u32 %v251, 4294901760
    %7850 = vmatpush1.msra.mxu0 %v7849
    %v7851 = vand.u32 %v238, 4294901760
    %7852 = vmatprep.subr.mxu0 %v7851
    %v7853 = vand.u32 %v237, 4294901760
    %7854 = vmatpush1.msra.mxu0 %v7853
    %v7855 = vand.u32 %v224, 4294901760
    %7856 = vmatprep.subr.mxu0 %v7855
    %v7857 = vand.u32 %v223, 4294901760
    %7858 = vmatpush1.msra.mxu0 %v7857
    %v7859 = vand.u32 %v210, 4294901760
    %7860 = vmatprep.subr.mxu0 %v7859
    %v7861 = vand.u32 %v209, 4294901760
    %7862 = vmatpush1.msra.mxu0 %v7861
    %v7863 = vand.u32 %v196, 4294901760
    %7864 = vmatprep.subr.mxu0 %v7863
    %v7865 = vand.u32 %v195, 4294901760
    %7866 = vmatpush1.msra.mxu0 %v7865
    %v7867 = vand.u32 %v182, 4294901760
    %7868 = vmatprep.subr.mxu0 %v7867
    %v7869 = vand.u32 %v181, 4294901760
    %7870 = vmatpush1.msra.mxu0 %v7869
    %v7871 = vand.u32 %v168, 4294901760
    %7872 = vmatprep.subr.mxu0 %v7871
    %v7873 = vand.u32 %v167, 4294901760
    %7874 = vmatpush1.msra.mxu0 %v7873
    %v7875 = vand.u32 %v154, 4294901760
    %7876 = vmatprep.subr.mxu0 %v7875
    %v7877 = vand.u32 %v153, 4294901760
    %7878 = vmatpush1.msra.mxu0 %v7877
    %v7879 = vand.u32 %v140, 4294901760
    %7880 = vmatprep.subr.mxu0 %v7879
    %v7881 = vand.u32 %v139, 4294901760
    %7882 = vmatpush1.msra.mxu0 %v7881
    %v7883 = vand.u32 %v126, 4294901760
    %7884 = vmatprep.subr.mxu0 %v7883
    %v7885 = vand.u32 %v125, 4294901760
    %7886 = vmatpush1.msra.mxu0 %v7885
    %v7887 = vand.u32 %v112, 4294901760
    %7888 = vmatprep.subr.mxu0 %v7887
    %v7889 = vand.u32 %v111, 4294901760
    %7890 = vmatpush1.msra.mxu0 %v7889
    %v7891 = vand.u32 %v98, 4294901760
    %7892 = vmatprep.subr.mxu0 %v7891
    %v7893 = vand.u32 %v97, 4294901760
    %7894 = vmatpush1.msra.mxu0 %v7893
    %v7895 = vand.u32 %v84, 4294901760
    %7896 = vmatprep.subr.mxu0 %v7895
    %v7897 = vand.u32 %v83, 4294901760
    %7898 = vmatpush1.msra.mxu0 %v7897
    %v7899 = vand.u32 %v70, 4294901760
    %7900 = vmatprep.subr.mxu0 %v7899
    %v7901 = vand.u32 %v69, 4294901760
    %7902 = vmatpush1.msra.mxu0 %v7901
    %v7903 = vand.u32 %v56, 4294901760
    %7904 = vmatprep.subr.mxu0 %v7903
    %v7905 = vand.u32 %v55, 4294901760
    %7906 = vmatpush1.msra.mxu0 %v7905
    %v7907 = vand.u32 %v42, 4294901760
    %7908 = vmatprep.subr.mxu0 %v7907
    %v7909 = vand.u32 %v41, 4294901760
    %7910 = vmatpush1.msra.mxu0 %v7909
    %7911 = vmatprep.subr.mxu0 0.0
    %7912 = vmatpush2.msra.mxu0 0.0
    %7913 = vmatprep.subr.mxu0 0.0
    %7914 = vmatpush2.msra.mxu0 0.0
    %7915 = vmatprep.subr.mxu0 0.0
    %7916 = vmatpush2.msra.mxu0 0.0
    %7917 = vmatprep.subr.mxu0 0.0
    %7918 = vmatpush2.msra.mxu0 0.0
    %7919 = vmatprep.subr.mxu0 0.0
    %7920 = vmatpush2.msra.mxu0 0.0
    %7921 = vmatprep.subr.mxu0 0.0
    %7922 = vmatpush2.msra.mxu0 0.0
    %7923 = vmatprep.subr.mxu0 0.0
    %7924 = vmatpush2.msra.mxu0 0.0
    %7925 = vmatprep.subr.mxu0 0.0
    %7926 = vmatpush2.msra.mxu0 0.0
    %v7927 = vand.u32 %v364, 4294901760
    %7928 = vmatprep.subr.mxu0 %v7927
    %v7929 = vand.u32 %v363, 4294901760
    %7930 = vmatpush2.msra.mxu0 %v7929
    %v7931 = vand.u32 %v350, 4294901760
    %7932 = vmatprep.subr.mxu0 %v7931
    %v7933 = vand.u32 %v349, 4294901760
    %7934 = vmatpush2.msra.mxu0 %v7933
    %v7935 = vand.u32 %v336, 4294901760
    %7936 = vmatprep.subr.mxu0 %v7935
    %v7937 = vand.u32 %v335, 4294901760
    %7938 = vmatpush2.msra.mxu0 %v7937
    %v7939 = vand.u32 %v322, 4294901760
    %7940 = vmatprep.subr.mxu0 %v7939
    %v7941 = vand.u32 %v321, 4294901760
    %7942 = vmatpush2.msra.mxu0 %v7941
    %v7943 = vand.u32 %v308, 4294901760
    %7944 = vmatprep.subr.mxu0 %v7943
    %v7945 = vand.u32 %v307, 4294901760
    %7946 = vmatpush2.msra.mxu0 %v7945
    %v7947 = vand.u32 %v294, 4294901760
    %7948 = vmatprep.subr.mxu0 %v7947
    %v7949 = vand.u32 %v293, 4294901760
    %7950 = vmatpush2.msra.mxu0 %v7949
    %v7951 = vand.u32 %v280, 4294901760
    %7952 = vmatprep.subr.mxu0 %v7951
    %v7953 = vand.u32 %v279, 4294901760
    %7954 = vmatpush2.msra.mxu0 %v7953
    %v7955 = vand.u32 %v266, 4294901760
    %7956 = vmatprep.subr.mxu0 %v7955
    %v7957 = vand.u32 %v265, 4294901760
    %7958 = vmatpush2.msra.mxu0 %v7957
    %v7959 = vand.u32 %v367, 4294901760
    %v7960 = vsub.f32 %v367, %v7959
    %v7961 = vand.u32 %v7960, 4294901760
    %7962 = vmatprep.mubr.f32.mxu0 %v7961
    %v7963 = vand.u32 %v25, 4294901760
    %v7964 = vsub.f32 %v25, %v7963
    %v7965 = vand.u32 %v7964, 4294901760
    %7966 = vmatmul.mubr.f32.gmra.mxu0 %v7965
    %v7967 = vpop.f32.mrf.mxu0
    %v7968 = vadd.f32 %v7833, %v7967
    %v7969 = vpop.f32.mrf.mxu0
    %v7970 = vadd.f32 %v7835, %v7969
    %v7971 = vand.u32 %v370, 4294901760
    %v7972 = vsub.f32 %v370, %v7971
    %v7973 = vand.u32 %v7972, 4294901760
    %7974 = vmatprep.mubr.f32.mxu0 %v7973
    %v7975 = vand.u32 %v27, 4294901760
    %v7976 = vsub.f32 %v27, %v7975
    %v7977 = vand.u32 %v7976, 4294901760
    %7978 = vmatmul.mubr.f32.gmra.mxu0 %v7977
    %v7979 = vpop.f32.mrf.mxu0
    %v7980 = vadd.f32 %v7843, %v7979
    %v7981 = vpop.f32.mrf.mxu0
    %v7982 = vadd.f32 %v7845, %v7981
    %7983 = vdwg.mxu0
    %v7984 = vand.u32 %v252, 4294901760
    %v7985 = vsub.f32 %v252, %v7984
    %v7986 = vand.u32 %v7985, 4294901760
    %7987 = vmatprep.subr.mxu0 %v7986
    %v7988 = vand.u32 %v251, 4294901760
    %v7989 = vsub.f32 %v251, %v7988
    %v7990 = vand.u32 %v7989, 4294901760
    %7991 = vmatpush1.msra.mxu0 %v7990
    %v7992 = vand.u32 %v238, 4294901760
    %v7993 = vsub.f32 %v238, %v7992
    %v7994 = vand.u32 %v7993, 4294901760
    %7995 = vmatprep.subr.mxu0 %v7994
    %v7996 = vand.u32 %v237, 4294901760
    %v7997 = vsub.f32 %v237, %v7996
    %v7998 = vand.u32 %v7997, 4294901760
    %7999 = vmatpush1.msra.mxu0 %v7998
    %v8000 = vand.u32 %v224, 4294901760
    %v8001 = vsub.f32 %v224, %v8000
    %v8002 = vand.u32 %v8001, 4294901760
    %8003 = vmatprep.subr.mxu0 %v8002
    %v8004 = vand.u32 %v223, 4294901760
    %v8005 = vsub.f32 %v223, %v8004
    %v8006 = vand.u32 %v8005, 4294901760
    %8007 = vmatpush1.msra.mxu0 %v8006
    %v8008 = vand.u32 %v210, 4294901760
    %v8009 = vsub.f32 %v210, %v8008
    %v8010 = vand.u32 %v8009, 4294901760
    %8011 = vmatprep.subr.mxu0 %v8010
    %v8012 = vand.u32 %v209, 4294901760
    %v8013 = vsub.f32 %v209, %v8012
    %v8014 = vand.u32 %v8013, 4294901760
    %8015 = vmatpush1.msra.mxu0 %v8014
    %v8016 = vand.u32 %v196, 4294901760
    %v8017 = vsub.f32 %v196, %v8016
    %v8018 = vand.u32 %v8017, 4294901760
    %8019 = vmatprep.subr.mxu0 %v8018
    %v8020 = vand.u32 %v195, 4294901760
    %v8021 = vsub.f32 %v195, %v8020
    %v8022 = vand.u32 %v8021, 4294901760
    %8023 = vmatpush1.msra.mxu0 %v8022
    %v8024 = vand.u32 %v182, 4294901760
    %v8025 = vsub.f32 %v182, %v8024
    %v8026 = vand.u32 %v8025, 4294901760
    %8027 = vmatprep.subr.mxu0 %v8026
    %v8028 = vand.u32 %v181, 4294901760
    %v8029 = vsub.f32 %v181, %v8028
    %v8030 = vand.u32 %v8029, 4294901760
    %8031 = vmatpush1.msra.mxu0 %v8030
    %v8032 = vand.u32 %v168, 4294901760
    %v8033 = vsub.f32 %v168, %v8032
    %v8034 = vand.u32 %v8033, 4294901760
    %8035 = vmatprep.subr.mxu0 %v8034
    %v8036 = vand.u32 %v167, 4294901760
    %v8037 = vsub.f32 %v167, %v8036
    %v8038 = vand.u32 %v8037, 4294901760
    %8039 = vmatpush1.msra.mxu0 %v8038
    %v8040 = vand.u32 %v154, 4294901760
    %v8041 = vsub.f32 %v154, %v8040
    %v8042 = vand.u32 %v8041, 4294901760
    %8043 = vmatprep.subr.mxu0 %v8042
    %v8044 = vand.u32 %v153, 4294901760
    %v8045 = vsub.f32 %v153, %v8044
    %v8046 = vand.u32 %v8045, 4294901760
    %8047 = vmatpush1.msra.mxu0 %v8046
    %v8048 = vand.u32 %v140, 4294901760
    %v8049 = vsub.f32 %v140, %v8048
    %v8050 = vand.u32 %v8049, 4294901760
    %8051 = vmatprep.subr.mxu0 %v8050
    %v8052 = vand.u32 %v139, 4294901760
    %v8053 = vsub.f32 %v139, %v8052
    %v8054 = vand.u32 %v8053, 4294901760
    %8055 = vmatpush1.msra.mxu0 %v8054
    %v8056 = vand.u32 %v126, 4294901760
    %v8057 = vsub.f32 %v126, %v8056
    %v8058 = vand.u32 %v8057, 4294901760
    %8059 = vmatprep.subr.mxu0 %v8058
    %v8060 = vand.u32 %v125, 4294901760
    %v8061 = vsub.f32 %v125, %v8060
    %v8062 = vand.u32 %v8061, 4294901760
    %8063 = vmatpush1.msra.mxu0 %v8062
    %v8064 = vand.u32 %v112, 4294901760
    %v8065 = vsub.f32 %v112, %v8064
    %v8066 = vand.u32 %v8065, 4294901760
    %8067 = vmatprep.subr.mxu0 %v8066
    %v8068 = vand.u32 %v111, 4294901760
    %v8069 = vsub.f32 %v111, %v8068
    %v8070 = vand.u32 %v8069, 4294901760
    %8071 = vmatpush1.msra.mxu0 %v8070
    %v8072 = vand.u32 %v98, 4294901760
    %v8073 = vsub.f32 %v98, %v8072
    %v8074 = vand.u32 %v8073, 4294901760
    %8075 = vmatprep.subr.mxu0 %v8074
    %v8076 = vand.u32 %v97, 4294901760
    %v8077 = vsub.f32 %v97, %v8076
    %v8078 = vand.u32 %v8077, 4294901760
    %8079 = vmatpush1.msra.mxu0 %v8078
    %v8080 = vand.u32 %v84, 4294901760
    %v8081 = vsub.f32 %v84, %v8080
    %v8082 = vand.u32 %v8081, 4294901760
    %8083 = vmatprep.subr.mxu0 %v8082
    %v8084 = vand.u32 %v83, 4294901760
    %v8085 = vsub.f32 %v83, %v8084
    %v8086 = vand.u32 %v8085, 4294901760
    %8087 = vmatpush1.msra.mxu0 %v8086
    %v8088 = vand.u32 %v70, 4294901760
    %v8089 = vsub.f32 %v70, %v8088
    %v8090 = vand.u32 %v8089, 4294901760
    %8091 = vmatprep.subr.mxu0 %v8090
    %v8092 = vand.u32 %v69, 4294901760
    %v8093 = vsub.f32 %v69, %v8092
    %v8094 = vand.u32 %v8093, 4294901760
    %8095 = vmatpush1.msra.mxu0 %v8094
    %v8096 = vand.u32 %v56, 4294901760
    %v8097 = vsub.f32 %v56, %v8096
    %v8098 = vand.u32 %v8097, 4294901760
    %8099 = vmatprep.subr.mxu0 %v8098
    %v8100 = vand.u32 %v55, 4294901760
    %v8101 = vsub.f32 %v55, %v8100
    %v8102 = vand.u32 %v8101, 4294901760
    %8103 = vmatpush1.msra.mxu0 %v8102
    %v8104 = vand.u32 %v42, 4294901760
    %v8105 = vsub.f32 %v42, %v8104
    %v8106 = vand.u32 %v8105, 4294901760
    %8107 = vmatprep.subr.mxu0 %v8106
    %v8108 = vand.u32 %v41, 4294901760
    %v8109 = vsub.f32 %v41, %v8108
    %v8110 = vand.u32 %v8109, 4294901760
    %8111 = vmatpush1.msra.mxu0 %v8110
    %8112 = vmatprep.subr.mxu0 0.0
    %8113 = vmatpush2.msra.mxu0 0.0
    %8114 = vmatprep.subr.mxu0 0.0
    %8115 = vmatpush2.msra.mxu0 0.0
    %8116 = vmatprep.subr.mxu0 0.0
    %8117 = vmatpush2.msra.mxu0 0.0
    %8118 = vmatprep.subr.mxu0 0.0
    %8119 = vmatpush2.msra.mxu0 0.0
    %8120 = vmatprep.subr.mxu0 0.0
    %8121 = vmatpush2.msra.mxu0 0.0
    %8122 = vmatprep.subr.mxu0 0.0
    %8123 = vmatpush2.msra.mxu0 0.0
    %8124 = vmatprep.subr.mxu0 0.0
    %8125 = vmatpush2.msra.mxu0 0.0
    %8126 = vmatprep.subr.mxu0 0.0
    %8127 = vmatpush2.msra.mxu0 0.0
    %v8128 = vand.u32 %v364, 4294901760
    %v8129 = vsub.f32 %v364, %v8128
    %v8130 = vand.u32 %v8129, 4294901760
    %8131 = vmatprep.subr.mxu0 %v8130
    %v8132 = vand.u32 %v363, 4294901760
    %v8133 = vsub.f32 %v363, %v8132
    %v8134 = vand.u32 %v8133, 4294901760
    %8135 = vmatpush2.msra.mxu0 %v8134
    %v8136 = vand.u32 %v350, 4294901760
    %v8137 = vsub.f32 %v350, %v8136
    %v8138 = vand.u32 %v8137, 4294901760
    %8139 = vmatprep.subr.mxu0 %v8138
    %v8140 = vand.u32 %v349, 4294901760
    %v8141 = vsub.f32 %v349, %v8140
    %v8142 = vand.u32 %v8141, 4294901760
    %8143 = vmatpush2.msra.mxu0 %v8142
    %v8144 = vand.u32 %v336, 4294901760
    %v8145 = vsub.f32 %v336, %v8144
    %v8146 = vand.u32 %v8145, 4294901760
    %8147 = vmatprep.subr.mxu0 %v8146
    %v8148 = vand.u32 %v335, 4294901760
    %v8149 = vsub.f32 %v335, %v8148
    %v8150 = vand.u32 %v8149, 4294901760
    %8151 = vmatpush2.msra.mxu0 %v8150
    %v8152 = vand.u32 %v322, 4294901760
    %v8153 = vsub.f32 %v322, %v8152
    %v8154 = vand.u32 %v8153, 4294901760
    %8155 = vmatprep.subr.mxu0 %v8154
    %v8156 = vand.u32 %v321, 4294901760
    %v8157 = vsub.f32 %v321, %v8156
    %v8158 = vand.u32 %v8157, 4294901760
    %8159 = vmatpush2.msra.mxu0 %v8158
    %v8160 = vand.u32 %v308, 4294901760
    %v8161 = vsub.f32 %v308, %v8160
    %v8162 = vand.u32 %v8161, 4294901760
    %8163 = vmatprep.subr.mxu0 %v8162
    %v8164 = vand.u32 %v307, 4294901760
    %v8165 = vsub.f32 %v307, %v8164
    %v8166 = vand.u32 %v8165, 4294901760
    %8167 = vmatpush2.msra.mxu0 %v8166
    %v8168 = vand.u32 %v294, 4294901760
    %v8169 = vsub.f32 %v294, %v8168
    %v8170 = vand.u32 %v8169, 4294901760
    %8171 = vmatprep.subr.mxu0 %v8170
    %v8172 = vand.u32 %v293, 4294901760
    %v8173 = vsub.f32 %v293, %v8172
    %v8174 = vand.u32 %v8173, 4294901760
    %8175 = vmatpush2.msra.mxu0 %v8174
    %v8176 = vand.u32 %v280, 4294901760
    %v8177 = vsub.f32 %v280, %v8176
    %v8178 = vand.u32 %v8177, 4294901760
    %8179 = vmatprep.subr.mxu0 %v8178
    %v8180 = vand.u32 %v279, 4294901760
    %v8181 = vsub.f32 %v279, %v8180
    %v8182 = vand.u32 %v8181, 4294901760
    %8183 = vmatpush2.msra.mxu0 %v8182
    %v8184 = vand.u32 %v266, 4294901760
    %v8185 = vsub.f32 %v266, %v8184
    %v8186 = vand.u32 %v8185, 4294901760
    %8187 = vmatprep.subr.mxu0 %v8186
    %v8188 = vand.u32 %v265, 4294901760
    %v8189 = vsub.f32 %v265, %v8188
    %v8190 = vand.u32 %v8189, 4294901760
    %8191 = vmatpush2.msra.mxu0 %v8190
    %v8192 = vand.u32 %v367, 4294901760
    %8193 = vmatprep.mubr.f32.mxu0 %v8192
    %v8194 = vand.u32 %v25, 4294901760
    %8195 = vmatmul.mubr.f32.gmra.mxu0 %v8194
    %v8196 = vpop.f32.mrf.mxu0
    %v8197 = vadd.f32 %v7968, %v8196
    %v8198 = vpop.f32.mrf.mxu0
    %v8199 = vadd.f32 %v7970, %v8198
    %v8200 = vand.u32 %v370, 4294901760
    %8201 = vmatprep.mubr.f32.mxu0 %v8200
    %v8202 = vand.u32 %v27, 4294901760
    %8203 = vmatmul.mubr.f32.gmra.mxu0 %v8202
    %v8204 = vpop.f32.mrf.mxu0
    %v8205 = vadd.f32 %v7980, %v8204
    %v8206 = vpop.f32.mrf.mxu0
    %v8207 = vadd.f32 %v7982, %v8206
    %8208 = vdwg.mxu0
    %v8209 = vand.u32 %v252, 4294901760
    %8210 = vmatprep.subr.mxu0 %v8209
    %v8211 = vand.u32 %v251, 4294901760
    %8212 = vmatpush1.msra.mxu0 %v8211
    %v8213 = vand.u32 %v238, 4294901760
    %8214 = vmatprep.subr.mxu0 %v8213
    %v8215 = vand.u32 %v237, 4294901760
    %8216 = vmatpush1.msra.mxu0 %v8215
    %v8217 = vand.u32 %v224, 4294901760
    %8218 = vmatprep.subr.mxu0 %v8217
    %v8219 = vand.u32 %v223, 4294901760
    %8220 = vmatpush1.msra.mxu0 %v8219
    %v8221 = vand.u32 %v210, 4294901760
    %8222 = vmatprep.subr.mxu0 %v8221
    %v8223 = vand.u32 %v209, 4294901760
    %8224 = vmatpush1.msra.mxu0 %v8223
    %v8225 = vand.u32 %v196, 4294901760
    %8226 = vmatprep.subr.mxu0 %v8225
    %v8227 = vand.u32 %v195, 4294901760
    %8228 = vmatpush1.msra.mxu0 %v8227
    %v8229 = vand.u32 %v182, 4294901760
    %8230 = vmatprep.subr.mxu0 %v8229
    %v8231 = vand.u32 %v181, 4294901760
    %8232 = vmatpush1.msra.mxu0 %v8231
    %v8233 = vand.u32 %v168, 4294901760
    %8234 = vmatprep.subr.mxu0 %v8233
    %v8235 = vand.u32 %v167, 4294901760
    %8236 = vmatpush1.msra.mxu0 %v8235
    %v8237 = vand.u32 %v154, 4294901760
    %8238 = vmatprep.subr.mxu0 %v8237
    %v8239 = vand.u32 %v153, 4294901760
    %8240 = vmatpush1.msra.mxu0 %v8239
    %v8241 = vand.u32 %v140, 4294901760
    %8242 = vmatprep.subr.mxu0 %v8241
    %v8243 = vand.u32 %v139, 4294901760
    %8244 = vmatpush1.msra.mxu0 %v8243
    %v8245 = vand.u32 %v126, 4294901760
    %8246 = vmatprep.subr.mxu0 %v8245
    %v8247 = vand.u32 %v125, 4294901760
    %8248 = vmatpush1.msra.mxu0 %v8247
    %v8249 = vand.u32 %v112, 4294901760
    %8250 = vmatprep.subr.mxu0 %v8249
    %v8251 = vand.u32 %v111, 4294901760
    %8252 = vmatpush1.msra.mxu0 %v8251
    %v8253 = vand.u32 %v98, 4294901760
    %8254 = vmatprep.subr.mxu0 %v8253
    %v8255 = vand.u32 %v97, 4294901760
    %8256 = vmatpush1.msra.mxu0 %v8255
    %v8257 = vand.u32 %v84, 4294901760
    %8258 = vmatprep.subr.mxu0 %v8257
    %v8259 = vand.u32 %v83, 4294901760
    %8260 = vmatpush1.msra.mxu0 %v8259
    %v8261 = vand.u32 %v70, 4294901760
    %8262 = vmatprep.subr.mxu0 %v8261
    %v8263 = vand.u32 %v69, 4294901760
    %8264 = vmatpush1.msra.mxu0 %v8263
    %v8265 = vand.u32 %v56, 4294901760
    %8266 = vmatprep.subr.mxu0 %v8265
    %v8267 = vand.u32 %v55, 4294901760
    %8268 = vmatpush1.msra.mxu0 %v8267
    %v8269 = vand.u32 %v42, 4294901760
    %8270 = vmatprep.subr.mxu0 %v8269
    %v8271 = vand.u32 %v41, 4294901760
    %8272 = vmatpush1.msra.mxu0 %v8271
    %8273 = vmatprep.subr.mxu0 0.0
    %8274 = vmatpush2.msra.mxu0 0.0
    %8275 = vmatprep.subr.mxu0 0.0
    %8276 = vmatpush2.msra.mxu0 0.0
    %8277 = vmatprep.subr.mxu0 0.0
    %8278 = vmatpush2.msra.mxu0 0.0
    %8279 = vmatprep.subr.mxu0 0.0
    %8280 = vmatpush2.msra.mxu0 0.0
    %8281 = vmatprep.subr.mxu0 0.0
    %8282 = vmatpush2.msra.mxu0 0.0
    %8283 = vmatprep.subr.mxu0 0.0
    %8284 = vmatpush2.msra.mxu0 0.0
    %8285 = vmatprep.subr.mxu0 0.0
    %8286 = vmatpush2.msra.mxu0 0.0
    %8287 = vmatprep.subr.mxu0 0.0
    %8288 = vmatpush2.msra.mxu0 0.0
    %v8289 = vand.u32 %v364, 4294901760
    %8290 = vmatprep.subr.mxu0 %v8289
    %v8291 = vand.u32 %v363, 4294901760
    %8292 = vmatpush2.msra.mxu0 %v8291
    %v8293 = vand.u32 %v350, 4294901760
    %8294 = vmatprep.subr.mxu0 %v8293
    %v8295 = vand.u32 %v349, 4294901760
    %8296 = vmatpush2.msra.mxu0 %v8295
    %v8297 = vand.u32 %v336, 4294901760
    %8298 = vmatprep.subr.mxu0 %v8297
    %v8299 = vand.u32 %v335, 4294901760
    %8300 = vmatpush2.msra.mxu0 %v8299
    %v8301 = vand.u32 %v322, 4294901760
    %8302 = vmatprep.subr.mxu0 %v8301
    %v8303 = vand.u32 %v321, 4294901760
    %8304 = vmatpush2.msra.mxu0 %v8303
    %v8305 = vand.u32 %v308, 4294901760
    %8306 = vmatprep.subr.mxu0 %v8305
    %v8307 = vand.u32 %v307, 4294901760
    %8308 = vmatpush2.msra.mxu0 %v8307
    %v8309 = vand.u32 %v294, 4294901760
    %8310 = vmatprep.subr.mxu0 %v8309
    %v8311 = vand.u32 %v293, 4294901760
    %8312 = vmatpush2.msra.mxu0 %v8311
    %v8313 = vand.u32 %v280, 4294901760
    %8314 = vmatprep.subr.mxu0 %v8313
    %v8315 = vand.u32 %v279, 4294901760
    %8316 = vmatpush2.msra.mxu0 %v8315
    %v8317 = vand.u32 %v266, 4294901760
    %8318 = vmatprep.subr.mxu0 %v8317
    %v8319 = vand.u32 %v265, 4294901760
    %8320 = vmatpush2.msra.mxu0 %v8319
    %v8321 = vand.u32 %v367, 4294901760
    %8322 = vmatprep.mubr.f32.mxu0 %v8321
    %v8323 = vand.u32 %v25, 4294901760
    %8324 = vmatmul.mubr.f32.gmra.mxu0 %v8323
    %v8325 = vpop.f32.mrf.mxu0
    %v8326 = vadd.f32 %v8197, %v8325
    %v8327 = vpop.f32.mrf.mxu0
    %v8328 = vadd.f32 %v8199, %v8327
    %v8329 = vand.u32 %v370, 4294901760
    %8330 = vmatprep.mubr.f32.mxu0 %v8329
    %v8331 = vand.u32 %v27, 4294901760
    %8332 = vmatmul.mubr.f32.gmra.mxu0 %v8331
    %v8333 = vpop.f32.mrf.mxu0
    %v8334 = vadd.f32 %v8205, %v8333
    %v8335 = vpop.f32.mrf.mxu0
    %v8336 = vadd.f32 %v8207, %v8335
    %8337 = vdwg.mxu0
    %8338 = vst [vmem:[%s2] sm:$0xff] %v1498
    %8339 = vst [vmem:[%s2 + $0x8] sm:$0xff] %v1500
    %8340 = vst [vmem:[%s2 + $0x10] sm:$0xff] %v2636
    %8341 = vst [vmem:[%s2 + $0x18] sm:$0xff] %v2638
    %8342 = vst [vmem:[%s2 + $0x20] sm:$0xff] %v3774
    %8343 = vst [vmem:[%s2 + $0x28] sm:$0xff] %v3776
    %8344 = vst [vmem:[%s2 + $0x30] sm:$0xff] %v4912
    %8345 = vst [vmem:[%s2 + $0x38] sm:$0xff] %v4914
    %8346 = vst [vmem:[%s2 + $0x40] sm:$0xff] %v6050
    %8347 = vst [vmem:[%s2 + $0x48] sm:$0xff] %v6052
    %8348 = vst [vmem:[%s2 + $0x50] sm:$0xff] %v7188
    %8349 = vst [vmem:[%s2 + $0x58] sm:$0xff] %v7190
    %8350 = vst [vmem:[%s2 + $0x60] sm:$0xff] %v8326
    %8351 = vst.msk [vmem:[%s2 + $0x68] sm:$0xff] %vm365, %v8328
    %8352 = vst [vmem:[%s2 + $0x70] sm:$0xff] %v1506
    %8353 = vst [vmem:[%s2 + $0x78] sm:$0xff] %v1508
    %8354 = vst [vmem:[%s2 + $0x80] sm:$0xff] %v2644
    %8355 = vst [vmem:[%s2 + $0x88] sm:$0xff] %v2646
    %8356 = vst [vmem:[%s2 + $0x90] sm:$0xff] %v3782
    %8357 = vst [vmem:[%s2 + $0x98] sm:$0xff] %v3784
    %8358 = vst [vmem:[%s2 + $0xa0] sm:$0xff] %v4920
    %8359 = vst [vmem:[%s2 + $0xa8] sm:$0xff] %v4922
    %8360 = vst [vmem:[%s2 + $0xb0] sm:$0xff] %v6058
    %8361 = vst [vmem:[%s2 + $0xb8] sm:$0xff] %v6060
    %8362 = vst [vmem:[%s2 + $0xc0] sm:$0xff] %v7196
    %8363 = vst [vmem:[%s2 + $0xc8] sm:$0xff] %v7198
    %8364 = vst [vmem:[%s2 + $0xd0] sm:$0xff] %v8334
    %8365 = vst.msk [vmem:[%s2 + $0xd8] sm:$0xff] %vm365, %v8336
    // Predicated region
    $region14: #{connect_four_features.1} parent=1 // pred_check
      _
    $region15: #{connect_four_features.1} parent=1 // pred_check_branch
      %8367 = sbr.rel (0) target = $region17
    $region16: #{connect_four_features.1} parent=1 // pred_region
      _
    $region17: #{connect_four_features.1} parent=1 // pred_fallthru
      _
    // Predicated region
    $region18: #{connect_four_features.1} parent=1 // pred_check
      _
    $region19: #{connect_four_features.1} parent=1 // pred_check_branch
      %8369 = sbr.rel (0) target = $region21
    $region20: #{connect_four_features.1} parent=1 // pred_region
      _
    $region21: #{connect_four_features.1} parent=1 // pred_fallthru
      _
    %8370 = vsyncpa [#allocation3], 1

</llo_original>
